<compile_context>
chip_gen: v7x
topology: tpu7x:2x2x1
jax: 0.10.0
libtpu: 0.0.40
codegen_flags: <defaults>
</compile_context>

<pallas_src>
from functools import partial

import jax
import jax.numpy as jnp
from jax.experimental import pallas as pl
from jax.experimental.pallas import tpu as pltpu


C8 = 8      # channel rows padded to one f32 sublane tile
PAD = 128   # lane halo in the shift buffer (> max |tap shift| = 73, 128-aligned)


# -----------------------------------------------------------------------------
# One-time host-side packing (hoisted out of the per-call jit).
# -----------------------------------------------------------------------------
def pack_params(params, N, D, H, W):
    Cin = params["wt"].shape[0]
    Co_up = Cin // 2
    Cout = params["w1"].shape[0]
    D2, H2, W2 = 2 * D, 2 * H, 2 * W
    HW = H2 * W2
    M = N * D2 * H2 * W2
    assert Cin <= C8 and Cout <= C8 and 2 * Co_up <= C8
    assert HW + W2 + 1 <= PAD          # halo covers the max 3x3x3 tap shift

    # ConvTranspose3d weights (Cin, Co_up, 2,2,2) -> two stacked (4*C8, C8) LHS
    # blocks; tap t = 4a+2b+c sits in rows [(t%4)*C8 :) of block t//4, placed on
    # the "up" rows of the concatenated activation.
    wt_p = jnp.transpose(params["wt"], (2, 3, 4, 1, 0)).reshape(8, Co_up, Cin)
    wt8 = jnp.zeros((8, C8, C8), jnp.float32).at[:, Co_up:2 * Co_up, :Cin].set(wt_p)
    wt_stack = wt8.reshape(2, 4 * C8, C8)

    # Conv3d weights (co, ci, 3,3,3) -> (C8, 27*C8); column block t*C8+ci
    # corresponds to tap t = kd*9 + kh*3 + kw, input channel ci.
    def pack_conv(w):
        co, ci = w.shape[0], w.shape[1]
        wp = jnp.transpose(w, (2, 3, 4, 0, 1)).reshape(27, co, ci)
        wz = jnp.zeros((27, C8, C8), jnp.float32).at[:, :co, :ci].set(wp)
        return jnp.transpose(wz, (1, 0, 2)).reshape(C8, 27 * C8)

    w1f = pack_conv(params["w1"])
    w2f = pack_conv(params["w2"])

    # per-channel vectors as columns of one (8, 8) table:
    #   col 0: convT bias (on the "up" rows of cat)
    #   cols 1-3: conv1 bias / BN1 gamma / BN1 beta ; cols 4-6: conv2 ...
    vec = jnp.zeros((C8, 8), jnp.float32)
    vec = vec.at[Co_up:2 * Co_up, 0].set(params["bt"])
    vec = vec.at[:Cout, 1].set(params["b1"])
    vec = vec.at[:Cout, 2].set(params["g1"])
    vec = vec.at[:Cout, 3].set(params["be1"])
    vec = vec.at[:Cout, 4].set(params["b2"])
    vec = vec.at[:Cout, 5].set(params["g2"])
    vec = vec.at[:Cout, 6].set(params["be2"])

    # Shape-only 0/1 masks (f32), hoisted out of the kernel:
    #   cmask[t]: 3x3x3 boundary validity of tap t on the fine grid (also blocks
    #             cross-batch leakage through the flat lane index).
    #   pmask[t]: ConvTranspose parity selector, t = 4*(d%2) + 2*(h%2) + (w%2).
    lane = jnp.arange(M, dtype=jnp.int32)
    w_i = lane % W2
    h_i = (lane // W2) % H2
    d_i = (lane // HW) % D2
    crow = []
    for dd in (-1, 0, 1):
        okd = ((d_i + dd) >= 0) & ((d_i + dd) < D2)
        for dh in (-1, 0, 1):
            okh = ((h_i + dh) >= 0) & ((h_i + dh) < H2)
            for dw in (-1, 0, 1):
                okw = ((w_i + dw) >= 0) & ((w_i + dw) < W2)
                crow.append((okd & okh & okw).astype(jnp.float32))
    cmask = jnp.stack(crow, axis=0)                               # (27, M)
    prow = []
    for t in range(8):
        a, b, c = (t >> 2) & 1, (t >> 1) & 1, t & 1
        prow.append(((d_i % 2 == a) & (h_i % 2 == b) & (w_i % 2 == c))
                    .astype(jnp.float32))
    pmask = jnp.stack(prow, axis=0)                               # (8, M)

    return dict(wt_stack=wt_stack, w1f=w1f, w2f=w2f, vec=vec,
                cmask=cmask, pmask=pmask)


# -----------------------------------------------------------------------------
# Fused forward pass.
# -----------------------------------------------------------------------------
@partial(jax.jit, static_argnames=("cout",))
def up_forward(x1, x2, packed, *, cout):
    """x1: (N, Cin, D, H, W), x2: (N, Cin//2, 2D, 2H, 2W) -> (N, cout, 2D, 2H, 2W)."""
    N, Cin, D, H, W = x1.shape
    Co_up = Cin // 2
    D2, H2, W2 = 2 * D, 2 * H, 2 * W
    HW = H2 * W2
    S = D2 * H2 * W2
    M = N * S                      # 1024 lane-dense internal layout
    eps = 1e-5
    assert M % 128 == 0

    # nearest-replicated upsample of x1 on the fine grid, (C8, M) lane-dense:
    #   x1e[ci, m] = x1[n, ci, d//2, h//2, w//2],  m = ((n*D2 + d)*H2 + h)*W2 + w
    x1_cf = jnp.transpose(x1, (1, 0, 2, 3, 4))
    x1e = jnp.broadcast_to(x1_cf[:, :, :, None, :, None, :, None],
                           (Cin, N, D, 2, H, 2, W, 2)).reshape(Cin, M)
    x1e = jnp.zeros((C8, M), jnp.float32).at[:Cin, :].set(x1e)

    # x2 in (C, M) layout; cat channel order is [x2 channels, upsampled channels]
    x2_cm = jnp.transpose(x2, (1, 0, 2, 3, 4)).reshape(Co_up, M)
    x2p = jnp.zeros((C8, M), jnp.float32).at[:Co_up, :].set(x2_cm)

    # tap lane shifts, t = (dd+1)*9 + (dh+1)*3 + (dw+1)
    shifts = [dd * HW + dh * W2 + dw
              for dd in (-1, 0, 1) for dh in (-1, 0, 1) for dw in (-1, 0, 1)]

    def kernel(x1e_ref, x2_ref, wts_ref, w1_ref, w2_ref, vec_ref, cm_ref, pm_ref,
               o_ref, xsh_ref, col_ref):
        # zero the halo regions of the shift buffer once (payload rewritten per conv)
        xsh_ref[:, :PAD] = jnp.zeros((C8, PAD), jnp.float32)
        xsh_ref[:, PAD + M:] = jnp.zeros((C8, PAD), jnp.float32)

        # ---- ConvTranspose3d(k=2, s=2) + channel concat, in (C, M) layout ----
        # two stacked (32, 8) weight blocks -> 2 matmuls instead of 8; each tap's
        # (8, M) sublane slab is parity-selected with a precomputed 0/1 mask row.
        x1e = x1e_ref[...]
        cat = x2_ref[...] + vec_ref[:, 0:1]        # x2 rows + (bt on the up rows)
        for half in range(2):
            blk = jnp.dot(wts_ref[half], x1e,
                          preferred_element_type=jnp.float32)         # (32, M)
            for j in range(4):
                t = half * 4 + j
                cat = cat + blk[j * C8:(j + 1) * C8, :] * pm_ref[t:t + 1, :]

        # ---- Conv3d(3x3x3, pad=1) + BatchNorm(training stats) + ReLU --------
        # im2col staged once per conv into a (216, M) VMEM block, then a single
        # 216-deep MXU contraction (1 pass on v6e/v7x, 2 on v5e).
        def conv_bn_relu(x, w_ref, bias, gamma, beta):
            xsh_ref[:, PAD:PAD + M] = x            # stage inside the halo buffer
            for t, s in enumerate(shifts):
                if s == 0:                         # center tap: no shift, no mask
                    col_ref[t * C8:(t + 1) * C8, :] = x
                else:
                    col_ref[t * C8:(t + 1) * C8, :] = (
                        xsh_ref[:, PAD + s:PAD + s + M] * cm_ref[t:t + 1, :])
            acc = jnp.dot(w_ref[...], col_ref[...],
                          preferred_element_type=jnp.float32) + bias   # (C8, M)
            # BatchNorm3d training statistics (biased variance), two-pass
            mean = jnp.sum(acc, axis=1, keepdims=True) * (1.0 / M)
            cen = acc - mean
            var = jnp.sum(cen * cen, axis=1, keepdims=True) * (1.0 / M)
            y = cen * (gamma * jax.lax.rsqrt(var + eps)) + beta
            return jnp.maximum(y, 0.0)

        h1 = conv_bn_relu(cat, w1_ref, vec_ref[:, 1:2], vec_ref[:, 2:3], vec_ref[:, 3:4])
        h2 = conv_bn_relu(h1, w2_ref, vec_ref[:, 4:5], vec_ref[:, 5:6], vec_ref[:, 6:7])

        # ---- single full-tile, lane/sublane-dense store ----------------------
        o_ref[...] = h2

    vmem = pl.BlockSpec(memory_space=pltpu.MemorySpace.VMEM)
    res = pl.pallas_call(
        kernel,
        out_shape=jax.ShapeDtypeStruct((C8, M), jnp.float32),
        in_specs=[vmem] * 8,
        out_specs=vmem,
        scratch_shapes=[
            pltpu.VMEM((C8, M + 2 * PAD), jnp.float32),   # zero-haloed shift buffer
            pltpu.VMEM((27 * C8, M), jnp.float32),        # im2col staging block
        ],
        # total VMEM ~1.2 MiB: far under the scoped default on every generation,
        # so no vmem_limit override and no grid/pipelining needed.
    )(x1e, x2p, packed["wt_stack"], packed["w1f"], packed["w2f"],
      packed["vec"], packed["cmask"], packed["pmask"])

    # tiny (~32 KiB) row-slice + N/C transpose done in the XLA wrapper so the
    # in-kernel store stays a single unmasked (8, 1024) tile.
    out = res[:cout].reshape(cout, N, D2, H2, W2)
    return jnp.transpose(out, (1, 0, 2, 3, 4))


# ------------------------------------- main -------------------------------------

if __name__ == "__main__":
    key = jax.random.PRNGKey(0)
    N = 2
    in_ch, out_ch = 4, 4
    D = H = W = 4
    k_up = 2

    ks = jax.random.split(key, 8)
    x1 = jax.random.normal(ks[0], (N, in_ch, D, H, W), jnp.float32)
    x2 = jax.random.normal(ks[1], (N, in_ch // 2, 2 * D, 2 * H, 2 * W), jnp.float32)

    def uni(k, shape, fan_in):
        s = 1.0 / jnp.sqrt(float(fan_in))
        return jax.random.uniform(k, shape, jnp.float32, -s, s)

    params = dict(
        # ConvTranspose3d(in_ch, in_ch//2, k=2, stride=2)
        wt=uni(ks[2], (in_ch, in_ch // 2, k_up, k_up, k_up), in_ch * k_up ** 3),
        bt=uni(ks[3], (in_ch // 2,), in_ch * k_up ** 3),
        # DoubleConv(in_ch -> out_ch -> out_ch), kernel 3, padding 1
        w1=uni(ks[4], (out_ch, in_ch, 3, 3, 3), in_ch * 27),
        b1=uni(ks[5], (out_ch,), in_ch * 27),
        w2=uni(ks[6], (out_ch, out_ch, 3, 3, 3), out_ch * 27),
        b2=uni(ks[7], (out_ch,), out_ch * 27),
        # BatchNorm3d defaults: weight=1, bias=0 (training-mode batch statistics)
        g1=jnp.ones((out_ch,), jnp.float32),
        be1=jnp.zeros((out_ch,), jnp.float32),
        g2=jnp.ones((out_ch,), jnp.float32),
        be2=jnp.zeros((out_ch,), jnp.float32),
    )

    packed = pack_params(params, N, D, H, W)          # one-time packing, outside jit

    out = up_forward(x1, x2, packed, cout=out_ch)
    out = jax.block_until_ready(out)

    assert out.shape == (N, out_ch, 2 * D, 2 * H, 2 * W), out.shape
    assert bool(jnp.all(jnp.isfinite(out)))
    print("KERNEL_OK")
</pallas_src>

<mosaic_0001>
module attributes {stable_mosaic.version = 11 : i64} {
  func.func @kernel(%arg0: memref<8x1024xf32, #tpu.memory_space<vmem>>, %arg1: memref<8x1024xf32, #tpu.memory_space<vmem>>, %arg2: memref<2x32x8xf32, #tpu.memory_space<vmem>>, %arg3: memref<8x216xf32, #tpu.memory_space<vmem>>, %arg4: memref<8x216xf32, #tpu.memory_space<vmem>>, %arg5: memref<8x8xf32, #tpu.memory_space<vmem>>, %arg6: memref<27x1024xf32, #tpu.memory_space<vmem>>, %arg7: memref<8x1024xf32, #tpu.memory_space<vmem>>, %arg8: memref<8x1024xf32, #tpu.memory_space<vmem>>, %arg9: memref<8x1280xf32, #tpu.memory_space<vmem>>, %arg10: memref<216x1024xf32, #tpu.memory_space<vmem>>) attributes {dimension_semantics = [], scalar_prefetch = 0 : i64, scratch_operands = 2 : i64, tpu.core_type = #tpu.core_type<tc>} {
    %cst = arith.constant 0.000000e+00 : f32
    %0 = vector.broadcast %cst : f32 to vector<8x128xf32>
    %c0 = arith.constant 0 : index
    %c0_0 = arith.constant 0 : index
    %1 = vector.load %arg9[%c0, %c0_0] : memref<8x1280xf32, #tpu.memory_space<vmem>>, vector<8x128xf32>
    tpu.vector_store %arg9[%c0, %c0_0], %0 {strides = array<i32>} : memref<8x1280xf32, #tpu.memory_space<vmem>>, vector<8x128xf32>,
    %cst_1 = arith.constant 0.000000e+00 : f32
    %2 = vector.broadcast %cst_1 : f32 to vector<8x128xf32>
    %c0_2 = arith.constant 0 : index
    %c1152 = arith.constant 1152 : index
    %3 = vector.load %arg9[%c0_2, %c1152] : memref<8x1280xf32, #tpu.memory_space<vmem>>, vector<8x128xf32>
    tpu.vector_store %arg9[%c0_2, %c1152], %2 {strides = array<i32>} : memref<8x1280xf32, #tpu.memory_space<vmem>>, vector<8x128xf32>,
    %c0_3 = arith.constant 0 : index
    %c0_4 = arith.constant 0 : index
    %4 = vector.load %arg0[%c0_3, %c0_4] : memref<8x1024xf32, #tpu.memory_space<vmem>>, vector<8x1024xf32>
    %c0_5 = arith.constant 0 : index
    %c0_6 = arith.constant 0 : index
    %5 = vector.load %arg1[%c0_5, %c0_6] : memref<8x1024xf32, #tpu.memory_space<vmem>>, vector<8x1024xf32>
    %c0_7 = arith.constant 0 : index
    %c0_8 = arith.constant 0 : index
    %6 = vector.load %arg5[%c0_7, %c0_8] : memref<8x8xf32, #tpu.memory_space<vmem>>, vector<8x1xf32>
    %7 = vector.broadcast %6 : vector<8x1xf32> to vector<8x1024xf32>
    %8 = arith.addf %5, %7 : vector<8x1024xf32>
    %c0_9 = arith.constant 0 : index
    %c0_10 = arith.constant 0 : index
    %c0_11 = arith.constant 0 : index
    %9 = vector.load %arg2[%c0_9, %c0_10, %c0_11] : memref<2x32x8xf32, #tpu.memory_space<vmem>>, vector<1x32x8xf32>
    %10 = vector.shape_cast %9 : vector<1x32x8xf32> to vector<32x8xf32>
    %cst_12 = arith.constant dense<0.000000e+00> : vector<32x1024xf32>
    %11 = tpu.matmul %10, %4, %cst_12 {dimension_numbers = #tpu.dot_dimension_numbers<[1], [0], [0], [1], [0, 0, 1, 1], [], []>} : vector<32x8xf32>, vector<8x1024xf32>, vector<32x1024xf32> -> vector<32x1024xf32>
    %12 = vector.extract_strided_slice %11 {offsets = [0, 0], sizes = [8, 1024], strides = [1, 1]} : vector<32x1024xf32> to vector<8x1024xf32>
    %c0_13 = arith.constant 0 : index
    %c0_14 = arith.constant 0 : index
    %13 = vector.load %arg7[%c0_13, %c0_14] : memref<8x1024xf32, #tpu.memory_space<vmem>>, vector<1x1024xf32>
    %14 = vector.broadcast %13 : vector<1x1024xf32> to vector<8x1024xf32>
    %15 = arith.mulf %12, %14 : vector<8x1024xf32>
    %16 = arith.addf %8, %15 : vector<8x1024xf32>
    %17 = vector.extract_strided_slice %11 {offsets = [8, 0], sizes = [8, 1024], strides = [1, 1]} : vector<32x1024xf32> to vector<8x1024xf32>
    %c1 = arith.constant 1 : index
    %c0_15 = arith.constant 0 : index
    %18 = vector.load %arg7[%c1, %c0_15] : memref<8x1024xf32, #tpu.memory_space<vmem>>, vector<1x1024xf32>
    %19 = vector.broadcast %18 : vector<1x1024xf32> to vector<8x1024xf32>
    %20 = arith.mulf %17, %19 : vector<8x1024xf32>
    %21 = arith.addf %16, %20 : vector<8x1024xf32>
    %22 = vector.extract_strided_slice %11 {offsets = [16, 0], sizes = [8, 1024], strides = [1, 1]} : vector<32x1024xf32> to vector<8x1024xf32>
    %c2 = arith.constant 2 : index
    %c0_16 = arith.constant 0 : index
    %23 = vector.load %arg7[%c2, %c0_16] : memref<8x1024xf32, #tpu.memory_space<vmem>>, vector<1x1024xf32>
    %24 = vector.broadcast %23 : vector<1x1024xf32> to vector<8x1024xf32>
    %25 = arith.mulf %22, %24 : vector<8x1024xf32>
    %26 = arith.addf %21, %25 : vector<8x1024xf32>
    %27 = vector.extract_strided_slice %11 {offsets = [24, 0], sizes = [8, 1024], strides = [1, 1]} : vector<32x1024xf32> to vector<8x1024xf32>
    %c3 = arith.constant 3 : index
    %c0_17 = arith.constant 0 : index
    %28 = vector.load %arg7[%c3, %c0_17] : memref<8x1024xf32, #tpu.memory_space<vmem>>, vector<1x1024xf32>
    %29 = vector.broadcast %28 : vector<1x1024xf32> to vector<8x1024xf32>
    %30 = arith.mulf %27, %29 : vector<8x1024xf32>
    %31 = arith.addf %26, %30 : vector<8x1024xf32>
    %c1_18 = arith.constant 1 : index
    %c0_19 = arith.constant 0 : index
    %c0_20 = arith.constant 0 : index
    %32 = vector.load %arg2[%c1_18, %c0_19, %c0_20] : memref<2x32x8xf32, #tpu.memory_space<vmem>>, vector<1x32x8xf32>
    %33 = vector.shape_cast %32 : vector<1x32x8xf32> to vector<32x8xf32>
    %cst_21 = arith.constant dense<0.000000e+00> : vector<32x1024xf32>
    %34 = tpu.matmul %33, %4, %cst_21 {dimension_numbers = #tpu.dot_dimension_numbers<[1], [0], [0], [1], [0, 0, 1, 1], [], []>} : vector<32x8xf32>, vector<8x1024xf32>, vector<32x1024xf32> -> vector<32x1024xf32>
    %35 = vector.extract_strided_slice %34 {offsets = [0, 0], sizes = [8, 1024], strides = [1, 1]} : vector<32x1024xf32> to vector<8x1024xf32>
    %c4 = arith.constant 4 : index
    %c0_22 = arith.constant 0 : index
    %36 = vector.load %arg7[%c4, %c0_22] : memref<8x1024xf32, #tpu.memory_space<vmem>>, vector<1x1024xf32>
    %37 = vector.broadcast %36 : vector<1x1024xf32> to vector<8x1024xf32>
    %38 = arith.mulf %35, %37 : vector<8x1024xf32>
    %39 = arith.addf %31, %38 : vector<8x1024xf32>
    %40 = vector.extract_strided_slice %34 {offsets = [8, 0], sizes = [8, 1024], strides = [1, 1]} : vector<32x1024xf32> to vector<8x1024xf32>
    %c5 = arith.constant 5 : index
    %c0_23 = arith.constant 0 : index
    %41 = vector.load %arg7[%c5, %c0_23] : memref<8x1024xf32, #tpu.memory_space<vmem>>, vector<1x1024xf32>
    %42 = vector.broadcast %41 : vector<1x1024xf32> to vector<8x1024xf32>
    %43 = arith.mulf %40, %42 : vector<8x1024xf32>
    %44 = arith.addf %39, %43 : vector<8x1024xf32>
    %45 = vector.extract_strided_slice %34 {offsets = [16, 0], sizes = [8, 1024], strides = [1, 1]} : vector<32x1024xf32> to vector<8x1024xf32>
    %c6 = arith.constant 6 : index
    %c0_24 = arith.constant 0 : index
    %46 = vector.load %arg7[%c6, %c0_24] : memref<8x1024xf32, #tpu.memory_space<vmem>>, vector<1x1024xf32>
    %47 = vector.broadcast %46 : vector<1x1024xf32> to vector<8x1024xf32>
    %48 = arith.mulf %45, %47 : vector<8x1024xf32>
    %49 = arith.addf %44, %48 : vector<8x1024xf32>
    %50 = vector.extract_strided_slice %34 {offsets = [24, 0], sizes = [8, 1024], strides = [1, 1]} : vector<32x1024xf32> to vector<8x1024xf32>
    %c7 = arith.constant 7 : index
    %c0_25 = arith.constant 0 : index
    %51 = vector.load %arg7[%c7, %c0_25] : memref<8x1024xf32, #tpu.memory_space<vmem>>, vector<1x1024xf32>
    %52 = vector.broadcast %51 : vector<1x1024xf32> to vector<8x1024xf32>
    %53 = arith.mulf %50, %52 : vector<8x1024xf32>
    %54 = arith.addf %49, %53 : vector<8x1024xf32>
    %c0_26 = arith.constant 0 : index
    %c1_27 = arith.constant 1 : index
    %55 = vector.load %arg5[%c0_26, %c1_27] : memref<8x8xf32, #tpu.memory_space<vmem>>, vector<8x1xf32>
    %c0_28 = arith.constant 0 : index
    %c2_29 = arith.constant 2 : index
    %56 = vector.load %arg5[%c0_28, %c2_29] : memref<8x8xf32, #tpu.memory_space<vmem>>, vector<8x1xf32>
    %c0_30 = arith.constant 0 : index
    %c3_31 = arith.constant 3 : index
    %57 = vector.load %arg5[%c0_30, %c3_31] : memref<8x8xf32, #tpu.memory_space<vmem>>, vector<8x1xf32>
    %c0_32 = arith.constant 0 : index
    %c128 = arith.constant 128 : index
    %58 = vector.load %arg9[%c0_32, %c128] : memref<8x1280xf32, #tpu.memory_space<vmem>>, vector<8x1024xf32>
    tpu.vector_store %arg9[%c0_32, %c128], %54 {strides = array<i32>} : memref<8x1280xf32, #tpu.memory_space<vmem>>, vector<8x1024xf32>,
    %c0_33 = arith.constant 0 : index
    %c55 = arith.constant 55 : index
    %59 = vector.load %arg9[%c0_33, %c55] : memref<8x1280xf32, #tpu.memory_space<vmem>>, vector<8x1024xf32>
    %c0_34 = arith.constant 0 : index
    %c0_35 = arith.constant 0 : index
    %60 = vector.load %arg6[%c0_34, %c0_35] : memref<27x1024xf32, #tpu.memory_space<vmem>>, vector<1x1024xf32>
    %61 = vector.broadcast %60 : vector<1x1024xf32> to vector<8x1024xf32>
    %62 = arith.mulf %59, %61 : vector<8x1024xf32>
    %c0_36 = arith.constant 0 : index
    %c0_37 = arith.constant 0 : index
    %63 = vector.load %arg10[%c0_36, %c0_37] : memref<216x1024xf32, #tpu.memory_space<vmem>>, vector<8x1024xf32>
    tpu.vector_store %arg10[%c0_36, %c0_37], %62 {strides = array<i32>} : memref<216x1024xf32, #tpu.memory_space<vmem>>, vector<8x1024xf32>,
    %c0_38 = arith.constant 0 : index
    %c56 = arith.constant 56 : index
    %64 = vector.load %arg9[%c0_38, %c56] : memref<8x1280xf32, #tpu.memory_space<vmem>>, vector<8x1024xf32>
    %c1_39 = arith.constant 1 : index
    %c0_40 = arith.constant 0 : index
    %65 = vector.load %arg6[%c1_39, %c0_40] : memref<27x1024xf32, #tpu.memory_space<vmem>>, vector<1x1024xf32>
    %66 = vector.broadcast %65 : vector<1x1024xf32> to vector<8x1024xf32>
    %67 = arith.mulf %64, %66 : vector<8x1024xf32>
    %c8 = arith.constant 8 : index
    %c0_41 = arith.constant 0 : index
    %68 = vector.load %arg10[%c8, %c0_41] : memref<216x1024xf32, #tpu.memory_space<vmem>>, vector<8x1024xf32>
    tpu.vector_store %arg10[%c8, %c0_41], %67 {strides = array<i32>} : memref<216x1024xf32, #tpu.memory_space<vmem>>, vector<8x1024xf32>,
    %c0_42 = arith.constant 0 : index
    %c57 = arith.constant 57 : index
    %69 = vector.load %arg9[%c0_42, %c57] : memref<8x1280xf32, #tpu.memory_space<vmem>>, vector<8x1024xf32>
    %c2_43 = arith.constant 2 : index
    %c0_44 = arith.constant 0 : index
    %70 = vector.load %arg6[%c2_43, %c0_44] : memref<27x1024xf32, #tpu.memory_space<vmem>>, vector<1x1024xf32>
    %71 = vector.broadcast %70 : vector<1x1024xf32> to vector<8x1024xf32>
    %72 = arith.mulf %69, %71 : vector<8x1024xf32>
    %c16 = arith.constant 16 : index
    %c0_45 = arith.constant 0 : index
    %73 = vector.load %arg10[%c16, %c0_45] : memref<216x1024xf32, #tpu.memory_space<vmem>>, vector<8x1024xf32>
    tpu.vector_store %arg10[%c16, %c0_45], %72 {strides = array<i32>} : memref<216x1024xf32, #tpu.memory_space<vmem>>, vector<8x1024xf32>,
    %c0_46 = arith.constant 0 : index
    %c63 = arith.constant 63 : index
    %74 = vector.load %arg9[%c0_46, %c63] : memref<8x1280xf32, #tpu.memory_space<vmem>>, vector<8x1024xf32>
    %c3_47 = arith.constant 3 : index
    %c0_48 = arith.constant 0 : index
    %75 = vector.load %arg6[%c3_47, %c0_48] : memref<27x1024xf32, #tpu.memory_space<vmem>>, vector<1x1024xf32>
    %76 = vector.broadcast %75 : vector<1x1024xf32> to vector<8x1024xf32>
    %77 = arith.mulf %74, %76 : vector<8x1024xf32>
    %c24 = arith.constant 24 : index
    %c0_49 = arith.constant 0 : index
    %78 = vector.load %arg10[%c24, %c0_49] : memref<216x1024xf32, #tpu.memory_space<vmem>>, vector<8x1024xf32>
    tpu.vector_store %arg10[%c24, %c0_49], %77 {strides = array<i32>} : memref<216x1024xf32, #tpu.memory_space<vmem>>, vector<8x1024xf32>,
    %c0_50 = arith.constant 0 : index
    %c64 = arith.constant 64 : index
    %79 = vector.load %arg9[%c0_50, %c64] : memref<8x1280xf32, #tpu.memory_space<vmem>>, vector<8x1024xf32>
    %c4_51 = arith.constant 4 : index
    %c0_52 = arith.constant 0 : index
    %80 = vector.load %arg6[%c4_51, %c0_52] : memref<27x1024xf32, #tpu.memory_space<vmem>>, vector<1x1024xf32>
    %81 = vector.broadcast %80 : vector<1x1024xf32> to vector<8x1024xf32>
    %82 = arith.mulf %79, %81 : vector<8x1024xf32>
    %c32 = arith.constant 32 : index
    %c0_53 = arith.constant 0 : index
    %83 = vector.load %arg10[%c32, %c0_53] : memref<216x1024xf32, #tpu.memory_space<vmem>>, vector<8x1024xf32>
    tpu.vector_store %arg10[%c32, %c0_53], %82 {strides = array<i32>} : memref<216x1024xf32, #tpu.memory_space<vmem>>, vector<8x1024xf32>,
    %c0_54 = arith.constant 0 : index
    %c65 = arith.constant 65 : index
    %84 = vector.load %arg9[%c0_54, %c65] : memref<8x1280xf32, #tpu.memory_space<vmem>>, vector<8x1024xf32>
    %c5_55 = arith.constant 5 : index
    %c0_56 = arith.constant 0 : index
    %85 = vector.load %arg6[%c5_55, %c0_56] : memref<27x1024xf32, #tpu.memory_space<vmem>>, vector<1x1024xf32>
    %86 = vector.broadcast %85 : vector<1x1024xf32> to vector<8x1024xf32>
    %87 = arith.mulf %84, %86 : vector<8x1024xf32>
    %c40 = arith.constant 40 : index
    %c0_57 = arith.constant 0 : index
    %88 = vector.load %arg10[%c40, %c0_57] : memref<216x1024xf32, #tpu.memory_space<vmem>>, vector<8x1024xf32>
    tpu.vector_store %arg10[%c40, %c0_57], %87 {strides = array<i32>} : memref<216x1024xf32, #tpu.memory_space<vmem>>, vector<8x1024xf32>,
    %c0_58 = arith.constant 0 : index
    %c71 = arith.constant 71 : index
    %89 = vector.load %arg9[%c0_58, %c71] : memref<8x1280xf32, #tpu.memory_space<vmem>>, vector<8x1024xf32>
    %c6_59 = arith.constant 6 : index
    %c0_60 = arith.constant 0 : index
    %90 = vector.load %arg6[%c6_59, %c0_60] : memref<27x1024xf32, #tpu.memory_space<vmem>>, vector<1x1024xf32>
    %91 = vector.broadcast %90 : vector<1x1024xf32> to vector<8x1024xf32>
    %92 = arith.mulf %89, %91 : vector<8x1024xf32>
    %c48 = arith.constant 48 : index
    %c0_61 = arith.constant 0 : index
    %93 = vector.load %arg10[%c48, %c0_61] : memref<216x1024xf32, #tpu.memory_space<vmem>>, vector<8x1024xf32>
    tpu.vector_store %arg10[%c48, %c0_61], %92 {strides = array<i32>} : memref<216x1024xf32, #tpu.memory_space<vmem>>, vector<8x1024xf32>,
    %c0_62 = arith.constant 0 : index
    %c72 = arith.constant 72 : index
    %94 = vector.load %arg9[%c0_62, %c72] : memref<8x1280xf32, #tpu.memory_space<vmem>>, vector<8x1024xf32>
    %c7_63 = arith.constant 7 : index
    %c0_64 = arith.constant 0 : index
    %95 = vector.load %arg6[%c7_63, %c0_64] : memref<27x1024xf32, #tpu.memory_space<vmem>>, vector<1x1024xf32>
    %96 = vector.broadcast %95 : vector<1x1024xf32> to vector<8x1024xf32>
    %97 = arith.mulf %94, %96 : vector<8x1024xf32>
    %c56_65 = arith.constant 56 : index
    %c0_66 = arith.constant 0 : index
    %98 = vector.load %arg10[%c56_65, %c0_66] : memref<216x1024xf32, #tpu.memory_space<vmem>>, vector<8x1024xf32>
    tpu.vector_store %arg10[%c56_65, %c0_66], %97 {strides = array<i32>} : memref<216x1024xf32, #tpu.memory_space<vmem>>, vector<8x1024xf32>,
    %c0_67 = arith.constant 0 : index
    %c73 = arith.constant 73 : index
    %99 = vector.load %arg9[%c0_67, %c73] : memref<8x1280xf32, #tpu.memory_space<vmem>>, vector<8x1024xf32>
    %c8_68 = arith.constant 8 : index
    %c0_69 = arith.constant 0 : index
    %100 = vector.load %arg6[%c8_68, %c0_69] : memref<27x1024xf32, #tpu.memory_space<vmem>>, vector<1x1024xf32>
    %101 = vector.broadcast %100 : vector<1x1024xf32> to vector<8x1024xf32>
    %102 = arith.mulf %99, %101 : vector<8x1024xf32>
    %c64_70 = arith.constant 64 : index
    %c0_71 = arith.constant 0 : index
    %103 = vector.load %arg10[%c64_70, %c0_71] : memref<216x1024xf32, #tpu.memory_space<vmem>>, vector<8x1024xf32>
    tpu.vector_store %arg10[%c64_70, %c0_71], %102 {strides = array<i32>} : memref<216x1024xf32, #tpu.memory_space<vmem>>, vector<8x1024xf32>,
    %c0_72 = arith.constant 0 : index
    %c119 = arith.constant 119 : index
    %104 = vector.load %arg9[%c0_72, %c119] : memref<8x1280xf32, #tpu.memory_space<vmem>>, vector<8x1024xf32>
    %c9 = arith.constant 9 : index
    %c0_73 = arith.constant 0 : index
    %105 = vector.load %arg6[%c9, %c0_73] : memref<27x1024xf32, #tpu.memory_space<vmem>>, vector<1x1024xf32>
    %106 = vector.broadcast %105 : vector<1x1024xf32> to vector<8x1024xf32>
    %107 = arith.mulf %104, %106 : vector<8x1024xf32>
    %c72_74 = arith.constant 72 : index
    %c0_75 = arith.constant 0 : index
    %108 = vector.load %arg10[%c72_74, %c0_75] : memref<216x1024xf32, #tpu.memory_space<vmem>>, vector<8x1024xf32>
    tpu.vector_store %arg10[%c72_74, %c0_75], %107 {strides = array<i32>} : memref<216x1024xf32, #tpu.memory_space<vmem>>, vector<8x1024xf32>,
    %c0_76 = arith.constant 0 : index
    %c120 = arith.constant 120 : index
    %109 = vector.load %arg9[%c0_76, %c120] : memref<8x1280xf32, #tpu.memory_space<vmem>>, vector<8x1024xf32>
    %c10 = arith.constant 10 : index
    %c0_77 = arith.constant 0 : index
    %110 = vector.load %arg6[%c10, %c0_77] : memref<27x1024xf32, #tpu.memory_space<vmem>>, vector<1x1024xf32>
    %111 = vector.broadcast %110 : vector<1x1024xf32> to vector<8x1024xf32>
    %112 = arith.mulf %109, %111 : vector<8x1024xf32>
    %c80 = arith.constant 80 : index
    %c0_78 = arith.constant 0 : index
    %113 = vector.load %arg10[%c80, %c0_78] : memref<216x1024xf32, #tpu.memory_space<vmem>>, vector<8x1024xf32>
    tpu.vector_store %arg10[%c80, %c0_78], %112 {strides = array<i32>} : memref<216x1024xf32, #tpu.memory_space<vmem>>, vector<8x1024xf32>,
    %c0_79 = arith.constant 0 : index
    %c121 = arith.constant 121 : index
    %114 = vector.load %arg9[%c0_79, %c121] : memref<8x1280xf32, #tpu.memory_space<vmem>>, vector<8x1024xf32>
    %c11 = arith.constant 11 : index
    %c0_80 = arith.constant 0 : index
    %115 = vector.load %arg6[%c11, %c0_80] : memref<27x1024xf32, #tpu.memory_space<vmem>>, vector<1x1024xf32>
    %116 = vector.broadcast %115 : vector<1x1024xf32> to vector<8x1024xf32>
    %117 = arith.mulf %114, %116 : vector<8x1024xf32>
    %c88 = arith.constant 88 : index
    %c0_81 = arith.constant 0 : index
    %118 = vector.load %arg10[%c88, %c0_81] : memref<216x1024xf32, #tpu.memory_space<vmem>>, vector<8x1024xf32>
    tpu.vector_store %arg10[%c88, %c0_81], %117 {strides = array<i32>} : memref<216x1024xf32, #tpu.memory_space<vmem>>, vector<8x1024xf32>,
    %c0_82 = arith.constant 0 : index
    %c127 = arith.constant 127 : index
    %119 = vector.load %arg9[%c0_82, %c127] : memref<8x1280xf32, #tpu.memory_space<vmem>>, vector<8x1024xf32>
    %c12 = arith.constant 12 : index
    %c0_83 = arith.constant 0 : index
    %120 = vector.load %arg6[%c12, %c0_83] : memref<27x1024xf32, #tpu.memory_space<vmem>>, vector<1x1024xf32>
    %121 = vector.broadcast %120 : vector<1x1024xf32> to vector<8x1024xf32>
    %122 = arith.mulf %119, %121 : vector<8x1024xf32>
    %c96 = arith.constant 96 : index
    %c0_84 = arith.constant 0 : index
    %123 = vector.load %arg10[%c96, %c0_84] : memref<216x1024xf32, #tpu.memory_space<vmem>>, vector<8x1024xf32>
    tpu.vector_store %arg10[%c96, %c0_84], %122 {strides = array<i32>} : memref<216x1024xf32, #tpu.memory_space<vmem>>, vector<8x1024xf32>,
    %c104 = arith.constant 104 : index
    %c0_85 = arith.constant 0 : index
    %124 = vector.load %arg10[%c104, %c0_85] : memref<216x1024xf32, #tpu.memory_space<vmem>>, vector<8x1024xf32>
    tpu.vector_store %arg10[%c104, %c0_85], %54 {strides = array<i32>} : memref<216x1024xf32, #tpu.memory_space<vmem>>, vector<8x1024xf32>,
    %c0_86 = arith.constant 0 : index
    %c129 = arith.constant 129 : index
    %125 = vector.load %arg9[%c0_86, %c129] : memref<8x1280xf32, #tpu.memory_space<vmem>>, vector<8x1024xf32>
    %c14 = arith.constant 14 : index
    %c0_87 = arith.constant 0 : index
    %126 = vector.load %arg6[%c14, %c0_87] : memref<27x1024xf32, #tpu.memory_space<vmem>>, vector<1x1024xf32>
    %127 = vector.broadcast %126 : vector<1x1024xf32> to vector<8x1024xf32>
    %128 = arith.mulf %125, %127 : vector<8x1024xf32>
    %c112 = arith.constant 112 : index
    %c0_88 = arith.constant 0 : index
    %129 = vector.load %arg10[%c112, %c0_88] : memref<216x1024xf32, #tpu.memory_space<vmem>>, vector<8x1024xf32>
    tpu.vector_store %arg10[%c112, %c0_88], %128 {strides = array<i32>} : memref<216x1024xf32, #tpu.memory_space<vmem>>, vector<8x1024xf32>,
    %c0_89 = arith.constant 0 : index
    %c135 = arith.constant 135 : index
    %130 = vector.load %arg9[%c0_89, %c135] : memref<8x1280xf32, #tpu.memory_space<vmem>>, vector<8x1024xf32>
    %c15 = arith.constant 15 : index
    %c0_90 = arith.constant 0 : index
    %131 = vector.load %arg6[%c15, %c0_90] : memref<27x1024xf32, #tpu.memory_space<vmem>>, vector<1x1024xf32>
    %132 = vector.broadcast %131 : vector<1x1024xf32> to vector<8x1024xf32>
    %133 = arith.mulf %130, %132 : vector<8x1024xf32>
    %c120_91 = arith.constant 120 : index
    %c0_92 = arith.constant 0 : index
    %134 = vector.load %arg10[%c120_91, %c0_92] : memref<216x1024xf32, #tpu.memory_space<vmem>>, vector<8x1024xf32>
    tpu.vector_store %arg10[%c120_91, %c0_92], %133 {strides = array<i32>} : memref<216x1024xf32, #tpu.memory_space<vmem>>, vector<8x1024xf32>,
    %c0_93 = arith.constant 0 : index
    %c136 = arith.constant 136 : index
    %135 = vector.load %arg9[%c0_93, %c136] : memref<8x1280xf32, #tpu.memory_space<vmem>>, vector<8x1024xf32>
    %c16_94 = arith.constant 16 : index
    %c0_95 = arith.constant 0 : index
    %136 = vector.load %arg6[%c16_94, %c0_95] : memref<27x1024xf32, #tpu.memory_space<vmem>>, vector<1x1024xf32>
    %137 = vector.broadcast %136 : vector<1x1024xf32> to vector<8x1024xf32>
    %138 = arith.mulf %135, %137 : vector<8x1024xf32>
    %c128_96 = arith.constant 128 : index
    %c0_97 = arith.constant 0 : index
    %139 = vector.load %arg10[%c128_96, %c0_97] : memref<216x1024xf32, #tpu.memory_space<vmem>>, vector<8x1024xf32>
    tpu.vector_store %arg10[%c128_96, %c0_97], %138 {strides = array<i32>} : memref<216x1024xf32, #tpu.memory_space<vmem>>, vector<8x1024xf32>,
    %c0_98 = arith.constant 0 : index
    %c137 = arith.constant 137 : index
    %140 = vector.load %arg9[%c0_98, %c137] : memref<8x1280xf32, #tpu.memory_space<vmem>>, vector<8x1024xf32>
    %c17 = arith.constant 17 : index
    %c0_99 = arith.constant 0 : index
    %141 = vector.load %arg6[%c17, %c0_99] : memref<27x1024xf32, #tpu.memory_space<vmem>>, vector<1x1024xf32>
    %142 = vector.broadcast %141 : vector<1x1024xf32> to vector<8x1024xf32>
    %143 = arith.mulf %140, %142 : vector<8x1024xf32>
    %c136_100 = arith.constant 136 : index
    %c0_101 = arith.constant 0 : index
    %144 = vector.load %arg10[%c136_100, %c0_101] : memref<216x1024xf32, #tpu.memory_space<vmem>>, vector<8x1024xf32>
    tpu.vector_store %arg10[%c136_100, %c0_101], %143 {strides = array<i32>} : memref<216x1024xf32, #tpu.memory_space<vmem>>, vector<8x1024xf32>,
    %c0_102 = arith.constant 0 : index
    %c183 = arith.constant 183 : index
    %145 = vector.load %arg9[%c0_102, %c183] : memref<8x1280xf32, #tpu.memory_space<vmem>>, vector<8x1024xf32>
    %c18 = arith.constant 18 : index
    %c0_103 = arith.constant 0 : index
    %146 = vector.load %arg6[%c18, %c0_103] : memref<27x1024xf32, #tpu.memory_space<vmem>>, vector<1x1024xf32>
    %147 = vector.broadcast %146 : vector<1x1024xf32> to vector<8x1024xf32>
    %148 = arith.mulf %145, %147 : vector<8x1024xf32>
    %c144 = arith.constant 144 : index
    %c0_104 = arith.constant 0 : index
    %149 = vector.load %arg10[%c144, %c0_104] : memref<216x1024xf32, #tpu.memory_space<vmem>>, vector<8x1024xf32>
    tpu.vector_store %arg10[%c144, %c0_104], %148 {strides = array<i32>} : memref<216x1024xf32, #tpu.memory_space<vmem>>, vector<8x1024xf32>,
    %c0_105 = arith.constant 0 : index
    %c184 = arith.constant 184 : index
    %150 = vector.load %arg9[%c0_105, %c184] : memref<8x1280xf32, #tpu.memory_space<vmem>>, vector<8x1024xf32>
    %c19 = arith.constant 19 : index
    %c0_106 = arith.constant 0 : index
    %151 = vector.load %arg6[%c19, %c0_106] : memref<27x1024xf32, #tpu.memory_space<vmem>>, vector<1x1024xf32>
    %152 = vector.broadcast %151 : vector<1x1024xf32> to vector<8x1024xf32>
    %153 = arith.mulf %150, %152 : vector<8x1024xf32>
    %c152 = arith.constant 152 : index
    %c0_107 = arith.constant 0 : index
    %154 = vector.load %arg10[%c152, %c0_107] : memref<216x1024xf32, #tpu.memory_space<vmem>>, vector<8x1024xf32>
    tpu.vector_store %arg10[%c152, %c0_107], %153 {strides = array<i32>} : memref<216x1024xf32, #tpu.memory_space<vmem>>, vector<8x1024xf32>,
    %c0_108 = arith.constant 0 : index
    %c185 = arith.constant 185 : index
    %155 = vector.load %arg9[%c0_108, %c185] : memref<8x1280xf32, #tpu.memory_space<vmem>>, vector<8x1024xf32>
    %c20 = arith.constant 20 : index
    %c0_109 = arith.constant 0 : index
    %156 = vector.load %arg6[%c20, %c0_109] : memref<27x1024xf32, #tpu.memory_space<vmem>>, vector<1x1024xf32>
    %157 = vector.broadcast %156 : vector<1x1024xf32> to vector<8x1024xf32>
    %158 = arith.mulf %155, %157 : vector<8x1024xf32>
    %c160 = arith.constant 160 : index
    %c0_110 = arith.constant 0 : index
    %159 = vector.load %arg10[%c160, %c0_110] : memref<216x1024xf32, #tpu.memory_space<vmem>>, vector<8x1024xf32>
    tpu.vector_store %arg10[%c160, %c0_110], %158 {strides = array<i32>} : memref<216x1024xf32, #tpu.memory_space<vmem>>, vector<8x1024xf32>,
    %c0_111 = arith.constant 0 : index
    %c191 = arith.constant 191 : index
    %160 = vector.load %arg9[%c0_111, %c191] : memref<8x1280xf32, #tpu.memory_space<vmem>>, vector<8x1024xf32>
    %c21 = arith.constant 21 : index
    %c0_112 = arith.constant 0 : index
    %161 = vector.load %arg6[%c21, %c0_112] : memref<27x1024xf32, #tpu.memory_space<vmem>>, vector<1x1024xf32>
    %162 = vector.broadcast %161 : vector<1x1024xf32> to vector<8x1024xf32>
    %163 = arith.mulf %160, %162 : vector<8x1024xf32>
    %c168 = arith.constant 168 : index
    %c0_113 = arith.constant 0 : index
    %164 = vector.load %arg10[%c168, %c0_113] : memref<216x1024xf32, #tpu.memory_space<vmem>>, vector<8x1024xf32>
    tpu.vector_store %arg10[%c168, %c0_113], %163 {strides = array<i32>} : memref<216x1024xf32, #tpu.memory_space<vmem>>, vector<8x1024xf32>,
    %c0_114 = arith.constant 0 : index
    %c192 = arith.constant 192 : index
    %165 = vector.load %arg9[%c0_114, %c192] : memref<8x1280xf32, #tpu.memory_space<vmem>>, vector<8x1024xf32>
    %c22 = arith.constant 22 : index
    %c0_115 = arith.constant 0 : index
    %166 = vector.load %arg6[%c22, %c0_115] : memref<27x1024xf32, #tpu.memory_space<vmem>>, vector<1x1024xf32>
    %167 = vector.broadcast %166 : vector<1x1024xf32> to vector<8x1024xf32>
    %168 = arith.mulf %165, %167 : vector<8x1024xf32>
    %c176 = arith.constant 176 : index
    %c0_116 = arith.constant 0 : index
    %169 = vector.load %arg10[%c176, %c0_116] : memref<216x1024xf32, #tpu.memory_space<vmem>>, vector<8x1024xf32>
    tpu.vector_store %arg10[%c176, %c0_116], %168 {strides = array<i32>} : memref<216x1024xf32, #tpu.memory_space<vmem>>, vector<8x1024xf32>,
    %c0_117 = arith.constant 0 : index
    %c193 = arith.constant 193 : index
    %170 = vector.load %arg9[%c0_117, %c193] : memref<8x1280xf32, #tpu.memory_space<vmem>>, vector<8x1024xf32>
    %c23 = arith.constant 23 : index
    %c0_118 = arith.constant 0 : index
    %171 = vector.load %arg6[%c23, %c0_118] : memref<27x1024xf32, #tpu.memory_space<vmem>>, vector<1x1024xf32>
    %172 = vector.broadcast %171 : vector<1x1024xf32> to vector<8x1024xf32>
    %173 = arith.mulf %170, %172 : vector<8x1024xf32>
    %c184_119 = arith.constant 184 : index
    %c0_120 = arith.constant 0 : index
    %174 = vector.load %arg10[%c184_119, %c0_120] : memref<216x1024xf32, #tpu.memory_space<vmem>>, vector<8x1024xf32>
    tpu.vector_store %arg10[%c184_119, %c0_120], %173 {strides = array<i32>} : memref<216x1024xf32, #tpu.memory_space<vmem>>, vector<8x1024xf32>,
    %c0_121 = arith.constant 0 : index
    %c199 = arith.constant 199 : index
    %175 = vector.load %arg9[%c0_121, %c199] : memref<8x1280xf32, #tpu.memory_space<vmem>>, vector<8x1024xf32>
    %c24_122 = arith.constant 24 : index
    %c0_123 = arith.constant 0 : index
    %176 = vector.load %arg6[%c24_122, %c0_123] : memref<27x1024xf32, #tpu.memory_space<vmem>>, vector<1x1024xf32>
    %177 = vector.broadcast %176 : vector<1x1024xf32> to vector<8x1024xf32>
    %178 = arith.mulf %175, %177 : vector<8x1024xf32>
    %c192_124 = arith.constant 192 : index
    %c0_125 = arith.constant 0 : index
    %179 = vector.load %arg10[%c192_124, %c0_125] : memref<216x1024xf32, #tpu.memory_space<vmem>>, vector<8x1024xf32>
    tpu.vector_store %arg10[%c192_124, %c0_125], %178 {strides = array<i32>} : memref<216x1024xf32, #tpu.memory_space<vmem>>, vector<8x1024xf32>,
    %c0_126 = arith.constant 0 : index
    %c200 = arith.constant 200 : index
    %180 = vector.load %arg9[%c0_126, %c200] : memref<8x1280xf32, #tpu.memory_space<vmem>>, vector<8x1024xf32>
    %c25 = arith.constant 25 : index
    %c0_127 = arith.constant 0 : index
    %181 = vector.load %arg6[%c25, %c0_127] : memref<27x1024xf32, #tpu.memory_space<vmem>>, vector<1x1024xf32>
    %182 = vector.broadcast %181 : vector<1x1024xf32> to vector<8x1024xf32>
    %183 = arith.mulf %180, %182 : vector<8x1024xf32>
    %c200_128 = arith.constant 200 : index
    %c0_129 = arith.constant 0 : index
    %184 = vector.load %arg10[%c200_128, %c0_129] : memref<216x1024xf32, #tpu.memory_space<vmem>>, vector<8x1024xf32>
    tpu.vector_store %arg10[%c200_128, %c0_129], %183 {strides = array<i32>} : memref<216x1024xf32, #tpu.memory_space<vmem>>, vector<8x1024xf32>,
    %c0_130 = arith.constant 0 : index
    %c201 = arith.constant 201 : index
    %185 = vector.load %arg9[%c0_130, %c201] : memref<8x1280xf32, #tpu.memory_space<vmem>>, vector<8x1024xf32>
    %c26 = arith.constant 26 : index
    %c0_131 = arith.constant 0 : index
    %186 = vector.load %arg6[%c26, %c0_131] : memref<27x1024xf32, #tpu.memory_space<vmem>>, vector<1x1024xf32>
    %187 = vector.broadcast %186 : vector<1x1024xf32> to vector<8x1024xf32>
    %188 = arith.mulf %185, %187 : vector<8x1024xf32>
    %c208 = arith.constant 208 : index
    %c0_132 = arith.constant 0 : index
    %189 = vector.load %arg10[%c208, %c0_132] : memref<216x1024xf32, #tpu.memory_space<vmem>>, vector<8x1024xf32>
    tpu.vector_store %arg10[%c208, %c0_132], %188 {strides = array<i32>} : memref<216x1024xf32, #tpu.memory_space<vmem>>, vector<8x1024xf32>,
    %c0_133 = arith.constant 0 : index
    %c0_134 = arith.constant 0 : index
    %190 = vector.load %arg3[%c0_133, %c0_134] : memref<8x216xf32, #tpu.memory_space<vmem>>, vector<8x216xf32>
    %c0_135 = arith.constant 0 : index
    %c0_136 = arith.constant 0 : index
    %191 = vector.load %arg10[%c0_135, %c0_136] : memref<216x1024xf32, #tpu.memory_space<vmem>>, vector<216x1024xf32>
    %cst_137 = arith.constant dense<0.000000e+00> : vector<8x1024xf32>
    %192 = tpu.matmul %190, %191, %cst_137 {dimension_numbers = #tpu.dot_dimension_numbers<[1], [0], [0], [1], [0, 0, 1, 1], [], []>} : vector<8x216xf32>, vector<216x1024xf32>, vector<8x1024xf32> -> vector<8x1024xf32>
    %193 = vector.broadcast %55 : vector<8x1xf32> to vector<8x1024xf32>
    %194 = arith.addf %192, %193 : vector<8x1024xf32>
    %cst_138 = arith.constant dense<0.000000e+00> : vector<8xf32>
    %195 = vector.multi_reduction <add>, %194, %cst_138 [1] : vector<8x1024xf32> to vector<8xf32>
    %196 = vector.shape_cast %195 : vector<8xf32> to vector<8x1xf32>
    %cst_139 = arith.constant 9.765625E-4 : f32
    %197 = vector.broadcast %cst_139 : f32 to vector<8x1xf32>
    %198 = arith.mulf %196, %197 : vector<8x1xf32>
    %199 = vector.broadcast %198 : vector<8x1xf32> to vector<8x1024xf32>
    %200 = arith.subf %194, %199 : vector<8x1024xf32>
    %201 = arith.mulf %200, %200 : vector<8x1024xf32>
    %cst_140 = arith.constant dense<0.000000e+00> : vector<8xf32>
    %202 = vector.multi_reduction <add>, %201, %cst_140 [1] : vector<8x1024xf32> to vector<8xf32>
    %203 = vector.shape_cast %202 : vector<8xf32> to vector<8x1xf32>
    %cst_141 = arith.constant 9.765625E-4 : f32
    %204 = vector.broadcast %cst_141 : f32 to vector<8x1xf32>
    %205 = arith.mulf %203, %204 : vector<8x1xf32>
    %cst_142 = arith.constant 9.99999974E-6 : f32
    %206 = vector.broadcast %cst_142 : f32 to vector<8x1xf32>
    %207 = arith.addf %205, %206 : vector<8x1xf32>
    %208 = math.rsqrt %207 : vector<8x1xf32>
    %209 = arith.mulf %56, %208 : vector<8x1xf32>
    %210 = vector.broadcast %209 : vector<8x1xf32> to vector<8x1024xf32>
    %211 = arith.mulf %200, %210 : vector<8x1024xf32>
    %212 = vector.broadcast %57 : vector<8x1xf32> to vector<8x1024xf32>
    %213 = arith.addf %211, %212 : vector<8x1024xf32>
    %cst_143 = arith.constant 0.000000e+00 : f32
    %214 = vector.broadcast %cst_143 : f32 to vector<8x1024xf32>
    %215 = arith.maximumf %213, %214 : vector<8x1024xf32>
    %c0_144 = arith.constant 0 : index
    %c4_145 = arith.constant 4 : index
    %216 = vector.load %arg5[%c0_144, %c4_145] : memref<8x8xf32, #tpu.memory_space<vmem>>, vector<8x1xf32>
    %c0_146 = arith.constant 0 : index
    %c5_147 = arith.constant 5 : index
    %217 = vector.load %arg5[%c0_146, %c5_147] : memref<8x8xf32, #tpu.memory_space<vmem>>, vector<8x1xf32>
    %c0_148 = arith.constant 0 : index
    %c6_149 = arith.constant 6 : index
    %218 = vector.load %arg5[%c0_148, %c6_149] : memref<8x8xf32, #tpu.memory_space<vmem>>, vector<8x1xf32>
    %c0_150 = arith.constant 0 : index
    %c128_151 = arith.constant 128 : index
    %219 = vector.load %arg9[%c0_150, %c128_151] : memref<8x1280xf32, #tpu.memory_space<vmem>>, vector<8x1024xf32>
    tpu.vector_store %arg9[%c0_150, %c128_151], %215 {strides = array<i32>} : memref<8x1280xf32, #tpu.memory_space<vmem>>, vector<8x1024xf32>,
    %c0_152 = arith.constant 0 : index
    %c55_153 = arith.constant 55 : index
    %220 = vector.load %arg9[%c0_152, %c55_153] : memref<8x1280xf32, #tpu.memory_space<vmem>>, vector<8x1024xf32>
    %c0_154 = arith.constant 0 : index
    %c0_155 = arith.constant 0 : index
    %221 = vector.load %arg6[%c0_154, %c0_155] : memref<27x1024xf32, #tpu.memory_space<vmem>>, vector<1x1024xf32>
    %222 = vector.broadcast %221 : vector<1x1024xf32> to vector<8x1024xf32>
    %223 = arith.mulf %220, %222 : vector<8x1024xf32>
    %c0_156 = arith.constant 0 : index
    %c0_157 = arith.constant 0 : index
    %224 = vector.load %arg10[%c0_156, %c0_157] : memref<216x1024xf32, #tpu.memory_space<vmem>>, vector<8x1024xf32>
    tpu.vector_store %arg10[%c0_156, %c0_157], %223 {strides = array<i32>} : memref<216x1024xf32, #tpu.memory_space<vmem>>, vector<8x1024xf32>,
    %c0_158 = arith.constant 0 : index
    %c56_159 = arith.constant 56 : index
    %225 = vector.load %arg9[%c0_158, %c56_159] : memref<8x1280xf32, #tpu.memory_space<vmem>>, vector<8x1024xf32>
    %c1_160 = arith.constant 1 : index
    %c0_161 = arith.constant 0 : index
    %226 = vector.load %arg6[%c1_160, %c0_161] : memref<27x1024xf32, #tpu.memory_space<vmem>>, vector<1x1024xf32>
    %227 = vector.broadcast %226 : vector<1x1024xf32> to vector<8x1024xf32>
    %228 = arith.mulf %225, %227 : vector<8x1024xf32>
    %c8_162 = arith.constant 8 : index
    %c0_163 = arith.constant 0 : index
    %229 = vector.load %arg10[%c8_162, %c0_163] : memref<216x1024xf32, #tpu.memory_space<vmem>>, vector<8x1024xf32>
    tpu.vector_store %arg10[%c8_162, %c0_163], %228 {strides = array<i32>} : memref<216x1024xf32, #tpu.memory_space<vmem>>, vector<8x1024xf32>,
    %c0_164 = arith.constant 0 : index
    %c57_165 = arith.constant 57 : index
    %230 = vector.load %arg9[%c0_164, %c57_165] : memref<8x1280xf32, #tpu.memory_space<vmem>>, vector<8x1024xf32>
    %c2_166 = arith.constant 2 : index
    %c0_167 = arith.constant 0 : index
    %231 = vector.load %arg6[%c2_166, %c0_167] : memref<27x1024xf32, #tpu.memory_space<vmem>>, vector<1x1024xf32>
    %232 = vector.broadcast %231 : vector<1x1024xf32> to vector<8x1024xf32>
    %233 = arith.mulf %230, %232 : vector<8x1024xf32>
    %c16_168 = arith.constant 16 : index
    %c0_169 = arith.constant 0 : index
    %234 = vector.load %arg10[%c16_168, %c0_169] : memref<216x1024xf32, #tpu.memory_space<vmem>>, vector<8x1024xf32>
    tpu.vector_store %arg10[%c16_168, %c0_169], %233 {strides = array<i32>} : memref<216x1024xf32, #tpu.memory_space<vmem>>, vector<8x1024xf32>,
    %c0_170 = arith.constant 0 : index
    %c63_171 = arith.constant 63 : index
    %235 = vector.load %arg9[%c0_170, %c63_171] : memref<8x1280xf32, #tpu.memory_space<vmem>>, vector<8x1024xf32>
    %c3_172 = arith.constant 3 : index
    %c0_173 = arith.constant 0 : index
    %236 = vector.load %arg6[%c3_172, %c0_173] : memref<27x1024xf32, #tpu.memory_space<vmem>>, vector<1x1024xf32>
    %237 = vector.broadcast %236 : vector<1x1024xf32> to vector<8x1024xf32>
    %238 = arith.mulf %235, %237 : vector<8x1024xf32>
    %c24_174 = arith.constant 24 : index
    %c0_175 = arith.constant 0 : index
    %239 = vector.load %arg10[%c24_174, %c0_175] : memref<216x1024xf32, #tpu.memory_space<vmem>>, vector<8x1024xf32>
    tpu.vector_store %arg10[%c24_174, %c0_175], %238 {strides = array<i32>} : memref<216x1024xf32, #tpu.memory_space<vmem>>, vector<8x1024xf32>,
    %c0_176 = arith.constant 0 : index
    %c64_177 = arith.constant 64 : index
    %240 = vector.load %arg9[%c0_176, %c64_177] : memref<8x1280xf32, #tpu.memory_space<vmem>>, vector<8x1024xf32>
    %c4_178 = arith.constant 4 : index
    %c0_179 = arith.constant 0 : index
    %241 = vector.load %arg6[%c4_178, %c0_179] : memref<27x1024xf32, #tpu.memory_space<vmem>>, vector<1x1024xf32>
    %242 = vector.broadcast %241 : vector<1x1024xf32> to vector<8x1024xf32>
    %243 = arith.mulf %240, %242 : vector<8x1024xf32>
    %c32_180 = arith.constant 32 : index
    %c0_181 = arith.constant 0 : index
    %244 = vector.load %arg10[%c32_180, %c0_181] : memref<216x1024xf32, #tpu.memory_space<vmem>>, vector<8x1024xf32>
    tpu.vector_store %arg10[%c32_180, %c0_181], %243 {strides = array<i32>} : memref<216x1024xf32, #tpu.memory_space<vmem>>, vector<8x1024xf32>,
    %c0_182 = arith.constant 0 : index
    %c65_183 = arith.constant 65 : index
    %245 = vector.load %arg9[%c0_182, %c65_183] : memref<8x1280xf32, #tpu.memory_space<vmem>>, vector<8x1024xf32>
    %c5_184 = arith.constant 5 : index
    %c0_185 = arith.constant 0 : index
    %246 = vector.load %arg6[%c5_184, %c0_185] : memref<27x1024xf32, #tpu.memory_space<vmem>>, vector<1x1024xf32>
    %247 = vector.broadcast %246 : vector<1x1024xf32> to vector<8x1024xf32>
    %248 = arith.mulf %245, %247 : vector<8x1024xf32>
    %c40_186 = arith.constant 40 : index
    %c0_187 = arith.constant 0 : index
    %249 = vector.load %arg10[%c40_186, %c0_187] : memref<216x1024xf32, #tpu.memory_space<vmem>>, vector<8x1024xf32>
    tpu.vector_store %arg10[%c40_186, %c0_187], %248 {strides = array<i32>} : memref<216x1024xf32, #tpu.memory_space<vmem>>, vector<8x1024xf32>,
    %c0_188 = arith.constant 0 : index
    %c71_189 = arith.constant 71 : index
    %250 = vector.load %arg9[%c0_188, %c71_189] : memref<8x1280xf32, #tpu.memory_space<vmem>>, vector<8x1024xf32>
    %c6_190 = arith.constant 6 : index
    %c0_191 = arith.constant 0 : index
    %251 = vector.load %arg6[%c6_190, %c0_191] : memref<27x1024xf32, #tpu.memory_space<vmem>>, vector<1x1024xf32>
    %252 = vector.broadcast %251 : vector<1x1024xf32> to vector<8x1024xf32>
    %253 = arith.mulf %250, %252 : vector<8x1024xf32>
    %c48_192 = arith.constant 48 : index
    %c0_193 = arith.constant 0 : index
    %254 = vector.load %arg10[%c48_192, %c0_193] : memref<216x1024xf32, #tpu.memory_space<vmem>>, vector<8x1024xf32>
    tpu.vector_store %arg10[%c48_192, %c0_193], %253 {strides = array<i32>} : memref<216x1024xf32, #tpu.memory_space<vmem>>, vector<8x1024xf32>,
    %c0_194 = arith.constant 0 : index
    %c72_195 = arith.constant 72 : index
    %255 = vector.load %arg9[%c0_194, %c72_195] : memref<8x1280xf32, #tpu.memory_space<vmem>>, vector<8x1024xf32>
    %c7_196 = arith.constant 7 : index
    %c0_197 = arith.constant 0 : index
    %256 = vector.load %arg6[%c7_196, %c0_197] : memref<27x1024xf32, #tpu.memory_space<vmem>>, vector<1x1024xf32>
    %257 = vector.broadcast %256 : vector<1x1024xf32> to vector<8x1024xf32>
    %258 = arith.mulf %255, %257 : vector<8x1024xf32>
    %c56_198 = arith.constant 56 : index
    %c0_199 = arith.constant 0 : index
    %259 = vector.load %arg10[%c56_198, %c0_199] : memref<216x1024xf32, #tpu.memory_space<vmem>>, vector<8x1024xf32>
    tpu.vector_store %arg10[%c56_198, %c0_199], %258 {strides = array<i32>} : memref<216x1024xf32, #tpu.memory_space<vmem>>, vector<8x1024xf32>,
    %c0_200 = arith.constant 0 : index
    %c73_201 = arith.constant 73 : index
    %260 = vector.load %arg9[%c0_200, %c73_201] : memref<8x1280xf32, #tpu.memory_space<vmem>>, vector<8x1024xf32>
    %c8_202 = arith.constant 8 : index
    %c0_203 = arith.constant 0 : index
    %261 = vector.load %arg6[%c8_202, %c0_203] : memref<27x1024xf32, #tpu.memory_space<vmem>>, vector<1x1024xf32>
    %262 = vector.broadcast %261 : vector<1x1024xf32> to vector<8x1024xf32>
    %263 = arith.mulf %260, %262 : vector<8x1024xf32>
    %c64_204 = arith.constant 64 : index
    %c0_205 = arith.constant 0 : index
    %264 = vector.load %arg10[%c64_204, %c0_205] : memref<216x1024xf32, #tpu.memory_space<vmem>>, vector<8x1024xf32>
    tpu.vector_store %arg10[%c64_204, %c0_205], %263 {strides = array<i32>} : memref<216x1024xf32, #tpu.memory_space<vmem>>, vector<8x1024xf32>,
    %c0_206 = arith.constant 0 : index
    %c119_207 = arith.constant 119 : index
    %265 = vector.load %arg9[%c0_206, %c119_207] : memref<8x1280xf32, #tpu.memory_space<vmem>>, vector<8x1024xf32>
    %c9_208 = arith.constant 9 : index
    %c0_209 = arith.constant 0 : index
    %266 = vector.load %arg6[%c9_208, %c0_209] : memref<27x1024xf32, #tpu.memory_space<vmem>>, vector<1x1024xf32>
    %267 = vector.broadcast %266 : vector<1x1024xf32> to vector<8x1024xf32>
    %268 = arith.mulf %265, %267 : vector<8x1024xf32>
    %c72_210 = arith.constant 72 : index
    %c0_211 = arith.constant 0 : index
    %269 = vector.load %arg10[%c72_210, %c0_211] : memref<216x1024xf32, #tpu.memory_space<vmem>>, vector<8x1024xf32>
    tpu.vector_store %arg10[%c72_210, %c0_211], %268 {strides = array<i32>} : memref<216x1024xf32, #tpu.memory_space<vmem>>, vector<8x1024xf32>,
    %c0_212 = arith.constant 0 : index
    %c120_213 = arith.constant 120 : index
    %270 = vector.load %arg9[%c0_212, %c120_213] : memref<8x1280xf32, #tpu.memory_space<vmem>>, vector<8x1024xf32>
    %c10_214 = arith.constant 10 : index
    %c0_215 = arith.constant 0 : index
    %271 = vector.load %arg6[%c10_214, %c0_215] : memref<27x1024xf32, #tpu.memory_space<vmem>>, vector<1x1024xf32>
    %272 = vector.broadcast %271 : vector<1x1024xf32> to vector<8x1024xf32>
    %273 = arith.mulf %270, %272 : vector<8x1024xf32>
    %c80_216 = arith.constant 80 : index
    %c0_217 = arith.constant 0 : index
    %274 = vector.load %arg10[%c80_216, %c0_217] : memref<216x1024xf32, #tpu.memory_space<vmem>>, vector<8x1024xf32>
    tpu.vector_store %arg10[%c80_216, %c0_217], %273 {strides = array<i32>} : memref<216x1024xf32, #tpu.memory_space<vmem>>, vector<8x1024xf32>,
    %c0_218 = arith.constant 0 : index
    %c121_219 = arith.constant 121 : index
    %275 = vector.load %arg9[%c0_218, %c121_219] : memref<8x1280xf32, #tpu.memory_space<vmem>>, vector<8x1024xf32>
    %c11_220 = arith.constant 11 : index
    %c0_221 = arith.constant 0 : index
    %276 = vector.load %arg6[%c11_220, %c0_221] : memref<27x1024xf32, #tpu.memory_space<vmem>>, vector<1x1024xf32>
    %277 = vector.broadcast %276 : vector<1x1024xf32> to vector<8x1024xf32>
    %278 = arith.mulf %275, %277 : vector<8x1024xf32>
    %c88_222 = arith.constant 88 : index
    %c0_223 = arith.constant 0 : index
    %279 = vector.load %arg10[%c88_222, %c0_223] : memref<216x1024xf32, #tpu.memory_space<vmem>>, vector<8x1024xf32>
    tpu.vector_store %arg10[%c88_222, %c0_223], %278 {strides = array<i32>} : memref<216x1024xf32, #tpu.memory_space<vmem>>, vector<8x1024xf32>,
    %c0_224 = arith.constant 0 : index
    %c127_225 = arith.constant 127 : index
    %280 = vector.load %arg9[%c0_224, %c127_225] : memref<8x1280xf32, #tpu.memory_space<vmem>>, vector<8x1024xf32>
    %c12_226 = arith.constant 12 : index
    %c0_227 = arith.constant 0 : index
    %281 = vector.load %arg6[%c12_226, %c0_227] : memref<27x1024xf32, #tpu.memory_space<vmem>>, vector<1x1024xf32>
    %282 = vector.broadcast %281 : vector<1x1024xf32> to vector<8x1024xf32>
    %283 = arith.mulf %280, %282 : vector<8x1024xf32>
    %c96_228 = arith.constant 96 : index
    %c0_229 = arith.constant 0 : index
    %284 = vector.load %arg10[%c96_228, %c0_229] : memref<216x1024xf32, #tpu.memory_space<vmem>>, vector<8x1024xf32>
    tpu.vector_store %arg10[%c96_228, %c0_229], %283 {strides = array<i32>} : memref<216x1024xf32, #tpu.memory_space<vmem>>, vector<8x1024xf32>,
    %c104_230 = arith.constant 104 : index
    %c0_231 = arith.constant 0 : index
    %285 = vector.load %arg10[%c104_230, %c0_231] : memref<216x1024xf32, #tpu.memory_space<vmem>>, vector<8x1024xf32>
    tpu.vector_store %arg10[%c104_230, %c0_231], %215 {strides = array<i32>} : memref<216x1024xf32, #tpu.memory_space<vmem>>, vector<8x1024xf32>,
    %c0_232 = arith.constant 0 : index
    %c129_233 = arith.constant 129 : index
    %286 = vector.load %arg9[%c0_232, %c129_233] : memref<8x1280xf32, #tpu.memory_space<vmem>>, vector<8x1024xf32>
    %c14_234 = arith.constant 14 : index
    %c0_235 = arith.constant 0 : index
    %287 = vector.load %arg6[%c14_234, %c0_235] : memref<27x1024xf32, #tpu.memory_space<vmem>>, vector<1x1024xf32>
    %288 = vector.broadcast %287 : vector<1x1024xf32> to vector<8x1024xf32>
    %289 = arith.mulf %286, %288 : vector<8x1024xf32>
    %c112_236 = arith.constant 112 : index
    %c0_237 = arith.constant 0 : index
    %290 = vector.load %arg10[%c112_236, %c0_237] : memref<216x1024xf32, #tpu.memory_space<vmem>>, vector<8x1024xf32>
    tpu.vector_store %arg10[%c112_236, %c0_237], %289 {strides = array<i32>} : memref<216x1024xf32, #tpu.memory_space<vmem>>, vector<8x1024xf32>,
    %c0_238 = arith.constant 0 : index
    %c135_239 = arith.constant 135 : index
    %291 = vector.load %arg9[%c0_238, %c135_239] : memref<8x1280xf32, #tpu.memory_space<vmem>>, vector<8x1024xf32>
    %c15_240 = arith.constant 15 : index
    %c0_241 = arith.constant 0 : index
    %292 = vector.load %arg6[%c15_240, %c0_241] : memref<27x1024xf32, #tpu.memory_space<vmem>>, vector<1x1024xf32>
    %293 = vector.broadcast %292 : vector<1x1024xf32> to vector<8x1024xf32>
    %294 = arith.mulf %291, %293 : vector<8x1024xf32>
    %c120_242 = arith.constant 120 : index
    %c0_243 = arith.constant 0 : index
    %295 = vector.load %arg10[%c120_242, %c0_243] : memref<216x1024xf32, #tpu.memory_space<vmem>>, vector<8x1024xf32>
    tpu.vector_store %arg10[%c120_242, %c0_243], %294 {strides = array<i32>} : memref<216x1024xf32, #tpu.memory_space<vmem>>, vector<8x1024xf32>,
    %c0_244 = arith.constant 0 : index
    %c136_245 = arith.constant 136 : index
    %296 = vector.load %arg9[%c0_244, %c136_245] : memref<8x1280xf32, #tpu.memory_space<vmem>>, vector<8x1024xf32>
    %c16_246 = arith.constant 16 : index
    %c0_247 = arith.constant 0 : index
    %297 = vector.load %arg6[%c16_246, %c0_247] : memref<27x1024xf32, #tpu.memory_space<vmem>>, vector<1x1024xf32>
    %298 = vector.broadcast %297 : vector<1x1024xf32> to vector<8x1024xf32>
    %299 = arith.mulf %296, %298 : vector<8x1024xf32>
    %c128_248 = arith.constant 128 : index
    %c0_249 = arith.constant 0 : index
    %300 = vector.load %arg10[%c128_248, %c0_249] : memref<216x1024xf32, #tpu.memory_space<vmem>>, vector<8x1024xf32>
    tpu.vector_store %arg10[%c128_248, %c0_249], %299 {strides = array<i32>} : memref<216x1024xf32, #tpu.memory_space<vmem>>, vector<8x1024xf32>,
    %c0_250 = arith.constant 0 : index
    %c137_251 = arith.constant 137 : index
    %301 = vector.load %arg9[%c0_250, %c137_251] : memref<8x1280xf32, #tpu.memory_space<vmem>>, vector<8x1024xf32>
    %c17_252 = arith.constant 17 : index
    %c0_253 = arith.constant 0 : index
    %302 = vector.load %arg6[%c17_252, %c0_253] : memref<27x1024xf32, #tpu.memory_space<vmem>>, vector<1x1024xf32>
    %303 = vector.broadcast %302 : vector<1x1024xf32> to vector<8x1024xf32>
    %304 = arith.mulf %301, %303 : vector<8x1024xf32>
    %c136_254 = arith.constant 136 : index
    %c0_255 = arith.constant 0 : index
    %305 = vector.load %arg10[%c136_254, %c0_255] : memref<216x1024xf32, #tpu.memory_space<vmem>>, vector<8x1024xf32>
    tpu.vector_store %arg10[%c136_254, %c0_255], %304 {strides = array<i32>} : memref<216x1024xf32, #tpu.memory_space<vmem>>, vector<8x1024xf32>,
    %c0_256 = arith.constant 0 : index
    %c183_257 = arith.constant 183 : index
    %306 = vector.load %arg9[%c0_256, %c183_257] : memref<8x1280xf32, #tpu.memory_space<vmem>>, vector<8x1024xf32>
    %c18_258 = arith.constant 18 : index
    %c0_259 = arith.constant 0 : index
    %307 = vector.load %arg6[%c18_258, %c0_259] : memref<27x1024xf32, #tpu.memory_space<vmem>>, vector<1x1024xf32>
    %308 = vector.broadcast %307 : vector<1x1024xf32> to vector<8x1024xf32>
    %309 = arith.mulf %306, %308 : vector<8x1024xf32>
    %c144_260 = arith.constant 144 : index
    %c0_261 = arith.constant 0 : index
    %310 = vector.load %arg10[%c144_260, %c0_261] : memref<216x1024xf32, #tpu.memory_space<vmem>>, vector<8x1024xf32>
    tpu.vector_store %arg10[%c144_260, %c0_261], %309 {strides = array<i32>} : memref<216x1024xf32, #tpu.memory_space<vmem>>, vector<8x1024xf32>,
    %c0_262 = arith.constant 0 : index
    %c184_263 = arith.constant 184 : index
    %311 = vector.load %arg9[%c0_262, %c184_263] : memref<8x1280xf32, #tpu.memory_space<vmem>>, vector<8x1024xf32>
    %c19_264 = arith.constant 19 : index
    %c0_265 = arith.constant 0 : index
    %312 = vector.load %arg6[%c19_264, %c0_265] : memref<27x1024xf32, #tpu.memory_space<vmem>>, vector<1x1024xf32>
    %313 = vector.broadcast %312 : vector<1x1024xf32> to vector<8x1024xf32>
    %314 = arith.mulf %311, %313 : vector<8x1024xf32>
    %c152_266 = arith.constant 152 : index
    %c0_267 = arith.constant 0 : index
    %315 = vector.load %arg10[%c152_266, %c0_267] : memref<216x1024xf32, #tpu.memory_space<vmem>>, vector<8x1024xf32>
    tpu.vector_store %arg10[%c152_266, %c0_267], %314 {strides = array<i32>} : memref<216x1024xf32, #tpu.memory_space<vmem>>, vector<8x1024xf32>,
    %c0_268 = arith.constant 0 : index
    %c185_269 = arith.constant 185 : index
    %316 = vector.load %arg9[%c0_268, %c185_269] : memref<8x1280xf32, #tpu.memory_space<vmem>>, vector<8x1024xf32>
    %c20_270 = arith.constant 20 : index
    %c0_271 = arith.constant 0 : index
    %317 = vector.load %arg6[%c20_270, %c0_271] : memref<27x1024xf32, #tpu.memory_space<vmem>>, vector<1x1024xf32>
    %318 = vector.broadcast %317 : vector<1x1024xf32> to vector<8x1024xf32>
    %319 = arith.mulf %316, %318 : vector<8x1024xf32>
    %c160_272 = arith.constant 160 : index
    %c0_273 = arith.constant 0 : index
    %320 = vector.load %arg10[%c160_272, %c0_273] : memref<216x1024xf32, #tpu.memory_space<vmem>>, vector<8x1024xf32>
    tpu.vector_store %arg10[%c160_272, %c0_273], %319 {strides = array<i32>} : memref<216x1024xf32, #tpu.memory_space<vmem>>, vector<8x1024xf32>,
    %c0_274 = arith.constant 0 : index
    %c191_275 = arith.constant 191 : index
    %321 = vector.load %arg9[%c0_274, %c191_275] : memref<8x1280xf32, #tpu.memory_space<vmem>>, vector<8x1024xf32>
    %c21_276 = arith.constant 21 : index
    %c0_277 = arith.constant 0 : index
    %322 = vector.load %arg6[%c21_276, %c0_277] : memref<27x1024xf32, #tpu.memory_space<vmem>>, vector<1x1024xf32>
    %323 = vector.broadcast %322 : vector<1x1024xf32> to vector<8x1024xf32>
    %324 = arith.mulf %321, %323 : vector<8x1024xf32>
    %c168_278 = arith.constant 168 : index
    %c0_279 = arith.constant 0 : index
    %325 = vector.load %arg10[%c168_278, %c0_279] : memref<216x1024xf32, #tpu.memory_space<vmem>>, vector<8x1024xf32>
    tpu.vector_store %arg10[%c168_278, %c0_279], %324 {strides = array<i32>} : memref<216x1024xf32, #tpu.memory_space<vmem>>, vector<8x1024xf32>,
    %c0_280 = arith.constant 0 : index
    %c192_281 = arith.constant 192 : index
    %326 = vector.load %arg9[%c0_280, %c192_281] : memref<8x1280xf32, #tpu.memory_space<vmem>>, vector<8x1024xf32>
    %c22_282 = arith.constant 22 : index
    %c0_283 = arith.constant 0 : index
    %327 = vector.load %arg6[%c22_282, %c0_283] : memref<27x1024xf32, #tpu.memory_space<vmem>>, vector<1x1024xf32>
    %328 = vector.broadcast %327 : vector<1x1024xf32> to vector<8x1024xf32>
    %329 = arith.mulf %326, %328 : vector<8x1024xf32>
    %c176_284 = arith.constant 176 : index
    %c0_285 = arith.constant 0 : index
    %330 = vector.load %arg10[%c176_284, %c0_285] : memref<216x1024xf32, #tpu.memory_space<vmem>>, vector<8x1024xf32>
    tpu.vector_store %arg10[%c176_284, %c0_285], %329 {strides = array<i32>} : memref<216x1024xf32, #tpu.memory_space<vmem>>, vector<8x1024xf32>,
    %c0_286 = arith.constant 0 : index
    %c193_287 = arith.constant 193 : index
    %331 = vector.load %arg9[%c0_286, %c193_287] : memref<8x1280xf32, #tpu.memory_space<vmem>>, vector<8x1024xf32>
    %c23_288 = arith.constant 23 : index
    %c0_289 = arith.constant 0 : index
    %332 = vector.load %arg6[%c23_288, %c0_289] : memref<27x1024xf32, #tpu.memory_space<vmem>>, vector<1x1024xf32>
    %333 = vector.broadcast %332 : vector<1x1024xf32> to vector<8x1024xf32>
    %334 = arith.mulf %331, %333 : vector<8x1024xf32>
    %c184_290 = arith.constant 184 : index
    %c0_291 = arith.constant 0 : index
    %335 = vector.load %arg10[%c184_290, %c0_291] : memref<216x1024xf32, #tpu.memory_space<vmem>>, vector<8x1024xf32>
    tpu.vector_store %arg10[%c184_290, %c0_291], %334 {strides = array<i32>} : memref<216x1024xf32, #tpu.memory_space<vmem>>, vector<8x1024xf32>,
    %c0_292 = arith.constant 0 : index
    %c199_293 = arith.constant 199 : index
    %336 = vector.load %arg9[%c0_292, %c199_293] : memref<8x1280xf32, #tpu.memory_space<vmem>>, vector<8x1024xf32>
    %c24_294 = arith.constant 24 : index
    %c0_295 = arith.constant 0 : index
    %337 = vector.load %arg6[%c24_294, %c0_295] : memref<27x1024xf32, #tpu.memory_space<vmem>>, vector<1x1024xf32>
    %338 = vector.broadcast %337 : vector<1x1024xf32> to vector<8x1024xf32>
    %339 = arith.mulf %336, %338 : vector<8x1024xf32>
    %c192_296 = arith.constant 192 : index
    %c0_297 = arith.constant 0 : index
    %340 = vector.load %arg10[%c192_296, %c0_297] : memref<216x1024xf32, #tpu.memory_space<vmem>>, vector<8x1024xf32>
    tpu.vector_store %arg10[%c192_296, %c0_297], %339 {strides = array<i32>} : memref<216x1024xf32, #tpu.memory_space<vmem>>, vector<8x1024xf32>,
    %c0_298 = arith.constant 0 : index
    %c200_299 = arith.constant 200 : index
    %341 = vector.load %arg9[%c0_298, %c200_299] : memref<8x1280xf32, #tpu.memory_space<vmem>>, vector<8x1024xf32>
    %c25_300 = arith.constant 25 : index
    %c0_301 = arith.constant 0 : index
    %342 = vector.load %arg6[%c25_300, %c0_301] : memref<27x1024xf32, #tpu.memory_space<vmem>>, vector<1x1024xf32>
    %343 = vector.broadcast %342 : vector<1x1024xf32> to vector<8x1024xf32>
    %344 = arith.mulf %341, %343 : vector<8x1024xf32>
    %c200_302 = arith.constant 200 : index
    %c0_303 = arith.constant 0 : index
    %345 = vector.load %arg10[%c200_302, %c0_303] : memref<216x1024xf32, #tpu.memory_space<vmem>>, vector<8x1024xf32>
    tpu.vector_store %arg10[%c200_302, %c0_303], %344 {strides = array<i32>} : memref<216x1024xf32, #tpu.memory_space<vmem>>, vector<8x1024xf32>,
    %c0_304 = arith.constant 0 : index
    %c201_305 = arith.constant 201 : index
    %346 = vector.load %arg9[%c0_304, %c201_305] : memref<8x1280xf32, #tpu.memory_space<vmem>>, vector<8x1024xf32>
    %c26_306 = arith.constant 26 : index
    %c0_307 = arith.constant 0 : index
    %347 = vector.load %arg6[%c26_306, %c0_307] : memref<27x1024xf32, #tpu.memory_space<vmem>>, vector<1x1024xf32>
    %348 = vector.broadcast %347 : vector<1x1024xf32> to vector<8x1024xf32>
    %349 = arith.mulf %346, %348 : vector<8x1024xf32>
    %c208_308 = arith.constant 208 : index
    %c0_309 = arith.constant 0 : index
    %350 = vector.load %arg10[%c208_308, %c0_309] : memref<216x1024xf32, #tpu.memory_space<vmem>>, vector<8x1024xf32>
    tpu.vector_store %arg10[%c208_308, %c0_309], %349 {strides = array<i32>} : memref<216x1024xf32, #tpu.memory_space<vmem>>, vector<8x1024xf32>,
    %c0_310 = arith.constant 0 : index
    %c0_311 = arith.constant 0 : index
    %351 = vector.load %arg4[%c0_310, %c0_311] : memref<8x216xf32, #tpu.memory_space<vmem>>, vector<8x216xf32>
    %c0_312 = arith.constant 0 : index
    %c0_313 = arith.constant 0 : index
    %352 = vector.load %arg10[%c0_312, %c0_313] : memref<216x1024xf32, #tpu.memory_space<vmem>>, vector<216x1024xf32>
    %cst_314 = arith.constant dense<0.000000e+00> : vector<8x1024xf32>
    %353 = tpu.matmul %351, %352, %cst_314 {dimension_numbers = #tpu.dot_dimension_numbers<[1], [0], [0], [1], [0, 0, 1, 1], [], []>} : vector<8x216xf32>, vector<216x1024xf32>, vector<8x1024xf32> -> vector<8x1024xf32>
    %354 = vector.broadcast %216 : vector<8x1xf32> to vector<8x1024xf32>
    %355 = arith.addf %353, %354 : vector<8x1024xf32>
    %cst_315 = arith.constant dense<0.000000e+00> : vector<8xf32>
    %356 = vector.multi_reduction <add>, %355, %cst_315 [1] : vector<8x1024xf32> to vector<8xf32>
    %357 = vector.shape_cast %356 : vector<8xf32> to vector<8x1xf32>
    %cst_316 = arith.constant 9.765625E-4 : f32
    %358 = vector.broadcast %cst_316 : f32 to vector<8x1xf32>
    %359 = arith.mulf %357, %358 : vector<8x1xf32>
    %360 = vector.broadcast %359 : vector<8x1xf32> to vector<8x1024xf32>
    %361 = arith.subf %355, %360 : vector<8x1024xf32>
    %362 = arith.mulf %361, %361 : vector<8x1024xf32>
    %cst_317 = arith.constant dense<0.000000e+00> : vector<8xf32>
    %363 = vector.multi_reduction <add>, %362, %cst_317 [1] : vector<8x1024xf32> to vector<8xf32>
    %364 = vector.shape_cast %363 : vector<8xf32> to vector<8x1xf32>
    %cst_318 = arith.constant 9.765625E-4 : f32
    %365 = vector.broadcast %cst_318 : f32 to vector<8x1xf32>
    %366 = arith.mulf %364, %365 : vector<8x1xf32>
    %cst_319 = arith.constant 9.99999974E-6 : f32
    %367 = vector.broadcast %cst_319 : f32 to vector<8x1xf32>
    %368 = arith.addf %366, %367 : vector<8x1xf32>
    %369 = math.rsqrt %368 : vector<8x1xf32>
    %370 = arith.mulf %217, %369 : vector<8x1xf32>
    %371 = vector.broadcast %370 : vector<8x1xf32> to vector<8x1024xf32>
    %372 = arith.mulf %361, %371 : vector<8x1024xf32>
    %373 = vector.broadcast %218 : vector<8x1xf32> to vector<8x1024xf32>
    %374 = arith.addf %372, %373 : vector<8x1024xf32>
    %cst_320 = arith.constant 0.000000e+00 : f32
    %375 = vector.broadcast %cst_320 : f32 to vector<8x1024xf32>
    %376 = arith.maximumf %374, %375 : vector<8x1024xf32>
    %c0_321 = arith.constant 0 : index
    %c0_322 = arith.constant 0 : index
    %377 = vector.load %arg8[%c0_321, %c0_322] : memref<8x1024xf32, #tpu.memory_space<vmem>>, vector<8x1024xf32>
    tpu.vector_store %arg8[%c0_321, %c0_322], %376 {strides = array<i32>} : memref<8x1024xf32, #tpu.memory_space<vmem>>, vector<8x1024xf32>,
    return
  }
}

</mosaic_0001>

<llo_original>
// kernel: up_forward.1
$region0: #{up_forward.1}
  #allocation0 [shape = 'u32[]', space=smem, size = 0x4, offset = 0x4, fixed_abs, tag = 'smem constant byte address 0x4 - core index']
  #allocation1 [shape = 'u32[144,128]{1,0:T(1,128)}', space=vmem, size = 0x12000, scoped, tag = 'internal scratch']
  #allocation2 [shape = 'f32[8,1280]{1,0:T(8,128)}', space=vmem, size = 0xa000, scoped, tag = 'scratch operand']
  #allocation3 [shape = 'f32[216,1024]{1,0:T(8,128)}', space=vmem, size = 0xd8000, scoped, tag = 'scratch operand']
  %s0 = inlined_call_operand.vmem [shape: f32[8,1024], index: 0, kind: input, shape index: {}]
  %s1 = inlined_call_operand.vmem [shape: f32[8,1024], index: 1, kind: input, shape index: {}]
  %s2 = inlined_call_operand.vmem [shape: f32[2,32,8], index: 2, kind: input, shape index: {}]
  %s3 = inlined_call_operand.vmem [shape: f32[8,216], index: 3, kind: input, shape index: {}]
  %s4 = inlined_call_operand.vmem [shape: f32[8,216], index: 4, kind: input, shape index: {}]
  %s5 = inlined_call_operand.vmem [shape: f32[8,8], index: 5, kind: input, shape index: {}]
  %s6 = inlined_call_operand.vmem [shape: f32[27,1024], index: 6, kind: input, shape index: {}]
  %s7 = inlined_call_operand.vmem [shape: f32[8,1024], index: 7, kind: input, shape index: {}]
  %s8 = inlined_call_operand.vmem [shape: f32[8,1024], index: 8, kind: output, shape index: {}]
  %s9 = sld [smem:[#allocation0]]
  $region42: #{up_forward.1} parent=0
    _
  %s11 = ssub.s32 1, %s9
  %s12 = scalar_select 0, %s11, %s9
  // Predicated region
  $region2: #{up_forward.1} parent=0 // pred_check
    _
  $region3: #{up_forward.1} parent=0 // pred_check_branch
    %14 = sbr.rel (0) target = $region5
  $region4: #{up_forward.1} parent=0 // pred_region
    _
  $region5: #{up_forward.1} parent=0 // pred_fallthru
    _
  // Predicated region
  $region6: #{up_forward.1} parent=0 // pred_check
    _
  $region7: #{up_forward.1} parent=0 // pred_check_branch
    %16 = sbr.rel (0) target = $region9
  $region8: #{up_forward.1} parent=0 // pred_region
    _
  $region9: #{up_forward.1} parent=0 // pred_fallthru
    _
  // Predicated region
  $region10: #{up_forward.1} parent=0 // pred_check
    _
  $region11: #{up_forward.1} parent=0 // pred_check_branch
    %18 = sbr.rel (0) target = $region13
  $region12: #{up_forward.1} parent=0 // pred_region
    _
  $region13: #{up_forward.1} parent=0 // pred_fallthru
    _
  // Predicated region
  $region14: #{up_forward.1} parent=0 // pred_check
    _
  $region15: #{up_forward.1} parent=0 // pred_check_branch
    %20 = sbr.rel (0) target = $region17
  $region16: #{up_forward.1} parent=0 // pred_region
    _
  $region17: #{up_forward.1} parent=0 // pred_fallthru
    _
  // Predicated region
  $region18: #{up_forward.1} parent=0 // pred_check
    _
  $region19: #{up_forward.1} parent=0 // pred_check_branch
    %22 = sbr.rel (0) target = $region21
  $region20: #{up_forward.1} parent=0 // pred_region
    _
  $region21: #{up_forward.1} parent=0 // pred_fallthru
    _
  // Predicated region
  $region22: #{up_forward.1} parent=0 // pred_check
    _
  $region23: #{up_forward.1} parent=0 // pred_check_branch
    %24 = sbr.rel (0) target = $region25
  $region24: #{up_forward.1} parent=0 // pred_region
    _
  $region25: #{up_forward.1} parent=0 // pred_fallthru
    _
  // Predicated region
  $region26: #{up_forward.1} parent=0 // pred_check
    _
  $region27: #{up_forward.1} parent=0 // pred_check_branch
    %26 = sbr.rel (0) target = $region29
  $region28: #{up_forward.1} parent=0 // pred_region
    _
  $region29: #{up_forward.1} parent=0 // pred_fallthru
    _
  // Predicated region
  $region30: #{up_forward.1} parent=0 // pred_check
    _
  $region31: #{up_forward.1} parent=0 // pred_check_branch
    %28 = sbr.rel (0) target = $region33
  $region32: #{up_forward.1} parent=0 // pred_region
    _
  $region33: #{up_forward.1} parent=0 // pred_fallthru
    _
  %29 = vst [vmem:[#allocation2] sm:$0xff] 0.0
  %30 = vst [vmem:[#allocation2 + $0x48] sm:$0xff] 0.0
  %v31 = vld [vmem:[%s0] sm:$0xff]
  %v32 = vld [vmem:[%s0 + $0x8] sm:$0xff]
  %v33 = vld [vmem:[%s0 + $0x10] sm:$0xff]
  %v34 = vld [vmem:[%s0 + $0x18] sm:$0xff]
  %v35 = vld [vmem:[%s0 + $0x20] sm:$0xff]
  %v36 = vld [vmem:[%s0 + $0x28] sm:$0xff]
  %v37 = vld [vmem:[%s0 + $0x30] sm:$0xff]
  %v38 = vld [vmem:[%s0 + $0x38] sm:$0xff]
  %v39 = vld [vmem:[%s1] sm:$0xff]
  %v40 = vld [vmem:[%s1 + $0x8] sm:$0xff]
  %v41 = vld [vmem:[%s1 + $0x10] sm:$0xff]
  %v42 = vld [vmem:[%s1 + $0x18] sm:$0xff]
  %v43 = vld [vmem:[%s1 + $0x20] sm:$0xff]
  %v44 = vld [vmem:[%s1 + $0x28] sm:$0xff]
  %v45 = vld [vmem:[%s1 + $0x30] sm:$0xff]
  %v46 = vld [vmem:[%s1 + $0x38] sm:$0xff]
  %v47 = vld [vmem:[%s5] sm:$0xff]
  %49 = vset.pattern.permute.xlu0 0
  %50 = vperm.xlu0 %49, %v47
  %v51 = vpop.permute.xlu0 %50
  %v53 = vadd.f32 %v39, %v51
  %v54 = vadd.f32 %v40, %v51
  %v55 = vadd.f32 %v41, %v51
  %v56 = vadd.f32 %v42, %v51
  %v57 = vadd.f32 %v43, %v51
  %v58 = vadd.f32 %v44, %v51
  %v59 = vadd.f32 %v45, %v51
  %v60 = vadd.f32 %v46, %v51
  %v61 = vld [vmem:[%s2] sm:$0xff]
  %v62 = vld [vmem:[%s2 + $0x8] sm:$0xff]
  %v63 = vld [vmem:[%s2 + $0x10] sm:$0xff]
  %v64 = vld [vmem:[%s2 + $0x18] sm:$0xff]
  %vm65 = vcmask 64512
  %v67 = vsel %vm65, %v61, 0
  %v70 = vsel %vm65, %v62, 0
  %v73 = vsel %vm65, %v63, 0
  %v76 = vsel %vm65, %v64, 0
  %78 = vmatprep.subr.mxu0 %v32
  %79 = vmatpush1.msra.mxu0 %v31
  %80 = vmatprep.subr.mxu0 0.0
  %81 = vmatpush1.msra.mxu0 0.0
  %82 = vmatprep.subr.mxu0 0.0
  %83 = vmatpush1.msra.mxu0 0.0
  %84 = vmatprep.subr.mxu0 0.0
  %85 = vmatpush1.msra.mxu0 0.0
  %86 = vmatprep.subr.mxu0 0.0
  %87 = vmatpush1.msra.mxu0 0.0
  %88 = vmatprep.subr.mxu0 0.0
  %89 = vmatpush1.msra.mxu0 0.0
  %90 = vmatprep.subr.mxu0 0.0
  %91 = vmatpush1.msra.mxu0 0.0
  %92 = vmatprep.subr.mxu0 0.0
  %93 = vmatpush1.msra.mxu0 0.0
  %94 = vmatprep.subr.mxu0 0.0
  %95 = vmatpush1.msra.mxu0 0.0
  %96 = vmatprep.subr.mxu0 0.0
  %97 = vmatpush1.msra.mxu0 0.0
  %98 = vmatprep.subr.mxu0 0.0
  %99 = vmatpush1.msra.mxu0 0.0
  %100 = vmatprep.subr.mxu0 0.0
  %101 = vmatpush1.msra.mxu0 0.0
  %102 = vmatprep.subr.mxu0 0.0
  %103 = vmatpush1.msra.mxu0 0.0
  %104 = vmatprep.subr.mxu0 0.0
  %105 = vmatpush1.msra.mxu0 0.0
  %106 = vmatprep.subr.mxu0 0.0
  %107 = vmatpush1.msra.mxu0 0.0
  %108 = vmatprep.subr.mxu0 0.0
  %109 = vmatpush1.msra.mxu0 0.0
  %110 = vmatprep.subr.mxu0 0.0
  %111 = vmatpush1.msra.mxu0 0.0
  %112 = vmatprep.subr.mxu0 0.0
  %113 = vmatpush1.msra.mxu0 0.0
  %114 = vmatprep.subr.mxu0 0.0
  %115 = vmatpush1.msra.mxu0 0.0
  %116 = vmatprep.subr.mxu0 0.0
  %117 = vmatpush1.msra.mxu0 0.0
  %118 = vmatprep.subr.mxu0 0.0
  %119 = vmatpush1.msra.mxu0 0.0
  %120 = vmatprep.subr.mxu0 0.0
  %121 = vmatpush1.msra.mxu0 0.0
  %122 = vmatprep.subr.mxu0 0.0
  %123 = vmatpush1.msra.mxu0 0.0
  %124 = vmatprep.subr.mxu0 0.0
  %125 = vmatpush1.msra.mxu0 0.0
  %126 = vmatprep.subr.mxu0 0.0
  %127 = vmatpush1.msra.mxu0 0.0
  %128 = vmatprep.subr.mxu0 0.0
  %129 = vmatpush1.msra.mxu0 0.0
  %130 = vmatprep.subr.mxu0 0.0
  %131 = vmatpush1.msra.mxu0 0.0
  %132 = vmatprep.subr.mxu0 0.0
  %133 = vmatpush1.msra.mxu0 0.0
  %134 = vmatprep.subr.mxu0 0.0
  %135 = vmatpush1.msra.mxu0 0.0
  %136 = vmatprep.subr.mxu0 0.0
  %137 = vmatpush1.msra.mxu0 0.0
  %138 = vmatprep.subr.mxu0 0.0
  %139 = vmatpush1.msra.mxu0 0.0
  %140 = vmatprep.subr.mxu0 0.0
  %141 = vmatpush1.msra.mxu0 0.0
  %142 = vmatprep.mubr.f32.mxu0 0.0
  %143 = vmatmul.mubr.f32.gmra.mrb[0].mxu0 %v67
  %v144 = vpop.f32.mrb[0].mxu0
  %v145 = vadd.f32 0.0, %v144
  %v146 = vpop.f32.mrb[0].mxu0
  %v147 = vadd.f32 0.0, %v146
  %148 = vmatprep.mubr.f32.mxu0 0.0
  %149 = vmatmul.mubr.f32.gmra.mrb[0].mxu0 %v70
  %v150 = vpop.f32.mrb[0].mxu0
  %v151 = vadd.f32 0.0, %v150
  %v152 = vpop.f32.mrb[0].mxu0
  %v153 = vadd.f32 0.0, %v152
  %154 = vmatprep.mubr.f32.mxu0 0.0
  %155 = vmatmul.mubr.f32.gmra.mrb[0].mxu0 %v73
  %v156 = vpop.f32.mrb[0].mxu0
  %v157 = vadd.f32 0.0, %v156
  %v158 = vpop.f32.mrb[0].mxu0
  %v159 = vadd.f32 0.0, %v158
  %160 = vmatprep.mubr.f32.mxu0 0.0
  %161 = vmatmul.mubr.f32.gmra.mrb[0].mxu0 %v76
  %v162 = vpop.f32.mrb[0].mxu0
  %v163 = vadd.f32 0.0, %v162
  %v164 = vpop.f32.mrb[0].mxu0
  %v165 = vadd.f32 0.0, %v164
  %166 = vdwg.mxu0
  %167 = vmatprep.subr.mxu0 %v34
  %168 = vmatpush1.msra.mxu0 %v33
  %169 = vmatprep.subr.mxu0 0.0
  %170 = vmatpush1.msra.mxu0 0.0
  %171 = vmatprep.subr.mxu0 0.0
  %172 = vmatpush1.msra.mxu0 0.0
  %173 = vmatprep.subr.mxu0 0.0
  %174 = vmatpush1.msra.mxu0 0.0
  %175 = vmatprep.subr.mxu0 0.0
  %176 = vmatpush1.msra.mxu0 0.0
  %177 = vmatprep.subr.mxu0 0.0
  %178 = vmatpush1.msra.mxu0 0.0
  %179 = vmatprep.subr.mxu0 0.0
  %180 = vmatpush1.msra.mxu0 0.0
  %181 = vmatprep.subr.mxu0 0.0
  %182 = vmatpush1.msra.mxu0 0.0
  %183 = vmatprep.subr.mxu0 0.0
  %184 = vmatpush1.msra.mxu0 0.0
  %185 = vmatprep.subr.mxu0 0.0
  %186 = vmatpush1.msra.mxu0 0.0
  %187 = vmatprep.subr.mxu0 0.0
  %188 = vmatpush1.msra.mxu0 0.0
  %189 = vmatprep.subr.mxu0 0.0
  %190 = vmatpush1.msra.mxu0 0.0
  %191 = vmatprep.subr.mxu0 0.0
  %192 = vmatpush1.msra.mxu0 0.0
  %193 = vmatprep.subr.mxu0 0.0
  %194 = vmatpush1.msra.mxu0 0.0
  %195 = vmatprep.subr.mxu0 0.0
  %196 = vmatpush1.msra.mxu0 0.0
  %197 = vmatprep.subr.mxu0 0.0
  %198 = vmatpush1.msra.mxu0 0.0
  %199 = vmatprep.subr.mxu0 0.0
  %200 = vmatpush1.msra.mxu0 0.0
  %201 = vmatprep.subr.mxu0 0.0
  %202 = vmatpush1.msra.mxu0 0.0
  %203 = vmatprep.subr.mxu0 0.0
  %204 = vmatpush1.msra.mxu0 0.0
  %205 = vmatprep.subr.mxu0 0.0
  %206 = vmatpush1.msra.mxu0 0.0
  %207 = vmatprep.subr.mxu0 0.0
  %208 = vmatpush1.msra.mxu0 0.0
  %209 = vmatprep.subr.mxu0 0.0
  %210 = vmatpush1.msra.mxu0 0.0
  %211 = vmatprep.subr.mxu0 0.0
  %212 = vmatpush1.msra.mxu0 0.0
  %213 = vmatprep.subr.mxu0 0.0
  %214 = vmatpush1.msra.mxu0 0.0
  %215 = vmatprep.subr.mxu0 0.0
  %216 = vmatpush1.msra.mxu0 0.0
  %217 = vmatprep.subr.mxu0 0.0
  %218 = vmatpush1.msra.mxu0 0.0
  %219 = vmatprep.subr.mxu0 0.0
  %220 = vmatpush1.msra.mxu0 0.0
  %221 = vmatprep.subr.mxu0 0.0
  %222 = vmatpush1.msra.mxu0 0.0
  %223 = vmatprep.subr.mxu0 0.0
  %224 = vmatpush1.msra.mxu0 0.0
  %225 = vmatprep.subr.mxu0 0.0
  %226 = vmatpush1.msra.mxu0 0.0
  %227 = vmatprep.subr.mxu0 0.0
  %228 = vmatpush1.msra.mxu0 0.0
  %229 = vmatprep.subr.mxu0 0.0
  %230 = vmatpush1.msra.mxu0 0.0
  %231 = vmatprep.mubr.f32.mxu0 0.0
  %232 = vmatmul.mubr.f32.gmra.mrb[0].mxu0 %v67
  %v233 = vpop.f32.mrb[0].mxu0
  %v234 = vadd.f32 0.0, %v233
  %v235 = vpop.f32.mrb[0].mxu0
  %v236 = vadd.f32 0.0, %v235
  %237 = vmatprep.mubr.f32.mxu0 0.0
  %238 = vmatmul.mubr.f32.gmra.mrb[0].mxu0 %v70
  %v239 = vpop.f32.mrb[0].mxu0
  %v240 = vadd.f32 0.0, %v239
  %v241 = vpop.f32.mrb[0].mxu0
  %v242 = vadd.f32 0.0, %v241
  %243 = vmatprep.mubr.f32.mxu0 0.0
  %244 = vmatmul.mubr.f32.gmra.mrb[0].mxu0 %v73
  %v245 = vpop.f32.mrb[0].mxu0
  %v246 = vadd.f32 0.0, %v245
  %v247 = vpop.f32.mrb[0].mxu0
  %v248 = vadd.f32 0.0, %v247
  %249 = vmatprep.mubr.f32.mxu0 0.0
  %250 = vmatmul.mubr.f32.gmra.mrb[0].mxu0 %v76
  %v251 = vpop.f32.mrb[0].mxu0
  %v252 = vadd.f32 0.0, %v251
  %v253 = vpop.f32.mrb[0].mxu0
  %v254 = vadd.f32 0.0, %v253
  %255 = vdwg.mxu0
  %256 = vmatprep.subr.mxu0 %v36
  %257 = vmatpush1.msra.mxu0 %v35
  %258 = vmatprep.subr.mxu0 0.0
  %259 = vmatpush1.msra.mxu0 0.0
  %260 = vmatprep.subr.mxu0 0.0
  %261 = vmatpush1.msra.mxu0 0.0
  %262 = vmatprep.subr.mxu0 0.0
  %263 = vmatpush1.msra.mxu0 0.0
  %264 = vmatprep.subr.mxu0 0.0
  %265 = vmatpush1.msra.mxu0 0.0
  %266 = vmatprep.subr.mxu0 0.0
  %267 = vmatpush1.msra.mxu0 0.0
  %268 = vmatprep.subr.mxu0 0.0
  %269 = vmatpush1.msra.mxu0 0.0
  %270 = vmatprep.subr.mxu0 0.0
  %271 = vmatpush1.msra.mxu0 0.0
  %272 = vmatprep.subr.mxu0 0.0
  %273 = vmatpush1.msra.mxu0 0.0
  %274 = vmatprep.subr.mxu0 0.0
  %275 = vmatpush1.msra.mxu0 0.0
  %276 = vmatprep.subr.mxu0 0.0
  %277 = vmatpush1.msra.mxu0 0.0
  %278 = vmatprep.subr.mxu0 0.0
  %279 = vmatpush1.msra.mxu0 0.0
  %280 = vmatprep.subr.mxu0 0.0
  %281 = vmatpush1.msra.mxu0 0.0
  %282 = vmatprep.subr.mxu0 0.0
  %283 = vmatpush1.msra.mxu0 0.0
  %284 = vmatprep.subr.mxu0 0.0
  %285 = vmatpush1.msra.mxu0 0.0
  %286 = vmatprep.subr.mxu0 0.0
  %287 = vmatpush1.msra.mxu0 0.0
  %288 = vmatprep.subr.mxu0 0.0
  %289 = vmatpush1.msra.mxu0 0.0
  %290 = vmatprep.subr.mxu0 0.0
  %291 = vmatpush1.msra.mxu0 0.0
  %292 = vmatprep.subr.mxu0 0.0
  %293 = vmatpush1.msra.mxu0 0.0
  %294 = vmatprep.subr.mxu0 0.0
  %295 = vmatpush1.msra.mxu0 0.0
  %296 = vmatprep.subr.mxu0 0.0
  %297 = vmatpush1.msra.mxu0 0.0
  %298 = vmatprep.subr.mxu0 0.0
  %299 = vmatpush1.msra.mxu0 0.0
  %300 = vmatprep.subr.mxu0 0.0
  %301 = vmatpush1.msra.mxu0 0.0
  %302 = vmatprep.subr.mxu0 0.0
  %303 = vmatpush1.msra.mxu0 0.0
  %304 = vmatprep.subr.mxu0 0.0
  %305 = vmatpush1.msra.mxu0 0.0
  %306 = vmatprep.subr.mxu0 0.0
  %307 = vmatpush1.msra.mxu0 0.0
  %308 = vmatprep.subr.mxu0 0.0
  %309 = vmatpush1.msra.mxu0 0.0
  %310 = vmatprep.subr.mxu0 0.0
  %311 = vmatpush1.msra.mxu0 0.0
  %312 = vmatprep.subr.mxu0 0.0
  %313 = vmatpush1.msra.mxu0 0.0
  %314 = vmatprep.subr.mxu0 0.0
  %315 = vmatpush1.msra.mxu0 0.0
  %316 = vmatprep.subr.mxu0 0.0
  %317 = vmatpush1.msra.mxu0 0.0
  %318 = vmatprep.subr.mxu0 0.0
  %319 = vmatpush1.msra.mxu0 0.0
  %320 = vmatprep.mubr.f32.mxu0 0.0
  %321 = vmatmul.mubr.f32.gmra.mrb[0].mxu0 %v67
  %v322 = vpop.f32.mrb[0].mxu0
  %v323 = vadd.f32 0.0, %v322
  %v324 = vpop.f32.mrb[0].mxu0
  %v325 = vadd.f32 0.0, %v324
  %326 = vmatprep.mubr.f32.mxu0 0.0
  %327 = vmatmul.mubr.f32.gmra.mrb[0].mxu0 %v70
  %v328 = vpop.f32.mrb[0].mxu0
  %v329 = vadd.f32 0.0, %v328
  %v330 = vpop.f32.mrb[0].mxu0
  %v331 = vadd.f32 0.0, %v330
  %332 = vmatprep.mubr.f32.mxu0 0.0
  %333 = vmatmul.mubr.f32.gmra.mrb[0].mxu0 %v73
  %v334 = vpop.f32.mrb[0].mxu0
  %v335 = vadd.f32 0.0, %v334
  %v336 = vpop.f32.mrb[0].mxu0
  %v337 = vadd.f32 0.0, %v336
  %338 = vmatprep.mubr.f32.mxu0 0.0
  %339 = vmatmul.mubr.f32.gmra.mrb[0].mxu0 %v76
  %v340 = vpop.f32.mrb[0].mxu0
  %v341 = vadd.f32 0.0, %v340
  %v342 = vpop.f32.mrb[0].mxu0
  %v343 = vadd.f32 0.0, %v342
  %344 = vdwg.mxu0
  %345 = vmatprep.subr.mxu0 %v38
  %346 = vmatpush1.msra.mxu0 %v37
  %347 = vmatprep.subr.mxu0 0.0
  %348 = vmatpush1.msra.mxu0 0.0
  %349 = vmatprep.subr.mxu0 0.0
  %350 = vmatpush1.msra.mxu0 0.0
  %351 = vmatprep.subr.mxu0 0.0
  %352 = vmatpush1.msra.mxu0 0.0
  %353 = vmatprep.subr.mxu0 0.0
  %354 = vmatpush1.msra.mxu0 0.0
  %355 = vmatprep.subr.mxu0 0.0
  %356 = vmatpush1.msra.mxu0 0.0
  %357 = vmatprep.subr.mxu0 0.0
  %358 = vmatpush1.msra.mxu0 0.0
  %359 = vmatprep.subr.mxu0 0.0
  %360 = vmatpush1.msra.mxu0 0.0
  %361 = vmatprep.subr.mxu0 0.0
  %362 = vmatpush1.msra.mxu0 0.0
  %363 = vmatprep.subr.mxu0 0.0
  %364 = vmatpush1.msra.mxu0 0.0
  %365 = vmatprep.subr.mxu0 0.0
  %366 = vmatpush1.msra.mxu0 0.0
  %367 = vmatprep.subr.mxu0 0.0
  %368 = vmatpush1.msra.mxu0 0.0
  %369 = vmatprep.subr.mxu0 0.0
  %370 = vmatpush1.msra.mxu0 0.0
  %371 = vmatprep.subr.mxu0 0.0
  %372 = vmatpush1.msra.mxu0 0.0
  %373 = vmatprep.subr.mxu0 0.0
  %374 = vmatpush1.msra.mxu0 0.0
  %375 = vmatprep.subr.mxu0 0.0
  %376 = vmatpush1.msra.mxu0 0.0
  %377 = vmatprep.subr.mxu0 0.0
  %378 = vmatpush1.msra.mxu0 0.0
  %379 = vmatprep.subr.mxu0 0.0
  %380 = vmatpush1.msra.mxu0 0.0
  %381 = vmatprep.subr.mxu0 0.0
  %382 = vmatpush1.msra.mxu0 0.0
  %383 = vmatprep.subr.mxu0 0.0
  %384 = vmatpush1.msra.mxu0 0.0
  %385 = vmatprep.subr.mxu0 0.0
  %386 = vmatpush1.msra.mxu0 0.0
  %387 = vmatprep.subr.mxu0 0.0
  %388 = vmatpush1.msra.mxu0 0.0
  %389 = vmatprep.subr.mxu0 0.0
  %390 = vmatpush1.msra.mxu0 0.0
  %391 = vmatprep.subr.mxu0 0.0
  %392 = vmatpush1.msra.mxu0 0.0
  %393 = vmatprep.subr.mxu0 0.0
  %394 = vmatpush1.msra.mxu0 0.0
  %395 = vmatprep.subr.mxu0 0.0
  %396 = vmatpush1.msra.mxu0 0.0
  %397 = vmatprep.subr.mxu0 0.0
  %398 = vmatpush1.msra.mxu0 0.0
  %399 = vmatprep.subr.mxu0 0.0
  %400 = vmatpush1.msra.mxu0 0.0
  %401 = vmatprep.subr.mxu0 0.0
  %402 = vmatpush1.msra.mxu0 0.0
  %403 = vmatprep.subr.mxu0 0.0
  %404 = vmatpush1.msra.mxu0 0.0
  %405 = vmatprep.subr.mxu0 0.0
  %406 = vmatpush1.msra.mxu0 0.0
  %407 = vmatprep.subr.mxu0 0.0
  %408 = vmatpush1.msra.mxu0 0.0
  %409 = vmatprep.mubr.f32.mxu0 0.0
  %410 = vmatmul.mubr.f32.gmra.mrb[0].mxu0 %v67
  %v411 = vpop.f32.mrb[0].mxu0
  %v412 = vadd.f32 0.0, %v411
  %v413 = vpop.f32.mrb[0].mxu0
  %v414 = vadd.f32 0.0, %v413
  %415 = vmatprep.mubr.f32.mxu0 0.0
  %416 = vmatmul.mubr.f32.gmra.mrb[0].mxu0 %v70
  %v417 = vpop.f32.mrb[0].mxu0
  %v418 = vadd.f32 0.0, %v417
  %v419 = vpop.f32.mrb[0].mxu0
  %v420 = vadd.f32 0.0, %v419
  %421 = vmatprep.mubr.f32.mxu0 0.0
  %422 = vmatmul.mubr.f32.gmra.mrb[0].mxu0 %v73
  %v423 = vpop.f32.mrb[0].mxu0
  %v424 = vadd.f32 0.0, %v423
  %v425 = vpop.f32.mrb[0].mxu0
  %v426 = vadd.f32 0.0, %v425
  %427 = vmatprep.mubr.f32.mxu0 0.0
  %428 = vmatmul.mubr.f32.gmra.mrb[0].mxu0 %v76
  %v429 = vpop.f32.mrb[0].mxu0
  %v430 = vadd.f32 0.0, %v429
  %v431 = vpop.f32.mrb[0].mxu0
  %v432 = vadd.f32 0.0, %v431
  %433 = vdwg.mxu0
  %v434 = vld [vmem:[%s7] ss:$8 sm:$0xf]
  %v435 = vld [vmem:[%s7] ss:$8 sm:$0xf0]
  %v436 = vor.u32 %v434, %v435
  %v438 = vlaneseq
  %v439 = vshrl.u32 %v438, 7
  %v440 = vsub.s32 0, %v439
  %v441 = vrot.slane %v436, %v440
  %v442 = vlaneseq
  %v443 = vshrl.u32 %v442, 7
  %v444 = vsub.s32 1, %v443
  %v445 = vrot.slane %v436, %v444
  %v446 = vlaneseq
  %v447 = vshrl.u32 %v446, 7
  %v448 = vsub.s32 2, %v447
  %v449 = vrot.slane %v436, %v448
  %v450 = vlaneseq
  %v451 = vshrl.u32 %v450, 7
  %v452 = vsub.s32 3, %v451
  %v453 = vrot.slane %v436, %v452
  %v454 = vlaneseq
  %v455 = vshrl.u32 %v454, 7
  %v456 = vsub.s32 4, %v455
  %v457 = vrot.slane %v436, %v456
  %v458 = vlaneseq
  %v459 = vshrl.u32 %v458, 7
  %v460 = vsub.s32 5, %v459
  %v461 = vrot.slane %v436, %v460
  %v462 = vlaneseq
  %v463 = vshrl.u32 %v462, 7
  %v464 = vsub.s32 6, %v463
  %v465 = vrot.slane %v436, %v464
  %v466 = vlaneseq
  %v467 = vshrl.u32 %v466, 7
  %v468 = vsub.s32 7, %v467
  %v469 = vrot.slane %v436, %v468
  %v478 = vmul.f32 %v145, %v441
  %v479 = vmul.f32 %v147, %v445
  %v480 = vmul.f32 %v234, %v449
  %v481 = vmul.f32 %v236, %v453
  %v482 = vmul.f32 %v323, %v457
  %v483 = vmul.f32 %v325, %v461
  %v484 = vmul.f32 %v412, %v465
  %v485 = vmul.f32 %v414, %v469
  %v486 = vadd.f32 %v53, %v478
  %v487 = vadd.f32 %v54, %v479
  %v488 = vadd.f32 %v55, %v480
  %v489 = vadd.f32 %v56, %v481
  %v490 = vadd.f32 %v57, %v482
  %v491 = vadd.f32 %v58, %v483
  %v492 = vadd.f32 %v59, %v484
  %v493 = vadd.f32 %v60, %v485
  %s494 = scalar_lea.vmem %s7, 1
  %v495 = vld [vmem:[%s494] ss:$8 sm:$0xf]
  %v496 = vld [vmem:[%s494] ss:$8 sm:$0xf0]
  %v497 = vor.u32 %v495, %v496
  %v499 = vlaneseq
  %v500 = vshrl.u32 %v499, 7
  %v501 = vsub.s32 0, %v500
  %v502 = vrot.slane %v497, %v501
  %v503 = vlaneseq
  %v504 = vshrl.u32 %v503, 7
  %v505 = vsub.s32 1, %v504
  %v506 = vrot.slane %v497, %v505
  %v507 = vlaneseq
  %v508 = vshrl.u32 %v507, 7
  %v509 = vsub.s32 2, %v508
  %v510 = vrot.slane %v497, %v509
  %v511 = vlaneseq
  %v512 = vshrl.u32 %v511, 7
  %v513 = vsub.s32 3, %v512
  %v514 = vrot.slane %v497, %v513
  %v515 = vlaneseq
  %v516 = vshrl.u32 %v515, 7
  %v517 = vsub.s32 4, %v516
  %v518 = vrot.slane %v497, %v517
  %v519 = vlaneseq
  %v520 = vshrl.u32 %v519, 7
  %v521 = vsub.s32 5, %v520
  %v522 = vrot.slane %v497, %v521
  %v523 = vlaneseq
  %v524 = vshrl.u32 %v523, 7
  %v525 = vsub.s32 6, %v524
  %v526 = vrot.slane %v497, %v525
  %v527 = vlaneseq
  %v528 = vshrl.u32 %v527, 7
  %v529 = vsub.s32 7, %v528
  %v530 = vrot.slane %v497, %v529
  %v539 = vmul.f32 %v151, %v502
  %v540 = vmul.f32 %v153, %v506
  %v541 = vmul.f32 %v240, %v510
  %v542 = vmul.f32 %v242, %v514
  %v543 = vmul.f32 %v329, %v518
  %v544 = vmul.f32 %v331, %v522
  %v545 = vmul.f32 %v418, %v526
  %v546 = vmul.f32 %v420, %v530
  %v547 = vadd.f32 %v486, %v539
  %v548 = vadd.f32 %v487, %v540
  %v549 = vadd.f32 %v488, %v541
  %v550 = vadd.f32 %v489, %v542
  %v551 = vadd.f32 %v490, %v543
  %v552 = vadd.f32 %v491, %v544
  %v553 = vadd.f32 %v492, %v545
  %v554 = vadd.f32 %v493, %v546
  %s555 = scalar_lea.vmem %s7, 2
  %v556 = vld [vmem:[%s555] ss:$8 sm:$0xf]
  %v557 = vld [vmem:[%s555] ss:$8 sm:$0xf0]
  %v558 = vor.u32 %v556, %v557
  %v560 = vlaneseq
  %v561 = vshrl.u32 %v560, 7
  %v562 = vsub.s32 0, %v561
  %v563 = vrot.slane %v558, %v562
  %v564 = vlaneseq
  %v565 = vshrl.u32 %v564, 7
  %v566 = vsub.s32 1, %v565
  %v567 = vrot.slane %v558, %v566
  %v568 = vlaneseq
  %v569 = vshrl.u32 %v568, 7
  %v570 = vsub.s32 2, %v569
  %v571 = vrot.slane %v558, %v570
  %v572 = vlaneseq
  %v573 = vshrl.u32 %v572, 7
  %v574 = vsub.s32 3, %v573
  %v575 = vrot.slane %v558, %v574
  %v576 = vlaneseq
  %v577 = vshrl.u32 %v576, 7
  %v578 = vsub.s32 4, %v577
  %v579 = vrot.slane %v558, %v578
  %v580 = vlaneseq
  %v581 = vshrl.u32 %v580, 7
  %v582 = vsub.s32 5, %v581
  %v583 = vrot.slane %v558, %v582
  %v584 = vlaneseq
  %v585 = vshrl.u32 %v584, 7
  %v586 = vsub.s32 6, %v585
  %v587 = vrot.slane %v558, %v586
  %v588 = vlaneseq
  %v589 = vshrl.u32 %v588, 7
  %v590 = vsub.s32 7, %v589
  %v591 = vrot.slane %v558, %v590
  %v600 = vmul.f32 %v157, %v563
  %v601 = vmul.f32 %v159, %v567
  %v602 = vmul.f32 %v246, %v571
  %v603 = vmul.f32 %v248, %v575
  %v604 = vmul.f32 %v335, %v579
  %v605 = vmul.f32 %v337, %v583
  %v606 = vmul.f32 %v424, %v587
  %v607 = vmul.f32 %v426, %v591
  %v608 = vadd.f32 %v547, %v600
  %v609 = vadd.f32 %v548, %v601
  %v610 = vadd.f32 %v549, %v602
  %v611 = vadd.f32 %v550, %v603
  %v612 = vadd.f32 %v551, %v604
  %v613 = vadd.f32 %v552, %v605
  %v614 = vadd.f32 %v553, %v606
  %v615 = vadd.f32 %v554, %v607
  %s616 = scalar_lea.vmem %s7, 3
  %v617 = vld [vmem:[%s616] ss:$8 sm:$0xf]
  %v618 = vld [vmem:[%s616] ss:$8 sm:$0xf0]
  %v619 = vor.u32 %v617, %v618
  %v621 = vlaneseq
  %v622 = vshrl.u32 %v621, 7
  %v623 = vsub.s32 0, %v622
  %v624 = vrot.slane %v619, %v623
  %v625 = vlaneseq
  %v626 = vshrl.u32 %v625, 7
  %v627 = vsub.s32 1, %v626
  %v628 = vrot.slane %v619, %v627
  %v629 = vlaneseq
  %v630 = vshrl.u32 %v629, 7
  %v631 = vsub.s32 2, %v630
  %v632 = vrot.slane %v619, %v631
  %v633 = vlaneseq
  %v634 = vshrl.u32 %v633, 7
  %v635 = vsub.s32 3, %v634
  %v636 = vrot.slane %v619, %v635
  %v637 = vlaneseq
  %v638 = vshrl.u32 %v637, 7
  %v639 = vsub.s32 4, %v638
  %v640 = vrot.slane %v619, %v639
  %v641 = vlaneseq
  %v642 = vshrl.u32 %v641, 7
  %v643 = vsub.s32 5, %v642
  %v644 = vrot.slane %v619, %v643
  %v645 = vlaneseq
  %v646 = vshrl.u32 %v645, 7
  %v647 = vsub.s32 6, %v646
  %v648 = vrot.slane %v619, %v647
  %v649 = vlaneseq
  %v650 = vshrl.u32 %v649, 7
  %v651 = vsub.s32 7, %v650
  %v652 = vrot.slane %v619, %v651
  %v661 = vmul.f32 %v163, %v624
  %v662 = vmul.f32 %v165, %v628
  %v663 = vmul.f32 %v252, %v632
  %v664 = vmul.f32 %v254, %v636
  %v665 = vmul.f32 %v341, %v640
  %v666 = vmul.f32 %v343, %v644
  %v667 = vmul.f32 %v430, %v648
  %v668 = vmul.f32 %v432, %v652
  %v669 = vadd.f32 %v608, %v661
  %v670 = vadd.f32 %v609, %v662
  %v671 = vadd.f32 %v610, %v663
  %v672 = vadd.f32 %v611, %v664
  %v673 = vadd.f32 %v612, %v665
  %v674 = vadd.f32 %v613, %v666
  %v675 = vadd.f32 %v614, %v667
  %v676 = vadd.f32 %v615, %v668
  %s677 = scalar_lea.vmem %s2, 32
  %v678 = vld [vmem:[%s677] sm:$0xff]
  %v679 = vld [vmem:[%s677 + $0x8] sm:$0xff]
  %v680 = vld [vmem:[%s677 + $0x10] sm:$0xff]
  %v681 = vld [vmem:[%s677 + $0x18] sm:$0xff]
  %v683 = vsel %vm65, %v678, 0
  %v686 = vsel %vm65, %v679, 0
  %v689 = vsel %vm65, %v680, 0
  %v692 = vsel %vm65, %v681, 0
  %694 = vmatprep.subr.mxu0 %v32
  %695 = vmatpush1.msra.mxu0 %v31
  %696 = vmatprep.subr.mxu0 0.0
  %697 = vmatpush1.msra.mxu0 0.0
  %698 = vmatprep.subr.mxu0 0.0
  %699 = vmatpush1.msra.mxu0 0.0
  %700 = vmatprep.subr.mxu0 0.0
  %701 = vmatpush1.msra.mxu0 0.0
  %702 = vmatprep.subr.mxu0 0.0
  %703 = vmatpush1.msra.mxu0 0.0
  %704 = vmatprep.subr.mxu0 0.0
  %705 = vmatpush1.msra.mxu0 0.0
  %706 = vmatprep.subr.mxu0 0.0
  %707 = vmatpush1.msra.mxu0 0.0
  %708 = vmatprep.subr.mxu0 0.0
  %709 = vmatpush1.msra.mxu0 0.0
  %710 = vmatprep.subr.mxu0 0.0
  %711 = vmatpush1.msra.mxu0 0.0
  %712 = vmatprep.subr.mxu0 0.0
  %713 = vmatpush1.msra.mxu0 0.0
  %714 = vmatprep.subr.mxu0 0.0
  %715 = vmatpush1.msra.mxu0 0.0
  %716 = vmatprep.subr.mxu0 0.0
  %717 = vmatpush1.msra.mxu0 0.0
  %718 = vmatprep.subr.mxu0 0.0
  %719 = vmatpush1.msra.mxu0 0.0
  %720 = vmatprep.subr.mxu0 0.0
  %721 = vmatpush1.msra.mxu0 0.0
  %722 = vmatprep.subr.mxu0 0.0
  %723 = vmatpush1.msra.mxu0 0.0
  %724 = vmatprep.subr.mxu0 0.0
  %725 = vmatpush1.msra.mxu0 0.0
  %726 = vmatprep.subr.mxu0 0.0
  %727 = vmatpush1.msra.mxu0 0.0
  %728 = vmatprep.subr.mxu0 0.0
  %729 = vmatpush1.msra.mxu0 0.0
  %730 = vmatprep.subr.mxu0 0.0
  %731 = vmatpush1.msra.mxu0 0.0
  %732 = vmatprep.subr.mxu0 0.0
  %733 = vmatpush1.msra.mxu0 0.0
  %734 = vmatprep.subr.mxu0 0.0
  %735 = vmatpush1.msra.mxu0 0.0
  %736 = vmatprep.subr.mxu0 0.0
  %737 = vmatpush1.msra.mxu0 0.0
  %738 = vmatprep.subr.mxu0 0.0
  %739 = vmatpush1.msra.mxu0 0.0
  %740 = vmatprep.subr.mxu0 0.0
  %741 = vmatpush1.msra.mxu0 0.0
  %742 = vmatprep.subr.mxu0 0.0
  %743 = vmatpush1.msra.mxu0 0.0
  %744 = vmatprep.subr.mxu0 0.0
  %745 = vmatpush1.msra.mxu0 0.0
  %746 = vmatprep.subr.mxu0 0.0
  %747 = vmatpush1.msra.mxu0 0.0
  %748 = vmatprep.subr.mxu0 0.0
  %749 = vmatpush1.msra.mxu0 0.0
  %750 = vmatprep.subr.mxu0 0.0
  %751 = vmatpush1.msra.mxu0 0.0
  %752 = vmatprep.subr.mxu0 0.0
  %753 = vmatpush1.msra.mxu0 0.0
  %754 = vmatprep.subr.mxu0 0.0
  %755 = vmatpush1.msra.mxu0 0.0
  %756 = vmatprep.subr.mxu0 0.0
  %757 = vmatpush1.msra.mxu0 0.0
  %758 = vmatprep.mubr.f32.mxu0 0.0
  %759 = vmatmul.mubr.f32.gmra.mrb[0].mxu0 %v683
  %v760 = vpop.f32.mrb[0].mxu0
  %v761 = vadd.f32 0.0, %v760
  %v762 = vpop.f32.mrb[0].mxu0
  %v763 = vadd.f32 0.0, %v762
  %764 = vmatprep.mubr.f32.mxu0 0.0
  %765 = vmatmul.mubr.f32.gmra.mrb[0].mxu0 %v686
  %v766 = vpop.f32.mrb[0].mxu0
  %v767 = vadd.f32 0.0, %v766
  %v768 = vpop.f32.mrb[0].mxu0
  %v769 = vadd.f32 0.0, %v768
  %770 = vmatprep.mubr.f32.mxu0 0.0
  %771 = vmatmul.mubr.f32.gmra.mrb[0].mxu0 %v689
  %v772 = vpop.f32.mrb[0].mxu0
  %v773 = vadd.f32 0.0, %v772
  %v774 = vpop.f32.mrb[0].mxu0
  %v775 = vadd.f32 0.0, %v774
  %776 = vmatprep.mubr.f32.mxu0 0.0
  %777 = vmatmul.mubr.f32.gmra.mrb[0].mxu0 %v692
  %v778 = vpop.f32.mrb[0].mxu0
  %v779 = vadd.f32 0.0, %v778
  %v780 = vpop.f32.mrb[0].mxu0
  %v781 = vadd.f32 0.0, %v780
  %782 = vdwg.mxu0
  %783 = vmatprep.subr.mxu0 %v34
  %784 = vmatpush1.msra.mxu0 %v33
  %785 = vmatprep.subr.mxu0 0.0
  %786 = vmatpush1.msra.mxu0 0.0
  %787 = vmatprep.subr.mxu0 0.0
  %788 = vmatpush1.msra.mxu0 0.0
  %789 = vmatprep.subr.mxu0 0.0
  %790 = vmatpush1.msra.mxu0 0.0
  %791 = vmatprep.subr.mxu0 0.0
  %792 = vmatpush1.msra.mxu0 0.0
  %793 = vmatprep.subr.mxu0 0.0
  %794 = vmatpush1.msra.mxu0 0.0
  %795 = vmatprep.subr.mxu0 0.0
  %796 = vmatpush1.msra.mxu0 0.0
  %797 = vmatprep.subr.mxu0 0.0
  %798 = vmatpush1.msra.mxu0 0.0
  %799 = vmatprep.subr.mxu0 0.0
  %800 = vmatpush1.msra.mxu0 0.0
  %801 = vmatprep.subr.mxu0 0.0
  %802 = vmatpush1.msra.mxu0 0.0
  %803 = vmatprep.subr.mxu0 0.0
  %804 = vmatpush1.msra.mxu0 0.0
  %805 = vmatprep.subr.mxu0 0.0
  %806 = vmatpush1.msra.mxu0 0.0
  %807 = vmatprep.subr.mxu0 0.0
  %808 = vmatpush1.msra.mxu0 0.0
  %809 = vmatprep.subr.mxu0 0.0
  %810 = vmatpush1.msra.mxu0 0.0
  %811 = vmatprep.subr.mxu0 0.0
  %812 = vmatpush1.msra.mxu0 0.0
  %813 = vmatprep.subr.mxu0 0.0
  %814 = vmatpush1.msra.mxu0 0.0
  %815 = vmatprep.subr.mxu0 0.0
  %816 = vmatpush1.msra.mxu0 0.0
  %817 = vmatprep.subr.mxu0 0.0
  %818 = vmatpush1.msra.mxu0 0.0
  %819 = vmatprep.subr.mxu0 0.0
  %820 = vmatpush1.msra.mxu0 0.0
  %821 = vmatprep.subr.mxu0 0.0
  %822 = vmatpush1.msra.mxu0 0.0
  %823 = vmatprep.subr.mxu0 0.0
  %824 = vmatpush1.msra.mxu0 0.0
  %825 = vmatprep.subr.mxu0 0.0
  %826 = vmatpush1.msra.mxu0 0.0
  %827 = vmatprep.subr.mxu0 0.0
  %828 = vmatpush1.msra.mxu0 0.0
  %829 = vmatprep.subr.mxu0 0.0
  %830 = vmatpush1.msra.mxu0 0.0
  %831 = vmatprep.subr.mxu0 0.0
  %832 = vmatpush1.msra.mxu0 0.0
  %833 = vmatprep.subr.mxu0 0.0
  %834 = vmatpush1.msra.mxu0 0.0
  %835 = vmatprep.subr.mxu0 0.0
  %836 = vmatpush1.msra.mxu0 0.0
  %837 = vmatprep.subr.mxu0 0.0
  %838 = vmatpush1.msra.mxu0 0.0
  %839 = vmatprep.subr.mxu0 0.0
  %840 = vmatpush1.msra.mxu0 0.0
  %841 = vmatprep.subr.mxu0 0.0
  %842 = vmatpush1.msra.mxu0 0.0
  %843 = vmatprep.subr.mxu0 0.0
  %844 = vmatpush1.msra.mxu0 0.0
  %845 = vmatprep.subr.mxu0 0.0
  %846 = vmatpush1.msra.mxu0 0.0
  %847 = vmatprep.mubr.f32.mxu0 0.0
  %848 = vmatmul.mubr.f32.gmra.mrb[0].mxu0 %v683
  %v849 = vpop.f32.mrb[0].mxu0
  %v850 = vadd.f32 0.0, %v849
  %v851 = vpop.f32.mrb[0].mxu0
  %v852 = vadd.f32 0.0, %v851
  %853 = vmatprep.mubr.f32.mxu0 0.0
  %854 = vmatmul.mubr.f32.gmra.mrb[0].mxu0 %v686
  %v855 = vpop.f32.mrb[0].mxu0
  %v856 = vadd.f32 0.0, %v855
  %v857 = vpop.f32.mrb[0].mxu0
  %v858 = vadd.f32 0.0, %v857
  %859 = vmatprep.mubr.f32.mxu0 0.0
  %860 = vmatmul.mubr.f32.gmra.mrb[0].mxu0 %v689
  %v861 = vpop.f32.mrb[0].mxu0
  %v862 = vadd.f32 0.0, %v861
  %v863 = vpop.f32.mrb[0].mxu0
  %v864 = vadd.f32 0.0, %v863
  %865 = vmatprep.mubr.f32.mxu0 0.0
  %866 = vmatmul.mubr.f32.gmra.mrb[0].mxu0 %v692
  %v867 = vpop.f32.mrb[0].mxu0
  %v868 = vadd.f32 0.0, %v867
  %v869 = vpop.f32.mrb[0].mxu0
  %v870 = vadd.f32 0.0, %v869
  %871 = vdwg.mxu0
  %872 = vmatprep.subr.mxu0 %v36
  %873 = vmatpush1.msra.mxu0 %v35
  %874 = vmatprep.subr.mxu0 0.0
  %875 = vmatpush1.msra.mxu0 0.0
  %876 = vmatprep.subr.mxu0 0.0
  %877 = vmatpush1.msra.mxu0 0.0
  %878 = vmatprep.subr.mxu0 0.0
  %879 = vmatpush1.msra.mxu0 0.0
  %880 = vmatprep.subr.mxu0 0.0
  %881 = vmatpush1.msra.mxu0 0.0
  %882 = vmatprep.subr.mxu0 0.0
  %883 = vmatpush1.msra.mxu0 0.0
  %884 = vmatprep.subr.mxu0 0.0
  %885 = vmatpush1.msra.mxu0 0.0
  %886 = vmatprep.subr.mxu0 0.0
  %887 = vmatpush1.msra.mxu0 0.0
  %888 = vmatprep.subr.mxu0 0.0
  %889 = vmatpush1.msra.mxu0 0.0
  %890 = vmatprep.subr.mxu0 0.0
  %891 = vmatpush1.msra.mxu0 0.0
  %892 = vmatprep.subr.mxu0 0.0
  %893 = vmatpush1.msra.mxu0 0.0
  %894 = vmatprep.subr.mxu0 0.0
  %895 = vmatpush1.msra.mxu0 0.0
  %896 = vmatprep.subr.mxu0 0.0
  %897 = vmatpush1.msra.mxu0 0.0
  %898 = vmatprep.subr.mxu0 0.0
  %899 = vmatpush1.msra.mxu0 0.0
  %900 = vmatprep.subr.mxu0 0.0
  %901 = vmatpush1.msra.mxu0 0.0
  %902 = vmatprep.subr.mxu0 0.0
  %903 = vmatpush1.msra.mxu0 0.0
  %904 = vmatprep.subr.mxu0 0.0
  %905 = vmatpush1.msra.mxu0 0.0
  %906 = vmatprep.subr.mxu0 0.0
  %907 = vmatpush1.msra.mxu0 0.0
  %908 = vmatprep.subr.mxu0 0.0
  %909 = vmatpush1.msra.mxu0 0.0
  %910 = vmatprep.subr.mxu0 0.0
  %911 = vmatpush1.msra.mxu0 0.0
  %912 = vmatprep.subr.mxu0 0.0
  %913 = vmatpush1.msra.mxu0 0.0
  %914 = vmatprep.subr.mxu0 0.0
  %915 = vmatpush1.msra.mxu0 0.0
  %916 = vmatprep.subr.mxu0 0.0
  %917 = vmatpush1.msra.mxu0 0.0
  %918 = vmatprep.subr.mxu0 0.0
  %919 = vmatpush1.msra.mxu0 0.0
  %920 = vmatprep.subr.mxu0 0.0
  %921 = vmatpush1.msra.mxu0 0.0
  %922 = vmatprep.subr.mxu0 0.0
  %923 = vmatpush1.msra.mxu0 0.0
  %924 = vmatprep.subr.mxu0 0.0
  %925 = vmatpush1.msra.mxu0 0.0
  %926 = vmatprep.subr.mxu0 0.0
  %927 = vmatpush1.msra.mxu0 0.0
  %928 = vmatprep.subr.mxu0 0.0
  %929 = vmatpush1.msra.mxu0 0.0
  %930 = vmatprep.subr.mxu0 0.0
  %931 = vmatpush1.msra.mxu0 0.0
  %932 = vmatprep.subr.mxu0 0.0
  %933 = vmatpush1.msra.mxu0 0.0
  %934 = vmatprep.subr.mxu0 0.0
  %935 = vmatpush1.msra.mxu0 0.0
  %936 = vmatprep.mubr.f32.mxu0 0.0
  %937 = vmatmul.mubr.f32.gmra.mrb[0].mxu0 %v683
  %v938 = vpop.f32.mrb[0].mxu0
  %v939 = vadd.f32 0.0, %v938
  %v940 = vpop.f32.mrb[0].mxu0
  %v941 = vadd.f32 0.0, %v940
  %942 = vmatprep.mubr.f32.mxu0 0.0
  %943 = vmatmul.mubr.f32.gmra.mrb[0].mxu0 %v686
  %v944 = vpop.f32.mrb[0].mxu0
  %v945 = vadd.f32 0.0, %v944
  %v946 = vpop.f32.mrb[0].mxu0
  %v947 = vadd.f32 0.0, %v946
  %948 = vmatprep.mubr.f32.mxu0 0.0
  %949 = vmatmul.mubr.f32.gmra.mrb[0].mxu0 %v689
  %v950 = vpop.f32.mrb[0].mxu0
  %v951 = vadd.f32 0.0, %v950
  %v952 = vpop.f32.mrb[0].mxu0
  %v953 = vadd.f32 0.0, %v952
  %954 = vmatprep.mubr.f32.mxu0 0.0
  %955 = vmatmul.mubr.f32.gmra.mrb[0].mxu0 %v692
  %v956 = vpop.f32.mrb[0].mxu0
  %v957 = vadd.f32 0.0, %v956
  %v958 = vpop.f32.mrb[0].mxu0
  %v959 = vadd.f32 0.0, %v958
  %960 = vdwg.mxu0
  %961 = vmatprep.subr.mxu0 %v38
  %962 = vmatpush1.msra.mxu0 %v37
  %963 = vmatprep.subr.mxu0 0.0
  %964 = vmatpush1.msra.mxu0 0.0
  %965 = vmatprep.subr.mxu0 0.0
  %966 = vmatpush1.msra.mxu0 0.0
  %967 = vmatprep.subr.mxu0 0.0
  %968 = vmatpush1.msra.mxu0 0.0
  %969 = vmatprep.subr.mxu0 0.0
  %970 = vmatpush1.msra.mxu0 0.0
  %971 = vmatprep.subr.mxu0 0.0
  %972 = vmatpush1.msra.mxu0 0.0
  %973 = vmatprep.subr.mxu0 0.0
  %974 = vmatpush1.msra.mxu0 0.0
  %975 = vmatprep.subr.mxu0 0.0
  %976 = vmatpush1.msra.mxu0 0.0
  %977 = vmatprep.subr.mxu0 0.0
  %978 = vmatpush1.msra.mxu0 0.0
  %979 = vmatprep.subr.mxu0 0.0
  %980 = vmatpush1.msra.mxu0 0.0
  %981 = vmatprep.subr.mxu0 0.0
  %982 = vmatpush1.msra.mxu0 0.0
  %983 = vmatprep.subr.mxu0 0.0
  %984 = vmatpush1.msra.mxu0 0.0
  %985 = vmatprep.subr.mxu0 0.0
  %986 = vmatpush1.msra.mxu0 0.0
  %987 = vmatprep.subr.mxu0 0.0
  %988 = vmatpush1.msra.mxu0 0.0
  %989 = vmatprep.subr.mxu0 0.0
  %990 = vmatpush1.msra.mxu0 0.0
  %991 = vmatprep.subr.mxu0 0.0
  %992 = vmatpush1.msra.mxu0 0.0
  %993 = vmatprep.subr.mxu0 0.0
  %994 = vmatpush1.msra.mxu0 0.0
  %995 = vmatprep.subr.mxu0 0.0
  %996 = vmatpush1.msra.mxu0 0.0
  %997 = vmatprep.subr.mxu0 0.0
  %998 = vmatpush1.msra.mxu0 0.0
  %999 = vmatprep.subr.mxu0 0.0
  %1000 = vmatpush1.msra.mxu0 0.0
  %1001 = vmatprep.subr.mxu0 0.0
  %1002 = vmatpush1.msra.mxu0 0.0
  %1003 = vmatprep.subr.mxu0 0.0
  %1004 = vmatpush1.msra.mxu0 0.0
  %1005 = vmatprep.subr.mxu0 0.0
  %1006 = vmatpush1.msra.mxu0 0.0
  %1007 = vmatprep.subr.mxu0 0.0
  %1008 = vmatpush1.msra.mxu0 0.0
  %1009 = vmatprep.subr.mxu0 0.0
  %1010 = vmatpush1.msra.mxu0 0.0
  %1011 = vmatprep.subr.mxu0 0.0
  %1012 = vmatpush1.msra.mxu0 0.0
  %1013 = vmatprep.subr.mxu0 0.0
  %1014 = vmatpush1.msra.mxu0 0.0
  %1015 = vmatprep.subr.mxu0 0.0
  %1016 = vmatpush1.msra.mxu0 0.0
  %1017 = vmatprep.subr.mxu0 0.0
  %1018 = vmatpush1.msra.mxu0 0.0
  %1019 = vmatprep.subr.mxu0 0.0
  %1020 = vmatpush1.msra.mxu0 0.0
  %1021 = vmatprep.subr.mxu0 0.0
  %1022 = vmatpush1.msra.mxu0 0.0
  %1023 = vmatprep.subr.mxu0 0.0
  %1024 = vmatpush1.msra.mxu0 0.0
  %1025 = vmatprep.mubr.f32.mxu0 0.0
  %1026 = vmatmul.mubr.f32.gmra.mrb[0].mxu0 %v683
  %v1027 = vpop.f32.mrb[0].mxu0
  %v1028 = vadd.f32 0.0, %v1027
  %v1029 = vpop.f32.mrb[0].mxu0
  %v1030 = vadd.f32 0.0, %v1029
  %1031 = vmatprep.mubr.f32.mxu0 0.0
  %1032 = vmatmul.mubr.f32.gmra.mrb[0].mxu0 %v686
  %v1033 = vpop.f32.mrb[0].mxu0
  %v1034 = vadd.f32 0.0, %v1033
  %v1035 = vpop.f32.mrb[0].mxu0
  %v1036 = vadd.f32 0.0, %v1035
  %1037 = vmatprep.mubr.f32.mxu0 0.0
  %1038 = vmatmul.mubr.f32.gmra.mrb[0].mxu0 %v689
  %v1039 = vpop.f32.mrb[0].mxu0
  %v1040 = vadd.f32 0.0, %v1039
  %v1041 = vpop.f32.mrb[0].mxu0
  %v1042 = vadd.f32 0.0, %v1041
  %1043 = vmatprep.mubr.f32.mxu0 0.0
  %1044 = vmatmul.mubr.f32.gmra.mrb[0].mxu0 %v692
  %v1045 = vpop.f32.mrb[0].mxu0
  %v1046 = vadd.f32 0.0, %v1045
  %v1047 = vpop.f32.mrb[0].mxu0
  %v1048 = vadd.f32 0.0, %v1047
  %1049 = vdwg.mxu0
  %s1050 = scalar_lea.vmem %s7, 4
  %v1051 = vld [vmem:[%s1050] ss:$8 sm:$0xf]
  %v1052 = vld [vmem:[%s1050] ss:$8 sm:$0xf0]
  %v1053 = vor.u32 %v1051, %v1052
  %v1055 = vlaneseq
  %v1056 = vshrl.u32 %v1055, 7
  %v1057 = vsub.s32 0, %v1056
  %v1058 = vrot.slane %v1053, %v1057
  %v1059 = vlaneseq
  %v1060 = vshrl.u32 %v1059, 7
  %v1061 = vsub.s32 1, %v1060
  %v1062 = vrot.slane %v1053, %v1061
  %v1063 = vlaneseq
  %v1064 = vshrl.u32 %v1063, 7
  %v1065 = vsub.s32 2, %v1064
  %v1066 = vrot.slane %v1053, %v1065
  %v1067 = vlaneseq
  %v1068 = vshrl.u32 %v1067, 7
  %v1069 = vsub.s32 3, %v1068
  %v1070 = vrot.slane %v1053, %v1069
  %v1071 = vlaneseq
  %v1072 = vshrl.u32 %v1071, 7
  %v1073 = vsub.s32 4, %v1072
  %v1074 = vrot.slane %v1053, %v1073
  %v1075 = vlaneseq
  %v1076 = vshrl.u32 %v1075, 7
  %v1077 = vsub.s32 5, %v1076
  %v1078 = vrot.slane %v1053, %v1077
  %v1079 = vlaneseq
  %v1080 = vshrl.u32 %v1079, 7
  %v1081 = vsub.s32 6, %v1080
  %v1082 = vrot.slane %v1053, %v1081
  %v1083 = vlaneseq
  %v1084 = vshrl.u32 %v1083, 7
  %v1085 = vsub.s32 7, %v1084
  %v1086 = vrot.slane %v1053, %v1085
  %v1095 = vmul.f32 %v761, %v1058
  %v1096 = vmul.f32 %v763, %v1062
  %v1097 = vmul.f32 %v850, %v1066
  %v1098 = vmul.f32 %v852, %v1070
  %v1099 = vmul.f32 %v939, %v1074
  %v1100 = vmul.f32 %v941, %v1078
  %v1101 = vmul.f32 %v1028, %v1082
  %v1102 = vmul.f32 %v1030, %v1086
  %v1103 = vadd.f32 %v669, %v1095
  %v1104 = vadd.f32 %v670, %v1096
  %v1105 = vadd.f32 %v671, %v1097
  %v1106 = vadd.f32 %v672, %v1098
  %v1107 = vadd.f32 %v673, %v1099
  %v1108 = vadd.f32 %v674, %v1100
  %v1109 = vadd.f32 %v675, %v1101
  %v1110 = vadd.f32 %v676, %v1102
  %s1111 = scalar_lea.vmem %s7, 5
  %v1112 = vld [vmem:[%s1111] ss:$8 sm:$0xf]
  %v1113 = vld [vmem:[%s1111] ss:$8 sm:$0xf0]
  %v1114 = vor.u32 %v1112, %v1113
  %v1116 = vlaneseq
  %v1117 = vshrl.u32 %v1116, 7
  %v1118 = vsub.s32 0, %v1117
  %v1119 = vrot.slane %v1114, %v1118
  %v1120 = vlaneseq
  %v1121 = vshrl.u32 %v1120, 7
  %v1122 = vsub.s32 1, %v1121
  %v1123 = vrot.slane %v1114, %v1122
  %v1124 = vlaneseq
  %v1125 = vshrl.u32 %v1124, 7
  %v1126 = vsub.s32 2, %v1125
  %v1127 = vrot.slane %v1114, %v1126
  %v1128 = vlaneseq
  %v1129 = vshrl.u32 %v1128, 7
  %v1130 = vsub.s32 3, %v1129
  %v1131 = vrot.slane %v1114, %v1130
  %v1132 = vlaneseq
  %v1133 = vshrl.u32 %v1132, 7
  %v1134 = vsub.s32 4, %v1133
  %v1135 = vrot.slane %v1114, %v1134
  %v1136 = vlaneseq
  %v1137 = vshrl.u32 %v1136, 7
  %v1138 = vsub.s32 5, %v1137
  %v1139 = vrot.slane %v1114, %v1138
  %v1140 = vlaneseq
  %v1141 = vshrl.u32 %v1140, 7
  %v1142 = vsub.s32 6, %v1141
  %v1143 = vrot.slane %v1114, %v1142
  %v1144 = vlaneseq
  %v1145 = vshrl.u32 %v1144, 7
  %v1146 = vsub.s32 7, %v1145
  %v1147 = vrot.slane %v1114, %v1146
  %v1156 = vmul.f32 %v767, %v1119
  %v1157 = vmul.f32 %v769, %v1123
  %v1158 = vmul.f32 %v856, %v1127
  %v1159 = vmul.f32 %v858, %v1131
  %v1160 = vmul.f32 %v945, %v1135
  %v1161 = vmul.f32 %v947, %v1139
  %v1162 = vmul.f32 %v1034, %v1143
  %v1163 = vmul.f32 %v1036, %v1147
  %v1164 = vadd.f32 %v1103, %v1156
  %v1165 = vadd.f32 %v1104, %v1157
  %v1166 = vadd.f32 %v1105, %v1158
  %v1167 = vadd.f32 %v1106, %v1159
  %v1168 = vadd.f32 %v1107, %v1160
  %v1169 = vadd.f32 %v1108, %v1161
  %v1170 = vadd.f32 %v1109, %v1162
  %v1171 = vadd.f32 %v1110, %v1163
  %s1172 = scalar_lea.vmem %s7, 6
  %v1173 = vld [vmem:[%s1172] ss:$8 sm:$0xf]
  %v1174 = vld [vmem:[%s1172] ss:$8 sm:$0xf0]
  %v1175 = vor.u32 %v1173, %v1174
  %v1177 = vlaneseq
  %v1178 = vshrl.u32 %v1177, 7
  %v1179 = vsub.s32 0, %v1178
  %v1180 = vrot.slane %v1175, %v1179
  %v1181 = vlaneseq
  %v1182 = vshrl.u32 %v1181, 7
  %v1183 = vsub.s32 1, %v1182
  %v1184 = vrot.slane %v1175, %v1183
  %v1185 = vlaneseq
  %v1186 = vshrl.u32 %v1185, 7
  %v1187 = vsub.s32 2, %v1186
  %v1188 = vrot.slane %v1175, %v1187
  %v1189 = vlaneseq
  %v1190 = vshrl.u32 %v1189, 7
  %v1191 = vsub.s32 3, %v1190
  %v1192 = vrot.slane %v1175, %v1191
  %v1193 = vlaneseq
  %v1194 = vshrl.u32 %v1193, 7
  %v1195 = vsub.s32 4, %v1194
  %v1196 = vrot.slane %v1175, %v1195
  %v1197 = vlaneseq
  %v1198 = vshrl.u32 %v1197, 7
  %v1199 = vsub.s32 5, %v1198
  %v1200 = vrot.slane %v1175, %v1199
  %v1201 = vlaneseq
  %v1202 = vshrl.u32 %v1201, 7
  %v1203 = vsub.s32 6, %v1202
  %v1204 = vrot.slane %v1175, %v1203
  %v1205 = vlaneseq
  %v1206 = vshrl.u32 %v1205, 7
  %v1207 = vsub.s32 7, %v1206
  %v1208 = vrot.slane %v1175, %v1207
  %v1217 = vmul.f32 %v773, %v1180
  %v1218 = vmul.f32 %v775, %v1184
  %v1219 = vmul.f32 %v862, %v1188
  %v1220 = vmul.f32 %v864, %v1192
  %v1221 = vmul.f32 %v951, %v1196
  %v1222 = vmul.f32 %v953, %v1200
  %v1223 = vmul.f32 %v1040, %v1204
  %v1224 = vmul.f32 %v1042, %v1208
  %v1225 = vadd.f32 %v1164, %v1217
  %v1226 = vadd.f32 %v1165, %v1218
  %v1227 = vadd.f32 %v1166, %v1219
  %v1228 = vadd.f32 %v1167, %v1220
  %v1229 = vadd.f32 %v1168, %v1221
  %v1230 = vadd.f32 %v1169, %v1222
  %v1231 = vadd.f32 %v1170, %v1223
  %v1232 = vadd.f32 %v1171, %v1224
  %s1233 = scalar_lea.vmem %s7, 7
  %v1234 = vld [vmem:[%s1233] ss:$8 sm:$0xf]
  %v1235 = vld [vmem:[%s1233] ss:$8 sm:$0xf0]
  %v1236 = vor.u32 %v1234, %v1235
  %v1238 = vlaneseq
  %v1239 = vshrl.u32 %v1238, 7
  %v1240 = vsub.s32 0, %v1239
  %v1241 = vrot.slane %v1236, %v1240
  %v1242 = vlaneseq
  %v1243 = vshrl.u32 %v1242, 7
  %v1244 = vsub.s32 1, %v1243
  %v1245 = vrot.slane %v1236, %v1244
  %v1246 = vlaneseq
  %v1247 = vshrl.u32 %v1246, 7
  %v1248 = vsub.s32 2, %v1247
  %v1249 = vrot.slane %v1236, %v1248
  %v1250 = vlaneseq
  %v1251 = vshrl.u32 %v1250, 7
  %v1252 = vsub.s32 3, %v1251
  %v1253 = vrot.slane %v1236, %v1252
  %v1254 = vlaneseq
  %v1255 = vshrl.u32 %v1254, 7
  %v1256 = vsub.s32 4, %v1255
  %v1257 = vrot.slane %v1236, %v1256
  %v1258 = vlaneseq
  %v1259 = vshrl.u32 %v1258, 7
  %v1260 = vsub.s32 5, %v1259
  %v1261 = vrot.slane %v1236, %v1260
  %v1262 = vlaneseq
  %v1263 = vshrl.u32 %v1262, 7
  %v1264 = vsub.s32 6, %v1263
  %v1265 = vrot.slane %v1236, %v1264
  %v1266 = vlaneseq
  %v1267 = vshrl.u32 %v1266, 7
  %v1268 = vsub.s32 7, %v1267
  %v1269 = vrot.slane %v1236, %v1268
  %v1278 = vmul.f32 %v779, %v1241
  %v1279 = vmul.f32 %v781, %v1245
  %v1280 = vmul.f32 %v868, %v1249
  %v1281 = vmul.f32 %v870, %v1253
  %v1282 = vmul.f32 %v957, %v1257
  %v1283 = vmul.f32 %v959, %v1261
  %v1284 = vmul.f32 %v1046, %v1265
  %v1285 = vmul.f32 %v1048, %v1269
  %v1286 = vadd.f32 %v1225, %v1278
  %v1287 = vadd.f32 %v1226, %v1279
  %v1288 = vadd.f32 %v1227, %v1280
  %v1289 = vadd.f32 %v1228, %v1281
  %v1290 = vadd.f32 %v1229, %v1282
  %v1291 = vadd.f32 %v1230, %v1283
  %v1292 = vadd.f32 %v1231, %v1284
  %v1293 = vadd.f32 %v1232, %v1285
  %1294 = vst [vmem:[#allocation2 + $0x8] sm:$0xff] %v1286
  %1295 = vst [vmem:[#allocation2 + $0x10] sm:$0xff] %v1287
  %1296 = vst [vmem:[#allocation2 + $0x18] sm:$0xff] %v1288
  %1297 = vst [vmem:[#allocation2 + $0x20] sm:$0xff] %v1289
  %1298 = vst [vmem:[#allocation2 + $0x28] sm:$0xff] %v1290
  %1299 = vst [vmem:[#allocation2 + $0x30] sm:$0xff] %v1291
  %1300 = vst [vmem:[#allocation2 + $0x38] sm:$0xff] %v1292
  %1301 = vst [vmem:[#allocation2 + $0x40] sm:$0xff] %v1293
  %v1302 = vld [vmem:[#allocation2] sm:$0xff]
  %v1303 = vld [vmem:[#allocation2 + $0x8] sm:$0xff]
  %v1304 = vld [vmem:[#allocation2 + $0x10] sm:$0xff]
  %v1305 = vld [vmem:[#allocation2 + $0x18] sm:$0xff]
  %v1306 = vld [vmem:[#allocation2 + $0x20] sm:$0xff]
  %v1307 = vld [vmem:[#allocation2 + $0x28] sm:$0xff]
  %v1308 = vld [vmem:[#allocation2 + $0x30] sm:$0xff]
  %v1309 = vld [vmem:[#allocation2 + $0x38] sm:$0xff]
  %v1310 = vld [vmem:[#allocation2 + $0x40] sm:$0xff]
  %v1311 = vld [vmem:[%s6] ss:$8 sm:$0xf]
  %v1312 = vld [vmem:[%s6] ss:$8 sm:$0xf0]
  %v1313 = vor.u32 %v1311, %v1312
  %v1315 = vlaneseq
  %v1316 = vshrl.u32 %v1315, 7
  %v1317 = vsub.s32 0, %v1316
  %v1318 = vrot.slane %v1313, %v1317
  %v1319 = vlaneseq
  %v1320 = vshrl.u32 %v1319, 7
  %v1321 = vsub.s32 1, %v1320
  %v1322 = vrot.slane %v1313, %v1321
  %v1323 = vlaneseq
  %v1324 = vshrl.u32 %v1323, 7
  %v1325 = vsub.s32 2, %v1324
  %v1326 = vrot.slane %v1313, %v1325
  %v1327 = vlaneseq
  %v1328 = vshrl.u32 %v1327, 7
  %v1329 = vsub.s32 3, %v1328
  %v1330 = vrot.slane %v1313, %v1329
  %v1331 = vlaneseq
  %v1332 = vshrl.u32 %v1331, 7
  %v1333 = vsub.s32 4, %v1332
  %v1334 = vrot.slane %v1313, %v1333
  %v1335 = vlaneseq
  %v1336 = vshrl.u32 %v1335, 7
  %v1337 = vsub.s32 5, %v1336
  %v1338 = vrot.slane %v1313, %v1337
  %v1339 = vlaneseq
  %v1340 = vshrl.u32 %v1339, 7
  %v1341 = vsub.s32 6, %v1340
  %v1342 = vrot.slane %v1313, %v1341
  %v1343 = vlaneseq
  %v1344 = vshrl.u32 %v1343, 7
  %v1345 = vsub.s32 7, %v1344
  %v1346 = vrot.slane %v1313, %v1345
  %1347 = vrot.lane.b32.xlu0 %v1318, 55
  %v1348 = vpop.permute.xlu0 %1347
  %1349 = vrot.lane.b32.xlu0 %v1322, 55
  %v1350 = vpop.permute.xlu0 %1349
  %1351 = vrot.lane.b32.xlu0 %v1326, 55
  %v1352 = vpop.permute.xlu0 %1351
  %1353 = vrot.lane.b32.xlu0 %v1330, 55
  %v1354 = vpop.permute.xlu0 %1353
  %1355 = vrot.lane.b32.xlu0 %v1334, 55
  %v1356 = vpop.permute.xlu0 %1355
  %1357 = vrot.lane.b32.xlu0 %v1338, 55
  %v1358 = vpop.permute.xlu0 %1357
  %1359 = vrot.lane.b32.xlu0 %v1342, 55
  %v1360 = vpop.permute.xlu0 %1359
  %1361 = vrot.lane.b32.xlu0 %v1346, 55
  %v1362 = vpop.permute.xlu0 %1361
  %vm1363 = vcmask 449536
  %v1364 = vsel %vm1363, %v1348, %v1350
  %v1365 = vsel %vm1363, %v1350, %v1352
  %v1366 = vsel %vm1363, %v1352, %v1354
  %v1367 = vsel %vm1363, %v1354, %v1356
  %v1368 = vsel %vm1363, %v1356, %v1358
  %v1369 = vsel %vm1363, %v1358, %v1360
  %v1370 = vsel %vm1363, %v1360, %v1362
  %v1380 = vmul.f32 %v1302, %v1348
  %v1381 = vmul.f32 %v1303, %v1364
  %v1382 = vmul.f32 %v1304, %v1365
  %v1383 = vmul.f32 %v1305, %v1366
  %v1384 = vmul.f32 %v1306, %v1367
  %v1385 = vmul.f32 %v1307, %v1368
  %v1386 = vmul.f32 %v1308, %v1369
  %v1387 = vmul.f32 %v1309, %v1370
  %v1388 = vmul.f32 %v1310, %v1362
  %1398 = vrot.lane.b32.xlu0 %v1380, 73
  %v1399 = vpop.permute.xlu0 %1398
  %1400 = vrot.lane.b32.xlu0 %v1381, 73
  %v1401 = vpop.permute.xlu0 %1400
  %1402 = vrot.lane.b32.xlu0 %v1382, 73
  %v1403 = vpop.permute.xlu0 %1402
  %1404 = vrot.lane.b32.xlu0 %v1383, 73
  %v1405 = vpop.permute.xlu0 %1404
  %1406 = vrot.lane.b32.xlu0 %v1384, 73
  %v1407 = vpop.permute.xlu0 %1406
  %1408 = vrot.lane.b32.xlu0 %v1385, 73
  %v1409 = vpop.permute.xlu0 %1408
  %1410 = vrot.lane.b32.xlu0 %v1386, 73
  %v1411 = vpop.permute.xlu0 %1410
  %1412 = vrot.lane.b32.xlu0 %v1387, 73
  %v1413 = vpop.permute.xlu0 %1412
  %1414 = vrot.lane.b32.xlu0 %v1388, 73
  %v1415 = vpop.permute.xlu0 %1414
  %vm1416 = vcmask 596992
  %v1417 = vsel %vm1416, %v1399, %v1401
  %v1418 = vsel %vm1416, %v1401, %v1403
  %v1419 = vsel %vm1416, %v1403, %v1405
  %v1420 = vsel %vm1416, %v1405, %v1407
  %v1421 = vsel %vm1416, %v1407, %v1409
  %v1422 = vsel %vm1416, %v1409, %v1411
  %v1423 = vsel %vm1416, %v1411, %v1413
  %v1424 = vsel %vm1416, %v1413, %v1415
  %1433 = vst [vmem:[#allocation3] sm:$0xff] %v1417
  %1434 = vst [vmem:[#allocation3 + $0x8] sm:$0xff] %v1418
  %1435 = vst [vmem:[#allocation3 + $0x10] sm:$0xff] %v1419
  %1436 = vst [vmem:[#allocation3 + $0x18] sm:$0xff] %v1420
  %1437 = vst [vmem:[#allocation3 + $0x20] sm:$0xff] %v1421
  %1438 = vst [vmem:[#allocation3 + $0x28] sm:$0xff] %v1422
  %1439 = vst [vmem:[#allocation3 + $0x30] sm:$0xff] %v1423
  %1440 = vst [vmem:[#allocation3 + $0x38] sm:$0xff] %v1424
  %v1441 = vld [vmem:[#allocation2] sm:$0xff]
  %v1442 = vld [vmem:[#allocation2 + $0x8] sm:$0xff]
  %v1443 = vld [vmem:[#allocation2 + $0x10] sm:$0xff]
  %v1444 = vld [vmem:[#allocation2 + $0x18] sm:$0xff]
  %v1445 = vld [vmem:[#allocation2 + $0x20] sm:$0xff]
  %v1446 = vld [vmem:[#allocation2 + $0x28] sm:$0xff]
  %v1447 = vld [vmem:[#allocation2 + $0x30] sm:$0xff]
  %v1448 = vld [vmem:[#allocation2 + $0x38] sm:$0xff]
  %v1449 = vld [vmem:[#allocation2 + $0x40] sm:$0xff]
  %s1450 = scalar_lea.vmem %s6, 1
  %v1451 = vld [vmem:[%s1450] ss:$8 sm:$0xf]
  %v1452 = vld [vmem:[%s1450] ss:$8 sm:$0xf0]
  %v1453 = vor.u32 %v1451, %v1452
  %v1455 = vlaneseq
  %v1456 = vshrl.u32 %v1455, 7
  %v1457 = vsub.s32 0, %v1456
  %v1458 = vrot.slane %v1453, %v1457
  %v1459 = vlaneseq
  %v1460 = vshrl.u32 %v1459, 7
  %v1461 = vsub.s32 1, %v1460
  %v1462 = vrot.slane %v1453, %v1461
  %v1463 = vlaneseq
  %v1464 = vshrl.u32 %v1463, 7
  %v1465 = vsub.s32 2, %v1464
  %v1466 = vrot.slane %v1453, %v1465
  %v1467 = vlaneseq
  %v1468 = vshrl.u32 %v1467, 7
  %v1469 = vsub.s32 3, %v1468
  %v1470 = vrot.slane %v1453, %v1469
  %v1471 = vlaneseq
  %v1472 = vshrl.u32 %v1471, 7
  %v1473 = vsub.s32 4, %v1472
  %v1474 = vrot.slane %v1453, %v1473
  %v1475 = vlaneseq
  %v1476 = vshrl.u32 %v1475, 7
  %v1477 = vsub.s32 5, %v1476
  %v1478 = vrot.slane %v1453, %v1477
  %v1479 = vlaneseq
  %v1480 = vshrl.u32 %v1479, 7
  %v1481 = vsub.s32 6, %v1480
  %v1482 = vrot.slane %v1453, %v1481
  %v1483 = vlaneseq
  %v1484 = vshrl.u32 %v1483, 7
  %v1485 = vsub.s32 7, %v1484
  %v1486 = vrot.slane %v1453, %v1485
  %1487 = vrot.lane.b32.xlu0 %v1458, 56
  %v1488 = vpop.permute.xlu0 %1487
  %1489 = vrot.lane.b32.xlu0 %v1462, 56
  %v1490 = vpop.permute.xlu0 %1489
  %1491 = vrot.lane.b32.xlu0 %v1466, 56
  %v1492 = vpop.permute.xlu0 %1491
  %1493 = vrot.lane.b32.xlu0 %v1470, 56
  %v1494 = vpop.permute.xlu0 %1493
  %1495 = vrot.lane.b32.xlu0 %v1474, 56
  %v1496 = vpop.permute.xlu0 %1495
  %1497 = vrot.lane.b32.xlu0 %v1478, 56
  %v1498 = vpop.permute.xlu0 %1497
  %1499 = vrot.lane.b32.xlu0 %v1482, 56
  %v1500 = vpop.permute.xlu0 %1499
  %1501 = vrot.lane.b32.xlu0 %v1486, 56
  %v1502 = vpop.permute.xlu0 %1501
  %vm1503 = vcmask 457728
  %v1504 = vsel %vm1503, %v1488, %v1490
  %v1505 = vsel %vm1503, %v1490, %v1492
  %v1506 = vsel %vm1503, %v1492, %v1494
  %v1507 = vsel %vm1503, %v1494, %v1496
  %v1508 = vsel %vm1503, %v1496, %v1498
  %v1509 = vsel %vm1503, %v1498, %v1500
  %v1510 = vsel %vm1503, %v1500, %v1502
  %v1520 = vmul.f32 %v1441, %v1488
  %v1521 = vmul.f32 %v1442, %v1504
  %v1522 = vmul.f32 %v1443, %v1505
  %v1523 = vmul.f32 %v1444, %v1506
  %v1524 = vmul.f32 %v1445, %v1507
  %v1525 = vmul.f32 %v1446, %v1508
  %v1526 = vmul.f32 %v1447, %v1509
  %v1527 = vmul.f32 %v1448, %v1510
  %v1528 = vmul.f32 %v1449, %v1502
  %1538 = vrot.lane.b32.xlu0 %v1520, 72
  %v1539 = vpop.permute.xlu0 %1538
  %1540 = vrot.lane.b32.xlu0 %v1521, 72
  %v1541 = vpop.permute.xlu0 %1540
  %1542 = vrot.lane.b32.xlu0 %v1522, 72
  %v1543 = vpop.permute.xlu0 %1542
  %1544 = vrot.lane.b32.xlu0 %v1523, 72
  %v1545 = vpop.permute.xlu0 %1544
  %1546 = vrot.lane.b32.xlu0 %v1524, 72
  %v1547 = vpop.permute.xlu0 %1546
  %1548 = vrot.lane.b32.xlu0 %v1525, 72
  %v1549 = vpop.permute.xlu0 %1548
  %1550 = vrot.lane.b32.xlu0 %v1526, 72
  %v1551 = vpop.permute.xlu0 %1550
  %1552 = vrot.lane.b32.xlu0 %v1527, 72
  %v1553 = vpop.permute.xlu0 %1552
  %1554 = vrot.lane.b32.xlu0 %v1528, 72
  %v1555 = vpop.permute.xlu0 %1554
  %vm1556 = vcmask 588800
  %v1557 = vsel %vm1556, %v1539, %v1541
  %v1558 = vsel %vm1556, %v1541, %v1543
  %v1559 = vsel %vm1556, %v1543, %v1545
  %v1560 = vsel %vm1556, %v1545, %v1547
  %v1561 = vsel %vm1556, %v1547, %v1549
  %v1562 = vsel %vm1556, %v1549, %v1551
  %v1563 = vsel %vm1556, %v1551, %v1553
  %v1564 = vsel %vm1556, %v1553, %v1555
  %1573 = vst [vmem:[#allocation3 + $0x40] sm:$0xff] %v1557
  %1574 = vst [vmem:[#allocation3 + $0x48] sm:$0xff] %v1558
  %1575 = vst [vmem:[#allocation3 + $0x50] sm:$0xff] %v1559
  %1576 = vst [vmem:[#allocation3 + $0x58] sm:$0xff] %v1560
  %1577 = vst [vmem:[#allocation3 + $0x60] sm:$0xff] %v1561
  %1578 = vst [vmem:[#allocation3 + $0x68] sm:$0xff] %v1562
  %1579 = vst [vmem:[#allocation3 + $0x70] sm:$0xff] %v1563
  %1580 = vst [vmem:[#allocation3 + $0x78] sm:$0xff] %v1564
  %v1581 = vld [vmem:[#allocation2] sm:$0xff]
  %v1582 = vld [vmem:[#allocation2 + $0x8] sm:$0xff]
  %v1583 = vld [vmem:[#allocation2 + $0x10] sm:$0xff]
  %v1584 = vld [vmem:[#allocation2 + $0x18] sm:$0xff]
  %v1585 = vld [vmem:[#allocation2 + $0x20] sm:$0xff]
  %v1586 = vld [vmem:[#allocation2 + $0x28] sm:$0xff]
  %v1587 = vld [vmem:[#allocation2 + $0x30] sm:$0xff]
  %v1588 = vld [vmem:[#allocation2 + $0x38] sm:$0xff]
  %v1589 = vld [vmem:[#allocation2 + $0x40] sm:$0xff]
  %s1590 = scalar_lea.vmem %s6, 2
  %v1591 = vld [vmem:[%s1590] ss:$8 sm:$0xf]
  %v1592 = vld [vmem:[%s1590] ss:$8 sm:$0xf0]
  %v1593 = vor.u32 %v1591, %v1592
  %v1595 = vlaneseq
  %v1596 = vshrl.u32 %v1595, 7
  %v1597 = vsub.s32 0, %v1596
  %v1598 = vrot.slane %v1593, %v1597
  %v1599 = vlaneseq
  %v1600 = vshrl.u32 %v1599, 7
  %v1601 = vsub.s32 1, %v1600
  %v1602 = vrot.slane %v1593, %v1601
  %v1603 = vlaneseq
  %v1604 = vshrl.u32 %v1603, 7
  %v1605 = vsub.s32 2, %v1604
  %v1606 = vrot.slane %v1593, %v1605
  %v1607 = vlaneseq
  %v1608 = vshrl.u32 %v1607, 7
  %v1609 = vsub.s32 3, %v1608
  %v1610 = vrot.slane %v1593, %v1609
  %v1611 = vlaneseq
  %v1612 = vshrl.u32 %v1611, 7
  %v1613 = vsub.s32 4, %v1612
  %v1614 = vrot.slane %v1593, %v1613
  %v1615 = vlaneseq
  %v1616 = vshrl.u32 %v1615, 7
  %v1617 = vsub.s32 5, %v1616
  %v1618 = vrot.slane %v1593, %v1617
  %v1619 = vlaneseq
  %v1620 = vshrl.u32 %v1619, 7
  %v1621 = vsub.s32 6, %v1620
  %v1622 = vrot.slane %v1593, %v1621
  %v1623 = vlaneseq
  %v1624 = vshrl.u32 %v1623, 7
  %v1625 = vsub.s32 7, %v1624
  %v1626 = vrot.slane %v1593, %v1625
  %1627 = vrot.lane.b32.xlu0 %v1598, 57
  %v1628 = vpop.permute.xlu0 %1627
  %1629 = vrot.lane.b32.xlu0 %v1602, 57
  %v1630 = vpop.permute.xlu0 %1629
  %1631 = vrot.lane.b32.xlu0 %v1606, 57
  %v1632 = vpop.permute.xlu0 %1631
  %1633 = vrot.lane.b32.xlu0 %v1610, 57
  %v1634 = vpop.permute.xlu0 %1633
  %1635 = vrot.lane.b32.xlu0 %v1614, 57
  %v1636 = vpop.permute.xlu0 %1635
  %1637 = vrot.lane.b32.xlu0 %v1618, 57
  %v1638 = vpop.permute.xlu0 %1637
  %1639 = vrot.lane.b32.xlu0 %v1622, 57
  %v1640 = vpop.permute.xlu0 %1639
  %1641 = vrot.lane.b32.xlu0 %v1626, 57
  %v1642 = vpop.permute.xlu0 %1641
  %vm1643 = vcmask 465920
  %v1644 = vsel %vm1643, %v1628, %v1630
  %v1645 = vsel %vm1643, %v1630, %v1632
  %v1646 = vsel %vm1643, %v1632, %v1634
  %v1647 = vsel %vm1643, %v1634, %v1636
  %v1648 = vsel %vm1643, %v1636, %v1638
  %v1649 = vsel %vm1643, %v1638, %v1640
  %v1650 = vsel %vm1643, %v1640, %v1642
  %v1660 = vmul.f32 %v1581, %v1628
  %v1661 = vmul.f32 %v1582, %v1644
  %v1662 = vmul.f32 %v1583, %v1645
  %v1663 = vmul.f32 %v1584, %v1646
  %v1664 = vmul.f32 %v1585, %v1647
  %v1665 = vmul.f32 %v1586, %v1648
  %v1666 = vmul.f32 %v1587, %v1649
  %v1667 = vmul.f32 %v1588, %v1650
  %v1668 = vmul.f32 %v1589, %v1642
  %1678 = vrot.lane.b32.xlu0 %v1660, 71
  %v1679 = vpop.permute.xlu0 %1678
  %1680 = vrot.lane.b32.xlu0 %v1661, 71
  %v1681 = vpop.permute.xlu0 %1680
  %1682 = vrot.lane.b32.xlu0 %v1662, 71
  %v1683 = vpop.permute.xlu0 %1682
  %1684 = vrot.lane.b32.xlu0 %v1663, 71
  %v1685 = vpop.permute.xlu0 %1684
  %1686 = vrot.lane.b32.xlu0 %v1664, 71
  %v1687 = vpop.permute.xlu0 %1686
  %1688 = vrot.lane.b32.xlu0 %v1665, 71
  %v1689 = vpop.permute.xlu0 %1688
  %1690 = vrot.lane.b32.xlu0 %v1666, 71
  %v1691 = vpop.permute.xlu0 %1690
  %1692 = vrot.lane.b32.xlu0 %v1667, 71
  %v1693 = vpop.permute.xlu0 %1692
  %1694 = vrot.lane.b32.xlu0 %v1668, 71
  %v1695 = vpop.permute.xlu0 %1694
  %vm1696 = vcmask 580608
  %v1697 = vsel %vm1696, %v1679, %v1681
  %v1698 = vsel %vm1696, %v1681, %v1683
  %v1699 = vsel %vm1696, %v1683, %v1685
  %v1700 = vsel %vm1696, %v1685, %v1687
  %v1701 = vsel %vm1696, %v1687, %v1689
  %v1702 = vsel %vm1696, %v1689, %v1691
  %v1703 = vsel %vm1696, %v1691, %v1693
  %v1704 = vsel %vm1696, %v1693, %v1695
  %1713 = vst [vmem:[#allocation3 + $0x80] sm:$0xff] %v1697
  %1714 = vst [vmem:[#allocation3 + $0x88] sm:$0xff] %v1698
  %1715 = vst [vmem:[#allocation3 + $0x90] sm:$0xff] %v1699
  %1716 = vst [vmem:[#allocation3 + $0x98] sm:$0xff] %v1700
  %1717 = vst [vmem:[#allocation3 + $0xa0] sm:$0xff] %v1701
  %1718 = vst [vmem:[#allocation3 + $0xa8] sm:$0xff] %v1702
  %1719 = vst [vmem:[#allocation3 + $0xb0] sm:$0xff] %v1703
  %1720 = vst [vmem:[#allocation3 + $0xb8] sm:$0xff] %v1704
  %v1721 = vld [vmem:[#allocation2] sm:$0xff]
  %v1722 = vld [vmem:[#allocation2 + $0x8] sm:$0xff]
  %v1723 = vld [vmem:[#allocation2 + $0x10] sm:$0xff]
  %v1724 = vld [vmem:[#allocation2 + $0x18] sm:$0xff]
  %v1725 = vld [vmem:[#allocation2 + $0x20] sm:$0xff]
  %v1726 = vld [vmem:[#allocation2 + $0x28] sm:$0xff]
  %v1727 = vld [vmem:[#allocation2 + $0x30] sm:$0xff]
  %v1728 = vld [vmem:[#allocation2 + $0x38] sm:$0xff]
  %v1729 = vld [vmem:[#allocation2 + $0x40] sm:$0xff]
  %s1730 = scalar_lea.vmem %s6, 3
  %v1731 = vld [vmem:[%s1730] ss:$8 sm:$0xf]
  %v1732 = vld [vmem:[%s1730] ss:$8 sm:$0xf0]
  %v1733 = vor.u32 %v1731, %v1732
  %v1735 = vlaneseq
  %v1736 = vshrl.u32 %v1735, 7
  %v1737 = vsub.s32 0, %v1736
  %v1738 = vrot.slane %v1733, %v1737
  %v1739 = vlaneseq
  %v1740 = vshrl.u32 %v1739, 7
  %v1741 = vsub.s32 1, %v1740
  %v1742 = vrot.slane %v1733, %v1741
  %v1743 = vlaneseq
  %v1744 = vshrl.u32 %v1743, 7
  %v1745 = vsub.s32 2, %v1744
  %v1746 = vrot.slane %v1733, %v1745
  %v1747 = vlaneseq
  %v1748 = vshrl.u32 %v1747, 7
  %v1749 = vsub.s32 3, %v1748
  %v1750 = vrot.slane %v1733, %v1749
  %v1751 = vlaneseq
  %v1752 = vshrl.u32 %v1751, 7
  %v1753 = vsub.s32 4, %v1752
  %v1754 = vrot.slane %v1733, %v1753
  %v1755 = vlaneseq
  %v1756 = vshrl.u32 %v1755, 7
  %v1757 = vsub.s32 5, %v1756
  %v1758 = vrot.slane %v1733, %v1757
  %v1759 = vlaneseq
  %v1760 = vshrl.u32 %v1759, 7
  %v1761 = vsub.s32 6, %v1760
  %v1762 = vrot.slane %v1733, %v1761
  %v1763 = vlaneseq
  %v1764 = vshrl.u32 %v1763, 7
  %v1765 = vsub.s32 7, %v1764
  %v1766 = vrot.slane %v1733, %v1765
  %1767 = vrot.lane.b32.xlu0 %v1738, 63
  %v1768 = vpop.permute.xlu0 %1767
  %1769 = vrot.lane.b32.xlu0 %v1742, 63
  %v1770 = vpop.permute.xlu0 %1769
  %1771 = vrot.lane.b32.xlu0 %v1746, 63
  %v1772 = vpop.permute.xlu0 %1771
  %1773 = vrot.lane.b32.xlu0 %v1750, 63
  %v1774 = vpop.permute.xlu0 %1773
  %1775 = vrot.lane.b32.xlu0 %v1754, 63
  %v1776 = vpop.permute.xlu0 %1775
  %1777 = vrot.lane.b32.xlu0 %v1758, 63
  %v1778 = vpop.permute.xlu0 %1777
  %1779 = vrot.lane.b32.xlu0 %v1762, 63
  %v1780 = vpop.permute.xlu0 %1779
  %1781 = vrot.lane.b32.xlu0 %v1766, 63
  %v1782 = vpop.permute.xlu0 %1781
  %vm1783 = vcmask 515072
  %v1784 = vsel %vm1783, %v1768, %v1770
  %v1785 = vsel %vm1783, %v1770, %v1772
  %v1786 = vsel %vm1783, %v1772, %v1774
  %v1787 = vsel %vm1783, %v1774, %v1776
  %v1788 = vsel %vm1783, %v1776, %v1778
  %v1789 = vsel %vm1783, %v1778, %v1780
  %v1790 = vsel %vm1783, %v1780, %v1782
  %v1800 = vmul.f32 %v1721, %v1768
  %v1801 = vmul.f32 %v1722, %v1784
  %v1802 = vmul.f32 %v1723, %v1785
  %v1803 = vmul.f32 %v1724, %v1786
  %v1804 = vmul.f32 %v1725, %v1787
  %v1805 = vmul.f32 %v1726, %v1788
  %v1806 = vmul.f32 %v1727, %v1789
  %v1807 = vmul.f32 %v1728, %v1790
  %v1808 = vmul.f32 %v1729, %v1782
  %1818 = vrot.lane.b32.xlu0 %v1800, 65
  %v1819 = vpop.permute.xlu0 %1818
  %1820 = vrot.lane.b32.xlu0 %v1801, 65
  %v1821 = vpop.permute.xlu0 %1820
  %1822 = vrot.lane.b32.xlu0 %v1802, 65
  %v1823 = vpop.permute.xlu0 %1822
  %1824 = vrot.lane.b32.xlu0 %v1803, 65
  %v1825 = vpop.permute.xlu0 %1824
  %1826 = vrot.lane.b32.xlu0 %v1804, 65
  %v1827 = vpop.permute.xlu0 %1826
  %1828 = vrot.lane.b32.xlu0 %v1805, 65
  %v1829 = vpop.permute.xlu0 %1828
  %1830 = vrot.lane.b32.xlu0 %v1806, 65
  %v1831 = vpop.permute.xlu0 %1830
  %1832 = vrot.lane.b32.xlu0 %v1807, 65
  %v1833 = vpop.permute.xlu0 %1832
  %1834 = vrot.lane.b32.xlu0 %v1808, 65
  %v1835 = vpop.permute.xlu0 %1834
  %vm1836 = vcmask 531456
  %v1837 = vsel %vm1836, %v1819, %v1821
  %v1838 = vsel %vm1836, %v1821, %v1823
  %v1839 = vsel %vm1836, %v1823, %v1825
  %v1840 = vsel %vm1836, %v1825, %v1827
  %v1841 = vsel %vm1836, %v1827, %v1829
  %v1842 = vsel %vm1836, %v1829, %v1831
  %v1843 = vsel %vm1836, %v1831, %v1833
  %v1844 = vsel %vm1836, %v1833, %v1835
  %1853 = vst [vmem:[#allocation3 + $0xc0] sm:$0xff] %v1837
  %1854 = vst [vmem:[#allocation3 + $0xc8] sm:$0xff] %v1838
  %1855 = vst [vmem:[#allocation3 + $0xd0] sm:$0xff] %v1839
  %1856 = vst [vmem:[#allocation3 + $0xd8] sm:$0xff] %v1840
  %1857 = vst [vmem:[#allocation3 + $0xe0] sm:$0xff] %v1841
  %1858 = vst [vmem:[#allocation3 + $0xe8] sm:$0xff] %v1842
  %1859 = vst [vmem:[#allocation3 + $0xf0] sm:$0xff] %v1843
  %1860 = vst [vmem:[#allocation3 + $0xf8] sm:$0xff] %v1844
  %v1861 = vld [vmem:[#allocation2] sm:$0xff]
  %v1862 = vld [vmem:[#allocation2 + $0x8] sm:$0xff]
  %v1863 = vld [vmem:[#allocation2 + $0x10] sm:$0xff]
  %v1864 = vld [vmem:[#allocation2 + $0x18] sm:$0xff]
  %v1865 = vld [vmem:[#allocation2 + $0x20] sm:$0xff]
  %v1866 = vld [vmem:[#allocation2 + $0x28] sm:$0xff]
  %v1867 = vld [vmem:[#allocation2 + $0x30] sm:$0xff]
  %v1868 = vld [vmem:[#allocation2 + $0x38] sm:$0xff]
  %v1869 = vld [vmem:[#allocation2 + $0x40] sm:$0xff]
  %s1870 = scalar_lea.vmem %s6, 4
  %v1871 = vld [vmem:[%s1870] ss:$8 sm:$0xf]
  %v1872 = vld [vmem:[%s1870] ss:$8 sm:$0xf0]
  %v1873 = vor.u32 %v1871, %v1872
  %v1875 = vlaneseq
  %v1876 = vshrl.u32 %v1875, 7
  %v1877 = vsub.s32 0, %v1876
  %v1878 = vrot.slane %v1873, %v1877
  %v1879 = vlaneseq
  %v1880 = vshrl.u32 %v1879, 7
  %v1881 = vsub.s32 1, %v1880
  %v1882 = vrot.slane %v1873, %v1881
  %v1883 = vlaneseq
  %v1884 = vshrl.u32 %v1883, 7
  %v1885 = vsub.s32 2, %v1884
  %v1886 = vrot.slane %v1873, %v1885
  %v1887 = vlaneseq
  %v1888 = vshrl.u32 %v1887, 7
  %v1889 = vsub.s32 3, %v1888
  %v1890 = vrot.slane %v1873, %v1889
  %v1891 = vlaneseq
  %v1892 = vshrl.u32 %v1891, 7
  %v1893 = vsub.s32 4, %v1892
  %v1894 = vrot.slane %v1873, %v1893
  %v1895 = vlaneseq
  %v1896 = vshrl.u32 %v1895, 7
  %v1897 = vsub.s32 5, %v1896
  %v1898 = vrot.slane %v1873, %v1897
  %v1899 = vlaneseq
  %v1900 = vshrl.u32 %v1899, 7
  %v1901 = vsub.s32 6, %v1900
  %v1902 = vrot.slane %v1873, %v1901
  %v1903 = vlaneseq
  %v1904 = vshrl.u32 %v1903, 7
  %v1905 = vsub.s32 7, %v1904
  %v1906 = vrot.slane %v1873, %v1905
  %1907 = vrot.lane.b32.xlu0 %v1878, 64
  %v1908 = vpop.permute.xlu0 %1907
  %1909 = vrot.lane.b32.xlu0 %v1882, 64
  %v1910 = vpop.permute.xlu0 %1909
  %1911 = vrot.lane.b32.xlu0 %v1886, 64
  %v1912 = vpop.permute.xlu0 %1911
  %1913 = vrot.lane.b32.xlu0 %v1890, 64
  %v1914 = vpop.permute.xlu0 %1913
  %1915 = vrot.lane.b32.xlu0 %v1894, 64
  %v1916 = vpop.permute.xlu0 %1915
  %1917 = vrot.lane.b32.xlu0 %v1898, 64
  %v1918 = vpop.permute.xlu0 %1917
  %1919 = vrot.lane.b32.xlu0 %v1902, 64
  %v1920 = vpop.permute.xlu0 %1919
  %1921 = vrot.lane.b32.xlu0 %v1906, 64
  %v1922 = vpop.permute.xlu0 %1921
  %vm1923 = vcmask 523264
  %v1924 = vsel %vm1923, %v1908, %v1910
  %v1925 = vsel %vm1923, %v1910, %v1912
  %v1926 = vsel %vm1923, %v1912, %v1914
  %v1927 = vsel %vm1923, %v1914, %v1916
  %v1928 = vsel %vm1923, %v1916, %v1918
  %v1929 = vsel %vm1923, %v1918, %v1920
  %v1930 = vsel %vm1923, %v1920, %v1922
  %v1940 = vmul.f32 %v1861, %v1908
  %v1941 = vmul.f32 %v1862, %v1924
  %v1942 = vmul.f32 %v1863, %v1925
  %v1943 = vmul.f32 %v1864, %v1926
  %v1944 = vmul.f32 %v1865, %v1927
  %v1945 = vmul.f32 %v1866, %v1928
  %v1946 = vmul.f32 %v1867, %v1929
  %v1947 = vmul.f32 %v1868, %v1930
  %v1948 = vmul.f32 %v1869, %v1922
  %1958 = vrot.lane.b32.xlu0 %v1940, 64
  %v1959 = vpop.permute.xlu0 %1958
  %1960 = vrot.lane.b32.xlu0 %v1941, 64
  %v1961 = vpop.permute.xlu0 %1960
  %1962 = vrot.lane.b32.xlu0 %v1942, 64
  %v1963 = vpop.permute.xlu0 %1962
  %1964 = vrot.lane.b32.xlu0 %v1943, 64
  %v1965 = vpop.permute.xlu0 %1964
  %1966 = vrot.lane.b32.xlu0 %v1944, 64
  %v1967 = vpop.permute.xlu0 %1966
  %1968 = vrot.lane.b32.xlu0 %v1945, 64
  %v1969 = vpop.permute.xlu0 %1968
  %1970 = vrot.lane.b32.xlu0 %v1946, 64
  %v1971 = vpop.permute.xlu0 %1970
  %1972 = vrot.lane.b32.xlu0 %v1947, 64
  %v1973 = vpop.permute.xlu0 %1972
  %1974 = vrot.lane.b32.xlu0 %v1948, 64
  %v1975 = vpop.permute.xlu0 %1974
  %v1976 = vsel %vm1923, %v1959, %v1961
  %v1977 = vsel %vm1923, %v1961, %v1963
  %v1978 = vsel %vm1923, %v1963, %v1965
  %v1979 = vsel %vm1923, %v1965, %v1967
  %v1980 = vsel %vm1923, %v1967, %v1969
  %v1981 = vsel %vm1923, %v1969, %v1971
  %v1982 = vsel %vm1923, %v1971, %v1973
  %v1983 = vsel %vm1923, %v1973, %v1975
  %1992 = vst [vmem:[#allocation3 + $0x100] sm:$0xff] %v1976
  %1993 = vst [vmem:[#allocation3 + $0x108] sm:$0xff] %v1977
  %1994 = vst [vmem:[#allocation3 + $0x110] sm:$0xff] %v1978
  %1995 = vst [vmem:[#allocation3 + $0x118] sm:$0xff] %v1979
  %1996 = vst [vmem:[#allocation3 + $0x120] sm:$0xff] %v1980
  %1997 = vst [vmem:[#allocation3 + $0x128] sm:$0xff] %v1981
  %1998 = vst [vmem:[#allocation3 + $0x130] sm:$0xff] %v1982
  %1999 = vst [vmem:[#allocation3 + $0x138] sm:$0xff] %v1983
  %v2000 = vld [vmem:[#allocation2] sm:$0xff]
  %v2001 = vld [vmem:[#allocation2 + $0x8] sm:$0xff]
  %v2002 = vld [vmem:[#allocation2 + $0x10] sm:$0xff]
  %v2003 = vld [vmem:[#allocation2 + $0x18] sm:$0xff]
  %v2004 = vld [vmem:[#allocation2 + $0x20] sm:$0xff]
  %v2005 = vld [vmem:[#allocation2 + $0x28] sm:$0xff]
  %v2006 = vld [vmem:[#allocation2 + $0x30] sm:$0xff]
  %v2007 = vld [vmem:[#allocation2 + $0x38] sm:$0xff]
  %v2008 = vld [vmem:[#allocation2 + $0x40] sm:$0xff]
  %s2009 = scalar_lea.vmem %s6, 5
  %v2010 = vld [vmem:[%s2009] ss:$8 sm:$0xf]
  %v2011 = vld [vmem:[%s2009] ss:$8 sm:$0xf0]
  %v2012 = vor.u32 %v2010, %v2011
  %v2014 = vlaneseq
  %v2015 = vshrl.u32 %v2014, 7
  %v2016 = vsub.s32 0, %v2015
  %v2017 = vrot.slane %v2012, %v2016
  %v2018 = vlaneseq
  %v2019 = vshrl.u32 %v2018, 7
  %v2020 = vsub.s32 1, %v2019
  %v2021 = vrot.slane %v2012, %v2020
  %v2022 = vlaneseq
  %v2023 = vshrl.u32 %v2022, 7
  %v2024 = vsub.s32 2, %v2023
  %v2025 = vrot.slane %v2012, %v2024
  %v2026 = vlaneseq
  %v2027 = vshrl.u32 %v2026, 7
  %v2028 = vsub.s32 3, %v2027
  %v2029 = vrot.slane %v2012, %v2028
  %v2030 = vlaneseq
  %v2031 = vshrl.u32 %v2030, 7
  %v2032 = vsub.s32 4, %v2031
  %v2033 = vrot.slane %v2012, %v2032
  %v2034 = vlaneseq
  %v2035 = vshrl.u32 %v2034, 7
  %v2036 = vsub.s32 5, %v2035
  %v2037 = vrot.slane %v2012, %v2036
  %v2038 = vlaneseq
  %v2039 = vshrl.u32 %v2038, 7
  %v2040 = vsub.s32 6, %v2039
  %v2041 = vrot.slane %v2012, %v2040
  %v2042 = vlaneseq
  %v2043 = vshrl.u32 %v2042, 7
  %v2044 = vsub.s32 7, %v2043
  %v2045 = vrot.slane %v2012, %v2044
  %2046 = vrot.lane.b32.xlu0 %v2017, 65
  %v2047 = vpop.permute.xlu0 %2046
  %2048 = vrot.lane.b32.xlu0 %v2021, 65
  %v2049 = vpop.permute.xlu0 %2048
  %2050 = vrot.lane.b32.xlu0 %v2025, 65
  %v2051 = vpop.permute.xlu0 %2050
  %2052 = vrot.lane.b32.xlu0 %v2029, 65
  %v2053 = vpop.permute.xlu0 %2052
  %2054 = vrot.lane.b32.xlu0 %v2033, 65
  %v2055 = vpop.permute.xlu0 %2054
  %2056 = vrot.lane.b32.xlu0 %v2037, 65
  %v2057 = vpop.permute.xlu0 %2056
  %2058 = vrot.lane.b32.xlu0 %v2041, 65
  %v2059 = vpop.permute.xlu0 %2058
  %2060 = vrot.lane.b32.xlu0 %v2045, 65
  %v2061 = vpop.permute.xlu0 %2060
  %v2062 = vsel %vm1836, %v2047, %v2049
  %v2063 = vsel %vm1836, %v2049, %v2051
  %v2064 = vsel %vm1836, %v2051, %v2053
  %v2065 = vsel %vm1836, %v2053, %v2055
  %v2066 = vsel %vm1836, %v2055, %v2057
  %v2067 = vsel %vm1836, %v2057, %v2059
  %v2068 = vsel %vm1836, %v2059, %v2061
  %v2078 = vmul.f32 %v2000, %v2047
  %v2079 = vmul.f32 %v2001, %v2062
  %v2080 = vmul.f32 %v2002, %v2063
  %v2081 = vmul.f32 %v2003, %v2064
  %v2082 = vmul.f32 %v2004, %v2065
  %v2083 = vmul.f32 %v2005, %v2066
  %v2084 = vmul.f32 %v2006, %v2067
  %v2085 = vmul.f32 %v2007, %v2068
  %v2086 = vmul.f32 %v2008, %v2061
  %2096 = vrot.lane.b32.xlu0 %v2078, 63
  %v2097 = vpop.permute.xlu0 %2096
  %2098 = vrot.lane.b32.xlu0 %v2079, 63
  %v2099 = vpop.permute.xlu0 %2098
  %2100 = vrot.lane.b32.xlu0 %v2080, 63
  %v2101 = vpop.permute.xlu0 %2100
  %2102 = vrot.lane.b32.xlu0 %v2081, 63
  %v2103 = vpop.permute.xlu0 %2102
  %2104 = vrot.lane.b32.xlu0 %v2082, 63
  %v2105 = vpop.permute.xlu0 %2104
  %2106 = vrot.lane.b32.xlu0 %v2083, 63
  %v2107 = vpop.permute.xlu0 %2106
  %2108 = vrot.lane.b32.xlu0 %v2084, 63
  %v2109 = vpop.permute.xlu0 %2108
  %2110 = vrot.lane.b32.xlu0 %v2085, 63
  %v2111 = vpop.permute.xlu0 %2110
  %2112 = vrot.lane.b32.xlu0 %v2086, 63
  %v2113 = vpop.permute.xlu0 %2112
  %v2114 = vsel %vm1783, %v2097, %v2099
  %v2115 = vsel %vm1783, %v2099, %v2101
  %v2116 = vsel %vm1783, %v2101, %v2103
  %v2117 = vsel %vm1783, %v2103, %v2105
  %v2118 = vsel %vm1783, %v2105, %v2107
  %v2119 = vsel %vm1783, %v2107, %v2109
  %v2120 = vsel %vm1783, %v2109, %v2111
  %v2121 = vsel %vm1783, %v2111, %v2113
  %2130 = vst [vmem:[#allocation3 + $0x140] sm:$0xff] %v2114
  %2131 = vst [vmem:[#allocation3 + $0x148] sm:$0xff] %v2115
  %2132 = vst [vmem:[#allocation3 + $0x150] sm:$0xff] %v2116
  %2133 = vst [vmem:[#allocation3 + $0x158] sm:$0xff] %v2117
  %2134 = vst [vmem:[#allocation3 + $0x160] sm:$0xff] %v2118
  %2135 = vst [vmem:[#allocation3 + $0x168] sm:$0xff] %v2119
  %2136 = vst [vmem:[#allocation3 + $0x170] sm:$0xff] %v2120
  %2137 = vst [vmem:[#allocation3 + $0x178] sm:$0xff] %v2121
  %v2138 = vld [vmem:[#allocation2] sm:$0xff]
  %v2139 = vld [vmem:[#allocation2 + $0x8] sm:$0xff]
  %v2140 = vld [vmem:[#allocation2 + $0x10] sm:$0xff]
  %v2141 = vld [vmem:[#allocation2 + $0x18] sm:$0xff]
  %v2142 = vld [vmem:[#allocation2 + $0x20] sm:$0xff]
  %v2143 = vld [vmem:[#allocation2 + $0x28] sm:$0xff]
  %v2144 = vld [vmem:[#allocation2 + $0x30] sm:$0xff]
  %v2145 = vld [vmem:[#allocation2 + $0x38] sm:$0xff]
  %v2146 = vld [vmem:[#allocation2 + $0x40] sm:$0xff]
  %s2147 = scalar_lea.vmem %s6, 6
  %v2148 = vld [vmem:[%s2147] ss:$8 sm:$0xf]
  %v2149 = vld [vmem:[%s2147] ss:$8 sm:$0xf0]
  %v2150 = vor.u32 %v2148, %v2149
  %v2152 = vlaneseq
  %v2153 = vshrl.u32 %v2152, 7
  %v2154 = vsub.s32 0, %v2153
  %v2155 = vrot.slane %v2150, %v2154
  %v2156 = vlaneseq
  %v2157 = vshrl.u32 %v2156, 7
  %v2158 = vsub.s32 1, %v2157
  %v2159 = vrot.slane %v2150, %v2158
  %v2160 = vlaneseq
  %v2161 = vshrl.u32 %v2160, 7
  %v2162 = vsub.s32 2, %v2161
  %v2163 = vrot.slane %v2150, %v2162
  %v2164 = vlaneseq
  %v2165 = vshrl.u32 %v2164, 7
  %v2166 = vsub.s32 3, %v2165
  %v2167 = vrot.slane %v2150, %v2166
  %v2168 = vlaneseq
  %v2169 = vshrl.u32 %v2168, 7
  %v2170 = vsub.s32 4, %v2169
  %v2171 = vrot.slane %v2150, %v2170
  %v2172 = vlaneseq
  %v2173 = vshrl.u32 %v2172, 7
  %v2174 = vsub.s32 5, %v2173
  %v2175 = vrot.slane %v2150, %v2174
  %v2176 = vlaneseq
  %v2177 = vshrl.u32 %v2176, 7
  %v2178 = vsub.s32 6, %v2177
  %v2179 = vrot.slane %v2150, %v2178
  %v2180 = vlaneseq
  %v2181 = vshrl.u32 %v2180, 7
  %v2182 = vsub.s32 7, %v2181
  %v2183 = vrot.slane %v2150, %v2182
  %2184 = vrot.lane.b32.xlu0 %v2155, 71
  %v2185 = vpop.permute.xlu0 %2184
  %2186 = vrot.lane.b32.xlu0 %v2159, 71
  %v2187 = vpop.permute.xlu0 %2186
  %2188 = vrot.lane.b32.xlu0 %v2163, 71
  %v2189 = vpop.permute.xlu0 %2188
  %2190 = vrot.lane.b32.xlu0 %v2167, 71
  %v2191 = vpop.permute.xlu0 %2190
  %2192 = vrot.lane.b32.xlu0 %v2171, 71
  %v2193 = vpop.permute.xlu0 %2192
  %2194 = vrot.lane.b32.xlu0 %v2175, 71
  %v2195 = vpop.permute.xlu0 %2194
  %2196 = vrot.lane.b32.xlu0 %v2179, 71
  %v2197 = vpop.permute.xlu0 %2196
  %2198 = vrot.lane.b32.xlu0 %v2183, 71
  %v2199 = vpop.permute.xlu0 %2198
  %v2200 = vsel %vm1696, %v2185, %v2187
  %v2201 = vsel %vm1696, %v2187, %v2189
  %v2202 = vsel %vm1696, %v2189, %v2191
  %v2203 = vsel %vm1696, %v2191, %v2193
  %v2204 = vsel %vm1696, %v2193, %v2195
  %v2205 = vsel %vm1696, %v2195, %v2197
  %v2206 = vsel %vm1696, %v2197, %v2199
  %v2216 = vmul.f32 %v2138, %v2185
  %v2217 = vmul.f32 %v2139, %v2200
  %v2218 = vmul.f32 %v2140, %v2201
  %v2219 = vmul.f32 %v2141, %v2202
  %v2220 = vmul.f32 %v2142, %v2203
  %v2221 = vmul.f32 %v2143, %v2204
  %v2222 = vmul.f32 %v2144, %v2205
  %v2223 = vmul.f32 %v2145, %v2206
  %v2224 = vmul.f32 %v2146, %v2199
  %2234 = vrot.lane.b32.xlu0 %v2216, 57
  %v2235 = vpop.permute.xlu0 %2234
  %2236 = vrot.lane.b32.xlu0 %v2217, 57
  %v2237 = vpop.permute.xlu0 %2236
  %2238 = vrot.lane.b32.xlu0 %v2218, 57
  %v2239 = vpop.permute.xlu0 %2238
  %2240 = vrot.lane.b32.xlu0 %v2219, 57
  %v2241 = vpop.permute.xlu0 %2240
  %2242 = vrot.lane.b32.xlu0 %v2220, 57
  %v2243 = vpop.permute.xlu0 %2242
  %2244 = vrot.lane.b32.xlu0 %v2221, 57
  %v2245 = vpop.permute.xlu0 %2244
  %2246 = vrot.lane.b32.xlu0 %v2222, 57
  %v2247 = vpop.permute.xlu0 %2246
  %2248 = vrot.lane.b32.xlu0 %v2223, 57
  %v2249 = vpop.permute.xlu0 %2248
  %2250 = vrot.lane.b32.xlu0 %v2224, 57
  %v2251 = vpop.permute.xlu0 %2250
  %v2252 = vsel %vm1643, %v2235, %v2237
  %v2253 = vsel %vm1643, %v2237, %v2239
  %v2254 = vsel %vm1643, %v2239, %v2241
  %v2255 = vsel %vm1643, %v2241, %v2243
  %v2256 = vsel %vm1643, %v2243, %v2245
  %v2257 = vsel %vm1643, %v2245, %v2247
  %v2258 = vsel %vm1643, %v2247, %v2249
  %v2259 = vsel %vm1643, %v2249, %v2251
  %2268 = vst [vmem:[#allocation3 + $0x180] sm:$0xff] %v2252
  %2269 = vst [vmem:[#allocation3 + $0x188] sm:$0xff] %v2253
  %2270 = vst [vmem:[#allocation3 + $0x190] sm:$0xff] %v2254
  %2271 = vst [vmem:[#allocation3 + $0x198] sm:$0xff] %v2255
  %2272 = vst [vmem:[#allocation3 + $0x1a0] sm:$0xff] %v2256
  %2273 = vst [vmem:[#allocation3 + $0x1a8] sm:$0xff] %v2257
  %2274 = vst [vmem:[#allocation3 + $0x1b0] sm:$0xff] %v2258
  %2275 = vst [vmem:[#allocation3 + $0x1b8] sm:$0xff] %v2259
  %v2276 = vld [vmem:[#allocation2] sm:$0xff]
  %v2277 = vld [vmem:[#allocation2 + $0x8] sm:$0xff]
  %v2278 = vld [vmem:[#allocation2 + $0x10] sm:$0xff]
  %v2279 = vld [vmem:[#allocation2 + $0x18] sm:$0xff]
  %v2280 = vld [vmem:[#allocation2 + $0x20] sm:$0xff]
  %v2281 = vld [vmem:[#allocation2 + $0x28] sm:$0xff]
  %v2282 = vld [vmem:[#allocation2 + $0x30] sm:$0xff]
  %v2283 = vld [vmem:[#allocation2 + $0x38] sm:$0xff]
  %v2284 = vld [vmem:[#allocation2 + $0x40] sm:$0xff]
  %s2285 = scalar_lea.vmem %s6, 7
  %v2286 = vld [vmem:[%s2285] ss:$8 sm:$0xf]
  %v2287 = vld [vmem:[%s2285] ss:$8 sm:$0xf0]
  %v2288 = vor.u32 %v2286, %v2287
  %v2290 = vlaneseq
  %v2291 = vshrl.u32 %v2290, 7
  %v2292 = vsub.s32 0, %v2291
  %v2293 = vrot.slane %v2288, %v2292
  %v2294 = vlaneseq
  %v2295 = vshrl.u32 %v2294, 7
  %v2296 = vsub.s32 1, %v2295
  %v2297 = vrot.slane %v2288, %v2296
  %v2298 = vlaneseq
  %v2299 = vshrl.u32 %v2298, 7
  %v2300 = vsub.s32 2, %v2299
  %v2301 = vrot.slane %v2288, %v2300
  %v2302 = vlaneseq
  %v2303 = vshrl.u32 %v2302, 7
  %v2304 = vsub.s32 3, %v2303
  %v2305 = vrot.slane %v2288, %v2304
  %v2306 = vlaneseq
  %v2307 = vshrl.u32 %v2306, 7
  %v2308 = vsub.s32 4, %v2307
  %v2309 = vrot.slane %v2288, %v2308
  %v2310 = vlaneseq
  %v2311 = vshrl.u32 %v2310, 7
  %v2312 = vsub.s32 5, %v2311
  %v2313 = vrot.slane %v2288, %v2312
  %v2314 = vlaneseq
  %v2315 = vshrl.u32 %v2314, 7
  %v2316 = vsub.s32 6, %v2315
  %v2317 = vrot.slane %v2288, %v2316
  %v2318 = vlaneseq
  %v2319 = vshrl.u32 %v2318, 7
  %v2320 = vsub.s32 7, %v2319
  %v2321 = vrot.slane %v2288, %v2320
  %2322 = vrot.lane.b32.xlu0 %v2293, 72
  %v2323 = vpop.permute.xlu0 %2322
  %2324 = vrot.lane.b32.xlu0 %v2297, 72
  %v2325 = vpop.permute.xlu0 %2324
  %2326 = vrot.lane.b32.xlu0 %v2301, 72
  %v2327 = vpop.permute.xlu0 %2326
  %2328 = vrot.lane.b32.xlu0 %v2305, 72
  %v2329 = vpop.permute.xlu0 %2328
  %2330 = vrot.lane.b32.xlu0 %v2309, 72
  %v2331 = vpop.permute.xlu0 %2330
  %2332 = vrot.lane.b32.xlu0 %v2313, 72
  %v2333 = vpop.permute.xlu0 %2332
  %2334 = vrot.lane.b32.xlu0 %v2317, 72
  %v2335 = vpop.permute.xlu0 %2334
  %2336 = vrot.lane.b32.xlu0 %v2321, 72
  %v2337 = vpop.permute.xlu0 %2336
  %v2338 = vsel %vm1556, %v2323, %v2325
  %v2339 = vsel %vm1556, %v2325, %v2327
  %v2340 = vsel %vm1556, %v2327, %v2329
  %v2341 = vsel %vm1556, %v2329, %v2331
  %v2342 = vsel %vm1556, %v2331, %v2333
  %v2343 = vsel %vm1556, %v2333, %v2335
  %v2344 = vsel %vm1556, %v2335, %v2337
  %v2354 = vmul.f32 %v2276, %v2323
  %v2355 = vmul.f32 %v2277, %v2338
  %v2356 = vmul.f32 %v2278, %v2339
  %v2357 = vmul.f32 %v2279, %v2340
  %v2358 = vmul.f32 %v2280, %v2341
  %v2359 = vmul.f32 %v2281, %v2342
  %v2360 = vmul.f32 %v2282, %v2343
  %v2361 = vmul.f32 %v2283, %v2344
  %v2362 = vmul.f32 %v2284, %v2337
  %2372 = vrot.lane.b32.xlu0 %v2354, 56
  %v2373 = vpop.permute.xlu0 %2372
  %2374 = vrot.lane.b32.xlu0 %v2355, 56
  %v2375 = vpop.permute.xlu0 %2374
  %2376 = vrot.lane.b32.xlu0 %v2356, 56
  %v2377 = vpop.permute.xlu0 %2376
  %2378 = vrot.lane.b32.xlu0 %v2357, 56
  %v2379 = vpop.permute.xlu0 %2378
  %2380 = vrot.lane.b32.xlu0 %v2358, 56
  %v2381 = vpop.permute.xlu0 %2380
  %2382 = vrot.lane.b32.xlu0 %v2359, 56
  %v2383 = vpop.permute.xlu0 %2382
  %2384 = vrot.lane.b32.xlu0 %v2360, 56
  %v2385 = vpop.permute.xlu0 %2384
  %2386 = vrot.lane.b32.xlu0 %v2361, 56
  %v2387 = vpop.permute.xlu0 %2386
  %2388 = vrot.lane.b32.xlu0 %v2362, 56
  %v2389 = vpop.permute.xlu0 %2388
  %v2390 = vsel %vm1503, %v2373, %v2375
  %v2391 = vsel %vm1503, %v2375, %v2377
  %v2392 = vsel %vm1503, %v2377, %v2379
  %v2393 = vsel %vm1503, %v2379, %v2381
  %v2394 = vsel %vm1503, %v2381, %v2383
  %v2395 = vsel %vm1503, %v2383, %v2385
  %v2396 = vsel %vm1503, %v2385, %v2387
  %v2397 = vsel %vm1503, %v2387, %v2389
  %2406 = vst [vmem:[#allocation3 + $0x1c0] sm:$0xff] %v2390
  %2407 = vst [vmem:[#allocation3 + $0x1c8] sm:$0xff] %v2391
  %2408 = vst [vmem:[#allocation3 + $0x1d0] sm:$0xff] %v2392
  %2409 = vst [vmem:[#allocation3 + $0x1d8] sm:$0xff] %v2393
  %2410 = vst [vmem:[#allocation3 + $0x1e0] sm:$0xff] %v2394
  %2411 = vst [vmem:[#allocation3 + $0x1e8] sm:$0xff] %v2395
  %2412 = vst [vmem:[#allocation3 + $0x1f0] sm:$0xff] %v2396
  %2413 = vst [vmem:[#allocation3 + $0x1f8] sm:$0xff] %v2397
  %v2414 = vld [vmem:[#allocation2] sm:$0xff]
  %v2415 = vld [vmem:[#allocation2 + $0x8] sm:$0xff]
  %v2416 = vld [vmem:[#allocation2 + $0x10] sm:$0xff]
  %v2417 = vld [vmem:[#allocation2 + $0x18] sm:$0xff]
  %v2418 = vld [vmem:[#allocation2 + $0x20] sm:$0xff]
  %v2419 = vld [vmem:[#allocation2 + $0x28] sm:$0xff]
  %v2420 = vld [vmem:[#allocation2 + $0x30] sm:$0xff]
  %v2421 = vld [vmem:[#allocation2 + $0x38] sm:$0xff]
  %v2422 = vld [vmem:[#allocation2 + $0x40] sm:$0xff]
  %s2423 = scalar_lea.vmem %s6, 64
  %v2424 = vld [vmem:[%s2423] ss:$8 sm:$0xf]
  %v2425 = vld [vmem:[%s2423] ss:$8 sm:$0xf0]
  %v2426 = vor.u32 %v2424, %v2425
  %v2428 = vlaneseq
  %v2429 = vshrl.u32 %v2428, 7
  %v2430 = vsub.s32 0, %v2429
  %v2431 = vrot.slane %v2426, %v2430
  %v2432 = vlaneseq
  %v2433 = vshrl.u32 %v2432, 7
  %v2434 = vsub.s32 1, %v2433
  %v2435 = vrot.slane %v2426, %v2434
  %v2436 = vlaneseq
  %v2437 = vshrl.u32 %v2436, 7
  %v2438 = vsub.s32 2, %v2437
  %v2439 = vrot.slane %v2426, %v2438
  %v2440 = vlaneseq
  %v2441 = vshrl.u32 %v2440, 7
  %v2442 = vsub.s32 3, %v2441
  %v2443 = vrot.slane %v2426, %v2442
  %v2444 = vlaneseq
  %v2445 = vshrl.u32 %v2444, 7
  %v2446 = vsub.s32 4, %v2445
  %v2447 = vrot.slane %v2426, %v2446
  %v2448 = vlaneseq
  %v2449 = vshrl.u32 %v2448, 7
  %v2450 = vsub.s32 5, %v2449
  %v2451 = vrot.slane %v2426, %v2450
  %v2452 = vlaneseq
  %v2453 = vshrl.u32 %v2452, 7
  %v2454 = vsub.s32 6, %v2453
  %v2455 = vrot.slane %v2426, %v2454
  %v2456 = vlaneseq
  %v2457 = vshrl.u32 %v2456, 7
  %v2458 = vsub.s32 7, %v2457
  %v2459 = vrot.slane %v2426, %v2458
  %2460 = vrot.lane.b32.xlu0 %v2431, 73
  %v2461 = vpop.permute.xlu0 %2460
  %2462 = vrot.lane.b32.xlu0 %v2435, 73
  %v2463 = vpop.permute.xlu0 %2462
  %2464 = vrot.lane.b32.xlu0 %v2439, 73
  %v2465 = vpop.permute.xlu0 %2464
  %2466 = vrot.lane.b32.xlu0 %v2443, 73
  %v2467 = vpop.permute.xlu0 %2466
  %2468 = vrot.lane.b32.xlu0 %v2447, 73
  %v2469 = vpop.permute.xlu0 %2468
  %2470 = vrot.lane.b32.xlu0 %v2451, 73
  %v2471 = vpop.permute.xlu0 %2470
  %2472 = vrot.lane.b32.xlu0 %v2455, 73
  %v2473 = vpop.permute.xlu0 %2472
  %2474 = vrot.lane.b32.xlu0 %v2459, 73
  %v2475 = vpop.permute.xlu0 %2474
  %v2476 = vsel %vm1416, %v2461, %v2463
  %v2477 = vsel %vm1416, %v2463, %v2465
  %v2478 = vsel %vm1416, %v2465, %v2467
  %v2479 = vsel %vm1416, %v2467, %v2469
  %v2480 = vsel %vm1416, %v2469, %v2471
  %v2481 = vsel %vm1416, %v2471, %v2473
  %v2482 = vsel %vm1416, %v2473, %v2475
  %v2492 = vmul.f32 %v2414, %v2461
  %v2493 = vmul.f32 %v2415, %v2476
  %v2494 = vmul.f32 %v2416, %v2477
  %v2495 = vmul.f32 %v2417, %v2478
  %v2496 = vmul.f32 %v2418, %v2479
  %v2497 = vmul.f32 %v2419, %v2480
  %v2498 = vmul.f32 %v2420, %v2481
  %v2499 = vmul.f32 %v2421, %v2482
  %v2500 = vmul.f32 %v2422, %v2475
  %2510 = vrot.lane.b32.xlu0 %v2492, 55
  %v2511 = vpop.permute.xlu0 %2510
  %2512 = vrot.lane.b32.xlu0 %v2493, 55
  %v2513 = vpop.permute.xlu0 %2512
  %2514 = vrot.lane.b32.xlu0 %v2494, 55
  %v2515 = vpop.permute.xlu0 %2514
  %2516 = vrot.lane.b32.xlu0 %v2495, 55
  %v2517 = vpop.permute.xlu0 %2516
  %2518 = vrot.lane.b32.xlu0 %v2496, 55
  %v2519 = vpop.permute.xlu0 %2518
  %2520 = vrot.lane.b32.xlu0 %v2497, 55
  %v2521 = vpop.permute.xlu0 %2520
  %2522 = vrot.lane.b32.xlu0 %v2498, 55
  %v2523 = vpop.permute.xlu0 %2522
  %2524 = vrot.lane.b32.xlu0 %v2499, 55
  %v2525 = vpop.permute.xlu0 %2524
  %2526 = vrot.lane.b32.xlu0 %v2500, 55
  %v2527 = vpop.permute.xlu0 %2526
  %v2528 = vsel %vm1363, %v2511, %v2513
  %v2529 = vsel %vm1363, %v2513, %v2515
  %v2530 = vsel %vm1363, %v2515, %v2517
  %v2531 = vsel %vm1363, %v2517, %v2519
  %v2532 = vsel %vm1363, %v2519, %v2521
  %v2533 = vsel %vm1363, %v2521, %v2523
  %v2534 = vsel %vm1363, %v2523, %v2525
  %v2535 = vsel %vm1363, %v2525, %v2527
  %2544 = vst [vmem:[#allocation3 + $0x200] sm:$0xff] %v2528
  %2545 = vst [vmem:[#allocation3 + $0x208] sm:$0xff] %v2529
  %2546 = vst [vmem:[#allocation3 + $0x210] sm:$0xff] %v2530
  %2547 = vst [vmem:[#allocation3 + $0x218] sm:$0xff] %v2531
  %2548 = vst [vmem:[#allocation3 + $0x220] sm:$0xff] %v2532
  %2549 = vst [vmem:[#allocation3 + $0x228] sm:$0xff] %v2533
  %2550 = vst [vmem:[#allocation3 + $0x230] sm:$0xff] %v2534
  %2551 = vst [vmem:[#allocation3 + $0x238] sm:$0xff] %v2535
  %v2552 = vld [vmem:[#allocation2] sm:$0xff]
  %v2553 = vld [vmem:[#allocation2 + $0x8] sm:$0xff]
  %v2554 = vld [vmem:[#allocation2 + $0x10] sm:$0xff]
  %v2555 = vld [vmem:[#allocation2 + $0x18] sm:$0xff]
  %v2556 = vld [vmem:[#allocation2 + $0x20] sm:$0xff]
  %v2557 = vld [vmem:[#allocation2 + $0x28] sm:$0xff]
  %v2558 = vld [vmem:[#allocation2 + $0x30] sm:$0xff]
  %v2559 = vld [vmem:[#allocation2 + $0x38] sm:$0xff]
  %v2560 = vld [vmem:[#allocation2 + $0x40] sm:$0xff]
  %s2561 = scalar_lea.vmem %s6, 65
  %v2562 = vld [vmem:[%s2561] ss:$8 sm:$0xf]
  %v2563 = vld [vmem:[%s2561] ss:$8 sm:$0xf0]
  %v2564 = vor.u32 %v2562, %v2563
  %v2566 = vlaneseq
  %v2567 = vshrl.u32 %v2566, 7
  %v2568 = vsub.s32 0, %v2567
  %v2569 = vrot.slane %v2564, %v2568
  %v2570 = vlaneseq
  %v2571 = vshrl.u32 %v2570, 7
  %v2572 = vsub.s32 1, %v2571
  %v2573 = vrot.slane %v2564, %v2572
  %v2574 = vlaneseq
  %v2575 = vshrl.u32 %v2574, 7
  %v2576 = vsub.s32 2, %v2575
  %v2577 = vrot.slane %v2564, %v2576
  %v2578 = vlaneseq
  %v2579 = vshrl.u32 %v2578, 7
  %v2580 = vsub.s32 3, %v2579
  %v2581 = vrot.slane %v2564, %v2580
  %v2582 = vlaneseq
  %v2583 = vshrl.u32 %v2582, 7
  %v2584 = vsub.s32 4, %v2583
  %v2585 = vrot.slane %v2564, %v2584
  %v2586 = vlaneseq
  %v2587 = vshrl.u32 %v2586, 7
  %v2588 = vsub.s32 5, %v2587
  %v2589 = vrot.slane %v2564, %v2588
  %v2590 = vlaneseq
  %v2591 = vshrl.u32 %v2590, 7
  %v2592 = vsub.s32 6, %v2591
  %v2593 = vrot.slane %v2564, %v2592
  %v2594 = vlaneseq
  %v2595 = vshrl.u32 %v2594, 7
  %v2596 = vsub.s32 7, %v2595
  %v2597 = vrot.slane %v2564, %v2596
  %2598 = vrot.lane.b32.xlu0 %v2569, 119
  %v2599 = vpop.permute.xlu0 %2598
  %2600 = vrot.lane.b32.xlu0 %v2573, 119
  %v2601 = vpop.permute.xlu0 %2600
  %2602 = vrot.lane.b32.xlu0 %v2577, 119
  %v2603 = vpop.permute.xlu0 %2602
  %2604 = vrot.lane.b32.xlu0 %v2581, 119
  %v2605 = vpop.permute.xlu0 %2604
  %2606 = vrot.lane.b32.xlu0 %v2585, 119
  %v2607 = vpop.permute.xlu0 %2606
  %2608 = vrot.lane.b32.xlu0 %v2589, 119
  %v2609 = vpop.permute.xlu0 %2608
  %2610 = vrot.lane.b32.xlu0 %v2593, 119
  %v2611 = vpop.permute.xlu0 %2610
  %2612 = vrot.lane.b32.xlu0 %v2597, 119
  %v2613 = vpop.permute.xlu0 %2612
  %vm2614 = vcmask 973824
  %v2615 = vsel %vm2614, %v2599, %v2601
  %v2616 = vsel %vm2614, %v2601, %v2603
  %v2617 = vsel %vm2614, %v2603, %v2605
  %v2618 = vsel %vm2614, %v2605, %v2607
  %v2619 = vsel %vm2614, %v2607, %v2609
  %v2620 = vsel %vm2614, %v2609, %v2611
  %v2621 = vsel %vm2614, %v2611, %v2613
  %v2631 = vmul.f32 %v2552, %v2599
  %v2632 = vmul.f32 %v2553, %v2615
  %v2633 = vmul.f32 %v2554, %v2616
  %v2634 = vmul.f32 %v2555, %v2617
  %v2635 = vmul.f32 %v2556, %v2618
  %v2636 = vmul.f32 %v2557, %v2619
  %v2637 = vmul.f32 %v2558, %v2620
  %v2638 = vmul.f32 %v2559, %v2621
  %v2639 = vmul.f32 %v2560, %v2613
  %2649 = vrot.lane.b32.xlu0 %v2631, 9
  %v2650 = vpop.permute.xlu0 %2649
  %2651 = vrot.lane.b32.xlu0 %v2632, 9
  %v2652 = vpop.permute.xlu0 %2651
  %2653 = vrot.lane.b32.xlu0 %v2633, 9
  %v2654 = vpop.permute.xlu0 %2653
  %2655 = vrot.lane.b32.xlu0 %v2634, 9
  %v2656 = vpop.permute.xlu0 %2655
  %2657 = vrot.lane.b32.xlu0 %v2635, 9
  %v2658 = vpop.permute.xlu0 %2657
  %2659 = vrot.lane.b32.xlu0 %v2636, 9
  %v2660 = vpop.permute.xlu0 %2659
  %2661 = vrot.lane.b32.xlu0 %v2637, 9
  %v2662 = vpop.permute.xlu0 %2661
  %2663 = vrot.lane.b32.xlu0 %v2638, 9
  %v2664 = vpop.permute.xlu0 %2663
  %2665 = vrot.lane.b32.xlu0 %v2639, 9
  %v2666 = vpop.permute.xlu0 %2665
  %vm2667 = vcmask 72704
  %v2668 = vsel %vm2667, %v2650, %v2652
  %v2669 = vsel %vm2667, %v2652, %v2654
  %v2670 = vsel %vm2667, %v2654, %v2656
  %v2671 = vsel %vm2667, %v2656, %v2658
  %v2672 = vsel %vm2667, %v2658, %v2660
  %v2673 = vsel %vm2667, %v2660, %v2662
  %v2674 = vsel %vm2667, %v2662, %v2664
  %v2675 = vsel %vm2667, %v2664, %v2666
  %2684 = vst [vmem:[#allocation3 + $0x240] sm:$0xff] %v2668
  %2685 = vst [vmem:[#allocation3 + $0x248] sm:$0xff] %v2669
  %2686 = vst [vmem:[#allocation3 + $0x250] sm:$0xff] %v2670
  %2687 = vst [vmem:[#allocation3 + $0x258] sm:$0xff] %v2671
  %2688 = vst [vmem:[#allocation3 + $0x260] sm:$0xff] %v2672
  %2689 = vst [vmem:[#allocation3 + $0x268] sm:$0xff] %v2673
  %2690 = vst [vmem:[#allocation3 + $0x270] sm:$0xff] %v2674
  %2691 = vst [vmem:[#allocation3 + $0x278] sm:$0xff] %v2675
  %v2692 = vld [vmem:[#allocation2] sm:$0xff]
  %v2693 = vld [vmem:[#allocation2 + $0x8] sm:$0xff]
  %v2694 = vld [vmem:[#allocation2 + $0x10] sm:$0xff]
  %v2695 = vld [vmem:[#allocation2 + $0x18] sm:$0xff]
  %v2696 = vld [vmem:[#allocation2 + $0x20] sm:$0xff]
  %v2697 = vld [vmem:[#allocation2 + $0x28] sm:$0xff]
  %v2698 = vld [vmem:[#allocation2 + $0x30] sm:$0xff]
  %v2699 = vld [vmem:[#allocation2 + $0x38] sm:$0xff]
  %v2700 = vld [vmem:[#allocation2 + $0x40] sm:$0xff]
  %s2701 = scalar_lea.vmem %s6, 66
  %v2702 = vld [vmem:[%s2701] ss:$8 sm:$0xf]
  %v2703 = vld [vmem:[%s2701] ss:$8 sm:$0xf0]
  %v2704 = vor.u32 %v2702, %v2703
  %v2706 = vlaneseq
  %v2707 = vshrl.u32 %v2706, 7
  %v2708 = vsub.s32 0, %v2707
  %v2709 = vrot.slane %v2704, %v2708
  %v2710 = vlaneseq
  %v2711 = vshrl.u32 %v2710, 7
  %v2712 = vsub.s32 1, %v2711
  %v2713 = vrot.slane %v2704, %v2712
  %v2714 = vlaneseq
  %v2715 = vshrl.u32 %v2714, 7
  %v2716 = vsub.s32 2, %v2715
  %v2717 = vrot.slane %v2704, %v2716
  %v2718 = vlaneseq
  %v2719 = vshrl.u32 %v2718, 7
  %v2720 = vsub.s32 3, %v2719
  %v2721 = vrot.slane %v2704, %v2720
  %v2722 = vlaneseq
  %v2723 = vshrl.u32 %v2722, 7
  %v2724 = vsub.s32 4, %v2723
  %v2725 = vrot.slane %v2704, %v2724
  %v2726 = vlaneseq
  %v2727 = vshrl.u32 %v2726, 7
  %v2728 = vsub.s32 5, %v2727
  %v2729 = vrot.slane %v2704, %v2728
  %v2730 = vlaneseq
  %v2731 = vshrl.u32 %v2730, 7
  %v2732 = vsub.s32 6, %v2731
  %v2733 = vrot.slane %v2704, %v2732
  %v2734 = vlaneseq
  %v2735 = vshrl.u32 %v2734, 7
  %v2736 = vsub.s32 7, %v2735
  %v2737 = vrot.slane %v2704, %v2736
  %2738 = vrot.lane.b32.xlu0 %v2709, 120
  %v2739 = vpop.permute.xlu0 %2738
  %2740 = vrot.lane.b32.xlu0 %v2713, 120
  %v2741 = vpop.permute.xlu0 %2740
  %2742 = vrot.lane.b32.xlu0 %v2717, 120
  %v2743 = vpop.permute.xlu0 %2742
  %2744 = vrot.lane.b32.xlu0 %v2721, 120
  %v2745 = vpop.permute.xlu0 %2744
  %2746 = vrot.lane.b32.xlu0 %v2725, 120
  %v2747 = vpop.permute.xlu0 %2746
  %2748 = vrot.lane.b32.xlu0 %v2729, 120
  %v2749 = vpop.permute.xlu0 %2748
  %2750 = vrot.lane.b32.xlu0 %v2733, 120
  %v2751 = vpop.permute.xlu0 %2750
  %2752 = vrot.lane.b32.xlu0 %v2737, 120
  %v2753 = vpop.permute.xlu0 %2752
  %vm2754 = vcmask 982016
  %v2755 = vsel %vm2754, %v2739, %v2741
  %v2756 = vsel %vm2754, %v2741, %v2743
  %v2757 = vsel %vm2754, %v2743, %v2745
  %v2758 = vsel %vm2754, %v2745, %v2747
  %v2759 = vsel %vm2754, %v2747, %v2749
  %v2760 = vsel %vm2754, %v2749, %v2751
  %v2761 = vsel %vm2754, %v2751, %v2753
  %v2771 = vmul.f32 %v2692, %v2739
  %v2772 = vmul.f32 %v2693, %v2755
  %v2773 = vmul.f32 %v2694, %v2756
  %v2774 = vmul.f32 %v2695, %v2757
  %v2775 = vmul.f32 %v2696, %v2758
  %v2776 = vmul.f32 %v2697, %v2759
  %v2777 = vmul.f32 %v2698, %v2760
  %v2778 = vmul.f32 %v2699, %v2761
  %v2779 = vmul.f32 %v2700, %v2753
  %2789 = vrot.lane.b32.xlu0 %v2771, 8
  %v2790 = vpop.permute.xlu0 %2789
  %2791 = vrot.lane.b32.xlu0 %v2772, 8
  %v2792 = vpop.permute.xlu0 %2791
  %2793 = vrot.lane.b32.xlu0 %v2773, 8
  %v2794 = vpop.permute.xlu0 %2793
  %2795 = vrot.lane.b32.xlu0 %v2774, 8
  %v2796 = vpop.permute.xlu0 %2795
  %2797 = vrot.lane.b32.xlu0 %v2775, 8
  %v2798 = vpop.permute.xlu0 %2797
  %2799 = vrot.lane.b32.xlu0 %v2776, 8
  %v2800 = vpop.permute.xlu0 %2799
  %2801 = vrot.lane.b32.xlu0 %v2777, 8
  %v2802 = vpop.permute.xlu0 %2801
  %2803 = vrot.lane.b32.xlu0 %v2778, 8
  %v2804 = vpop.permute.xlu0 %2803
  %2805 = vrot.lane.b32.xlu0 %v2779, 8
  %v2806 = vpop.permute.xlu0 %2805
  %v2807 = vsel %vm65, %v2790, %v2792
  %v2808 = vsel %vm65, %v2792, %v2794
  %v2809 = vsel %vm65, %v2794, %v2796
  %v2810 = vsel %vm65, %v2796, %v2798
  %v2811 = vsel %vm65, %v2798, %v2800
  %v2812 = vsel %vm65, %v2800, %v2802
  %v2813 = vsel %vm65, %v2802, %v2804
  %v2814 = vsel %vm65, %v2804, %v2806
  %2823 = vst [vmem:[#allocation3 + $0x280] sm:$0xff] %v2807
  %2824 = vst [vmem:[#allocation3 + $0x288] sm:$0xff] %v2808
  %2825 = vst [vmem:[#allocation3 + $0x290] sm:$0xff] %v2809
  %2826 = vst [vmem:[#allocation3 + $0x298] sm:$0xff] %v2810
  %2827 = vst [vmem:[#allocation3 + $0x2a0] sm:$0xff] %v2811
  %2828 = vst [vmem:[#allocation3 + $0x2a8] sm:$0xff] %v2812
  %2829 = vst [vmem:[#allocation3 + $0x2b0] sm:$0xff] %v2813
  %2830 = vst [vmem:[#allocation3 + $0x2b8] sm:$0xff] %v2814
  %v2831 = vld [vmem:[#allocation2] sm:$0xff]
  %v2832 = vld [vmem:[#allocation2 + $0x8] sm:$0xff]
  %v2833 = vld [vmem:[#allocation2 + $0x10] sm:$0xff]
  %v2834 = vld [vmem:[#allocation2 + $0x18] sm:$0xff]
  %v2835 = vld [vmem:[#allocation2 + $0x20] sm:$0xff]
  %v2836 = vld [vmem:[#allocation2 + $0x28] sm:$0xff]
  %v2837 = vld [vmem:[#allocation2 + $0x30] sm:$0xff]
  %v2838 = vld [vmem:[#allocation2 + $0x38] sm:$0xff]
  %v2839 = vld [vmem:[#allocation2 + $0x40] sm:$0xff]
  %s2840 = scalar_lea.vmem %s6, 67
  %v2841 = vld [vmem:[%s2840] ss:$8 sm:$0xf]
  %v2842 = vld [vmem:[%s2840] ss:$8 sm:$0xf0]
  %v2843 = vor.u32 %v2841, %v2842
  %v2845 = vlaneseq
  %v2846 = vshrl.u32 %v2845, 7
  %v2847 = vsub.s32 0, %v2846
  %v2848 = vrot.slane %v2843, %v2847
  %v2849 = vlaneseq
  %v2850 = vshrl.u32 %v2849, 7
  %v2851 = vsub.s32 1, %v2850
  %v2852 = vrot.slane %v2843, %v2851
  %v2853 = vlaneseq
  %v2854 = vshrl.u32 %v2853, 7
  %v2855 = vsub.s32 2, %v2854
  %v2856 = vrot.slane %v2843, %v2855
  %v2857 = vlaneseq
  %v2858 = vshrl.u32 %v2857, 7
  %v2859 = vsub.s32 3, %v2858
  %v2860 = vrot.slane %v2843, %v2859
  %v2861 = vlaneseq
  %v2862 = vshrl.u32 %v2861, 7
  %v2863 = vsub.s32 4, %v2862
  %v2864 = vrot.slane %v2843, %v2863
  %v2865 = vlaneseq
  %v2866 = vshrl.u32 %v2865, 7
  %v2867 = vsub.s32 5, %v2866
  %v2868 = vrot.slane %v2843, %v2867
  %v2869 = vlaneseq
  %v2870 = vshrl.u32 %v2869, 7
  %v2871 = vsub.s32 6, %v2870
  %v2872 = vrot.slane %v2843, %v2871
  %v2873 = vlaneseq
  %v2874 = vshrl.u32 %v2873, 7
  %v2875 = vsub.s32 7, %v2874
  %v2876 = vrot.slane %v2843, %v2875
  %2877 = vrot.lane.b32.xlu0 %v2848, 121
  %v2878 = vpop.permute.xlu0 %2877
  %2879 = vrot.lane.b32.xlu0 %v2852, 121
  %v2880 = vpop.permute.xlu0 %2879
  %2881 = vrot.lane.b32.xlu0 %v2856, 121
  %v2882 = vpop.permute.xlu0 %2881
  %2883 = vrot.lane.b32.xlu0 %v2860, 121
  %v2884 = vpop.permute.xlu0 %2883
  %2885 = vrot.lane.b32.xlu0 %v2864, 121
  %v2886 = vpop.permute.xlu0 %2885
  %2887 = vrot.lane.b32.xlu0 %v2868, 121
  %v2888 = vpop.permute.xlu0 %2887
  %2889 = vrot.lane.b32.xlu0 %v2872, 121
  %v2890 = vpop.permute.xlu0 %2889
  %2891 = vrot.lane.b32.xlu0 %v2876, 121
  %v2892 = vpop.permute.xlu0 %2891
  %vm2893 = vcmask 990208
  %v2894 = vsel %vm2893, %v2878, %v2880
  %v2895 = vsel %vm2893, %v2880, %v2882
  %v2896 = vsel %vm2893, %v2882, %v2884
  %v2897 = vsel %vm2893, %v2884, %v2886
  %v2898 = vsel %vm2893, %v2886, %v2888
  %v2899 = vsel %vm2893, %v2888, %v2890
  %v2900 = vsel %vm2893, %v2890, %v2892
  %v2910 = vmul.f32 %v2831, %v2878
  %v2911 = vmul.f32 %v2832, %v2894
  %v2912 = vmul.f32 %v2833, %v2895
  %v2913 = vmul.f32 %v2834, %v2896
  %v2914 = vmul.f32 %v2835, %v2897
  %v2915 = vmul.f32 %v2836, %v2898
  %v2916 = vmul.f32 %v2837, %v2899
  %v2917 = vmul.f32 %v2838, %v2900
  %v2918 = vmul.f32 %v2839, %v2892
  %2928 = vrot.lane.b32.xlu0 %v2910, 7
  %v2929 = vpop.permute.xlu0 %2928
  %2930 = vrot.lane.b32.xlu0 %v2911, 7
  %v2931 = vpop.permute.xlu0 %2930
  %2932 = vrot.lane.b32.xlu0 %v2912, 7
  %v2933 = vpop.permute.xlu0 %2932
  %2934 = vrot.lane.b32.xlu0 %v2913, 7
  %v2935 = vpop.permute.xlu0 %2934
  %2936 = vrot.lane.b32.xlu0 %v2914, 7
  %v2937 = vpop.permute.xlu0 %2936
  %2938 = vrot.lane.b32.xlu0 %v2915, 7
  %v2939 = vpop.permute.xlu0 %2938
  %2940 = vrot.lane.b32.xlu0 %v2916, 7
  %v2941 = vpop.permute.xlu0 %2940
  %2942 = vrot.lane.b32.xlu0 %v2917, 7
  %v2943 = vpop.permute.xlu0 %2942
  %2944 = vrot.lane.b32.xlu0 %v2918, 7
  %v2945 = vpop.permute.xlu0 %2944
  %vm2946 = vcmask 56320
  %v2947 = vsel %vm2946, %v2929, %v2931
  %v2948 = vsel %vm2946, %v2931, %v2933
  %v2949 = vsel %vm2946, %v2933, %v2935
  %v2950 = vsel %vm2946, %v2935, %v2937
  %v2951 = vsel %vm2946, %v2937, %v2939
  %v2952 = vsel %vm2946, %v2939, %v2941
  %v2953 = vsel %vm2946, %v2941, %v2943
  %v2954 = vsel %vm2946, %v2943, %v2945
  %2963 = vst [vmem:[#allocation3 + $0x2c0] sm:$0xff] %v2947
  %2964 = vst [vmem:[#allocation3 + $0x2c8] sm:$0xff] %v2948
  %2965 = vst [vmem:[#allocation3 + $0x2d0] sm:$0xff] %v2949
  %2966 = vst [vmem:[#allocation3 + $0x2d8] sm:$0xff] %v2950
  %2967 = vst [vmem:[#allocation3 + $0x2e0] sm:$0xff] %v2951
  %2968 = vst [vmem:[#allocation3 + $0x2e8] sm:$0xff] %v2952
  %2969 = vst [vmem:[#allocation3 + $0x2f0] sm:$0xff] %v2953
  %2970 = vst [vmem:[#allocation3 + $0x2f8] sm:$0xff] %v2954
  %v2971 = vld [vmem:[#allocation2] sm:$0xff]
  %v2972 = vld [vmem:[#allocation2 + $0x8] sm:$0xff]
  %v2973 = vld [vmem:[#allocation2 + $0x10] sm:$0xff]
  %v2974 = vld [vmem:[#allocation2 + $0x18] sm:$0xff]
  %v2975 = vld [vmem:[#allocation2 + $0x20] sm:$0xff]
  %v2976 = vld [vmem:[#allocation2 + $0x28] sm:$0xff]
  %v2977 = vld [vmem:[#allocation2 + $0x30] sm:$0xff]
  %v2978 = vld [vmem:[#allocation2 + $0x38] sm:$0xff]
  %v2979 = vld [vmem:[#allocation2 + $0x40] sm:$0xff]
  %s2980 = scalar_lea.vmem %s6, 68
  %v2981 = vld [vmem:[%s2980] ss:$8 sm:$0xf]
  %v2982 = vld [vmem:[%s2980] ss:$8 sm:$0xf0]
  %v2983 = vor.u32 %v2981, %v2982
  %v2985 = vlaneseq
  %v2986 = vshrl.u32 %v2985, 7
  %v2987 = vsub.s32 0, %v2986
  %v2988 = vrot.slane %v2983, %v2987
  %v2989 = vlaneseq
  %v2990 = vshrl.u32 %v2989, 7
  %v2991 = vsub.s32 1, %v2990
  %v2992 = vrot.slane %v2983, %v2991
  %v2993 = vlaneseq
  %v2994 = vshrl.u32 %v2993, 7
  %v2995 = vsub.s32 2, %v2994
  %v2996 = vrot.slane %v2983, %v2995
  %v2997 = vlaneseq
  %v2998 = vshrl.u32 %v2997, 7
  %v2999 = vsub.s32 3, %v2998
  %v3000 = vrot.slane %v2983, %v2999
  %v3001 = vlaneseq
  %v3002 = vshrl.u32 %v3001, 7
  %v3003 = vsub.s32 4, %v3002
  %v3004 = vrot.slane %v2983, %v3003
  %v3005 = vlaneseq
  %v3006 = vshrl.u32 %v3005, 7
  %v3007 = vsub.s32 5, %v3006
  %v3008 = vrot.slane %v2983, %v3007
  %v3009 = vlaneseq
  %v3010 = vshrl.u32 %v3009, 7
  %v3011 = vsub.s32 6, %v3010
  %v3012 = vrot.slane %v2983, %v3011
  %v3013 = vlaneseq
  %v3014 = vshrl.u32 %v3013, 7
  %v3015 = vsub.s32 7, %v3014
  %v3016 = vrot.slane %v2983, %v3015
  %3017 = vrot.lane.b32.xlu0 %v2988, 127
  %v3018 = vpop.permute.xlu0 %3017
  %3019 = vrot.lane.b32.xlu0 %v2992, 127
  %v3020 = vpop.permute.xlu0 %3019
  %3021 = vrot.lane.b32.xlu0 %v2996, 127
  %v3022 = vpop.permute.xlu0 %3021
  %3023 = vrot.lane.b32.xlu0 %v3000, 127
  %v3024 = vpop.permute.xlu0 %3023
  %3025 = vrot.lane.b32.xlu0 %v3004, 127
  %v3026 = vpop.permute.xlu0 %3025
  %3027 = vrot.lane.b32.xlu0 %v3008, 127
  %v3028 = vpop.permute.xlu0 %3027
  %3029 = vrot.lane.b32.xlu0 %v3012, 127
  %v3030 = vpop.permute.xlu0 %3029
  %3031 = vrot.lane.b32.xlu0 %v3016, 127
  %v3032 = vpop.permute.xlu0 %3031
  %vm3033 = vcmask 1039360
  %v3034 = vsel %vm3033, %v3018, %v3020
  %v3035 = vsel %vm3033, %v3020, %v3022
  %v3036 = vsel %vm3033, %v3022, %v3024
  %v3037 = vsel %vm3033, %v3024, %v3026
  %v3038 = vsel %vm3033, %v3026, %v3028
  %v3039 = vsel %vm3033, %v3028, %v3030
  %v3040 = vsel %vm3033, %v3030, %v3032
  %v3050 = vmul.f32 %v2971, %v3018
  %v3051 = vmul.f32 %v2972, %v3034
  %v3052 = vmul.f32 %v2973, %v3035
  %v3053 = vmul.f32 %v2974, %v3036
  %v3054 = vmul.f32 %v2975, %v3037
  %v3055 = vmul.f32 %v2976, %v3038
  %v3056 = vmul.f32 %v2977, %v3039
  %v3057 = vmul.f32 %v2978, %v3040
  %v3058 = vmul.f32 %v2979, %v3032
  %3068 = vrot.lane.b32.xlu0 %v3050, 1
  %v3069 = vpop.permute.xlu0 %3068
  %3070 = vrot.lane.b32.xlu0 %v3051, 1
  %v3071 = vpop.permute.xlu0 %3070
  %3072 = vrot.lane.b32.xlu0 %v3052, 1
  %v3073 = vpop.permute.xlu0 %3072
  %3074 = vrot.lane.b32.xlu0 %v3053, 1
  %v3075 = vpop.permute.xlu0 %3074
  %3076 = vrot.lane.b32.xlu0 %v3054, 1
  %v3077 = vpop.permute.xlu0 %3076
  %3078 = vrot.lane.b32.xlu0 %v3055, 1
  %v3079 = vpop.permute.xlu0 %3078
  %3080 = vrot.lane.b32.xlu0 %v3056, 1
  %v3081 = vpop.permute.xlu0 %3080
  %3082 = vrot.lane.b32.xlu0 %v3057, 1
  %v3083 = vpop.permute.xlu0 %3082
  %3084 = vrot.lane.b32.xlu0 %v3058, 1
  %v3085 = vpop.permute.xlu0 %3084
  %vm3086 = vcmask 7168
  %v3087 = vsel %vm3086, %v3069, %v3071
  %v3088 = vsel %vm3086, %v3071, %v3073
  %v3089 = vsel %vm3086, %v3073, %v3075
  %v3090 = vsel %vm3086, %v3075, %v3077
  %v3091 = vsel %vm3086, %v3077, %v3079
  %v3092 = vsel %vm3086, %v3079, %v3081
  %v3093 = vsel %vm3086, %v3081, %v3083
  %v3094 = vsel %vm3086, %v3083, %v3085
  %3103 = vst [vmem:[#allocation3 + $0x300] sm:$0xff] %v3087
  %3104 = vst [vmem:[#allocation3 + $0x308] sm:$0xff] %v3088
  %3105 = vst [vmem:[#allocation3 + $0x310] sm:$0xff] %v3089
  %3106 = vst [vmem:[#allocation3 + $0x318] sm:$0xff] %v3090
  %3107 = vst [vmem:[#allocation3 + $0x320] sm:$0xff] %v3091
  %3108 = vst [vmem:[#allocation3 + $0x328] sm:$0xff] %v3092
  %3109 = vst [vmem:[#allocation3 + $0x330] sm:$0xff] %v3093
  %3110 = vst [vmem:[#allocation3 + $0x338] sm:$0xff] %v3094
  %3111 = vst [vmem:[#allocation3 + $0x340] sm:$0xff] %v1286
  %3112 = vst [vmem:[#allocation3 + $0x348] sm:$0xff] %v1287
  %3113 = vst [vmem:[#allocation3 + $0x350] sm:$0xff] %v1288
  %3114 = vst [vmem:[#allocation3 + $0x358] sm:$0xff] %v1289
  %3115 = vst [vmem:[#allocation3 + $0x360] sm:$0xff] %v1290
  %3116 = vst [vmem:[#allocation3 + $0x368] sm:$0xff] %v1291
  %3117 = vst [vmem:[#allocation3 + $0x370] sm:$0xff] %v1292
  %3118 = vst [vmem:[#allocation3 + $0x378] sm:$0xff] %v1293
  %v3119 = vld [vmem:[#allocation2 + $0x8] sm:$0xff]
  %v3120 = vld [vmem:[#allocation2 + $0x10] sm:$0xff]
  %v3121 = vld [vmem:[#allocation2 + $0x18] sm:$0xff]
  %v3122 = vld [vmem:[#allocation2 + $0x20] sm:$0xff]
  %v3123 = vld [vmem:[#allocation2 + $0x28] sm:$0xff]
  %v3124 = vld [vmem:[#allocation2 + $0x30] sm:$0xff]
  %v3125 = vld [vmem:[#allocation2 + $0x38] sm:$0xff]
  %v3126 = vld [vmem:[#allocation2 + $0x40] sm:$0xff]
  %v3127 = vld [vmem:[#allocation2 + $0x48] sm:$0xff]
  %s3128 = scalar_lea.vmem %s6, 70
  %v3129 = vld [vmem:[%s3128] ss:$8 sm:$0xf]
  %v3130 = vld [vmem:[%s3128] ss:$8 sm:$0xf0]
  %v3131 = vor.u32 %v3129, %v3130
  %v3133 = vlaneseq
  %v3134 = vshrl.u32 %v3133, 7
  %v3135 = vsub.s32 0, %v3134
  %v3136 = vrot.slane %v3131, %v3135
  %v3137 = vlaneseq
  %v3138 = vshrl.u32 %v3137, 7
  %v3139 = vsub.s32 1, %v3138
  %v3140 = vrot.slane %v3131, %v3139
  %v3141 = vlaneseq
  %v3142 = vshrl.u32 %v3141, 7
  %v3143 = vsub.s32 2, %v3142
  %v3144 = vrot.slane %v3131, %v3143
  %v3145 = vlaneseq
  %v3146 = vshrl.u32 %v3145, 7
  %v3147 = vsub.s32 3, %v3146
  %v3148 = vrot.slane %v3131, %v3147
  %v3149 = vlaneseq
  %v3150 = vshrl.u32 %v3149, 7
  %v3151 = vsub.s32 4, %v3150
  %v3152 = vrot.slane %v3131, %v3151
  %v3153 = vlaneseq
  %v3154 = vshrl.u32 %v3153, 7
  %v3155 = vsub.s32 5, %v3154
  %v3156 = vrot.slane %v3131, %v3155
  %v3157 = vlaneseq
  %v3158 = vshrl.u32 %v3157, 7
  %v3159 = vsub.s32 6, %v3158
  %v3160 = vrot.slane %v3131, %v3159
  %v3161 = vlaneseq
  %v3162 = vshrl.u32 %v3161, 7
  %v3163 = vsub.s32 7, %v3162
  %v3164 = vrot.slane %v3131, %v3163
  %3165 = vrot.lane.b32.xlu0 %v3136, 1
  %v3166 = vpop.permute.xlu0 %3165
  %3167 = vrot.lane.b32.xlu0 %v3140, 1
  %v3168 = vpop.permute.xlu0 %3167
  %3169 = vrot.lane.b32.xlu0 %v3144, 1
  %v3170 = vpop.permute.xlu0 %3169
  %3171 = vrot.lane.b32.xlu0 %v3148, 1
  %v3172 = vpop.permute.xlu0 %3171
  %3173 = vrot.lane.b32.xlu0 %v3152, 1
  %v3174 = vpop.permute.xlu0 %3173
  %3175 = vrot.lane.b32.xlu0 %v3156, 1
  %v3176 = vpop.permute.xlu0 %3175
  %3177 = vrot.lane.b32.xlu0 %v3160, 1
  %v3178 = vpop.permute.xlu0 %3177
  %3179 = vrot.lane.b32.xlu0 %v3164, 1
  %v3180 = vpop.permute.xlu0 %3179
  %v3181 = vsel %vm3086, %v3166, %v3168
  %v3182 = vsel %vm3086, %v3168, %v3170
  %v3183 = vsel %vm3086, %v3170, %v3172
  %v3184 = vsel %vm3086, %v3172, %v3174
  %v3185 = vsel %vm3086, %v3174, %v3176
  %v3186 = vsel %vm3086, %v3176, %v3178
  %v3187 = vsel %vm3086, %v3178, %v3180
  %v3197 = vmul.f32 %v3119, %v3166
  %v3198 = vmul.f32 %v3120, %v3181
  %v3199 = vmul.f32 %v3121, %v3182
  %v3200 = vmul.f32 %v3122, %v3183
  %v3201 = vmul.f32 %v3123, %v3184
  %v3202 = vmul.f32 %v3124, %v3185
  %v3203 = vmul.f32 %v3125, %v3186
  %v3204 = vmul.f32 %v3126, %v3187
  %v3205 = vmul.f32 %v3127, %v3180
  %3215 = vrot.lane.b32.xlu0 %v3197, 127
  %v3216 = vpop.permute.xlu0 %3215
  %3217 = vrot.lane.b32.xlu0 %v3198, 127
  %v3218 = vpop.permute.xlu0 %3217
  %3219 = vrot.lane.b32.xlu0 %v3199, 127
  %v3220 = vpop.permute.xlu0 %3219
  %3221 = vrot.lane.b32.xlu0 %v3200, 127
  %v3222 = vpop.permute.xlu0 %3221
  %3223 = vrot.lane.b32.xlu0 %v3201, 127
  %v3224 = vpop.permute.xlu0 %3223
  %3225 = vrot.lane.b32.xlu0 %v3202, 127
  %v3226 = vpop.permute.xlu0 %3225
  %3227 = vrot.lane.b32.xlu0 %v3203, 127
  %v3228 = vpop.permute.xlu0 %3227
  %3229 = vrot.lane.b32.xlu0 %v3204, 127
  %v3230 = vpop.permute.xlu0 %3229
  %3231 = vrot.lane.b32.xlu0 %v3205, 127
  %v3232 = vpop.permute.xlu0 %3231
  %v3233 = vsel %vm3033, %v3216, %v3218
  %v3234 = vsel %vm3033, %v3218, %v3220
  %v3235 = vsel %vm3033, %v3220, %v3222
  %v3236 = vsel %vm3033, %v3222, %v3224
  %v3237 = vsel %vm3033, %v3224, %v3226
  %v3238 = vsel %vm3033, %v3226, %v3228
  %v3239 = vsel %vm3033, %v3228, %v3230
  %v3240 = vsel %vm3033, %v3230, %v3232
  %3249 = vst [vmem:[#allocation3 + $0x380] sm:$0xff] %v3233
  %3250 = vst [vmem:[#allocation3 + $0x388] sm:$0xff] %v3234
  %3251 = vst [vmem:[#allocation3 + $0x390] sm:$0xff] %v3235
  %3252 = vst [vmem:[#allocation3 + $0x398] sm:$0xff] %v3236
  %3253 = vst [vmem:[#allocation3 + $0x3a0] sm:$0xff] %v3237
  %3254 = vst [vmem:[#allocation3 + $0x3a8] sm:$0xff] %v3238
  %3255 = vst [vmem:[#allocation3 + $0x3b0] sm:$0xff] %v3239
  %3256 = vst [vmem:[#allocation3 + $0x3b8] sm:$0xff] %v3240
  %v3257 = vld [vmem:[#allocation2 + $0x8] sm:$0xff]
  %v3258 = vld [vmem:[#allocation2 + $0x10] sm:$0xff]
  %v3259 = vld [vmem:[#allocation2 + $0x18] sm:$0xff]
  %v3260 = vld [vmem:[#allocation2 + $0x20] sm:$0xff]
  %v3261 = vld [vmem:[#allocation2 + $0x28] sm:$0xff]
  %v3262 = vld [vmem:[#allocation2 + $0x30] sm:$0xff]
  %v3263 = vld [vmem:[#allocation2 + $0x38] sm:$0xff]
  %v3264 = vld [vmem:[#allocation2 + $0x40] sm:$0xff]
  %v3265 = vld [vmem:[#allocation2 + $0x48] sm:$0xff]
  %s3266 = scalar_lea.vmem %s6, 71
  %v3267 = vld [vmem:[%s3266] ss:$8 sm:$0xf]
  %v3268 = vld [vmem:[%s3266] ss:$8 sm:$0xf0]
  %v3269 = vor.u32 %v3267, %v3268
  %v3271 = vlaneseq
  %v3272 = vshrl.u32 %v3271, 7
  %v3273 = vsub.s32 0, %v3272
  %v3274 = vrot.slane %v3269, %v3273
  %v3275 = vlaneseq
  %v3276 = vshrl.u32 %v3275, 7
  %v3277 = vsub.s32 1, %v3276
  %v3278 = vrot.slane %v3269, %v3277
  %v3279 = vlaneseq
  %v3280 = vshrl.u32 %v3279, 7
  %v3281 = vsub.s32 2, %v3280
  %v3282 = vrot.slane %v3269, %v3281
  %v3283 = vlaneseq
  %v3284 = vshrl.u32 %v3283, 7
  %v3285 = vsub.s32 3, %v3284
  %v3286 = vrot.slane %v3269, %v3285
  %v3287 = vlaneseq
  %v3288 = vshrl.u32 %v3287, 7
  %v3289 = vsub.s32 4, %v3288
  %v3290 = vrot.slane %v3269, %v3289
  %v3291 = vlaneseq
  %v3292 = vshrl.u32 %v3291, 7
  %v3293 = vsub.s32 5, %v3292
  %v3294 = vrot.slane %v3269, %v3293
  %v3295 = vlaneseq
  %v3296 = vshrl.u32 %v3295, 7
  %v3297 = vsub.s32 6, %v3296
  %v3298 = vrot.slane %v3269, %v3297
  %v3299 = vlaneseq
  %v3300 = vshrl.u32 %v3299, 7
  %v3301 = vsub.s32 7, %v3300
  %v3302 = vrot.slane %v3269, %v3301
  %3303 = vrot.lane.b32.xlu0 %v3274, 7
  %v3304 = vpop.permute.xlu0 %3303
  %3305 = vrot.lane.b32.xlu0 %v3278, 7
  %v3306 = vpop.permute.xlu0 %3305
  %3307 = vrot.lane.b32.xlu0 %v3282, 7
  %v3308 = vpop.permute.xlu0 %3307
  %3309 = vrot.lane.b32.xlu0 %v3286, 7
  %v3310 = vpop.permute.xlu0 %3309
  %3311 = vrot.lane.b32.xlu0 %v3290, 7
  %v3312 = vpop.permute.xlu0 %3311
  %3313 = vrot.lane.b32.xlu0 %v3294, 7
  %v3314 = vpop.permute.xlu0 %3313
  %3315 = vrot.lane.b32.xlu0 %v3298, 7
  %v3316 = vpop.permute.xlu0 %3315
  %3317 = vrot.lane.b32.xlu0 %v3302, 7
  %v3318 = vpop.permute.xlu0 %3317
  %v3319 = vsel %vm2946, %v3304, %v3306
  %v3320 = vsel %vm2946, %v3306, %v3308
  %v3321 = vsel %vm2946, %v3308, %v3310
  %v3322 = vsel %vm2946, %v3310, %v3312
  %v3323 = vsel %vm2946, %v3312, %v3314
  %v3324 = vsel %vm2946, %v3314, %v3316
  %v3325 = vsel %vm2946, %v3316, %v3318
  %v3335 = vmul.f32 %v3257, %v3304
  %v3336 = vmul.f32 %v3258, %v3319
  %v3337 = vmul.f32 %v3259, %v3320
  %v3338 = vmul.f32 %v3260, %v3321
  %v3339 = vmul.f32 %v3261, %v3322
  %v3340 = vmul.f32 %v3262, %v3323
  %v3341 = vmul.f32 %v3263, %v3324
  %v3342 = vmul.f32 %v3264, %v3325
  %v3343 = vmul.f32 %v3265, %v3318
  %3353 = vrot.lane.b32.xlu0 %v3335, 121
  %v3354 = vpop.permute.xlu0 %3353
  %3355 = vrot.lane.b32.xlu0 %v3336, 121
  %v3356 = vpop.permute.xlu0 %3355
  %3357 = vrot.lane.b32.xlu0 %v3337, 121
  %v3358 = vpop.permute.xlu0 %3357
  %3359 = vrot.lane.b32.xlu0 %v3338, 121
  %v3360 = vpop.permute.xlu0 %3359
  %3361 = vrot.lane.b32.xlu0 %v3339, 121
  %v3362 = vpop.permute.xlu0 %3361
  %3363 = vrot.lane.b32.xlu0 %v3340, 121
  %v3364 = vpop.permute.xlu0 %3363
  %3365 = vrot.lane.b32.xlu0 %v3341, 121
  %v3366 = vpop.permute.xlu0 %3365
  %3367 = vrot.lane.b32.xlu0 %v3342, 121
  %v3368 = vpop.permute.xlu0 %3367
  %3369 = vrot.lane.b32.xlu0 %v3343, 121
  %v3370 = vpop.permute.xlu0 %3369
  %v3371 = vsel %vm2893, %v3354, %v3356
  %v3372 = vsel %vm2893, %v3356, %v3358
  %v3373 = vsel %vm2893, %v3358, %v3360
  %v3374 = vsel %vm2893, %v3360, %v3362
  %v3375 = vsel %vm2893, %v3362, %v3364
  %v3376 = vsel %vm2893, %v3364, %v3366
  %v3377 = vsel %vm2893, %v3366, %v3368
  %v3378 = vsel %vm2893, %v3368, %v3370
  %3387 = vst [vmem:[#allocation3 + $0x3c0] sm:$0xff] %v3371
  %3388 = vst [vmem:[#allocation3 + $0x3c8] sm:$0xff] %v3372
  %3389 = vst [vmem:[#allocation3 + $0x3d0] sm:$0xff] %v3373
  %3390 = vst [vmem:[#allocation3 + $0x3d8] sm:$0xff] %v3374
  %3391 = vst [vmem:[#allocation3 + $0x3e0] sm:$0xff] %v3375
  %3392 = vst [vmem:[#allocation3 + $0x3e8] sm:$0xff] %v3376
  %3393 = vst [vmem:[#allocation3 + $0x3f0] sm:$0xff] %v3377
  %3394 = vst [vmem:[#allocation3 + $0x3f8] sm:$0xff] %v3378
  %v3395 = vld [vmem:[#allocation2 + $0x8] sm:$0xff]
  %v3396 = vld [vmem:[#allocation2 + $0x10] sm:$0xff]
  %v3397 = vld [vmem:[#allocation2 + $0x18] sm:$0xff]
  %v3398 = vld [vmem:[#allocation2 + $0x20] sm:$0xff]
  %v3399 = vld [vmem:[#allocation2 + $0x28] sm:$0xff]
  %v3400 = vld [vmem:[#allocation2 + $0x30] sm:$0xff]
  %v3401 = vld [vmem:[#allocation2 + $0x38] sm:$0xff]
  %v3402 = vld [vmem:[#allocation2 + $0x40] sm:$0xff]
  %v3403 = vld [vmem:[#allocation2 + $0x48] sm:$0xff]
  %s3404 = scalar_lea.vmem %s6, 128
  %v3405 = vld [vmem:[%s3404] ss:$8 sm:$0xf]
  %v3406 = vld [vmem:[%s3404] ss:$8 sm:$0xf0]
  %v3407 = vor.u32 %v3405, %v3406
  %v3409 = vlaneseq
  %v3410 = vshrl.u32 %v3409, 7
  %v3411 = vsub.s32 0, %v3410
  %v3412 = vrot.slane %v3407, %v3411
  %v3413 = vlaneseq
  %v3414 = vshrl.u32 %v3413, 7
  %v3415 = vsub.s32 1, %v3414
  %v3416 = vrot.slane %v3407, %v3415
  %v3417 = vlaneseq
  %v3418 = vshrl.u32 %v3417, 7
  %v3419 = vsub.s32 2, %v3418
  %v3420 = vrot.slane %v3407, %v3419
  %v3421 = vlaneseq
  %v3422 = vshrl.u32 %v3421, 7
  %v3423 = vsub.s32 3, %v3422
  %v3424 = vrot.slane %v3407, %v3423
  %v3425 = vlaneseq
  %v3426 = vshrl.u32 %v3425, 7
  %v3427 = vsub.s32 4, %v3426
  %v3428 = vrot.slane %v3407, %v3427
  %v3429 = vlaneseq
  %v3430 = vshrl.u32 %v3429, 7
  %v3431 = vsub.s32 5, %v3430
  %v3432 = vrot.slane %v3407, %v3431
  %v3433 = vlaneseq
  %v3434 = vshrl.u32 %v3433, 7
  %v3435 = vsub.s32 6, %v3434
  %v3436 = vrot.slane %v3407, %v3435
  %v3437 = vlaneseq
  %v3438 = vshrl.u32 %v3437, 7
  %v3439 = vsub.s32 7, %v3438
  %v3440 = vrot.slane %v3407, %v3439
  %3441 = vrot.lane.b32.xlu0 %v3412, 8
  %v3442 = vpop.permute.xlu0 %3441
  %3443 = vrot.lane.b32.xlu0 %v3416, 8
  %v3444 = vpop.permute.xlu0 %3443
  %3445 = vrot.lane.b32.xlu0 %v3420, 8
  %v3446 = vpop.permute.xlu0 %3445
  %3447 = vrot.lane.b32.xlu0 %v3424, 8
  %v3448 = vpop.permute.xlu0 %3447
  %3449 = vrot.lane.b32.xlu0 %v3428, 8
  %v3450 = vpop.permute.xlu0 %3449
  %3451 = vrot.lane.b32.xlu0 %v3432, 8
  %v3452 = vpop.permute.xlu0 %3451
  %3453 = vrot.lane.b32.xlu0 %v3436, 8
  %v3454 = vpop.permute.xlu0 %3453
  %3455 = vrot.lane.b32.xlu0 %v3440, 8
  %v3456 = vpop.permute.xlu0 %3455
  %v3457 = vsel %vm65, %v3442, %v3444
  %v3458 = vsel %vm65, %v3444, %v3446
  %v3459 = vsel %vm65, %v3446, %v3448
  %v3460 = vsel %vm65, %v3448, %v3450
  %v3461 = vsel %vm65, %v3450, %v3452
  %v3462 = vsel %vm65, %v3452, %v3454
  %v3463 = vsel %vm65, %v3454, %v3456
  %v3473 = vmul.f32 %v3395, %v3442
  %v3474 = vmul.f32 %v3396, %v3457
  %v3475 = vmul.f32 %v3397, %v3458
  %v3476 = vmul.f32 %v3398, %v3459
  %v3477 = vmul.f32 %v3399, %v3460
  %v3478 = vmul.f32 %v3400, %v3461
  %v3479 = vmul.f32 %v3401, %v3462
  %v3480 = vmul.f32 %v3402, %v3463
  %v3481 = vmul.f32 %v3403, %v3456
  %3491 = vrot.lane.b32.xlu0 %v3473, 120
  %v3492 = vpop.permute.xlu0 %3491
  %3493 = vrot.lane.b32.xlu0 %v3474, 120
  %v3494 = vpop.permute.xlu0 %3493
  %3495 = vrot.lane.b32.xlu0 %v3475, 120
  %v3496 = vpop.permute.xlu0 %3495
  %3497 = vrot.lane.b32.xlu0 %v3476, 120
  %v3498 = vpop.permute.xlu0 %3497
  %3499 = vrot.lane.b32.xlu0 %v3477, 120
  %v3500 = vpop.permute.xlu0 %3499
  %3501 = vrot.lane.b32.xlu0 %v3478, 120
  %v3502 = vpop.permute.xlu0 %3501
  %3503 = vrot.lane.b32.xlu0 %v3479, 120
  %v3504 = vpop.permute.xlu0 %3503
  %3505 = vrot.lane.b32.xlu0 %v3480, 120
  %v3506 = vpop.permute.xlu0 %3505
  %3507 = vrot.lane.b32.xlu0 %v3481, 120
  %v3508 = vpop.permute.xlu0 %3507
  %v3509 = vsel %vm2754, %v3492, %v3494
  %v3510 = vsel %vm2754, %v3494, %v3496
  %v3511 = vsel %vm2754, %v3496, %v3498
  %v3512 = vsel %vm2754, %v3498, %v3500
  %v3513 = vsel %vm2754, %v3500, %v3502
  %v3514 = vsel %vm2754, %v3502, %v3504
  %v3515 = vsel %vm2754, %v3504, %v3506
  %v3516 = vsel %vm2754, %v3506, %v3508
  %3525 = vst [vmem:[#allocation3 + $0x400] sm:$0xff] %v3509
  %3526 = vst [vmem:[#allocation3 + $0x408] sm:$0xff] %v3510
  %3527 = vst [vmem:[#allocation3 + $0x410] sm:$0xff] %v3511
  %3528 = vst [vmem:[#allocation3 + $0x418] sm:$0xff] %v3512
  %3529 = vst [vmem:[#allocation3 + $0x420] sm:$0xff] %v3513
  %3530 = vst [vmem:[#allocation3 + $0x428] sm:$0xff] %v3514
  %3531 = vst [vmem:[#allocation3 + $0x430] sm:$0xff] %v3515
  %3532 = vst [vmem:[#allocation3 + $0x438] sm:$0xff] %v3516
  %v3533 = vld [vmem:[#allocation2 + $0x8] sm:$0xff]
  %v3534 = vld [vmem:[#allocation2 + $0x10] sm:$0xff]
  %v3535 = vld [vmem:[#allocation2 + $0x18] sm:$0xff]
  %v3536 = vld [vmem:[#allocation2 + $0x20] sm:$0xff]
  %v3537 = vld [vmem:[#allocation2 + $0x28] sm:$0xff]
  %v3538 = vld [vmem:[#allocation2 + $0x30] sm:$0xff]
  %v3539 = vld [vmem:[#allocation2 + $0x38] sm:$0xff]
  %v3540 = vld [vmem:[#allocation2 + $0x40] sm:$0xff]
  %v3541 = vld [vmem:[#allocation2 + $0x48] sm:$0xff]
  %s3542 = scalar_lea.vmem %s6, 129
  %v3543 = vld [vmem:[%s3542] ss:$8 sm:$0xf]
  %v3544 = vld [vmem:[%s3542] ss:$8 sm:$0xf0]
  %v3545 = vor.u32 %v3543, %v3544
  %v3547 = vlaneseq
  %v3548 = vshrl.u32 %v3547, 7
  %v3549 = vsub.s32 0, %v3548
  %v3550 = vrot.slane %v3545, %v3549
  %v3551 = vlaneseq
  %v3552 = vshrl.u32 %v3551, 7
  %v3553 = vsub.s32 1, %v3552
  %v3554 = vrot.slane %v3545, %v3553
  %v3555 = vlaneseq
  %v3556 = vshrl.u32 %v3555, 7
  %v3557 = vsub.s32 2, %v3556
  %v3558 = vrot.slane %v3545, %v3557
  %v3559 = vlaneseq
  %v3560 = vshrl.u32 %v3559, 7
  %v3561 = vsub.s32 3, %v3560
  %v3562 = vrot.slane %v3545, %v3561
  %v3563 = vlaneseq
  %v3564 = vshrl.u32 %v3563, 7
  %v3565 = vsub.s32 4, %v3564
  %v3566 = vrot.slane %v3545, %v3565
  %v3567 = vlaneseq
  %v3568 = vshrl.u32 %v3567, 7
  %v3569 = vsub.s32 5, %v3568
  %v3570 = vrot.slane %v3545, %v3569
  %v3571 = vlaneseq
  %v3572 = vshrl.u32 %v3571, 7
  %v3573 = vsub.s32 6, %v3572
  %v3574 = vrot.slane %v3545, %v3573
  %v3575 = vlaneseq
  %v3576 = vshrl.u32 %v3575, 7
  %v3577 = vsub.s32 7, %v3576
  %v3578 = vrot.slane %v3545, %v3577
  %3579 = vrot.lane.b32.xlu0 %v3550, 9
  %v3580 = vpop.permute.xlu0 %3579
  %3581 = vrot.lane.b32.xlu0 %v3554, 9
  %v3582 = vpop.permute.xlu0 %3581
  %3583 = vrot.lane.b32.xlu0 %v3558, 9
  %v3584 = vpop.permute.xlu0 %3583
  %3585 = vrot.lane.b32.xlu0 %v3562, 9
  %v3586 = vpop.permute.xlu0 %3585
  %3587 = vrot.lane.b32.xlu0 %v3566, 9
  %v3588 = vpop.permute.xlu0 %3587
  %3589 = vrot.lane.b32.xlu0 %v3570, 9
  %v3590 = vpop.permute.xlu0 %3589
  %3591 = vrot.lane.b32.xlu0 %v3574, 9
  %v3592 = vpop.permute.xlu0 %3591
  %3593 = vrot.lane.b32.xlu0 %v3578, 9
  %v3594 = vpop.permute.xlu0 %3593
  %v3595 = vsel %vm2667, %v3580, %v3582
  %v3596 = vsel %vm2667, %v3582, %v3584
  %v3597 = vsel %vm2667, %v3584, %v3586
  %v3598 = vsel %vm2667, %v3586, %v3588
  %v3599 = vsel %vm2667, %v3588, %v3590
  %v3600 = vsel %vm2667, %v3590, %v3592
  %v3601 = vsel %vm2667, %v3592, %v3594
  %v3611 = vmul.f32 %v3533, %v3580
  %v3612 = vmul.f32 %v3534, %v3595
  %v3613 = vmul.f32 %v3535, %v3596
  %v3614 = vmul.f32 %v3536, %v3597
  %v3615 = vmul.f32 %v3537, %v3598
  %v3616 = vmul.f32 %v3538, %v3599
  %v3617 = vmul.f32 %v3539, %v3600
  %v3618 = vmul.f32 %v3540, %v3601
  %v3619 = vmul.f32 %v3541, %v3594
  %3629 = vrot.lane.b32.xlu0 %v3611, 119
  %v3630 = vpop.permute.xlu0 %3629
  %3631 = vrot.lane.b32.xlu0 %v3612, 119
  %v3632 = vpop.permute.xlu0 %3631
  %3633 = vrot.lane.b32.xlu0 %v3613, 119
  %v3634 = vpop.permute.xlu0 %3633
  %3635 = vrot.lane.b32.xlu0 %v3614, 119
  %v3636 = vpop.permute.xlu0 %3635
  %3637 = vrot.lane.b32.xlu0 %v3615, 119
  %v3638 = vpop.permute.xlu0 %3637
  %3639 = vrot.lane.b32.xlu0 %v3616, 119
  %v3640 = vpop.permute.xlu0 %3639
  %3641 = vrot.lane.b32.xlu0 %v3617, 119
  %v3642 = vpop.permute.xlu0 %3641
  %3643 = vrot.lane.b32.xlu0 %v3618, 119
  %v3644 = vpop.permute.xlu0 %3643
  %3645 = vrot.lane.b32.xlu0 %v3619, 119
  %v3646 = vpop.permute.xlu0 %3645
  %v3647 = vsel %vm2614, %v3630, %v3632
  %v3648 = vsel %vm2614, %v3632, %v3634
  %v3649 = vsel %vm2614, %v3634, %v3636
  %v3650 = vsel %vm2614, %v3636, %v3638
  %v3651 = vsel %vm2614, %v3638, %v3640
  %v3652 = vsel %vm2614, %v3640, %v3642
  %v3653 = vsel %vm2614, %v3642, %v3644
  %v3654 = vsel %vm2614, %v3644, %v3646
  %3663 = vst [vmem:[#allocation3 + $0x440] sm:$0xff] %v3647
  %3664 = vst [vmem:[#allocation3 + $0x448] sm:$0xff] %v3648
  %3665 = vst [vmem:[#allocation3 + $0x450] sm:$0xff] %v3649
  %3666 = vst [vmem:[#allocation3 + $0x458] sm:$0xff] %v3650
  %3667 = vst [vmem:[#allocation3 + $0x460] sm:$0xff] %v3651
  %3668 = vst [vmem:[#allocation3 + $0x468] sm:$0xff] %v3652
  %3669 = vst [vmem:[#allocation3 + $0x470] sm:$0xff] %v3653
  %3670 = vst [vmem:[#allocation3 + $0x478] sm:$0xff] %v3654
  %v3671 = vld [vmem:[#allocation2 + $0x8] sm:$0xff]
  %v3672 = vld [vmem:[#allocation2 + $0x10] sm:$0xff]
  %v3673 = vld [vmem:[#allocation2 + $0x18] sm:$0xff]
  %v3674 = vld [vmem:[#allocation2 + $0x20] sm:$0xff]
  %v3675 = vld [vmem:[#allocation2 + $0x28] sm:$0xff]
  %v3676 = vld [vmem:[#allocation2 + $0x30] sm:$0xff]
  %v3677 = vld [vmem:[#allocation2 + $0x38] sm:$0xff]
  %v3678 = vld [vmem:[#allocation2 + $0x40] sm:$0xff]
  %v3679 = vld [vmem:[#allocation2 + $0x48] sm:$0xff]
  %s3680 = scalar_lea.vmem %s6, 130
  %v3681 = vld [vmem:[%s3680] ss:$8 sm:$0xf]
  %v3682 = vld [vmem:[%s3680] ss:$8 sm:$0xf0]
  %v3683 = vor.u32 %v3681, %v3682
  %v3685 = vlaneseq
  %v3686 = vshrl.u32 %v3685, 7
  %v3687 = vsub.s32 0, %v3686
  %v3688 = vrot.slane %v3683, %v3687
  %v3689 = vlaneseq
  %v3690 = vshrl.u32 %v3689, 7
  %v3691 = vsub.s32 1, %v3690
  %v3692 = vrot.slane %v3683, %v3691
  %v3693 = vlaneseq
  %v3694 = vshrl.u32 %v3693, 7
  %v3695 = vsub.s32 2, %v3694
  %v3696 = vrot.slane %v3683, %v3695
  %v3697 = vlaneseq
  %v3698 = vshrl.u32 %v3697, 7
  %v3699 = vsub.s32 3, %v3698
  %v3700 = vrot.slane %v3683, %v3699
  %v3701 = vlaneseq
  %v3702 = vshrl.u32 %v3701, 7
  %v3703 = vsub.s32 4, %v3702
  %v3704 = vrot.slane %v3683, %v3703
  %v3705 = vlaneseq
  %v3706 = vshrl.u32 %v3705, 7
  %v3707 = vsub.s32 5, %v3706
  %v3708 = vrot.slane %v3683, %v3707
  %v3709 = vlaneseq
  %v3710 = vshrl.u32 %v3709, 7
  %v3711 = vsub.s32 6, %v3710
  %v3712 = vrot.slane %v3683, %v3711
  %v3713 = vlaneseq
  %v3714 = vshrl.u32 %v3713, 7
  %v3715 = vsub.s32 7, %v3714
  %v3716 = vrot.slane %v3683, %v3715
  %3717 = vrot.lane.b32.xlu0 %v3688, 55
  %v3718 = vpop.permute.xlu0 %3717
  %3719 = vrot.lane.b32.xlu0 %v3692, 55
  %v3720 = vpop.permute.xlu0 %3719
  %3721 = vrot.lane.b32.xlu0 %v3696, 55
  %v3722 = vpop.permute.xlu0 %3721
  %3723 = vrot.lane.b32.xlu0 %v3700, 55
  %v3724 = vpop.permute.xlu0 %3723
  %3725 = vrot.lane.b32.xlu0 %v3704, 55
  %v3726 = vpop.permute.xlu0 %3725
  %3727 = vrot.lane.b32.xlu0 %v3708, 55
  %v3728 = vpop.permute.xlu0 %3727
  %3729 = vrot.lane.b32.xlu0 %v3712, 55
  %v3730 = vpop.permute.xlu0 %3729
  %3731 = vrot.lane.b32.xlu0 %v3716, 55
  %v3732 = vpop.permute.xlu0 %3731
  %v3733 = vsel %vm1363, %v3718, %v3720
  %v3734 = vsel %vm1363, %v3720, %v3722
  %v3735 = vsel %vm1363, %v3722, %v3724
  %v3736 = vsel %vm1363, %v3724, %v3726
  %v3737 = vsel %vm1363, %v3726, %v3728
  %v3738 = vsel %vm1363, %v3728, %v3730
  %v3739 = vsel %vm1363, %v3730, %v3732
  %v3749 = vmul.f32 %v3671, %v3718
  %v3750 = vmul.f32 %v3672, %v3733
  %v3751 = vmul.f32 %v3673, %v3734
  %v3752 = vmul.f32 %v3674, %v3735
  %v3753 = vmul.f32 %v3675, %v3736
  %v3754 = vmul.f32 %v3676, %v3737
  %v3755 = vmul.f32 %v3677, %v3738
  %v3756 = vmul.f32 %v3678, %v3739
  %v3757 = vmul.f32 %v3679, %v3732
  %3767 = vrot.lane.b32.xlu0 %v3749, 73
  %v3768 = vpop.permute.xlu0 %3767
  %3769 = vrot.lane.b32.xlu0 %v3750, 73
  %v3770 = vpop.permute.xlu0 %3769
  %3771 = vrot.lane.b32.xlu0 %v3751, 73
  %v3772 = vpop.permute.xlu0 %3771
  %3773 = vrot.lane.b32.xlu0 %v3752, 73
  %v3774 = vpop.permute.xlu0 %3773
  %3775 = vrot.lane.b32.xlu0 %v3753, 73
  %v3776 = vpop.permute.xlu0 %3775
  %3777 = vrot.lane.b32.xlu0 %v3754, 73
  %v3778 = vpop.permute.xlu0 %3777
  %3779 = vrot.lane.b32.xlu0 %v3755, 73
  %v3780 = vpop.permute.xlu0 %3779
  %3781 = vrot.lane.b32.xlu0 %v3756, 73
  %v3782 = vpop.permute.xlu0 %3781
  %3783 = vrot.lane.b32.xlu0 %v3757, 73
  %v3784 = vpop.permute.xlu0 %3783
  %v3785 = vsel %vm1416, %v3768, %v3770
  %v3786 = vsel %vm1416, %v3770, %v3772
  %v3787 = vsel %vm1416, %v3772, %v3774
  %v3788 = vsel %vm1416, %v3774, %v3776
  %v3789 = vsel %vm1416, %v3776, %v3778
  %v3790 = vsel %vm1416, %v3778, %v3780
  %v3791 = vsel %vm1416, %v3780, %v3782
  %v3792 = vsel %vm1416, %v3782, %v3784
  %3801 = vst [vmem:[#allocation3 + $0x480] sm:$0xff] %v3785
  %3802 = vst [vmem:[#allocation3 + $0x488] sm:$0xff] %v3786
  %3803 = vst [vmem:[#allocation3 + $0x490] sm:$0xff] %v3787
  %3804 = vst [vmem:[#allocation3 + $0x498] sm:$0xff] %v3788
  %3805 = vst [vmem:[#allocation3 + $0x4a0] sm:$0xff] %v3789
  %3806 = vst [vmem:[#allocation3 + $0x4a8] sm:$0xff] %v3790
  %3807 = vst [vmem:[#allocation3 + $0x4b0] sm:$0xff] %v3791
  %3808 = vst [vmem:[#allocation3 + $0x4b8] sm:$0xff] %v3792
  %v3809 = vld [vmem:[#allocation2 + $0x8] sm:$0xff]
  %v3810 = vld [vmem:[#allocation2 + $0x10] sm:$0xff]
  %v3811 = vld [vmem:[#allocation2 + $0x18] sm:$0xff]
  %v3812 = vld [vmem:[#allocation2 + $0x20] sm:$0xff]
  %v3813 = vld [vmem:[#allocation2 + $0x28] sm:$0xff]
  %v3814 = vld [vmem:[#allocation2 + $0x30] sm:$0xff]
  %v3815 = vld [vmem:[#allocation2 + $0x38] sm:$0xff]
  %v3816 = vld [vmem:[#allocation2 + $0x40] sm:$0xff]
  %v3817 = vld [vmem:[#allocation2 + $0x48] sm:$0xff]
  %s3818 = scalar_lea.vmem %s6, 131
  %v3819 = vld [vmem:[%s3818] ss:$8 sm:$0xf]
  %v3820 = vld [vmem:[%s3818] ss:$8 sm:$0xf0]
  %v3821 = vor.u32 %v3819, %v3820
  %v3823 = vlaneseq
  %v3824 = vshrl.u32 %v3823, 7
  %v3825 = vsub.s32 0, %v3824
  %v3826 = vrot.slane %v3821, %v3825
  %v3827 = vlaneseq
  %v3828 = vshrl.u32 %v3827, 7
  %v3829 = vsub.s32 1, %v3828
  %v3830 = vrot.slane %v3821, %v3829
  %v3831 = vlaneseq
  %v3832 = vshrl.u32 %v3831, 7
  %v3833 = vsub.s32 2, %v3832
  %v3834 = vrot.slane %v3821, %v3833
  %v3835 = vlaneseq
  %v3836 = vshrl.u32 %v3835, 7
  %v3837 = vsub.s32 3, %v3836
  %v3838 = vrot.slane %v3821, %v3837
  %v3839 = vlaneseq
  %v3840 = vshrl.u32 %v3839, 7
  %v3841 = vsub.s32 4, %v3840
  %v3842 = vrot.slane %v3821, %v3841
  %v3843 = vlaneseq
  %v3844 = vshrl.u32 %v3843, 7
  %v3845 = vsub.s32 5, %v3844
  %v3846 = vrot.slane %v3821, %v3845
  %v3847 = vlaneseq
  %v3848 = vshrl.u32 %v3847, 7
  %v3849 = vsub.s32 6, %v3848
  %v3850 = vrot.slane %v3821, %v3849
  %v3851 = vlaneseq
  %v3852 = vshrl.u32 %v3851, 7
  %v3853 = vsub.s32 7, %v3852
  %v3854 = vrot.slane %v3821, %v3853
  %3855 = vrot.lane.b32.xlu0 %v3826, 56
  %v3856 = vpop.permute.xlu0 %3855
  %3857 = vrot.lane.b32.xlu0 %v3830, 56
  %v3858 = vpop.permute.xlu0 %3857
  %3859 = vrot.lane.b32.xlu0 %v3834, 56
  %v3860 = vpop.permute.xlu0 %3859
  %3861 = vrot.lane.b32.xlu0 %v3838, 56
  %v3862 = vpop.permute.xlu0 %3861
  %3863 = vrot.lane.b32.xlu0 %v3842, 56
  %v3864 = vpop.permute.xlu0 %3863
  %3865 = vrot.lane.b32.xlu0 %v3846, 56
  %v3866 = vpop.permute.xlu0 %3865
  %3867 = vrot.lane.b32.xlu0 %v3850, 56
  %v3868 = vpop.permute.xlu0 %3867
  %3869 = vrot.lane.b32.xlu0 %v3854, 56
  %v3870 = vpop.permute.xlu0 %3869
  %v3871 = vsel %vm1503, %v3856, %v3858
  %v3872 = vsel %vm1503, %v3858, %v3860
  %v3873 = vsel %vm1503, %v3860, %v3862
  %v3874 = vsel %vm1503, %v3862, %v3864
  %v3875 = vsel %vm1503, %v3864, %v3866
  %v3876 = vsel %vm1503, %v3866, %v3868
  %v3877 = vsel %vm1503, %v3868, %v3870
  %v3887 = vmul.f32 %v3809, %v3856
  %v3888 = vmul.f32 %v3810, %v3871
  %v3889 = vmul.f32 %v3811, %v3872
  %v3890 = vmul.f32 %v3812, %v3873
  %v3891 = vmul.f32 %v3813, %v3874
  %v3892 = vmul.f32 %v3814, %v3875
  %v3893 = vmul.f32 %v3815, %v3876
  %v3894 = vmul.f32 %v3816, %v3877
  %v3895 = vmul.f32 %v3817, %v3870
  %3905 = vrot.lane.b32.xlu0 %v3887, 72
  %v3906 = vpop.permute.xlu0 %3905
  %3907 = vrot.lane.b32.xlu0 %v3888, 72
  %v3908 = vpop.permute.xlu0 %3907
  %3909 = vrot.lane.b32.xlu0 %v3889, 72
  %v3910 = vpop.permute.xlu0 %3909
  %3911 = vrot.lane.b32.xlu0 %v3890, 72
  %v3912 = vpop.permute.xlu0 %3911
  %3913 = vrot.lane.b32.xlu0 %v3891, 72
  %v3914 = vpop.permute.xlu0 %3913
  %3915 = vrot.lane.b32.xlu0 %v3892, 72
  %v3916 = vpop.permute.xlu0 %3915
  %3917 = vrot.lane.b32.xlu0 %v3893, 72
  %v3918 = vpop.permute.xlu0 %3917
  %3919 = vrot.lane.b32.xlu0 %v3894, 72
  %v3920 = vpop.permute.xlu0 %3919
  %3921 = vrot.lane.b32.xlu0 %v3895, 72
  %v3922 = vpop.permute.xlu0 %3921
  %v3923 = vsel %vm1556, %v3906, %v3908
  %v3924 = vsel %vm1556, %v3908, %v3910
  %v3925 = vsel %vm1556, %v3910, %v3912
  %v3926 = vsel %vm1556, %v3912, %v3914
  %v3927 = vsel %vm1556, %v3914, %v3916
  %v3928 = vsel %vm1556, %v3916, %v3918
  %v3929 = vsel %vm1556, %v3918, %v3920
  %v3930 = vsel %vm1556, %v3920, %v3922
  %3939 = vst [vmem:[#allocation3 + $0x4c0] sm:$0xff] %v3923
  %3940 = vst [vmem:[#allocation3 + $0x4c8] sm:$0xff] %v3924
  %3941 = vst [vmem:[#allocation3 + $0x4d0] sm:$0xff] %v3925
  %3942 = vst [vmem:[#allocation3 + $0x4d8] sm:$0xff] %v3926
  %3943 = vst [vmem:[#allocation3 + $0x4e0] sm:$0xff] %v3927
  %3944 = vst [vmem:[#allocation3 + $0x4e8] sm:$0xff] %v3928
  %3945 = vst [vmem:[#allocation3 + $0x4f0] sm:$0xff] %v3929
  %3946 = vst [vmem:[#allocation3 + $0x4f8] sm:$0xff] %v3930
  %v3947 = vld [vmem:[#allocation2 + $0x8] sm:$0xff]
  %v3948 = vld [vmem:[#allocation2 + $0x10] sm:$0xff]
  %v3949 = vld [vmem:[#allocation2 + $0x18] sm:$0xff]
  %v3950 = vld [vmem:[#allocation2 + $0x20] sm:$0xff]
  %v3951 = vld [vmem:[#allocation2 + $0x28] sm:$0xff]
  %v3952 = vld [vmem:[#allocation2 + $0x30] sm:$0xff]
  %v3953 = vld [vmem:[#allocation2 + $0x38] sm:$0xff]
  %v3954 = vld [vmem:[#allocation2 + $0x40] sm:$0xff]
  %v3955 = vld [vmem:[#allocation2 + $0x48] sm:$0xff]
  %s3956 = scalar_lea.vmem %s6, 132
  %v3957 = vld [vmem:[%s3956] ss:$8 sm:$0xf]
  %v3958 = vld [vmem:[%s3956] ss:$8 sm:$0xf0]
  %v3959 = vor.u32 %v3957, %v3958
  %v3961 = vlaneseq
  %v3962 = vshrl.u32 %v3961, 7
  %v3963 = vsub.s32 0, %v3962
  %v3964 = vrot.slane %v3959, %v3963
  %v3965 = vlaneseq
  %v3966 = vshrl.u32 %v3965, 7
  %v3967 = vsub.s32 1, %v3966
  %v3968 = vrot.slane %v3959, %v3967
  %v3969 = vlaneseq
  %v3970 = vshrl.u32 %v3969, 7
  %v3971 = vsub.s32 2, %v3970
  %v3972 = vrot.slane %v3959, %v3971
  %v3973 = vlaneseq
  %v3974 = vshrl.u32 %v3973, 7
  %v3975 = vsub.s32 3, %v3974
  %v3976 = vrot.slane %v3959, %v3975
  %v3977 = vlaneseq
  %v3978 = vshrl.u32 %v3977, 7
  %v3979 = vsub.s32 4, %v3978
  %v3980 = vrot.slane %v3959, %v3979
  %v3981 = vlaneseq
  %v3982 = vshrl.u32 %v3981, 7
  %v3983 = vsub.s32 5, %v3982
  %v3984 = vrot.slane %v3959, %v3983
  %v3985 = vlaneseq
  %v3986 = vshrl.u32 %v3985, 7
  %v3987 = vsub.s32 6, %v3986
  %v3988 = vrot.slane %v3959, %v3987
  %v3989 = vlaneseq
  %v3990 = vshrl.u32 %v3989, 7
  %v3991 = vsub.s32 7, %v3990
  %v3992 = vrot.slane %v3959, %v3991
  %3993 = vrot.lane.b32.xlu0 %v3964, 57
  %v3994 = vpop.permute.xlu0 %3993
  %3995 = vrot.lane.b32.xlu0 %v3968, 57
  %v3996 = vpop.permute.xlu0 %3995
  %3997 = vrot.lane.b32.xlu0 %v3972, 57
  %v3998 = vpop.permute.xlu0 %3997
  %3999 = vrot.lane.b32.xlu0 %v3976, 57
  %v4000 = vpop.permute.xlu0 %3999
  %4001 = vrot.lane.b32.xlu0 %v3980, 57
  %v4002 = vpop.permute.xlu0 %4001
  %4003 = vrot.lane.b32.xlu0 %v3984, 57
  %v4004 = vpop.permute.xlu0 %4003
  %4005 = vrot.lane.b32.xlu0 %v3988, 57
  %v4006 = vpop.permute.xlu0 %4005
  %4007 = vrot.lane.b32.xlu0 %v3992, 57
  %v4008 = vpop.permute.xlu0 %4007
  %v4009 = vsel %vm1643, %v3994, %v3996
  %v4010 = vsel %vm1643, %v3996, %v3998
  %v4011 = vsel %vm1643, %v3998, %v4000
  %v4012 = vsel %vm1643, %v4000, %v4002
  %v4013 = vsel %vm1643, %v4002, %v4004
  %v4014 = vsel %vm1643, %v4004, %v4006
  %v4015 = vsel %vm1643, %v4006, %v4008
  %v4025 = vmul.f32 %v3947, %v3994
  %v4026 = vmul.f32 %v3948, %v4009
  %v4027 = vmul.f32 %v3949, %v4010
  %v4028 = vmul.f32 %v3950, %v4011
  %v4029 = vmul.f32 %v3951, %v4012
  %v4030 = vmul.f32 %v3952, %v4013
  %v4031 = vmul.f32 %v3953, %v4014
  %v4032 = vmul.f32 %v3954, %v4015
  %v4033 = vmul.f32 %v3955, %v4008
  %4043 = vrot.lane.b32.xlu0 %v4025, 71
  %v4044 = vpop.permute.xlu0 %4043
  %4045 = vrot.lane.b32.xlu0 %v4026, 71
  %v4046 = vpop.permute.xlu0 %4045
  %4047 = vrot.lane.b32.xlu0 %v4027, 71
  %v4048 = vpop.permute.xlu0 %4047
  %4049 = vrot.lane.b32.xlu0 %v4028, 71
  %v4050 = vpop.permute.xlu0 %4049
  %4051 = vrot.lane.b32.xlu0 %v4029, 71
  %v4052 = vpop.permute.xlu0 %4051
  %4053 = vrot.lane.b32.xlu0 %v4030, 71
  %v4054 = vpop.permute.xlu0 %4053
  %4055 = vrot.lane.b32.xlu0 %v4031, 71
  %v4056 = vpop.permute.xlu0 %4055
  %4057 = vrot.lane.b32.xlu0 %v4032, 71
  %v4058 = vpop.permute.xlu0 %4057
  %4059 = vrot.lane.b32.xlu0 %v4033, 71
  %v4060 = vpop.permute.xlu0 %4059
  %v4061 = vsel %vm1696, %v4044, %v4046
  %v4062 = vsel %vm1696, %v4046, %v4048
  %v4063 = vsel %vm1696, %v4048, %v4050
  %v4064 = vsel %vm1696, %v4050, %v4052
  %v4065 = vsel %vm1696, %v4052, %v4054
  %v4066 = vsel %vm1696, %v4054, %v4056
  %v4067 = vsel %vm1696, %v4056, %v4058
  %v4068 = vsel %vm1696, %v4058, %v4060
  %4077 = vst [vmem:[#allocation3 + $0x500] sm:$0xff] %v4061
  %4078 = vst [vmem:[#allocation3 + $0x508] sm:$0xff] %v4062
  %4079 = vst [vmem:[#allocation3 + $0x510] sm:$0xff] %v4063
  %4080 = vst [vmem:[#allocation3 + $0x518] sm:$0xff] %v4064
  %4081 = vst [vmem:[#allocation3 + $0x520] sm:$0xff] %v4065
  %4082 = vst [vmem:[#allocation3 + $0x528] sm:$0xff] %v4066
  %4083 = vst [vmem:[#allocation3 + $0x530] sm:$0xff] %v4067
  %4084 = vst [vmem:[#allocation3 + $0x538] sm:$0xff] %v4068
  %v4085 = vld [vmem:[#allocation2 + $0x8] sm:$0xff]
  %v4086 = vld [vmem:[#allocation2 + $0x10] sm:$0xff]
  %v4087 = vld [vmem:[#allocation2 + $0x18] sm:$0xff]
  %v4088 = vld [vmem:[#allocation2 + $0x20] sm:$0xff]
  %v4089 = vld [vmem:[#allocation2 + $0x28] sm:$0xff]
  %v4090 = vld [vmem:[#allocation2 + $0x30] sm:$0xff]
  %v4091 = vld [vmem:[#allocation2 + $0x38] sm:$0xff]
  %v4092 = vld [vmem:[#allocation2 + $0x40] sm:$0xff]
  %v4093 = vld [vmem:[#allocation2 + $0x48] sm:$0xff]
  %s4094 = scalar_lea.vmem %s6, 133
  %v4095 = vld [vmem:[%s4094] ss:$8 sm:$0xf]
  %v4096 = vld [vmem:[%s4094] ss:$8 sm:$0xf0]
  %v4097 = vor.u32 %v4095, %v4096
  %v4099 = vlaneseq
  %v4100 = vshrl.u32 %v4099, 7
  %v4101 = vsub.s32 0, %v4100
  %v4102 = vrot.slane %v4097, %v4101
  %v4103 = vlaneseq
  %v4104 = vshrl.u32 %v4103, 7
  %v4105 = vsub.s32 1, %v4104
  %v4106 = vrot.slane %v4097, %v4105
  %v4107 = vlaneseq
  %v4108 = vshrl.u32 %v4107, 7
  %v4109 = vsub.s32 2, %v4108
  %v4110 = vrot.slane %v4097, %v4109
  %v4111 = vlaneseq
  %v4112 = vshrl.u32 %v4111, 7
  %v4113 = vsub.s32 3, %v4112
  %v4114 = vrot.slane %v4097, %v4113
  %v4115 = vlaneseq
  %v4116 = vshrl.u32 %v4115, 7
  %v4117 = vsub.s32 4, %v4116
  %v4118 = vrot.slane %v4097, %v4117
  %v4119 = vlaneseq
  %v4120 = vshrl.u32 %v4119, 7
  %v4121 = vsub.s32 5, %v4120
  %v4122 = vrot.slane %v4097, %v4121
  %v4123 = vlaneseq
  %v4124 = vshrl.u32 %v4123, 7
  %v4125 = vsub.s32 6, %v4124
  %v4126 = vrot.slane %v4097, %v4125
  %v4127 = vlaneseq
  %v4128 = vshrl.u32 %v4127, 7
  %v4129 = vsub.s32 7, %v4128
  %v4130 = vrot.slane %v4097, %v4129
  %4131 = vrot.lane.b32.xlu0 %v4102, 63
  %v4132 = vpop.permute.xlu0 %4131
  %4133 = vrot.lane.b32.xlu0 %v4106, 63
  %v4134 = vpop.permute.xlu0 %4133
  %4135 = vrot.lane.b32.xlu0 %v4110, 63
  %v4136 = vpop.permute.xlu0 %4135
  %4137 = vrot.lane.b32.xlu0 %v4114, 63
  %v4138 = vpop.permute.xlu0 %4137
  %4139 = vrot.lane.b32.xlu0 %v4118, 63
  %v4140 = vpop.permute.xlu0 %4139
  %4141 = vrot.lane.b32.xlu0 %v4122, 63
  %v4142 = vpop.permute.xlu0 %4141
  %4143 = vrot.lane.b32.xlu0 %v4126, 63
  %v4144 = vpop.permute.xlu0 %4143
  %4145 = vrot.lane.b32.xlu0 %v4130, 63
  %v4146 = vpop.permute.xlu0 %4145
  %v4147 = vsel %vm1783, %v4132, %v4134
  %v4148 = vsel %vm1783, %v4134, %v4136
  %v4149 = vsel %vm1783, %v4136, %v4138
  %v4150 = vsel %vm1783, %v4138, %v4140
  %v4151 = vsel %vm1783, %v4140, %v4142
  %v4152 = vsel %vm1783, %v4142, %v4144
  %v4153 = vsel %vm1783, %v4144, %v4146
  %v4163 = vmul.f32 %v4085, %v4132
  %v4164 = vmul.f32 %v4086, %v4147
  %v4165 = vmul.f32 %v4087, %v4148
  %v4166 = vmul.f32 %v4088, %v4149
  %v4167 = vmul.f32 %v4089, %v4150
  %v4168 = vmul.f32 %v4090, %v4151
  %v4169 = vmul.f32 %v4091, %v4152
  %v4170 = vmul.f32 %v4092, %v4153
  %v4171 = vmul.f32 %v4093, %v4146
  %4181 = vrot.lane.b32.xlu0 %v4163, 65
  %v4182 = vpop.permute.xlu0 %4181
  %4183 = vrot.lane.b32.xlu0 %v4164, 65
  %v4184 = vpop.permute.xlu0 %4183
  %4185 = vrot.lane.b32.xlu0 %v4165, 65
  %v4186 = vpop.permute.xlu0 %4185
  %4187 = vrot.lane.b32.xlu0 %v4166, 65
  %v4188 = vpop.permute.xlu0 %4187
  %4189 = vrot.lane.b32.xlu0 %v4167, 65
  %v4190 = vpop.permute.xlu0 %4189
  %4191 = vrot.lane.b32.xlu0 %v4168, 65
  %v4192 = vpop.permute.xlu0 %4191
  %4193 = vrot.lane.b32.xlu0 %v4169, 65
  %v4194 = vpop.permute.xlu0 %4193
  %4195 = vrot.lane.b32.xlu0 %v4170, 65
  %v4196 = vpop.permute.xlu0 %4195
  %4197 = vrot.lane.b32.xlu0 %v4171, 65
  %v4198 = vpop.permute.xlu0 %4197
  %v4199 = vsel %vm1836, %v4182, %v4184
  %v4200 = vsel %vm1836, %v4184, %v4186
  %v4201 = vsel %vm1836, %v4186, %v4188
  %v4202 = vsel %vm1836, %v4188, %v4190
  %v4203 = vsel %vm1836, %v4190, %v4192
  %v4204 = vsel %vm1836, %v4192, %v4194
  %v4205 = vsel %vm1836, %v4194, %v4196
  %v4206 = vsel %vm1836, %v4196, %v4198
  %4215 = vst [vmem:[#allocation3 + $0x540] sm:$0xff] %v4199
  %4216 = vst [vmem:[#allocation3 + $0x548] sm:$0xff] %v4200
  %4217 = vst [vmem:[#allocation3 + $0x550] sm:$0xff] %v4201
  %4218 = vst [vmem:[#allocation3 + $0x558] sm:$0xff] %v4202
  %4219 = vst [vmem:[#allocation3 + $0x560] sm:$0xff] %v4203
  %4220 = vst [vmem:[#allocation3 + $0x568] sm:$0xff] %v4204
  %4221 = vst [vmem:[#allocation3 + $0x570] sm:$0xff] %v4205
  %4222 = vst [vmem:[#allocation3 + $0x578] sm:$0xff] %v4206
  %v4223 = vld [vmem:[#allocation2 + $0x8] sm:$0xff]
  %v4224 = vld [vmem:[#allocation2 + $0x10] sm:$0xff]
  %v4225 = vld [vmem:[#allocation2 + $0x18] sm:$0xff]
  %v4226 = vld [vmem:[#allocation2 + $0x20] sm:$0xff]
  %v4227 = vld [vmem:[#allocation2 + $0x28] sm:$0xff]
  %v4228 = vld [vmem:[#allocation2 + $0x30] sm:$0xff]
  %v4229 = vld [vmem:[#allocation2 + $0x38] sm:$0xff]
  %v4230 = vld [vmem:[#allocation2 + $0x40] sm:$0xff]
  %v4231 = vld [vmem:[#allocation2 + $0x48] sm:$0xff]
  %s4232 = scalar_lea.vmem %s6, 134
  %v4233 = vld [vmem:[%s4232] ss:$8 sm:$0xf]
  %v4234 = vld [vmem:[%s4232] ss:$8 sm:$0xf0]
  %v4235 = vor.u32 %v4233, %v4234
  %v4237 = vlaneseq
  %v4238 = vshrl.u32 %v4237, 7
  %v4239 = vsub.s32 0, %v4238
  %v4240 = vrot.slane %v4235, %v4239
  %v4241 = vlaneseq
  %v4242 = vshrl.u32 %v4241, 7
  %v4243 = vsub.s32 1, %v4242
  %v4244 = vrot.slane %v4235, %v4243
  %v4245 = vlaneseq
  %v4246 = vshrl.u32 %v4245, 7
  %v4247 = vsub.s32 2, %v4246
  %v4248 = vrot.slane %v4235, %v4247
  %v4249 = vlaneseq
  %v4250 = vshrl.u32 %v4249, 7
  %v4251 = vsub.s32 3, %v4250
  %v4252 = vrot.slane %v4235, %v4251
  %v4253 = vlaneseq
  %v4254 = vshrl.u32 %v4253, 7
  %v4255 = vsub.s32 4, %v4254
  %v4256 = vrot.slane %v4235, %v4255
  %v4257 = vlaneseq
  %v4258 = vshrl.u32 %v4257, 7
  %v4259 = vsub.s32 5, %v4258
  %v4260 = vrot.slane %v4235, %v4259
  %v4261 = vlaneseq
  %v4262 = vshrl.u32 %v4261, 7
  %v4263 = vsub.s32 6, %v4262
  %v4264 = vrot.slane %v4235, %v4263
  %v4265 = vlaneseq
  %v4266 = vshrl.u32 %v4265, 7
  %v4267 = vsub.s32 7, %v4266
  %v4268 = vrot.slane %v4235, %v4267
  %4269 = vrot.lane.b32.xlu0 %v4240, 64
  %v4270 = vpop.permute.xlu0 %4269
  %4271 = vrot.lane.b32.xlu0 %v4244, 64
  %v4272 = vpop.permute.xlu0 %4271
  %4273 = vrot.lane.b32.xlu0 %v4248, 64
  %v4274 = vpop.permute.xlu0 %4273
  %4275 = vrot.lane.b32.xlu0 %v4252, 64
  %v4276 = vpop.permute.xlu0 %4275
  %4277 = vrot.lane.b32.xlu0 %v4256, 64
  %v4278 = vpop.permute.xlu0 %4277
  %4279 = vrot.lane.b32.xlu0 %v4260, 64
  %v4280 = vpop.permute.xlu0 %4279
  %4281 = vrot.lane.b32.xlu0 %v4264, 64
  %v4282 = vpop.permute.xlu0 %4281
  %4283 = vrot.lane.b32.xlu0 %v4268, 64
  %v4284 = vpop.permute.xlu0 %4283
  %v4285 = vsel %vm1923, %v4270, %v4272
  %v4286 = vsel %vm1923, %v4272, %v4274
  %v4287 = vsel %vm1923, %v4274, %v4276
  %v4288 = vsel %vm1923, %v4276, %v4278
  %v4289 = vsel %vm1923, %v4278, %v4280
  %v4290 = vsel %vm1923, %v4280, %v4282
  %v4291 = vsel %vm1923, %v4282, %v4284
  %v4301 = vmul.f32 %v4223, %v4270
  %v4302 = vmul.f32 %v4224, %v4285
  %v4303 = vmul.f32 %v4225, %v4286
  %v4304 = vmul.f32 %v4226, %v4287
  %v4305 = vmul.f32 %v4227, %v4288
  %v4306 = vmul.f32 %v4228, %v4289
  %v4307 = vmul.f32 %v4229, %v4290
  %v4308 = vmul.f32 %v4230, %v4291
  %v4309 = vmul.f32 %v4231, %v4284
  %4319 = vrot.lane.b32.xlu0 %v4301, 64
  %v4320 = vpop.permute.xlu0 %4319
  %4321 = vrot.lane.b32.xlu0 %v4302, 64
  %v4322 = vpop.permute.xlu0 %4321
  %4323 = vrot.lane.b32.xlu0 %v4303, 64
  %v4324 = vpop.permute.xlu0 %4323
  %4325 = vrot.lane.b32.xlu0 %v4304, 64
  %v4326 = vpop.permute.xlu0 %4325
  %4327 = vrot.lane.b32.xlu0 %v4305, 64
  %v4328 = vpop.permute.xlu0 %4327
  %4329 = vrot.lane.b32.xlu0 %v4306, 64
  %v4330 = vpop.permute.xlu0 %4329
  %4331 = vrot.lane.b32.xlu0 %v4307, 64
  %v4332 = vpop.permute.xlu0 %4331
  %4333 = vrot.lane.b32.xlu0 %v4308, 64
  %v4334 = vpop.permute.xlu0 %4333
  %4335 = vrot.lane.b32.xlu0 %v4309, 64
  %v4336 = vpop.permute.xlu0 %4335
  %v4337 = vsel %vm1923, %v4320, %v4322
  %v4338 = vsel %vm1923, %v4322, %v4324
  %v4339 = vsel %vm1923, %v4324, %v4326
  %v4340 = vsel %vm1923, %v4326, %v4328
  %v4341 = vsel %vm1923, %v4328, %v4330
  %v4342 = vsel %vm1923, %v4330, %v4332
  %v4343 = vsel %vm1923, %v4332, %v4334
  %v4344 = vsel %vm1923, %v4334, %v4336
  %4353 = vst [vmem:[#allocation3 + $0x580] sm:$0xff] %v4337
  %4354 = vst [vmem:[#allocation3 + $0x588] sm:$0xff] %v4338
  %4355 = vst [vmem:[#allocation3 + $0x590] sm:$0xff] %v4339
  %4356 = vst [vmem:[#allocation3 + $0x598] sm:$0xff] %v4340
  %4357 = vst [vmem:[#allocation3 + $0x5a0] sm:$0xff] %v4341
  %4358 = vst [vmem:[#allocation3 + $0x5a8] sm:$0xff] %v4342
  %4359 = vst [vmem:[#allocation3 + $0x5b0] sm:$0xff] %v4343
  %4360 = vst [vmem:[#allocation3 + $0x5b8] sm:$0xff] %v4344
  %v4361 = vld [vmem:[#allocation2 + $0x8] sm:$0xff]
  %v4362 = vld [vmem:[#allocation2 + $0x10] sm:$0xff]
  %v4363 = vld [vmem:[#allocation2 + $0x18] sm:$0xff]
  %v4364 = vld [vmem:[#allocation2 + $0x20] sm:$0xff]
  %v4365 = vld [vmem:[#allocation2 + $0x28] sm:$0xff]
  %v4366 = vld [vmem:[#allocation2 + $0x30] sm:$0xff]
  %v4367 = vld [vmem:[#allocation2 + $0x38] sm:$0xff]
  %v4368 = vld [vmem:[#allocation2 + $0x40] sm:$0xff]
  %v4369 = vld [vmem:[#allocation2 + $0x48] sm:$0xff]
  %s4370 = scalar_lea.vmem %s6, 135
  %v4371 = vld [vmem:[%s4370] ss:$8 sm:$0xf]
  %v4372 = vld [vmem:[%s4370] ss:$8 sm:$0xf0]
  %v4373 = vor.u32 %v4371, %v4372
  %v4375 = vlaneseq
  %v4376 = vshrl.u32 %v4375, 7
  %v4377 = vsub.s32 0, %v4376
  %v4378 = vrot.slane %v4373, %v4377
  %v4379 = vlaneseq
  %v4380 = vshrl.u32 %v4379, 7
  %v4381 = vsub.s32 1, %v4380
  %v4382 = vrot.slane %v4373, %v4381
  %v4383 = vlaneseq
  %v4384 = vshrl.u32 %v4383, 7
  %v4385 = vsub.s32 2, %v4384
  %v4386 = vrot.slane %v4373, %v4385
  %v4387 = vlaneseq
  %v4388 = vshrl.u32 %v4387, 7
  %v4389 = vsub.s32 3, %v4388
  %v4390 = vrot.slane %v4373, %v4389
  %v4391 = vlaneseq
  %v4392 = vshrl.u32 %v4391, 7
  %v4393 = vsub.s32 4, %v4392
  %v4394 = vrot.slane %v4373, %v4393
  %v4395 = vlaneseq
  %v4396 = vshrl.u32 %v4395, 7
  %v4397 = vsub.s32 5, %v4396
  %v4398 = vrot.slane %v4373, %v4397
  %v4399 = vlaneseq
  %v4400 = vshrl.u32 %v4399, 7
  %v4401 = vsub.s32 6, %v4400
  %v4402 = vrot.slane %v4373, %v4401
  %v4403 = vlaneseq
  %v4404 = vshrl.u32 %v4403, 7
  %v4405 = vsub.s32 7, %v4404
  %v4406 = vrot.slane %v4373, %v4405
  %4407 = vrot.lane.b32.xlu0 %v4378, 65
  %v4408 = vpop.permute.xlu0 %4407
  %4409 = vrot.lane.b32.xlu0 %v4382, 65
  %v4410 = vpop.permute.xlu0 %4409
  %4411 = vrot.lane.b32.xlu0 %v4386, 65
  %v4412 = vpop.permute.xlu0 %4411
  %4413 = vrot.lane.b32.xlu0 %v4390, 65
  %v4414 = vpop.permute.xlu0 %4413
  %4415 = vrot.lane.b32.xlu0 %v4394, 65
  %v4416 = vpop.permute.xlu0 %4415
  %4417 = vrot.lane.b32.xlu0 %v4398, 65
  %v4418 = vpop.permute.xlu0 %4417
  %4419 = vrot.lane.b32.xlu0 %v4402, 65
  %v4420 = vpop.permute.xlu0 %4419
  %4421 = vrot.lane.b32.xlu0 %v4406, 65
  %v4422 = vpop.permute.xlu0 %4421
  %v4423 = vsel %vm1836, %v4408, %v4410
  %v4424 = vsel %vm1836, %v4410, %v4412
  %v4425 = vsel %vm1836, %v4412, %v4414
  %v4426 = vsel %vm1836, %v4414, %v4416
  %v4427 = vsel %vm1836, %v4416, %v4418
  %v4428 = vsel %vm1836, %v4418, %v4420
  %v4429 = vsel %vm1836, %v4420, %v4422
  %v4439 = vmul.f32 %v4361, %v4408
  %v4440 = vmul.f32 %v4362, %v4423
  %v4441 = vmul.f32 %v4363, %v4424
  %v4442 = vmul.f32 %v4364, %v4425
  %v4443 = vmul.f32 %v4365, %v4426
  %v4444 = vmul.f32 %v4366, %v4427
  %v4445 = vmul.f32 %v4367, %v4428
  %v4446 = vmul.f32 %v4368, %v4429
  %v4447 = vmul.f32 %v4369, %v4422
  %4457 = vrot.lane.b32.xlu0 %v4439, 63
  %v4458 = vpop.permute.xlu0 %4457
  %4459 = vrot.lane.b32.xlu0 %v4440, 63
  %v4460 = vpop.permute.xlu0 %4459
  %4461 = vrot.lane.b32.xlu0 %v4441, 63
  %v4462 = vpop.permute.xlu0 %4461
  %4463 = vrot.lane.b32.xlu0 %v4442, 63
  %v4464 = vpop.permute.xlu0 %4463
  %4465 = vrot.lane.b32.xlu0 %v4443, 63
  %v4466 = vpop.permute.xlu0 %4465
  %4467 = vrot.lane.b32.xlu0 %v4444, 63
  %v4468 = vpop.permute.xlu0 %4467
  %4469 = vrot.lane.b32.xlu0 %v4445, 63
  %v4470 = vpop.permute.xlu0 %4469
  %4471 = vrot.lane.b32.xlu0 %v4446, 63
  %v4472 = vpop.permute.xlu0 %4471
  %4473 = vrot.lane.b32.xlu0 %v4447, 63
  %v4474 = vpop.permute.xlu0 %4473
  %v4475 = vsel %vm1783, %v4458, %v4460
  %v4476 = vsel %vm1783, %v4460, %v4462
  %v4477 = vsel %vm1783, %v4462, %v4464
  %v4478 = vsel %vm1783, %v4464, %v4466
  %v4479 = vsel %vm1783, %v4466, %v4468
  %v4480 = vsel %vm1783, %v4468, %v4470
  %v4481 = vsel %vm1783, %v4470, %v4472
  %v4482 = vsel %vm1783, %v4472, %v4474
  %4491 = vst [vmem:[#allocation3 + $0x5c0] sm:$0xff] %v4475
  %4492 = vst [vmem:[#allocation3 + $0x5c8] sm:$0xff] %v4476
  %4493 = vst [vmem:[#allocation3 + $0x5d0] sm:$0xff] %v4477
  %4494 = vst [vmem:[#allocation3 + $0x5d8] sm:$0xff] %v4478
  %4495 = vst [vmem:[#allocation3 + $0x5e0] sm:$0xff] %v4479
  %4496 = vst [vmem:[#allocation3 + $0x5e8] sm:$0xff] %v4480
  %4497 = vst [vmem:[#allocation3 + $0x5f0] sm:$0xff] %v4481
  %4498 = vst [vmem:[#allocation3 + $0x5f8] sm:$0xff] %v4482
  %v4499 = vld [vmem:[#allocation2 + $0x8] sm:$0xff]
  %v4500 = vld [vmem:[#allocation2 + $0x10] sm:$0xff]
  %v4501 = vld [vmem:[#allocation2 + $0x18] sm:$0xff]
  %v4502 = vld [vmem:[#allocation2 + $0x20] sm:$0xff]
  %v4503 = vld [vmem:[#allocation2 + $0x28] sm:$0xff]
  %v4504 = vld [vmem:[#allocation2 + $0x30] sm:$0xff]
  %v4505 = vld [vmem:[#allocation2 + $0x38] sm:$0xff]
  %v4506 = vld [vmem:[#allocation2 + $0x40] sm:$0xff]
  %v4507 = vld [vmem:[#allocation2 + $0x48] sm:$0xff]
  %s4508 = scalar_lea.vmem %s6, 192
  %v4509 = vld [vmem:[%s4508] ss:$8 sm:$0xf]
  %v4510 = vld [vmem:[%s4508] ss:$8 sm:$0xf0]
  %v4511 = vor.u32 %v4509, %v4510
  %v4513 = vlaneseq
  %v4514 = vshrl.u32 %v4513, 7
  %v4515 = vsub.s32 0, %v4514
  %v4516 = vrot.slane %v4511, %v4515
  %v4517 = vlaneseq
  %v4518 = vshrl.u32 %v4517, 7
  %v4519 = vsub.s32 1, %v4518
  %v4520 = vrot.slane %v4511, %v4519
  %v4521 = vlaneseq
  %v4522 = vshrl.u32 %v4521, 7
  %v4523 = vsub.s32 2, %v4522
  %v4524 = vrot.slane %v4511, %v4523
  %v4525 = vlaneseq
  %v4526 = vshrl.u32 %v4525, 7
  %v4527 = vsub.s32 3, %v4526
  %v4528 = vrot.slane %v4511, %v4527
  %v4529 = vlaneseq
  %v4530 = vshrl.u32 %v4529, 7
  %v4531 = vsub.s32 4, %v4530
  %v4532 = vrot.slane %v4511, %v4531
  %v4533 = vlaneseq
  %v4534 = vshrl.u32 %v4533, 7
  %v4535 = vsub.s32 5, %v4534
  %v4536 = vrot.slane %v4511, %v4535
  %v4537 = vlaneseq
  %v4538 = vshrl.u32 %v4537, 7
  %v4539 = vsub.s32 6, %v4538
  %v4540 = vrot.slane %v4511, %v4539
  %v4541 = vlaneseq
  %v4542 = vshrl.u32 %v4541, 7
  %v4543 = vsub.s32 7, %v4542
  %v4544 = vrot.slane %v4511, %v4543
  %4545 = vrot.lane.b32.xlu0 %v4516, 71
  %v4546 = vpop.permute.xlu0 %4545
  %4547 = vrot.lane.b32.xlu0 %v4520, 71
  %v4548 = vpop.permute.xlu0 %4547
  %4549 = vrot.lane.b32.xlu0 %v4524, 71
  %v4550 = vpop.permute.xlu0 %4549
  %4551 = vrot.lane.b32.xlu0 %v4528, 71
  %v4552 = vpop.permute.xlu0 %4551
  %4553 = vrot.lane.b32.xlu0 %v4532, 71
  %v4554 = vpop.permute.xlu0 %4553
  %4555 = vrot.lane.b32.xlu0 %v4536, 71
  %v4556 = vpop.permute.xlu0 %4555
  %4557 = vrot.lane.b32.xlu0 %v4540, 71
  %v4558 = vpop.permute.xlu0 %4557
  %4559 = vrot.lane.b32.xlu0 %v4544, 71
  %v4560 = vpop.permute.xlu0 %4559
  %v4561 = vsel %vm1696, %v4546, %v4548
  %v4562 = vsel %vm1696, %v4548, %v4550
  %v4563 = vsel %vm1696, %v4550, %v4552
  %v4564 = vsel %vm1696, %v4552, %v4554
  %v4565 = vsel %vm1696, %v4554, %v4556
  %v4566 = vsel %vm1696, %v4556, %v4558
  %v4567 = vsel %vm1696, %v4558, %v4560
  %v4577 = vmul.f32 %v4499, %v4546
  %v4578 = vmul.f32 %v4500, %v4561
  %v4579 = vmul.f32 %v4501, %v4562
  %v4580 = vmul.f32 %v4502, %v4563
  %v4581 = vmul.f32 %v4503, %v4564
  %v4582 = vmul.f32 %v4504, %v4565
  %v4583 = vmul.f32 %v4505, %v4566
  %v4584 = vmul.f32 %v4506, %v4567
  %v4585 = vmul.f32 %v4507, %v4560
  %4595 = vrot.lane.b32.xlu0 %v4577, 57
  %v4596 = vpop.permute.xlu0 %4595
  %4597 = vrot.lane.b32.xlu0 %v4578, 57
  %v4598 = vpop.permute.xlu0 %4597
  %4599 = vrot.lane.b32.xlu0 %v4579, 57
  %v4600 = vpop.permute.xlu0 %4599
  %4601 = vrot.lane.b32.xlu0 %v4580, 57
  %v4602 = vpop.permute.xlu0 %4601
  %4603 = vrot.lane.b32.xlu0 %v4581, 57
  %v4604 = vpop.permute.xlu0 %4603
  %4605 = vrot.lane.b32.xlu0 %v4582, 57
  %v4606 = vpop.permute.xlu0 %4605
  %4607 = vrot.lane.b32.xlu0 %v4583, 57
  %v4608 = vpop.permute.xlu0 %4607
  %4609 = vrot.lane.b32.xlu0 %v4584, 57
  %v4610 = vpop.permute.xlu0 %4609
  %4611 = vrot.lane.b32.xlu0 %v4585, 57
  %v4612 = vpop.permute.xlu0 %4611
  %v4613 = vsel %vm1643, %v4596, %v4598
  %v4614 = vsel %vm1643, %v4598, %v4600
  %v4615 = vsel %vm1643, %v4600, %v4602
  %v4616 = vsel %vm1643, %v4602, %v4604
  %v4617 = vsel %vm1643, %v4604, %v4606
  %v4618 = vsel %vm1643, %v4606, %v4608
  %v4619 = vsel %vm1643, %v4608, %v4610
  %v4620 = vsel %vm1643, %v4610, %v4612
  %4629 = vst [vmem:[#allocation3 + $0x600] sm:$0xff] %v4613
  %4630 = vst [vmem:[#allocation3 + $0x608] sm:$0xff] %v4614
  %4631 = vst [vmem:[#allocation3 + $0x610] sm:$0xff] %v4615
  %4632 = vst [vmem:[#allocation3 + $0x618] sm:$0xff] %v4616
  %4633 = vst [vmem:[#allocation3 + $0x620] sm:$0xff] %v4617
  %4634 = vst [vmem:[#allocation3 + $0x628] sm:$0xff] %v4618
  %4635 = vst [vmem:[#allocation3 + $0x630] sm:$0xff] %v4619
  %4636 = vst [vmem:[#allocation3 + $0x638] sm:$0xff] %v4620
  %v4637 = vld [vmem:[#allocation2 + $0x8] sm:$0xff]
  %v4638 = vld [vmem:[#allocation2 + $0x10] sm:$0xff]
  %v4639 = vld [vmem:[#allocation2 + $0x18] sm:$0xff]
  %v4640 = vld [vmem:[#allocation2 + $0x20] sm:$0xff]
  %v4641 = vld [vmem:[#allocation2 + $0x28] sm:$0xff]
  %v4642 = vld [vmem:[#allocation2 + $0x30] sm:$0xff]
  %v4643 = vld [vmem:[#allocation2 + $0x38] sm:$0xff]
  %v4644 = vld [vmem:[#allocation2 + $0x40] sm:$0xff]
  %v4645 = vld [vmem:[#allocation2 + $0x48] sm:$0xff]
  %s4646 = scalar_lea.vmem %s6, 193
  %v4647 = vld [vmem:[%s4646] ss:$8 sm:$0xf]
  %v4648 = vld [vmem:[%s4646] ss:$8 sm:$0xf0]
  %v4649 = vor.u32 %v4647, %v4648
  %v4651 = vlaneseq
  %v4652 = vshrl.u32 %v4651, 7
  %v4653 = vsub.s32 0, %v4652
  %v4654 = vrot.slane %v4649, %v4653
  %v4655 = vlaneseq
  %v4656 = vshrl.u32 %v4655, 7
  %v4657 = vsub.s32 1, %v4656
  %v4658 = vrot.slane %v4649, %v4657
  %v4659 = vlaneseq
  %v4660 = vshrl.u32 %v4659, 7
  %v4661 = vsub.s32 2, %v4660
  %v4662 = vrot.slane %v4649, %v4661
  %v4663 = vlaneseq
  %v4664 = vshrl.u32 %v4663, 7
  %v4665 = vsub.s32 3, %v4664
  %v4666 = vrot.slane %v4649, %v4665
  %v4667 = vlaneseq
  %v4668 = vshrl.u32 %v4667, 7
  %v4669 = vsub.s32 4, %v4668
  %v4670 = vrot.slane %v4649, %v4669
  %v4671 = vlaneseq
  %v4672 = vshrl.u32 %v4671, 7
  %v4673 = vsub.s32 5, %v4672
  %v4674 = vrot.slane %v4649, %v4673
  %v4675 = vlaneseq
  %v4676 = vshrl.u32 %v4675, 7
  %v4677 = vsub.s32 6, %v4676
  %v4678 = vrot.slane %v4649, %v4677
  %v4679 = vlaneseq
  %v4680 = vshrl.u32 %v4679, 7
  %v4681 = vsub.s32 7, %v4680
  %v4682 = vrot.slane %v4649, %v4681
  %4683 = vrot.lane.b32.xlu0 %v4654, 72
  %v4684 = vpop.permute.xlu0 %4683
  %4685 = vrot.lane.b32.xlu0 %v4658, 72
  %v4686 = vpop.permute.xlu0 %4685
  %4687 = vrot.lane.b32.xlu0 %v4662, 72
  %v4688 = vpop.permute.xlu0 %4687
  %4689 = vrot.lane.b32.xlu0 %v4666, 72
  %v4690 = vpop.permute.xlu0 %4689
  %4691 = vrot.lane.b32.xlu0 %v4670, 72
  %v4692 = vpop.permute.xlu0 %4691
  %4693 = vrot.lane.b32.xlu0 %v4674, 72
  %v4694 = vpop.permute.xlu0 %4693
  %4695 = vrot.lane.b32.xlu0 %v4678, 72
  %v4696 = vpop.permute.xlu0 %4695
  %4697 = vrot.lane.b32.xlu0 %v4682, 72
  %v4698 = vpop.permute.xlu0 %4697
  %v4699 = vsel %vm1556, %v4684, %v4686
  %v4700 = vsel %vm1556, %v4686, %v4688
  %v4701 = vsel %vm1556, %v4688, %v4690
  %v4702 = vsel %vm1556, %v4690, %v4692
  %v4703 = vsel %vm1556, %v4692, %v4694
  %v4704 = vsel %vm1556, %v4694, %v4696
  %v4705 = vsel %vm1556, %v4696, %v4698
  %v4715 = vmul.f32 %v4637, %v4684
  %v4716 = vmul.f32 %v4638, %v4699
  %v4717 = vmul.f32 %v4639, %v4700
  %v4718 = vmul.f32 %v4640, %v4701
  %v4719 = vmul.f32 %v4641, %v4702
  %v4720 = vmul.f32 %v4642, %v4703
  %v4721 = vmul.f32 %v4643, %v4704
  %v4722 = vmul.f32 %v4644, %v4705
  %v4723 = vmul.f32 %v4645, %v4698
  %4733 = vrot.lane.b32.xlu0 %v4715, 56
  %v4734 = vpop.permute.xlu0 %4733
  %4735 = vrot.lane.b32.xlu0 %v4716, 56
  %v4736 = vpop.permute.xlu0 %4735
  %4737 = vrot.lane.b32.xlu0 %v4717, 56
  %v4738 = vpop.permute.xlu0 %4737
  %4739 = vrot.lane.b32.xlu0 %v4718, 56
  %v4740 = vpop.permute.xlu0 %4739
  %4741 = vrot.lane.b32.xlu0 %v4719, 56
  %v4742 = vpop.permute.xlu0 %4741
  %4743 = vrot.lane.b32.xlu0 %v4720, 56
  %v4744 = vpop.permute.xlu0 %4743
  %4745 = vrot.lane.b32.xlu0 %v4721, 56
  %v4746 = vpop.permute.xlu0 %4745
  %4747 = vrot.lane.b32.xlu0 %v4722, 56
  %v4748 = vpop.permute.xlu0 %4747
  %4749 = vrot.lane.b32.xlu0 %v4723, 56
  %v4750 = vpop.permute.xlu0 %4749
  %v4751 = vsel %vm1503, %v4734, %v4736
  %v4752 = vsel %vm1503, %v4736, %v4738
  %v4753 = vsel %vm1503, %v4738, %v4740
  %v4754 = vsel %vm1503, %v4740, %v4742
  %v4755 = vsel %vm1503, %v4742, %v4744
  %v4756 = vsel %vm1503, %v4744, %v4746
  %v4757 = vsel %vm1503, %v4746, %v4748
  %v4758 = vsel %vm1503, %v4748, %v4750
  %4767 = vst [vmem:[#allocation3 + $0x640] sm:$0xff] %v4751
  %4768 = vst [vmem:[#allocation3 + $0x648] sm:$0xff] %v4752
  %4769 = vst [vmem:[#allocation3 + $0x650] sm:$0xff] %v4753
  %4770 = vst [vmem:[#allocation3 + $0x658] sm:$0xff] %v4754
  %4771 = vst [vmem:[#allocation3 + $0x660] sm:$0xff] %v4755
  %4772 = vst [vmem:[#allocation3 + $0x668] sm:$0xff] %v4756
  %4773 = vst [vmem:[#allocation3 + $0x670] sm:$0xff] %v4757
  %4774 = vst [vmem:[#allocation3 + $0x678] sm:$0xff] %v4758
  %v4775 = vld [vmem:[#allocation2 + $0x8] sm:$0xff]
  %v4776 = vld [vmem:[#allocation2 + $0x10] sm:$0xff]
  %v4777 = vld [vmem:[#allocation2 + $0x18] sm:$0xff]
  %v4778 = vld [vmem:[#allocation2 + $0x20] sm:$0xff]
  %v4779 = vld [vmem:[#allocation2 + $0x28] sm:$0xff]
  %v4780 = vld [vmem:[#allocation2 + $0x30] sm:$0xff]
  %v4781 = vld [vmem:[#allocation2 + $0x38] sm:$0xff]
  %v4782 = vld [vmem:[#allocation2 + $0x40] sm:$0xff]
  %v4783 = vld [vmem:[#allocation2 + $0x48] sm:$0xff]
  %s4784 = scalar_lea.vmem %s6, 194
  %v4785 = vld [vmem:[%s4784] ss:$8 sm:$0xf]
  %v4786 = vld [vmem:[%s4784] ss:$8 sm:$0xf0]
  %v4787 = vor.u32 %v4785, %v4786
  %v4789 = vlaneseq
  %v4790 = vshrl.u32 %v4789, 7
  %v4791 = vsub.s32 0, %v4790
  %v4792 = vrot.slane %v4787, %v4791
  %v4793 = vlaneseq
  %v4794 = vshrl.u32 %v4793, 7
  %v4795 = vsub.s32 1, %v4794
  %v4796 = vrot.slane %v4787, %v4795
  %v4797 = vlaneseq
  %v4798 = vshrl.u32 %v4797, 7
  %v4799 = vsub.s32 2, %v4798
  %v4800 = vrot.slane %v4787, %v4799
  %v4801 = vlaneseq
  %v4802 = vshrl.u32 %v4801, 7
  %v4803 = vsub.s32 3, %v4802
  %v4804 = vrot.slane %v4787, %v4803
  %v4805 = vlaneseq
  %v4806 = vshrl.u32 %v4805, 7
  %v4807 = vsub.s32 4, %v4806
  %v4808 = vrot.slane %v4787, %v4807
  %v4809 = vlaneseq
  %v4810 = vshrl.u32 %v4809, 7
  %v4811 = vsub.s32 5, %v4810
  %v4812 = vrot.slane %v4787, %v4811
  %v4813 = vlaneseq
  %v4814 = vshrl.u32 %v4813, 7
  %v4815 = vsub.s32 6, %v4814
  %v4816 = vrot.slane %v4787, %v4815
  %v4817 = vlaneseq
  %v4818 = vshrl.u32 %v4817, 7
  %v4819 = vsub.s32 7, %v4818
  %v4820 = vrot.slane %v4787, %v4819
  %4821 = vrot.lane.b32.xlu0 %v4792, 73
  %v4822 = vpop.permute.xlu0 %4821
  %4823 = vrot.lane.b32.xlu0 %v4796, 73
  %v4824 = vpop.permute.xlu0 %4823
  %4825 = vrot.lane.b32.xlu0 %v4800, 73
  %v4826 = vpop.permute.xlu0 %4825
  %4827 = vrot.lane.b32.xlu0 %v4804, 73
  %v4828 = vpop.permute.xlu0 %4827
  %4829 = vrot.lane.b32.xlu0 %v4808, 73
  %v4830 = vpop.permute.xlu0 %4829
  %4831 = vrot.lane.b32.xlu0 %v4812, 73
  %v4832 = vpop.permute.xlu0 %4831
  %4833 = vrot.lane.b32.xlu0 %v4816, 73
  %v4834 = vpop.permute.xlu0 %4833
  %4835 = vrot.lane.b32.xlu0 %v4820, 73
  %v4836 = vpop.permute.xlu0 %4835
  %v4837 = vsel %vm1416, %v4822, %v4824
  %v4838 = vsel %vm1416, %v4824, %v4826
  %v4839 = vsel %vm1416, %v4826, %v4828
  %v4840 = vsel %vm1416, %v4828, %v4830
  %v4841 = vsel %vm1416, %v4830, %v4832
  %v4842 = vsel %vm1416, %v4832, %v4834
  %v4843 = vsel %vm1416, %v4834, %v4836
  %v4853 = vmul.f32 %v4775, %v4822
  %v4854 = vmul.f32 %v4776, %v4837
  %v4855 = vmul.f32 %v4777, %v4838
  %v4856 = vmul.f32 %v4778, %v4839
  %v4857 = vmul.f32 %v4779, %v4840
  %v4858 = vmul.f32 %v4780, %v4841
  %v4859 = vmul.f32 %v4781, %v4842
  %v4860 = vmul.f32 %v4782, %v4843
  %v4861 = vmul.f32 %v4783, %v4836
  %4871 = vrot.lane.b32.xlu0 %v4853, 55
  %v4872 = vpop.permute.xlu0 %4871
  %4873 = vrot.lane.b32.xlu0 %v4854, 55
  %v4874 = vpop.permute.xlu0 %4873
  %4875 = vrot.lane.b32.xlu0 %v4855, 55
  %v4876 = vpop.permute.xlu0 %4875
  %4877 = vrot.lane.b32.xlu0 %v4856, 55
  %v4878 = vpop.permute.xlu0 %4877
  %4879 = vrot.lane.b32.xlu0 %v4857, 55
  %v4880 = vpop.permute.xlu0 %4879
  %4881 = vrot.lane.b32.xlu0 %v4858, 55
  %v4882 = vpop.permute.xlu0 %4881
  %4883 = vrot.lane.b32.xlu0 %v4859, 55
  %v4884 = vpop.permute.xlu0 %4883
  %4885 = vrot.lane.b32.xlu0 %v4860, 55
  %v4886 = vpop.permute.xlu0 %4885
  %4887 = vrot.lane.b32.xlu0 %v4861, 55
  %v4888 = vpop.permute.xlu0 %4887
  %v4889 = vsel %vm1363, %v4872, %v4874
  %v4890 = vsel %vm1363, %v4874, %v4876
  %v4891 = vsel %vm1363, %v4876, %v4878
  %v4892 = vsel %vm1363, %v4878, %v4880
  %v4893 = vsel %vm1363, %v4880, %v4882
  %v4894 = vsel %vm1363, %v4882, %v4884
  %v4895 = vsel %vm1363, %v4884, %v4886
  %v4896 = vsel %vm1363, %v4886, %v4888
  %4905 = vst [vmem:[#allocation3 + $0x680] sm:$0xff] %v4889
  %4906 = vst [vmem:[#allocation3 + $0x688] sm:$0xff] %v4890
  %4907 = vst [vmem:[#allocation3 + $0x690] sm:$0xff] %v4891
  %4908 = vst [vmem:[#allocation3 + $0x698] sm:$0xff] %v4892
  %4909 = vst [vmem:[#allocation3 + $0x6a0] sm:$0xff] %v4893
  %4910 = vst [vmem:[#allocation3 + $0x6a8] sm:$0xff] %v4894
  %4911 = vst [vmem:[#allocation3 + $0x6b0] sm:$0xff] %v4895
  %4912 = vst [vmem:[#allocation3 + $0x6b8] sm:$0xff] %v4896
  %v4913 = vld [vmem:[%s3] sm:$0xff]
  %v4914 = vld [vmem:[%s3 + $0x8] sm:$0xff]
  %v4915 = vld [vmem:[#allocation3] sm:$0xff]
  %v4916 = vld [vmem:[#allocation3 + $0x8] sm:$0xff]
  %v4917 = vld [vmem:[#allocation3 + $0x10] sm:$0xff]
  %v4918 = vld [vmem:[#allocation3 + $0x18] sm:$0xff]
  %v4919 = vld [vmem:[#allocation3 + $0x20] sm:$0xff]
  %v4920 = vld [vmem:[#allocation3 + $0x28] sm:$0xff]
  %v4921 = vld [vmem:[#allocation3 + $0x30] sm:$0xff]
  %v4922 = vld [vmem:[#allocation3 + $0x38] sm:$0xff]
  %v4923 = vld [vmem:[#allocation3 + $0x40] sm:$0xff]
  %v4924 = vld [vmem:[#allocation3 + $0x48] sm:$0xff]
  %v4925 = vld [vmem:[#allocation3 + $0x50] sm:$0xff]
  %v4926 = vld [vmem:[#allocation3 + $0x58] sm:$0xff]
  %v4927 = vld [vmem:[#allocation3 + $0x60] sm:$0xff]
  %v4928 = vld [vmem:[#allocation3 + $0x68] sm:$0xff]
  %v4929 = vld [vmem:[#allocation3 + $0x70] sm:$0xff]
  %v4930 = vld [vmem:[#allocation3 + $0x78] sm:$0xff]
  %v4931 = vld [vmem:[#allocation3 + $0x80] sm:$0xff]
  %v4932 = vld [vmem:[#allocation3 + $0x88] sm:$0xff]
  %v4933 = vld [vmem:[#allocation3 + $0x90] sm:$0xff]
  %v4934 = vld [vmem:[#allocation3 + $0x98] sm:$0xff]
  %v4935 = vld [vmem:[#allocation3 + $0xa0] sm:$0xff]
  %v4936 = vld [vmem:[#allocation3 + $0xa8] sm:$0xff]
  %v4937 = vld [vmem:[#allocation3 + $0xb0] sm:$0xff]
  %v4938 = vld [vmem:[#allocation3 + $0xb8] sm:$0xff]
  %v4939 = vld [vmem:[#allocation3 + $0xc0] sm:$0xff]
  %v4940 = vld [vmem:[#allocation3 + $0xc8] sm:$0xff]
  %v4941 = vld [vmem:[#allocation3 + $0xd0] sm:$0xff]
  %v4942 = vld [vmem:[#allocation3 + $0xd8] sm:$0xff]
  %v4943 = vld [vmem:[#allocation3 + $0xe0] sm:$0xff]
  %v4944 = vld [vmem:[#allocation3 + $0xe8] sm:$0xff]
  %v4945 = vld [vmem:[#allocation3 + $0xf0] sm:$0xff]
  %v4946 = vld [vmem:[#allocation3 + $0xf8] sm:$0xff]
  %v4947 = vld [vmem:[#allocation3 + $0x100] sm:$0xff]
  %v4948 = vld [vmem:[#allocation3 + $0x108] sm:$0xff]
  %v4949 = vld [vmem:[#allocation3 + $0x110] sm:$0xff]
  %v4950 = vld [vmem:[#allocation3 + $0x118] sm:$0xff]
  %v4951 = vld [vmem:[#allocation3 + $0x120] sm:$0xff]
  %v4952 = vld [vmem:[#allocation3 + $0x128] sm:$0xff]
  %v4953 = vld [vmem:[#allocation3 + $0x130] sm:$0xff]
  %v4954 = vld [vmem:[#allocation3 + $0x138] sm:$0xff]
  %v4955 = vld [vmem:[#allocation3 + $0x140] sm:$0xff]
  %v4956 = vld [vmem:[#allocation3 + $0x148] sm:$0xff]
  %v4957 = vld [vmem:[#allocation3 + $0x150] sm:$0xff]
  %v4958 = vld [vmem:[#allocation3 + $0x158] sm:$0xff]
  %v4959 = vld [vmem:[#allocation3 + $0x160] sm:$0xff]
  %v4960 = vld [vmem:[#allocation3 + $0x168] sm:$0xff]
  %v4961 = vld [vmem:[#allocation3 + $0x170] sm:$0xff]
  %v4962 = vld [vmem:[#allocation3 + $0x178] sm:$0xff]
  %v4963 = vld [vmem:[#allocation3 + $0x180] sm:$0xff]
  %v4964 = vld [vmem:[#allocation3 + $0x188] sm:$0xff]
  %v4965 = vld [vmem:[#allocation3 + $0x190] sm:$0xff]
  %v4966 = vld [vmem:[#allocation3 + $0x198] sm:$0xff]
  %v4967 = vld [vmem:[#allocation3 + $0x1a0] sm:$0xff]
  %v4968 = vld [vmem:[#allocation3 + $0x1a8] sm:$0xff]
  %v4969 = vld [vmem:[#allocation3 + $0x1b0] sm:$0xff]
  %v4970 = vld [vmem:[#allocation3 + $0x1b8] sm:$0xff]
  %v4971 = vld [vmem:[#allocation3 + $0x1c0] sm:$0xff]
  %v4972 = vld [vmem:[#allocation3 + $0x1c8] sm:$0xff]
  %v4973 = vld [vmem:[#allocation3 + $0x1d0] sm:$0xff]
  %v4974 = vld [vmem:[#allocation3 + $0x1d8] sm:$0xff]
  %v4975 = vld [vmem:[#allocation3 + $0x1e0] sm:$0xff]
  %v4976 = vld [vmem:[#allocation3 + $0x1e8] sm:$0xff]
  %v4977 = vld [vmem:[#allocation3 + $0x1f0] sm:$0xff]
  %v4978 = vld [vmem:[#allocation3 + $0x1f8] sm:$0xff]
  %v4979 = vld [vmem:[#allocation3 + $0x200] sm:$0xff]
  %v4980 = vld [vmem:[#allocation3 + $0x208] sm:$0xff]
  %v4981 = vld [vmem:[#allocation3 + $0x210] sm:$0xff]
  %v4982 = vld [vmem:[#allocation3 + $0x218] sm:$0xff]
  %v4983 = vld [vmem:[#allocation3 + $0x220] sm:$0xff]
  %v4984 = vld [vmem:[#allocation3 + $0x228] sm:$0xff]
  %v4985 = vld [vmem:[#allocation3 + $0x230] sm:$0xff]
  %v4986 = vld [vmem:[#allocation3 + $0x238] sm:$0xff]
  %v4987 = vld [vmem:[#allocation3 + $0x240] sm:$0xff]
  %v4988 = vld [vmem:[#allocation3 + $0x248] sm:$0xff]
  %v4989 = vld [vmem:[#allocation3 + $0x250] sm:$0xff]
  %v4990 = vld [vmem:[#allocation3 + $0x258] sm:$0xff]
  %v4991 = vld [vmem:[#allocation3 + $0x260] sm:$0xff]
  %v4992 = vld [vmem:[#allocation3 + $0x268] sm:$0xff]
  %v4993 = vld [vmem:[#allocation3 + $0x270] sm:$0xff]
  %v4994 = vld [vmem:[#allocation3 + $0x278] sm:$0xff]
  %v4995 = vld [vmem:[#allocation3 + $0x280] sm:$0xff]
  %v4996 = vld [vmem:[#allocation3 + $0x288] sm:$0xff]
  %v4997 = vld [vmem:[#allocation3 + $0x290] sm:$0xff]
  %v4998 = vld [vmem:[#allocation3 + $0x298] sm:$0xff]
  %v4999 = vld [vmem:[#allocation3 + $0x2a0] sm:$0xff]
  %v5000 = vld [vmem:[#allocation3 + $0x2a8] sm:$0xff]
  %v5001 = vld [vmem:[#allocation3 + $0x2b0] sm:$0xff]
  %v5002 = vld [vmem:[#allocation3 + $0x2b8] sm:$0xff]
  %v5003 = vld [vmem:[#allocation3 + $0x2c0] sm:$0xff]
  %v5004 = vld [vmem:[#allocation3 + $0x2c8] sm:$0xff]
  %v5005 = vld [vmem:[#allocation3 + $0x2d0] sm:$0xff]
  %v5006 = vld [vmem:[#allocation3 + $0x2d8] sm:$0xff]
  %v5007 = vld [vmem:[#allocation3 + $0x2e0] sm:$0xff]
  %v5008 = vld [vmem:[#allocation3 + $0x2e8] sm:$0xff]
  %v5009 = vld [vmem:[#allocation3 + $0x2f0] sm:$0xff]
  %v5010 = vld [vmem:[#allocation3 + $0x2f8] sm:$0xff]
  %v5011 = vld [vmem:[#allocation3 + $0x300] sm:$0xff]
  %v5012 = vld [vmem:[#allocation3 + $0x308] sm:$0xff]
  %v5013 = vld [vmem:[#allocation3 + $0x310] sm:$0xff]
  %v5014 = vld [vmem:[#allocation3 + $0x318] sm:$0xff]
  %v5015 = vld [vmem:[#allocation3 + $0x320] sm:$0xff]
  %v5016 = vld [vmem:[#allocation3 + $0x328] sm:$0xff]
  %v5017 = vld [vmem:[#allocation3 + $0x330] sm:$0xff]
  %v5018 = vld [vmem:[#allocation3 + $0x338] sm:$0xff]
  %v5019 = vld [vmem:[#allocation3 + $0x340] sm:$0xff]
  %v5020 = vld [vmem:[#allocation3 + $0x348] sm:$0xff]
  %v5021 = vld [vmem:[#allocation3 + $0x350] sm:$0xff]
  %v5022 = vld [vmem:[#allocation3 + $0x358] sm:$0xff]
  %v5023 = vld [vmem:[#allocation3 + $0x360] sm:$0xff]
  %v5024 = vld [vmem:[#allocation3 + $0x368] sm:$0xff]
  %v5025 = vld [vmem:[#allocation3 + $0x370] sm:$0xff]
  %v5026 = vld [vmem:[#allocation3 + $0x378] sm:$0xff]
  %v5027 = vld [vmem:[#allocation3 + $0x380] sm:$0xff]
  %v5028 = vld [vmem:[#allocation3 + $0x388] sm:$0xff]
  %v5029 = vld [vmem:[#allocation3 + $0x390] sm:$0xff]
  %v5030 = vld [vmem:[#allocation3 + $0x398] sm:$0xff]
  %v5031 = vld [vmem:[#allocation3 + $0x3a0] sm:$0xff]
  %v5032 = vld [vmem:[#allocation3 + $0x3a8] sm:$0xff]
  %v5033 = vld [vmem:[#allocation3 + $0x3b0] sm:$0xff]
  %v5034 = vld [vmem:[#allocation3 + $0x3b8] sm:$0xff]
  %v5035 = vld [vmem:[#allocation3 + $0x3c0] sm:$0xff]
  %v5036 = vld [vmem:[#allocation3 + $0x3c8] sm:$0xff]
  %v5037 = vld [vmem:[#allocation3 + $0x3d0] sm:$0xff]
  %v5038 = vld [vmem:[#allocation3 + $0x3d8] sm:$0xff]
  %v5039 = vld [vmem:[#allocation3 + $0x3e0] sm:$0xff]
  %v5040 = vld [vmem:[#allocation3 + $0x3e8] sm:$0xff]
  %v5041 = vld [vmem:[#allocation3 + $0x3f0] sm:$0xff]
  %v5042 = vld [vmem:[#allocation3 + $0x3f8] sm:$0xff]
  %v5043 = vld [vmem:[#allocation3 + $0x400] sm:$0xff]
  %v5044 = vld [vmem:[#allocation3 + $0x408] sm:$0xff]
  %v5045 = vld [vmem:[#allocation3 + $0x410] sm:$0xff]
  %v5046 = vld [vmem:[#allocation3 + $0x418] sm:$0xff]
  %v5047 = vld [vmem:[#allocation3 + $0x420] sm:$0xff]
  %v5048 = vld [vmem:[#allocation3 + $0x428] sm:$0xff]
  %v5049 = vld [vmem:[#allocation3 + $0x430] sm:$0xff]
  %v5050 = vld [vmem:[#allocation3 + $0x438] sm:$0xff]
  %v5051 = vld [vmem:[#allocation3 + $0x440] sm:$0xff]
  %v5052 = vld [vmem:[#allocation3 + $0x448] sm:$0xff]
  %v5053 = vld [vmem:[#allocation3 + $0x450] sm:$0xff]
  %v5054 = vld [vmem:[#allocation3 + $0x458] sm:$0xff]
  %v5055 = vld [vmem:[#allocation3 + $0x460] sm:$0xff]
  %v5056 = vld [vmem:[#allocation3 + $0x468] sm:$0xff]
  %v5057 = vld [vmem:[#allocation3 + $0x470] sm:$0xff]
  %v5058 = vld [vmem:[#allocation3 + $0x478] sm:$0xff]
  %v5059 = vld [vmem:[#allocation3 + $0x480] sm:$0xff]
  %v5060 = vld [vmem:[#allocation3 + $0x488] sm:$0xff]
  %v5061 = vld [vmem:[#allocation3 + $0x490] sm:$0xff]
  %v5062 = vld [vmem:[#allocation3 + $0x498] sm:$0xff]
  %v5063 = vld [vmem:[#allocation3 + $0x4a0] sm:$0xff]
  %v5064 = vld [vmem:[#allocation3 + $0x4a8] sm:$0xff]
  %v5065 = vld [vmem:[#allocation3 + $0x4b0] sm:$0xff]
  %v5066 = vld [vmem:[#allocation3 + $0x4b8] sm:$0xff]
  %v5067 = vld [vmem:[#allocation3 + $0x4c0] sm:$0xff]
  %v5068 = vld [vmem:[#allocation3 + $0x4c8] sm:$0xff]
  %v5069 = vld [vmem:[#allocation3 + $0x4d0] sm:$0xff]
  %v5070 = vld [vmem:[#allocation3 + $0x4d8] sm:$0xff]
  %v5071 = vld [vmem:[#allocation3 + $0x4e0] sm:$0xff]
  %v5072 = vld [vmem:[#allocation3 + $0x4e8] sm:$0xff]
  %v5073 = vld [vmem:[#allocation3 + $0x4f0] sm:$0xff]
  %v5074 = vld [vmem:[#allocation3 + $0x4f8] sm:$0xff]
  %v5075 = vld [vmem:[#allocation3 + $0x500] sm:$0xff]
  %v5076 = vld [vmem:[#allocation3 + $0x508] sm:$0xff]
  %v5077 = vld [vmem:[#allocation3 + $0x510] sm:$0xff]
  %v5078 = vld [vmem:[#allocation3 + $0x518] sm:$0xff]
  %v5079 = vld [vmem:[#allocation3 + $0x520] sm:$0xff]
  %v5080 = vld [vmem:[#allocation3 + $0x528] sm:$0xff]
  %v5081 = vld [vmem:[#allocation3 + $0x530] sm:$0xff]
  %v5082 = vld [vmem:[#allocation3 + $0x538] sm:$0xff]
  %v5083 = vld [vmem:[#allocation3 + $0x540] sm:$0xff]
  %v5084 = vld [vmem:[#allocation3 + $0x548] sm:$0xff]
  %v5085 = vld [vmem:[#allocation3 + $0x550] sm:$0xff]
  %v5086 = vld [vmem:[#allocation3 + $0x558] sm:$0xff]
  %v5087 = vld [vmem:[#allocation3 + $0x560] sm:$0xff]
  %v5088 = vld [vmem:[#allocation3 + $0x568] sm:$0xff]
  %v5089 = vld [vmem:[#allocation3 + $0x570] sm:$0xff]
  %v5090 = vld [vmem:[#allocation3 + $0x578] sm:$0xff]
  %v5091 = vld [vmem:[#allocation3 + $0x580] sm:$0xff]
  %v5092 = vld [vmem:[#allocation3 + $0x588] sm:$0xff]
  %v5093 = vld [vmem:[#allocation3 + $0x590] sm:$0xff]
  %v5094 = vld [vmem:[#allocation3 + $0x598] sm:$0xff]
  %v5095 = vld [vmem:[#allocation3 + $0x5a0] sm:$0xff]
  %v5096 = vld [vmem:[#allocation3 + $0x5a8] sm:$0xff]
  %v5097 = vld [vmem:[#allocation3 + $0x5b0] sm:$0xff]
  %v5098 = vld [vmem:[#allocation3 + $0x5b8] sm:$0xff]
  %v5099 = vld [vmem:[#allocation3 + $0x5c0] sm:$0xff]
  %v5100 = vld [vmem:[#allocation3 + $0x5c8] sm:$0xff]
  %v5101 = vld [vmem:[#allocation3 + $0x5d0] sm:$0xff]
  %v5102 = vld [vmem:[#allocation3 + $0x5d8] sm:$0xff]
  %v5103 = vld [vmem:[#allocation3 + $0x5e0] sm:$0xff]
  %v5104 = vld [vmem:[#allocation3 + $0x5e8] sm:$0xff]
  %v5105 = vld [vmem:[#allocation3 + $0x5f0] sm:$0xff]
  %v5106 = vld [vmem:[#allocation3 + $0x5f8] sm:$0xff]
  %v5107 = vld [vmem:[#allocation3 + $0x600] sm:$0xff]
  %v5108 = vld [vmem:[#allocation3 + $0x608] sm:$0xff]
  %v5109 = vld [vmem:[#allocation3 + $0x610] sm:$0xff]
  %v5110 = vld [vmem:[#allocation3 + $0x618] sm:$0xff]
  %v5111 = vld [vmem:[#allocation3 + $0x620] sm:$0xff]
  %v5112 = vld [vmem:[#allocation3 + $0x628] sm:$0xff]
  %v5113 = vld [vmem:[#allocation3 + $0x630] sm:$0xff]
  %v5114 = vld [vmem:[#allocation3 + $0x638] sm:$0xff]
  %v5115 = vld [vmem:[#allocation3 + $0x640] sm:$0xff]
  %v5116 = vld [vmem:[#allocation3 + $0x648] sm:$0xff]
  %v5117 = vld [vmem:[#allocation3 + $0x650] sm:$0xff]
  %v5118 = vld [vmem:[#allocation3 + $0x658] sm:$0xff]
  %v5119 = vld [vmem:[#allocation3 + $0x660] sm:$0xff]
  %v5120 = vld [vmem:[#allocation3 + $0x668] sm:$0xff]
  %v5121 = vld [vmem:[#allocation3 + $0x670] sm:$0xff]
  %v5122 = vld [vmem:[#allocation3 + $0x678] sm:$0xff]
  %v5123 = vld [vmem:[#allocation3 + $0x680] sm:$0xff]
  %v5124 = vld [vmem:[#allocation3 + $0x688] sm:$0xff]
  %v5125 = vld [vmem:[#allocation3 + $0x690] sm:$0xff]
  %v5126 = vld [vmem:[#allocation3 + $0x698] sm:$0xff]
  %v5127 = vld [vmem:[#allocation3 + $0x6a0] sm:$0xff]
  %v5128 = vld [vmem:[#allocation3 + $0x6a8] sm:$0xff]
  %v5129 = vld [vmem:[#allocation3 + $0x6b0] sm:$0xff]
  %v5130 = vld [vmem:[#allocation3 + $0x6b8] sm:$0xff]
  %5131 = vset.pattern.permute.xlu0 1
  %5132 = vperm.xlu0 %5131, %v47
  %v5133 = vpop.permute.xlu0 %5132
  %vm5135 = vcmask 719872
  %v5137 = vsel %vm5135, %v4914, 0
  %5139 = vmatprep.subr.mxu0 %v4916
  %5140 = vmatpush1.msra.mxu0 %v4915
  %5141 = vmatprep.subr.mxu0 %v4924
  %5142 = vmatpush1.msra.mxu0 %v4923
  %5143 = vmatprep.subr.mxu0 %v4932
  %5144 = vmatpush1.msra.mxu0 %v4931
  %5145 = vmatprep.subr.mxu0 %v4940
  %5146 = vmatpush1.msra.mxu0 %v4939
  %5147 = vmatprep.subr.mxu0 %v4948
  %5148 = vmatpush1.msra.mxu0 %v4947
  %5149 = vmatprep.subr.mxu0 %v4956
  %5150 = vmatpush1.msra.mxu0 %v4955
  %5151 = vmatprep.subr.mxu0 %v4964
  %5152 = vmatpush1.msra.mxu0 %v4963
  %5153 = vmatprep.subr.mxu0 %v4972
  %5154 = vmatpush1.msra.mxu0 %v4971
  %5155 = vmatprep.subr.mxu0 %v4980
  %5156 = vmatpush1.msra.mxu0 %v4979
  %5157 = vmatprep.subr.mxu0 %v4988
  %5158 = vmatpush1.msra.mxu0 %v4987
  %5159 = vmatprep.subr.mxu0 %v4996
  %5160 = vmatpush1.msra.mxu0 %v4995
  %5161 = vmatprep.subr.mxu0 %v5004
  %5162 = vmatpush1.msra.mxu0 %v5003
  %5163 = vmatprep.subr.mxu0 %v5012
  %5164 = vmatpush1.msra.mxu0 %v5011
  %5165 = vmatprep.subr.mxu0 %v5020
  %5166 = vmatpush1.msra.mxu0 %v5019
  %5167 = vmatprep.subr.mxu0 %v5028
  %5168 = vmatpush1.msra.mxu0 %v5027
  %5169 = vmatprep.subr.mxu0 %v5036
  %5170 = vmatpush1.msra.mxu0 %v5035
  %5171 = vmatprep.subr.mxu0 %v5044
  %5172 = vmatpush1.msra.mxu0 %v5043
  %5173 = vmatprep.subr.mxu0 %v5052
  %5174 = vmatpush1.msra.mxu0 %v5051
  %5175 = vmatprep.subr.mxu0 %v5060
  %5176 = vmatpush1.msra.mxu0 %v5059
  %5177 = vmatprep.subr.mxu0 %v5068
  %5178 = vmatpush1.msra.mxu0 %v5067
  %5179 = vmatprep.subr.mxu0 %v5076
  %5180 = vmatpush1.msra.mxu0 %v5075
  %5181 = vmatprep.subr.mxu0 %v5084
  %5182 = vmatpush1.msra.mxu0 %v5083
  %5183 = vmatprep.subr.mxu0 %v5092
  %5184 = vmatpush1.msra.mxu0 %v5091
  %5185 = vmatprep.subr.mxu0 %v5100
  %5186 = vmatpush1.msra.mxu0 %v5099
  %5187 = vmatprep.subr.mxu0 %v5108
  %5188 = vmatpush1.msra.mxu0 %v5107
  %5189 = vmatprep.subr.mxu0 %v5116
  %5190 = vmatpush1.msra.mxu0 %v5115
  %5191 = vmatprep.subr.mxu0 %v5124
  %5192 = vmatpush1.msra.mxu0 %v5123
  %5193 = vmatprep.subr.mxu0 0.0
  %5194 = vmatpush1.msra.mxu0 0.0
  %5195 = vmatprep.subr.mxu0 0.0
  %5196 = vmatpush1.msra.mxu0 0.0
  %5197 = vmatprep.subr.mxu0 0.0
  %5198 = vmatpush1.msra.mxu0 0.0
  %5199 = vmatprep.subr.mxu0 0.0
  %5200 = vmatpush1.msra.mxu0 0.0
  %5201 = vmatprep.subr.mxu0 0.0
  %5202 = vmatpush1.msra.mxu0 0.0
  %5203 = vmatprep.mubr.f32.mxu0 %v5137
  %5204 = vmatmul.mubr.f32.gmra.mrb[0].mxu0 %v4913
  %v5205 = vpop.f32.mrb[0].mxu0
  %v5206 = vadd.f32 %v5133, %v5205
  %v5207 = vpop.f32.mrb[0].mxu0
  %v5208 = vadd.f32 %v5133, %v5207
  %5209 = vdwg.mxu0
  %5210 = vmatprep.subr.mxu0 %v4918
  %5211 = vmatpush1.msra.mxu0 %v4917
  %5212 = vmatprep.subr.mxu0 %v4926
  %5213 = vmatpush1.msra.mxu0 %v4925
  %5214 = vmatprep.subr.mxu0 %v4934
  %5215 = vmatpush1.msra.mxu0 %v4933
  %5216 = vmatprep.subr.mxu0 %v4942
  %5217 = vmatpush1.msra.mxu0 %v4941
  %5218 = vmatprep.subr.mxu0 %v4950
  %5219 = vmatpush1.msra.mxu0 %v4949
  %5220 = vmatprep.subr.mxu0 %v4958
  %5221 = vmatpush1.msra.mxu0 %v4957
  %5222 = vmatprep.subr.mxu0 %v4966
  %5223 = vmatpush1.msra.mxu0 %v4965
  %5224 = vmatprep.subr.mxu0 %v4974
  %5225 = vmatpush1.msra.mxu0 %v4973
  %5226 = vmatprep.subr.mxu0 %v4982
  %5227 = vmatpush1.msra.mxu0 %v4981
  %5228 = vmatprep.subr.mxu0 %v4990
  %5229 = vmatpush1.msra.mxu0 %v4989
  %5230 = vmatprep.subr.mxu0 %v4998
  %5231 = vmatpush1.msra.mxu0 %v4997
  %5232 = vmatprep.subr.mxu0 %v5006
  %5233 = vmatpush1.msra.mxu0 %v5005
  %5234 = vmatprep.subr.mxu0 %v5014
  %5235 = vmatpush1.msra.mxu0 %v5013
  %5236 = vmatprep.subr.mxu0 %v5022
  %5237 = vmatpush1.msra.mxu0 %v5021
  %5238 = vmatprep.subr.mxu0 %v5030
  %5239 = vmatpush1.msra.mxu0 %v5029
  %5240 = vmatprep.subr.mxu0 %v5038
  %5241 = vmatpush1.msra.mxu0 %v5037
  %5242 = vmatprep.subr.mxu0 %v5046
  %5243 = vmatpush1.msra.mxu0 %v5045
  %5244 = vmatprep.subr.mxu0 %v5054
  %5245 = vmatpush1.msra.mxu0 %v5053
  %5246 = vmatprep.subr.mxu0 %v5062
  %5247 = vmatpush1.msra.mxu0 %v5061
  %5248 = vmatprep.subr.mxu0 %v5070
  %5249 = vmatpush1.msra.mxu0 %v5069
  %5250 = vmatprep.subr.mxu0 %v5078
  %5251 = vmatpush1.msra.mxu0 %v5077
  %5252 = vmatprep.subr.mxu0 %v5086
  %5253 = vmatpush1.msra.mxu0 %v5085
  %5254 = vmatprep.subr.mxu0 %v5094
  %5255 = vmatpush1.msra.mxu0 %v5093
  %5256 = vmatprep.subr.mxu0 %v5102
  %5257 = vmatpush1.msra.mxu0 %v5101
  %5258 = vmatprep.subr.mxu0 %v5110
  %5259 = vmatpush1.msra.mxu0 %v5109
  %5260 = vmatprep.subr.mxu0 %v5118
  %5261 = vmatpush1.msra.mxu0 %v5117
  %5262 = vmatprep.subr.mxu0 %v5126
  %5263 = vmatpush1.msra.mxu0 %v5125
  %5264 = vmatprep.subr.mxu0 0.0
  %5265 = vmatpush1.msra.mxu0 0.0
  %5266 = vmatprep.subr.mxu0 0.0
  %5267 = vmatpush1.msra.mxu0 0.0
  %5268 = vmatprep.subr.mxu0 0.0
  %5269 = vmatpush1.msra.mxu0 0.0
  %5270 = vmatprep.subr.mxu0 0.0
  %5271 = vmatpush1.msra.mxu0 0.0
  %5272 = vmatprep.subr.mxu0 0.0
  %5273 = vmatpush1.msra.mxu0 0.0
  %5274 = vmatprep.mubr.f32.mxu0 %v5137
  %5275 = vmatmul.mubr.f32.gmra.mrb[0].mxu0 %v4913
  %v5276 = vpop.f32.mrb[0].mxu0
  %v5277 = vadd.f32 %v5133, %v5276
  %v5278 = vpop.f32.mrb[0].mxu0
  %v5279 = vadd.f32 %v5133, %v5278
  %5280 = vdwg.mxu0
  %5281 = vmatprep.subr.mxu0 %v4920
  %5282 = vmatpush1.msra.mxu0 %v4919
  %5283 = vmatprep.subr.mxu0 %v4928
  %5284 = vmatpush1.msra.mxu0 %v4927
  %5285 = vmatprep.subr.mxu0 %v4936
  %5286 = vmatpush1.msra.mxu0 %v4935
  %5287 = vmatprep.subr.mxu0 %v4944
  %5288 = vmatpush1.msra.mxu0 %v4943
  %5289 = vmatprep.subr.mxu0 %v4952
  %5290 = vmatpush1.msra.mxu0 %v4951
  %5291 = vmatprep.subr.mxu0 %v4960
  %5292 = vmatpush1.msra.mxu0 %v4959
  %5293 = vmatprep.subr.mxu0 %v4968
  %5294 = vmatpush1.msra.mxu0 %v4967
  %5295 = vmatprep.subr.mxu0 %v4976
  %5296 = vmatpush1.msra.mxu0 %v4975
  %5297 = vmatprep.subr.mxu0 %v4984
  %5298 = vmatpush1.msra.mxu0 %v4983
  %5299 = vmatprep.subr.mxu0 %v4992
  %5300 = vmatpush1.msra.mxu0 %v4991
  %5301 = vmatprep.subr.mxu0 %v5000
  %5302 = vmatpush1.msra.mxu0 %v4999
  %5303 = vmatprep.subr.mxu0 %v5008
  %5304 = vmatpush1.msra.mxu0 %v5007
  %5305 = vmatprep.subr.mxu0 %v5016
  %5306 = vmatpush1.msra.mxu0 %v5015
  %5307 = vmatprep.subr.mxu0 %v5024
  %5308 = vmatpush1.msra.mxu0 %v5023
  %5309 = vmatprep.subr.mxu0 %v5032
  %5310 = vmatpush1.msra.mxu0 %v5031
  %5311 = vmatprep.subr.mxu0 %v5040
  %5312 = vmatpush1.msra.mxu0 %v5039
  %5313 = vmatprep.subr.mxu0 %v5048
  %5314 = vmatpush1.msra.mxu0 %v5047
  %5315 = vmatprep.subr.mxu0 %v5056
  %5316 = vmatpush1.msra.mxu0 %v5055
  %5317 = vmatprep.subr.mxu0 %v5064
  %5318 = vmatpush1.msra.mxu0 %v5063
  %5319 = vmatprep.subr.mxu0 %v5072
  %5320 = vmatpush1.msra.mxu0 %v5071
  %5321 = vmatprep.subr.mxu0 %v5080
  %5322 = vmatpush1.msra.mxu0 %v5079
  %5323 = vmatprep.subr.mxu0 %v5088
  %5324 = vmatpush1.msra.mxu0 %v5087
  %5325 = vmatprep.subr.mxu0 %v5096
  %5326 = vmatpush1.msra.mxu0 %v5095
  %5327 = vmatprep.subr.mxu0 %v5104
  %5328 = vmatpush1.msra.mxu0 %v5103
  %5329 = vmatprep.subr.mxu0 %v5112
  %5330 = vmatpush1.msra.mxu0 %v5111
  %5331 = vmatprep.subr.mxu0 %v5120
  %5332 = vmatpush1.msra.mxu0 %v5119
  %5333 = vmatprep.subr.mxu0 %v5128
  %5334 = vmatpush1.msra.mxu0 %v5127
  %5335 = vmatprep.subr.mxu0 0.0
  %5336 = vmatpush1.msra.mxu0 0.0
  %5337 = vmatprep.subr.mxu0 0.0
  %5338 = vmatpush1.msra.mxu0 0.0
  %5339 = vmatprep.subr.mxu0 0.0
  %5340 = vmatpush1.msra.mxu0 0.0
  %5341 = vmatprep.subr.mxu0 0.0
  %5342 = vmatpush1.msra.mxu0 0.0
  %5343 = vmatprep.subr.mxu0 0.0
  %5344 = vmatpush1.msra.mxu0 0.0
  %5345 = vmatprep.mubr.f32.mxu0 %v5137
  %5346 = vmatmul.mubr.f32.gmra.mrb[0].mxu0 %v4913
  %v5347 = vpop.f32.mrb[0].mxu0
  %v5348 = vadd.f32 %v5133, %v5347
  %v5349 = vpop.f32.mrb[0].mxu0
  %v5350 = vadd.f32 %v5133, %v5349
  %5351 = vdwg.mxu0
  %5352 = vmatprep.subr.mxu0 %v4922
  %5353 = vmatpush1.msra.mxu0 %v4921
  %5354 = vmatprep.subr.mxu0 %v4930
  %5355 = vmatpush1.msra.mxu0 %v4929
  %5356 = vmatprep.subr.mxu0 %v4938
  %5357 = vmatpush1.msra.mxu0 %v4937
  %5358 = vmatprep.subr.mxu0 %v4946
  %5359 = vmatpush1.msra.mxu0 %v4945
  %5360 = vmatprep.subr.mxu0 %v4954
  %5361 = vmatpush1.msra.mxu0 %v4953
  %5362 = vmatprep.subr.mxu0 %v4962
  %5363 = vmatpush1.msra.mxu0 %v4961
  %5364 = vmatprep.subr.mxu0 %v4970
  %5365 = vmatpush1.msra.mxu0 %v4969
  %5366 = vmatprep.subr.mxu0 %v4978
  %5367 = vmatpush1.msra.mxu0 %v4977
  %5368 = vmatprep.subr.mxu0 %v4986
  %5369 = vmatpush1.msra.mxu0 %v4985
  %5370 = vmatprep.subr.mxu0 %v4994
  %5371 = vmatpush1.msra.mxu0 %v4993
  %5372 = vmatprep.subr.mxu0 %v5002
  %5373 = vmatpush1.msra.mxu0 %v5001
  %5374 = vmatprep.subr.mxu0 %v5010
  %5375 = vmatpush1.msra.mxu0 %v5009
  %5376 = vmatprep.subr.mxu0 %v5018
  %5377 = vmatpush1.msra.mxu0 %v5017
  %5378 = vmatprep.subr.mxu0 %v5026
  %5379 = vmatpush1.msra.mxu0 %v5025
  %5380 = vmatprep.subr.mxu0 %v5034
  %5381 = vmatpush1.msra.mxu0 %v5033
  %5382 = vmatprep.subr.mxu0 %v5042
  %5383 = vmatpush1.msra.mxu0 %v5041
  %5384 = vmatprep.subr.mxu0 %v5050
  %5385 = vmatpush1.msra.mxu0 %v5049
  %5386 = vmatprep.subr.mxu0 %v5058
  %5387 = vmatpush1.msra.mxu0 %v5057
  %5388 = vmatprep.subr.mxu0 %v5066
  %5389 = vmatpush1.msra.mxu0 %v5065
  %5390 = vmatprep.subr.mxu0 %v5074
  %5391 = vmatpush1.msra.mxu0 %v5073
  %5392 = vmatprep.subr.mxu0 %v5082
  %5393 = vmatpush1.msra.mxu0 %v5081
  %5394 = vmatprep.subr.mxu0 %v5090
  %5395 = vmatpush1.msra.mxu0 %v5089
  %5396 = vmatprep.subr.mxu0 %v5098
  %5397 = vmatpush1.msra.mxu0 %v5097
  %5398 = vmatprep.subr.mxu0 %v5106
  %5399 = vmatpush1.msra.mxu0 %v5105
  %5400 = vmatprep.subr.mxu0 %v5114
  %5401 = vmatpush1.msra.mxu0 %v5113
  %5402 = vmatprep.subr.mxu0 %v5122
  %5403 = vmatpush1.msra.mxu0 %v5121
  %5404 = vmatprep.subr.mxu0 %v5130
  %5405 = vmatpush1.msra.mxu0 %v5129
  %5406 = vmatprep.subr.mxu0 0.0
  %5407 = vmatpush1.msra.mxu0 0.0
  %5408 = vmatprep.subr.mxu0 0.0
  %5409 = vmatpush1.msra.mxu0 0.0
  %5410 = vmatprep.subr.mxu0 0.0
  %5411 = vmatpush1.msra.mxu0 0.0
  %5412 = vmatprep.subr.mxu0 0.0
  %5413 = vmatpush1.msra.mxu0 0.0
  %5414 = vmatprep.subr.mxu0 0.0
  %5415 = vmatpush1.msra.mxu0 0.0
  %5416 = vmatprep.mubr.f32.mxu0 %v5137
  %5417 = vmatmul.mubr.f32.gmra.mrb[0].mxu0 %v4913
  %v5418 = vpop.f32.mrb[0].mxu0
  %v5419 = vadd.f32 %v5133, %v5418
  %v5420 = vpop.f32.mrb[0].mxu0
  %v5421 = vadd.f32 %v5133, %v5420
  %5422 = vdwg.mxu0
  %v5423 = vadd.f32 %v5206, %v5208
  %v5424 = vadd.f32 %v5423, %v5277
  %v5425 = vadd.f32 %v5424, %v5279
  %v5426 = vadd.f32 %v5425, %v5348
  %v5427 = vadd.f32 %v5426, %v5350
  %v5428 = vadd.f32 %v5427, %v5419
  %v5429 = vadd.f32 %v5428, %v5421
  %5430 = vadd.xlane.f32.xlu0 %v5429
  %v5431 = vpop.xlane.xlu0 %5430
  %v5432 = vmul.f32 %v5431, 0.0009765625
  %v5433 = vsub.f32 %v5206, %v5432
  %v5434 = vsub.f32 %v5208, %v5432
  %v5435 = vsub.f32 %v5277, %v5432
  %v5436 = vsub.f32 %v5279, %v5432
  %v5437 = vsub.f32 %v5348, %v5432
  %v5438 = vsub.f32 %v5350, %v5432
  %v5439 = vsub.f32 %v5419, %v5432
  %v5440 = vsub.f32 %v5421, %v5432
  %v5441 = vmul.f32 %v5433, %v5433
  %v5442 = vmul.f32 %v5434, %v5434
  %v5443 = vmul.f32 %v5435, %v5435
  %v5444 = vmul.f32 %v5436, %v5436
  %v5445 = vmul.f32 %v5437, %v5437
  %v5446 = vmul.f32 %v5438, %v5438
  %v5447 = vmul.f32 %v5439, %v5439
  %v5448 = vmul.f32 %v5440, %v5440
  %v5449 = vadd.f32 %v5441, %v5442
  %v5450 = vadd.f32 %v5449, %v5443
  %v5451 = vadd.f32 %v5450, %v5444
  %v5452 = vadd.f32 %v5451, %v5445
  %v5453 = vadd.f32 %v5452, %v5446
  %v5454 = vadd.f32 %v5453, %v5447
  %v5455 = vadd.f32 %v5454, %v5448
  %5456 = vadd.xlane.f32.xlu0 %v5455
  %v5457 = vpop.xlane.xlu0 %5456
  %v5458 = vmul.f32 %v5457, 0.0009765625
  %v5459 = vadd.f32 %v5458, 1e-05
  %v5460 = vrsqrt.pop %v5459
  %v5461 = vmul.f32 %v47, %v5460
  %5463 = vset.pattern.permute.xlu0 2
  %5464 = vperm.xlu0 %5463, %v5461
  %v5465 = vpop.permute.xlu0 %5464
  %v5467 = vmul.f32 %v5433, %v5465
  %v5468 = vmul.f32 %v5434, %v5465
  %v5469 = vmul.f32 %v5435, %v5465
  %v5470 = vmul.f32 %v5436, %v5465
  %v5471 = vmul.f32 %v5437, %v5465
  %v5472 = vmul.f32 %v5438, %v5465
  %v5473 = vmul.f32 %v5439, %v5465
  %v5474 = vmul.f32 %v5440, %v5465
  %5475 = vset.pattern.permute.xlu0 3
  %5476 = vperm.xlu0 %5475, %v47
  %v5477 = vpop.permute.xlu0 %5476
  %v5479 = vadd.f32 %v5467, %v5477
  %v5480 = vadd.f32 %v5468, %v5477
  %v5481 = vadd.f32 %v5469, %v5477
  %v5482 = vadd.f32 %v5470, %v5477
  %v5483 = vadd.f32 %v5471, %v5477
  %v5484 = vadd.f32 %v5472, %v5477
  %v5485 = vadd.f32 %v5473, %v5477
  %v5486 = vadd.f32 %v5474, %v5477
  %v5487 = vmax.f32 %v5479, 0.0
  %v5488 = vmax.f32 %v5480, 0.0
  %v5489 = vmax.f32 %v5481, 0.0
  %v5490 = vmax.f32 %v5482, 0.0
  %v5491 = vmax.f32 %v5483, 0.0
  %v5492 = vmax.f32 %v5484, 0.0
  %v5493 = vmax.f32 %v5485, 0.0
  %v5494 = vmax.f32 %v5486, 0.0
  %v5495 = vld [vmem:[%s5] sm:$0xff]
  %5496 = vst [vmem:[#allocation2 + $0x8] sm:$0xff] %v5487
  %5497 = vst [vmem:[#allocation2 + $0x10] sm:$0xff] %v5488
  %5498 = vst [vmem:[#allocation2 + $0x18] sm:$0xff] %v5489
  %5499 = vst [vmem:[#allocation2 + $0x20] sm:$0xff] %v5490
  %5500 = vst [vmem:[#allocation2 + $0x28] sm:$0xff] %v5491
  %5501 = vst [vmem:[#allocation2 + $0x30] sm:$0xff] %v5492
  %5502 = vst [vmem:[#allocation2 + $0x38] sm:$0xff] %v5493
  %5503 = vst [vmem:[#allocation2 + $0x40] sm:$0xff] %v5494
  %v5504 = vld [vmem:[#allocation2] sm:$0xff]
  %v5505 = vld [vmem:[#allocation2 + $0x8] sm:$0xff]
  %v5506 = vld [vmem:[#allocation2 + $0x10] sm:$0xff]
  %v5507 = vld [vmem:[#allocation2 + $0x18] sm:$0xff]
  %v5508 = vld [vmem:[#allocation2 + $0x20] sm:$0xff]
  %v5509 = vld [vmem:[#allocation2 + $0x28] sm:$0xff]
  %v5510 = vld [vmem:[#allocation2 + $0x30] sm:$0xff]
  %v5511 = vld [vmem:[#allocation2 + $0x38] sm:$0xff]
  %v5512 = vld [vmem:[#allocation2 + $0x40] sm:$0xff]
  %v5513 = vld [vmem:[%s6] ss:$8 sm:$0xf]
  %v5514 = vld [vmem:[%s6] ss:$8 sm:$0xf0]
  %v5515 = vor.u32 %v5513, %v5514
  %v5517 = vlaneseq
  %v5518 = vshrl.u32 %v5517, 7
  %v5519 = vsub.s32 0, %v5518
  %v5520 = vrot.slane %v5515, %v5519
  %v5521 = vlaneseq
  %v5522 = vshrl.u32 %v5521, 7
  %v5523 = vsub.s32 1, %v5522
  %v5524 = vrot.slane %v5515, %v5523
  %v5525 = vlaneseq
  %v5526 = vshrl.u32 %v5525, 7
  %v5527 = vsub.s32 2, %v5526
  %v5528 = vrot.slane %v5515, %v5527
  %v5529 = vlaneseq
  %v5530 = vshrl.u32 %v5529, 7
  %v5531 = vsub.s32 3, %v5530
  %v5532 = vrot.slane %v5515, %v5531
  %v5533 = vlaneseq
  %v5534 = vshrl.u32 %v5533, 7
  %v5535 = vsub.s32 4, %v5534
  %v5536 = vrot.slane %v5515, %v5535
  %v5537 = vlaneseq
  %v5538 = vshrl.u32 %v5537, 7
  %v5539 = vsub.s32 5, %v5538
  %v5540 = vrot.slane %v5515, %v5539
  %v5541 = vlaneseq
  %v5542 = vshrl.u32 %v5541, 7
  %v5543 = vsub.s32 6, %v5542
  %v5544 = vrot.slane %v5515, %v5543
  %v5545 = vlaneseq
  %v5546 = vshrl.u32 %v5545, 7
  %v5547 = vsub.s32 7, %v5546
  %v5548 = vrot.slane %v5515, %v5547
  %5549 = vrot.lane.b32.xlu0 %v5520, 55
  %v5550 = vpop.permute.xlu0 %5549
  %5551 = vrot.lane.b32.xlu0 %v5524, 55
  %v5552 = vpop.permute.xlu0 %5551
  %5553 = vrot.lane.b32.xlu0 %v5528, 55
  %v5554 = vpop.permute.xlu0 %5553
  %5555 = vrot.lane.b32.xlu0 %v5532, 55
  %v5556 = vpop.permute.xlu0 %5555
  %5557 = vrot.lane.b32.xlu0 %v5536, 55
  %v5558 = vpop.permute.xlu0 %5557
  %5559 = vrot.lane.b32.xlu0 %v5540, 55
  %v5560 = vpop.permute.xlu0 %5559
  %5561 = vrot.lane.b32.xlu0 %v5544, 55
  %v5562 = vpop.permute.xlu0 %5561
  %5563 = vrot.lane.b32.xlu0 %v5548, 55
  %v5564 = vpop.permute.xlu0 %5563
  %v5565 = vsel %vm1363, %v5550, %v5552
  %v5566 = vsel %vm1363, %v5552, %v5554
  %v5567 = vsel %vm1363, %v5554, %v5556
  %v5568 = vsel %vm1363, %v5556, %v5558
  %v5569 = vsel %vm1363, %v5558, %v5560
  %v5570 = vsel %vm1363, %v5560, %v5562
  %v5571 = vsel %vm1363, %v5562, %v5564
  %v5581 = vmul.f32 %v5504, %v5550
  %v5582 = vmul.f32 %v5505, %v5565
  %v5583 = vmul.f32 %v5506, %v5566
  %v5584 = vmul.f32 %v5507, %v5567
  %v5585 = vmul.f32 %v5508, %v5568
  %v5586 = vmul.f32 %v5509, %v5569
  %v5587 = vmul.f32 %v5510, %v5570
  %v5588 = vmul.f32 %v5511, %v5571
  %v5589 = vmul.f32 %v5512, %v5564
  %5599 = vrot.lane.b32.xlu0 %v5581, 73
  %v5600 = vpop.permute.xlu0 %5599
  %5601 = vrot.lane.b32.xlu0 %v5582, 73
  %v5602 = vpop.permute.xlu0 %5601
  %5603 = vrot.lane.b32.xlu0 %v5583, 73
  %v5604 = vpop.permute.xlu0 %5603
  %5605 = vrot.lane.b32.xlu0 %v5584, 73
  %v5606 = vpop.permute.xlu0 %5605
  %5607 = vrot.lane.b32.xlu0 %v5585, 73
  %v5608 = vpop.permute.xlu0 %5607
  %5609 = vrot.lane.b32.xlu0 %v5586, 73
  %v5610 = vpop.permute.xlu0 %5609
  %5611 = vrot.lane.b32.xlu0 %v5587, 73
  %v5612 = vpop.permute.xlu0 %5611
  %5613 = vrot.lane.b32.xlu0 %v5588, 73
  %v5614 = vpop.permute.xlu0 %5613
  %5615 = vrot.lane.b32.xlu0 %v5589, 73
  %v5616 = vpop.permute.xlu0 %5615
  %v5617 = vsel %vm1416, %v5600, %v5602
  %v5618 = vsel %vm1416, %v5602, %v5604
  %v5619 = vsel %vm1416, %v5604, %v5606
  %v5620 = vsel %vm1416, %v5606, %v5608
  %v5621 = vsel %vm1416, %v5608, %v5610
  %v5622 = vsel %vm1416, %v5610, %v5612
  %v5623 = vsel %vm1416, %v5612, %v5614
  %v5624 = vsel %vm1416, %v5614, %v5616
  %5633 = vst [vmem:[#allocation3] sm:$0xff] %v5617
  %5634 = vst [vmem:[#allocation3 + $0x8] sm:$0xff] %v5618
  %5635 = vst [vmem:[#allocation3 + $0x10] sm:$0xff] %v5619
  %5636 = vst [vmem:[#allocation3 + $0x18] sm:$0xff] %v5620
  %5637 = vst [vmem:[#allocation3 + $0x20] sm:$0xff] %v5621
  %5638 = vst [vmem:[#allocation3 + $0x28] sm:$0xff] %v5622
  %5639 = vst [vmem:[#allocation3 + $0x30] sm:$0xff] %v5623
  %5640 = vst [vmem:[#allocation3 + $0x38] sm:$0xff] %v5624
  %v5641 = vld [vmem:[#allocation2] sm:$0xff]
  %v5642 = vld [vmem:[#allocation2 + $0x8] sm:$0xff]
  %v5643 = vld [vmem:[#allocation2 + $0x10] sm:$0xff]
  %v5644 = vld [vmem:[#allocation2 + $0x18] sm:$0xff]
  %v5645 = vld [vmem:[#allocation2 + $0x20] sm:$0xff]
  %v5646 = vld [vmem:[#allocation2 + $0x28] sm:$0xff]
  %v5647 = vld [vmem:[#allocation2 + $0x30] sm:$0xff]
  %v5648 = vld [vmem:[#allocation2 + $0x38] sm:$0xff]
  %v5649 = vld [vmem:[#allocation2 + $0x40] sm:$0xff]
  %v5650 = vld [vmem:[%s1450] ss:$8 sm:$0xf]
  %v5651 = vld [vmem:[%s1450] ss:$8 sm:$0xf0]
  %v5652 = vor.u32 %v5650, %v5651
  %v5654 = vlaneseq
  %v5655 = vshrl.u32 %v5654, 7
  %v5656 = vsub.s32 0, %v5655
  %v5657 = vrot.slane %v5652, %v5656
  %v5658 = vlaneseq
  %v5659 = vshrl.u32 %v5658, 7
  %v5660 = vsub.s32 1, %v5659
  %v5661 = vrot.slane %v5652, %v5660
  %v5662 = vlaneseq
  %v5663 = vshrl.u32 %v5662, 7
  %v5664 = vsub.s32 2, %v5663
  %v5665 = vrot.slane %v5652, %v5664
  %v5666 = vlaneseq
  %v5667 = vshrl.u32 %v5666, 7
  %v5668 = vsub.s32 3, %v5667
  %v5669 = vrot.slane %v5652, %v5668
  %v5670 = vlaneseq
  %v5671 = vshrl.u32 %v5670, 7
  %v5672 = vsub.s32 4, %v5671
  %v5673 = vrot.slane %v5652, %v5672
  %v5674 = vlaneseq
  %v5675 = vshrl.u32 %v5674, 7
  %v5676 = vsub.s32 5, %v5675
  %v5677 = vrot.slane %v5652, %v5676
  %v5678 = vlaneseq
  %v5679 = vshrl.u32 %v5678, 7
  %v5680 = vsub.s32 6, %v5679
  %v5681 = vrot.slane %v5652, %v5680
  %v5682 = vlaneseq
  %v5683 = vshrl.u32 %v5682, 7
  %v5684 = vsub.s32 7, %v5683
  %v5685 = vrot.slane %v5652, %v5684
  %5686 = vrot.lane.b32.xlu0 %v5657, 56
  %v5687 = vpop.permute.xlu0 %5686
  %5688 = vrot.lane.b32.xlu0 %v5661, 56
  %v5689 = vpop.permute.xlu0 %5688
  %5690 = vrot.lane.b32.xlu0 %v5665, 56
  %v5691 = vpop.permute.xlu0 %5690
  %5692 = vrot.lane.b32.xlu0 %v5669, 56
  %v5693 = vpop.permute.xlu0 %5692
  %5694 = vrot.lane.b32.xlu0 %v5673, 56
  %v5695 = vpop.permute.xlu0 %5694
  %5696 = vrot.lane.b32.xlu0 %v5677, 56
  %v5697 = vpop.permute.xlu0 %5696
  %5698 = vrot.lane.b32.xlu0 %v5681, 56
  %v5699 = vpop.permute.xlu0 %5698
  %5700 = vrot.lane.b32.xlu0 %v5685, 56
  %v5701 = vpop.permute.xlu0 %5700
  %v5702 = vsel %vm1503, %v5687, %v5689
  %v5703 = vsel %vm1503, %v5689, %v5691
  %v5704 = vsel %vm1503, %v5691, %v5693
  %v5705 = vsel %vm1503, %v5693, %v5695
  %v5706 = vsel %vm1503, %v5695, %v5697
  %v5707 = vsel %vm1503, %v5697, %v5699
  %v5708 = vsel %vm1503, %v5699, %v5701
  %v5718 = vmul.f32 %v5641, %v5687
  %v5719 = vmul.f32 %v5642, %v5702
  %v5720 = vmul.f32 %v5643, %v5703
  %v5721 = vmul.f32 %v5644, %v5704
  %v5722 = vmul.f32 %v5645, %v5705
  %v5723 = vmul.f32 %v5646, %v5706
  %v5724 = vmul.f32 %v5647, %v5707
  %v5725 = vmul.f32 %v5648, %v5708
  %v5726 = vmul.f32 %v5649, %v5701
  %5736 = vrot.lane.b32.xlu0 %v5718, 72
  %v5737 = vpop.permute.xlu0 %5736
  %5738 = vrot.lane.b32.xlu0 %v5719, 72
  %v5739 = vpop.permute.xlu0 %5738
  %5740 = vrot.lane.b32.xlu0 %v5720, 72
  %v5741 = vpop.permute.xlu0 %5740
  %5742 = vrot.lane.b32.xlu0 %v5721, 72
  %v5743 = vpop.permute.xlu0 %5742
  %5744 = vrot.lane.b32.xlu0 %v5722, 72
  %v5745 = vpop.permute.xlu0 %5744
  %5746 = vrot.lane.b32.xlu0 %v5723, 72
  %v5747 = vpop.permute.xlu0 %5746
  %5748 = vrot.lane.b32.xlu0 %v5724, 72
  %v5749 = vpop.permute.xlu0 %5748
  %5750 = vrot.lane.b32.xlu0 %v5725, 72
  %v5751 = vpop.permute.xlu0 %5750
  %5752 = vrot.lane.b32.xlu0 %v5726, 72
  %v5753 = vpop.permute.xlu0 %5752
  %v5754 = vsel %vm1556, %v5737, %v5739
  %v5755 = vsel %vm1556, %v5739, %v5741
  %v5756 = vsel %vm1556, %v5741, %v5743
  %v5757 = vsel %vm1556, %v5743, %v5745
  %v5758 = vsel %vm1556, %v5745, %v5747
  %v5759 = vsel %vm1556, %v5747, %v5749
  %v5760 = vsel %vm1556, %v5749, %v5751
  %v5761 = vsel %vm1556, %v5751, %v5753
  %5770 = vst [vmem:[#allocation3 + $0x40] sm:$0xff] %v5754
  %5771 = vst [vmem:[#allocation3 + $0x48] sm:$0xff] %v5755
  %5772 = vst [vmem:[#allocation3 + $0x50] sm:$0xff] %v5756
  %5773 = vst [vmem:[#allocation3 + $0x58] sm:$0xff] %v5757
  %5774 = vst [vmem:[#allocation3 + $0x60] sm:$0xff] %v5758
  %5775 = vst [vmem:[#allocation3 + $0x68] sm:$0xff] %v5759
  %5776 = vst [vmem:[#allocation3 + $0x70] sm:$0xff] %v5760
  %5777 = vst [vmem:[#allocation3 + $0x78] sm:$0xff] %v5761
  %v5778 = vld [vmem:[#allocation2] sm:$0xff]
  %v5779 = vld [vmem:[#allocation2 + $0x8] sm:$0xff]
  %v5780 = vld [vmem:[#allocation2 + $0x10] sm:$0xff]
  %v5781 = vld [vmem:[#allocation2 + $0x18] sm:$0xff]
  %v5782 = vld [vmem:[#allocation2 + $0x20] sm:$0xff]
  %v5783 = vld [vmem:[#allocation2 + $0x28] sm:$0xff]
  %v5784 = vld [vmem:[#allocation2 + $0x30] sm:$0xff]
  %v5785 = vld [vmem:[#allocation2 + $0x38] sm:$0xff]
  %v5786 = vld [vmem:[#allocation2 + $0x40] sm:$0xff]
  %v5787 = vld [vmem:[%s1590] ss:$8 sm:$0xf]
  %v5788 = vld [vmem:[%s1590] ss:$8 sm:$0xf0]
  %v5789 = vor.u32 %v5787, %v5788
  %v5791 = vlaneseq
  %v5792 = vshrl.u32 %v5791, 7
  %v5793 = vsub.s32 0, %v5792
  %v5794 = vrot.slane %v5789, %v5793
  %v5795 = vlaneseq
  %v5796 = vshrl.u32 %v5795, 7
  %v5797 = vsub.s32 1, %v5796
  %v5798 = vrot.slane %v5789, %v5797
  %v5799 = vlaneseq
  %v5800 = vshrl.u32 %v5799, 7
  %v5801 = vsub.s32 2, %v5800
  %v5802 = vrot.slane %v5789, %v5801
  %v5803 = vlaneseq
  %v5804 = vshrl.u32 %v5803, 7
  %v5805 = vsub.s32 3, %v5804
  %v5806 = vrot.slane %v5789, %v5805
  %v5807 = vlaneseq
  %v5808 = vshrl.u32 %v5807, 7
  %v5809 = vsub.s32 4, %v5808
  %v5810 = vrot.slane %v5789, %v5809
  %v5811 = vlaneseq
  %v5812 = vshrl.u32 %v5811, 7
  %v5813 = vsub.s32 5, %v5812
  %v5814 = vrot.slane %v5789, %v5813
  %v5815 = vlaneseq
  %v5816 = vshrl.u32 %v5815, 7
  %v5817 = vsub.s32 6, %v5816
  %v5818 = vrot.slane %v5789, %v5817
  %v5819 = vlaneseq
  %v5820 = vshrl.u32 %v5819, 7
  %v5821 = vsub.s32 7, %v5820
  %v5822 = vrot.slane %v5789, %v5821
  %5823 = vrot.lane.b32.xlu0 %v5794, 57
  %v5824 = vpop.permute.xlu0 %5823
  %5825 = vrot.lane.b32.xlu0 %v5798, 57
  %v5826 = vpop.permute.xlu0 %5825
  %5827 = vrot.lane.b32.xlu0 %v5802, 57
  %v5828 = vpop.permute.xlu0 %5827
  %5829 = vrot.lane.b32.xlu0 %v5806, 57
  %v5830 = vpop.permute.xlu0 %5829
  %5831 = vrot.lane.b32.xlu0 %v5810, 57
  %v5832 = vpop.permute.xlu0 %5831
  %5833 = vrot.lane.b32.xlu0 %v5814, 57
  %v5834 = vpop.permute.xlu0 %5833
  %5835 = vrot.lane.b32.xlu0 %v5818, 57
  %v5836 = vpop.permute.xlu0 %5835
  %5837 = vrot.lane.b32.xlu0 %v5822, 57
  %v5838 = vpop.permute.xlu0 %5837
  %v5839 = vsel %vm1643, %v5824, %v5826
  %v5840 = vsel %vm1643, %v5826, %v5828
  %v5841 = vsel %vm1643, %v5828, %v5830
  %v5842 = vsel %vm1643, %v5830, %v5832
  %v5843 = vsel %vm1643, %v5832, %v5834
  %v5844 = vsel %vm1643, %v5834, %v5836
  %v5845 = vsel %vm1643, %v5836, %v5838
  %v5855 = vmul.f32 %v5778, %v5824
  %v5856 = vmul.f32 %v5779, %v5839
  %v5857 = vmul.f32 %v5780, %v5840
  %v5858 = vmul.f32 %v5781, %v5841
  %v5859 = vmul.f32 %v5782, %v5842
  %v5860 = vmul.f32 %v5783, %v5843
  %v5861 = vmul.f32 %v5784, %v5844
  %v5862 = vmul.f32 %v5785, %v5845
  %v5863 = vmul.f32 %v5786, %v5838
  %5873 = vrot.lane.b32.xlu0 %v5855, 71
  %v5874 = vpop.permute.xlu0 %5873
  %5875 = vrot.lane.b32.xlu0 %v5856, 71
  %v5876 = vpop.permute.xlu0 %5875
  %5877 = vrot.lane.b32.xlu0 %v5857, 71
  %v5878 = vpop.permute.xlu0 %5877
  %5879 = vrot.lane.b32.xlu0 %v5858, 71
  %v5880 = vpop.permute.xlu0 %5879
  %5881 = vrot.lane.b32.xlu0 %v5859, 71
  %v5882 = vpop.permute.xlu0 %5881
  %5883 = vrot.lane.b32.xlu0 %v5860, 71
  %v5884 = vpop.permute.xlu0 %5883
  %5885 = vrot.lane.b32.xlu0 %v5861, 71
  %v5886 = vpop.permute.xlu0 %5885
  %5887 = vrot.lane.b32.xlu0 %v5862, 71
  %v5888 = vpop.permute.xlu0 %5887
  %5889 = vrot.lane.b32.xlu0 %v5863, 71
  %v5890 = vpop.permute.xlu0 %5889
  %v5891 = vsel %vm1696, %v5874, %v5876
  %v5892 = vsel %vm1696, %v5876, %v5878
  %v5893 = vsel %vm1696, %v5878, %v5880
  %v5894 = vsel %vm1696, %v5880, %v5882
  %v5895 = vsel %vm1696, %v5882, %v5884
  %v5896 = vsel %vm1696, %v5884, %v5886
  %v5897 = vsel %vm1696, %v5886, %v5888
  %v5898 = vsel %vm1696, %v5888, %v5890
  %5907 = vst [vmem:[#allocation3 + $0x80] sm:$0xff] %v5891
  %5908 = vst [vmem:[#allocation3 + $0x88] sm:$0xff] %v5892
  %5909 = vst [vmem:[#allocation3 + $0x90] sm:$0xff] %v5893
  %5910 = vst [vmem:[#allocation3 + $0x98] sm:$0xff] %v5894
  %5911 = vst [vmem:[#allocation3 + $0xa0] sm:$0xff] %v5895
  %5912 = vst [vmem:[#allocation3 + $0xa8] sm:$0xff] %v5896
  %5913 = vst [vmem:[#allocation3 + $0xb0] sm:$0xff] %v5897
  %5914 = vst [vmem:[#allocation3 + $0xb8] sm:$0xff] %v5898
  %v5915 = vld [vmem:[#allocation2] sm:$0xff]
  %v5916 = vld [vmem:[#allocation2 + $0x8] sm:$0xff]
  %v5917 = vld [vmem:[#allocation2 + $0x10] sm:$0xff]
  %v5918 = vld [vmem:[#allocation2 + $0x18] sm:$0xff]
  %v5919 = vld [vmem:[#allocation2 + $0x20] sm:$0xff]
  %v5920 = vld [vmem:[#allocation2 + $0x28] sm:$0xff]
  %v5921 = vld [vmem:[#allocation2 + $0x30] sm:$0xff]
  %v5922 = vld [vmem:[#allocation2 + $0x38] sm:$0xff]
  %v5923 = vld [vmem:[#allocation2 + $0x40] sm:$0xff]
  %v5924 = vld [vmem:[%s1730] ss:$8 sm:$0xf]
  %v5925 = vld [vmem:[%s1730] ss:$8 sm:$0xf0]
  %v5926 = vor.u32 %v5924, %v5925
  %v5928 = vlaneseq
  %v5929 = vshrl.u32 %v5928, 7
  %v5930 = vsub.s32 0, %v5929
  %v5931 = vrot.slane %v5926, %v5930
  %v5932 = vlaneseq
  %v5933 = vshrl.u32 %v5932, 7
  %v5934 = vsub.s32 1, %v5933
  %v5935 = vrot.slane %v5926, %v5934
  %v5936 = vlaneseq
  %v5937 = vshrl.u32 %v5936, 7
  %v5938 = vsub.s32 2, %v5937
  %v5939 = vrot.slane %v5926, %v5938
  %v5940 = vlaneseq
  %v5941 = vshrl.u32 %v5940, 7
  %v5942 = vsub.s32 3, %v5941
  %v5943 = vrot.slane %v5926, %v5942
  %v5944 = vlaneseq
  %v5945 = vshrl.u32 %v5944, 7
  %v5946 = vsub.s32 4, %v5945
  %v5947 = vrot.slane %v5926, %v5946
  %v5948 = vlaneseq
  %v5949 = vshrl.u32 %v5948, 7
  %v5950 = vsub.s32 5, %v5949
  %v5951 = vrot.slane %v5926, %v5950
  %v5952 = vlaneseq
  %v5953 = vshrl.u32 %v5952, 7
  %v5954 = vsub.s32 6, %v5953
  %v5955 = vrot.slane %v5926, %v5954
  %v5956 = vlaneseq
  %v5957 = vshrl.u32 %v5956, 7
  %v5958 = vsub.s32 7, %v5957
  %v5959 = vrot.slane %v5926, %v5958
  %5960 = vrot.lane.b32.xlu0 %v5931, 63
  %v5961 = vpop.permute.xlu0 %5960
  %5962 = vrot.lane.b32.xlu0 %v5935, 63
  %v5963 = vpop.permute.xlu0 %5962
  %5964 = vrot.lane.b32.xlu0 %v5939, 63
  %v5965 = vpop.permute.xlu0 %5964
  %5966 = vrot.lane.b32.xlu0 %v5943, 63
  %v5967 = vpop.permute.xlu0 %5966
  %5968 = vrot.lane.b32.xlu0 %v5947, 63
  %v5969 = vpop.permute.xlu0 %5968
  %5970 = vrot.lane.b32.xlu0 %v5951, 63
  %v5971 = vpop.permute.xlu0 %5970
  %5972 = vrot.lane.b32.xlu0 %v5955, 63
  %v5973 = vpop.permute.xlu0 %5972
  %5974 = vrot.lane.b32.xlu0 %v5959, 63
  %v5975 = vpop.permute.xlu0 %5974
  %v5976 = vsel %vm1783, %v5961, %v5963
  %v5977 = vsel %vm1783, %v5963, %v5965
  %v5978 = vsel %vm1783, %v5965, %v5967
  %v5979 = vsel %vm1783, %v5967, %v5969
  %v5980 = vsel %vm1783, %v5969, %v5971
  %v5981 = vsel %vm1783, %v5971, %v5973
  %v5982 = vsel %vm1783, %v5973, %v5975
  %v5992 = vmul.f32 %v5915, %v5961
  %v5993 = vmul.f32 %v5916, %v5976
  %v5994 = vmul.f32 %v5917, %v5977
  %v5995 = vmul.f32 %v5918, %v5978
  %v5996 = vmul.f32 %v5919, %v5979
  %v5997 = vmul.f32 %v5920, %v5980
  %v5998 = vmul.f32 %v5921, %v5981
  %v5999 = vmul.f32 %v5922, %v5982
  %v6000 = vmul.f32 %v5923, %v5975
  %6010 = vrot.lane.b32.xlu0 %v5992, 65
  %v6011 = vpop.permute.xlu0 %6010
  %6012 = vrot.lane.b32.xlu0 %v5993, 65
  %v6013 = vpop.permute.xlu0 %6012
  %6014 = vrot.lane.b32.xlu0 %v5994, 65
  %v6015 = vpop.permute.xlu0 %6014
  %6016 = vrot.lane.b32.xlu0 %v5995, 65
  %v6017 = vpop.permute.xlu0 %6016
  %6018 = vrot.lane.b32.xlu0 %v5996, 65
  %v6019 = vpop.permute.xlu0 %6018
  %6020 = vrot.lane.b32.xlu0 %v5997, 65
  %v6021 = vpop.permute.xlu0 %6020
  %6022 = vrot.lane.b32.xlu0 %v5998, 65
  %v6023 = vpop.permute.xlu0 %6022
  %6024 = vrot.lane.b32.xlu0 %v5999, 65
  %v6025 = vpop.permute.xlu0 %6024
  %6026 = vrot.lane.b32.xlu0 %v6000, 65
  %v6027 = vpop.permute.xlu0 %6026
  %v6028 = vsel %vm1836, %v6011, %v6013
  %v6029 = vsel %vm1836, %v6013, %v6015
  %v6030 = vsel %vm1836, %v6015, %v6017
  %v6031 = vsel %vm1836, %v6017, %v6019
  %v6032 = vsel %vm1836, %v6019, %v6021
  %v6033 = vsel %vm1836, %v6021, %v6023
  %v6034 = vsel %vm1836, %v6023, %v6025
  %v6035 = vsel %vm1836, %v6025, %v6027
  %6044 = vst [vmem:[#allocation3 + $0xc0] sm:$0xff] %v6028
  %6045 = vst [vmem:[#allocation3 + $0xc8] sm:$0xff] %v6029
  %6046 = vst [vmem:[#allocation3 + $0xd0] sm:$0xff] %v6030
  %6047 = vst [vmem:[#allocation3 + $0xd8] sm:$0xff] %v6031
  %6048 = vst [vmem:[#allocation3 + $0xe0] sm:$0xff] %v6032
  %6049 = vst [vmem:[#allocation3 + $0xe8] sm:$0xff] %v6033
  %6050 = vst [vmem:[#allocation3 + $0xf0] sm:$0xff] %v6034
  %6051 = vst [vmem:[#allocation3 + $0xf8] sm:$0xff] %v6035
  %v6052 = vld [vmem:[#allocation2] sm:$0xff]
  %v6053 = vld [vmem:[#allocation2 + $0x8] sm:$0xff]
  %v6054 = vld [vmem:[#allocation2 + $0x10] sm:$0xff]
  %v6055 = vld [vmem:[#allocation2 + $0x18] sm:$0xff]
  %v6056 = vld [vmem:[#allocation2 + $0x20] sm:$0xff]
  %v6057 = vld [vmem:[#allocation2 + $0x28] sm:$0xff]
  %v6058 = vld [vmem:[#allocation2 + $0x30] sm:$0xff]
  %v6059 = vld [vmem:[#allocation2 + $0x38] sm:$0xff]
  %v6060 = vld [vmem:[#allocation2 + $0x40] sm:$0xff]
  %v6061 = vld [vmem:[%s1870] ss:$8 sm:$0xf]
  %v6062 = vld [vmem:[%s1870] ss:$8 sm:$0xf0]
  %v6063 = vor.u32 %v6061, %v6062
  %v6065 = vlaneseq
  %v6066 = vshrl.u32 %v6065, 7
  %v6067 = vsub.s32 0, %v6066
  %v6068 = vrot.slane %v6063, %v6067
  %v6069 = vlaneseq
  %v6070 = vshrl.u32 %v6069, 7
  %v6071 = vsub.s32 1, %v6070
  %v6072 = vrot.slane %v6063, %v6071
  %v6073 = vlaneseq
  %v6074 = vshrl.u32 %v6073, 7
  %v6075 = vsub.s32 2, %v6074
  %v6076 = vrot.slane %v6063, %v6075
  %v6077 = vlaneseq
  %v6078 = vshrl.u32 %v6077, 7
  %v6079 = vsub.s32 3, %v6078
  %v6080 = vrot.slane %v6063, %v6079
  %v6081 = vlaneseq
  %v6082 = vshrl.u32 %v6081, 7
  %v6083 = vsub.s32 4, %v6082
  %v6084 = vrot.slane %v6063, %v6083
  %v6085 = vlaneseq
  %v6086 = vshrl.u32 %v6085, 7
  %v6087 = vsub.s32 5, %v6086
  %v6088 = vrot.slane %v6063, %v6087
  %v6089 = vlaneseq
  %v6090 = vshrl.u32 %v6089, 7
  %v6091 = vsub.s32 6, %v6090
  %v6092 = vrot.slane %v6063, %v6091
  %v6093 = vlaneseq
  %v6094 = vshrl.u32 %v6093, 7
  %v6095 = vsub.s32 7, %v6094
  %v6096 = vrot.slane %v6063, %v6095
  %6097 = vrot.lane.b32.xlu0 %v6068, 64
  %v6098 = vpop.permute.xlu0 %6097
  %6099 = vrot.lane.b32.xlu0 %v6072, 64
  %v6100 = vpop.permute.xlu0 %6099
  %6101 = vrot.lane.b32.xlu0 %v6076, 64
  %v6102 = vpop.permute.xlu0 %6101
  %6103 = vrot.lane.b32.xlu0 %v6080, 64
  %v6104 = vpop.permute.xlu0 %6103
  %6105 = vrot.lane.b32.xlu0 %v6084, 64
  %v6106 = vpop.permute.xlu0 %6105
  %6107 = vrot.lane.b32.xlu0 %v6088, 64
  %v6108 = vpop.permute.xlu0 %6107
  %6109 = vrot.lane.b32.xlu0 %v6092, 64
  %v6110 = vpop.permute.xlu0 %6109
  %6111 = vrot.lane.b32.xlu0 %v6096, 64
  %v6112 = vpop.permute.xlu0 %6111
  %v6113 = vsel %vm1923, %v6098, %v6100
  %v6114 = vsel %vm1923, %v6100, %v6102
  %v6115 = vsel %vm1923, %v6102, %v6104
  %v6116 = vsel %vm1923, %v6104, %v6106
  %v6117 = vsel %vm1923, %v6106, %v6108
  %v6118 = vsel %vm1923, %v6108, %v6110
  %v6119 = vsel %vm1923, %v6110, %v6112
  %v6129 = vmul.f32 %v6052, %v6098
  %v6130 = vmul.f32 %v6053, %v6113
  %v6131 = vmul.f32 %v6054, %v6114
  %v6132 = vmul.f32 %v6055, %v6115
  %v6133 = vmul.f32 %v6056, %v6116
  %v6134 = vmul.f32 %v6057, %v6117
  %v6135 = vmul.f32 %v6058, %v6118
  %v6136 = vmul.f32 %v6059, %v6119
  %v6137 = vmul.f32 %v6060, %v6112
  %6147 = vrot.lane.b32.xlu0 %v6129, 64
  %v6148 = vpop.permute.xlu0 %6147
  %6149 = vrot.lane.b32.xlu0 %v6130, 64
  %v6150 = vpop.permute.xlu0 %6149
  %6151 = vrot.lane.b32.xlu0 %v6131, 64
  %v6152 = vpop.permute.xlu0 %6151
  %6153 = vrot.lane.b32.xlu0 %v6132, 64
  %v6154 = vpop.permute.xlu0 %6153
  %6155 = vrot.lane.b32.xlu0 %v6133, 64
  %v6156 = vpop.permute.xlu0 %6155
  %6157 = vrot.lane.b32.xlu0 %v6134, 64
  %v6158 = vpop.permute.xlu0 %6157
  %6159 = vrot.lane.b32.xlu0 %v6135, 64
  %v6160 = vpop.permute.xlu0 %6159
  %6161 = vrot.lane.b32.xlu0 %v6136, 64
  %v6162 = vpop.permute.xlu0 %6161
  %6163 = vrot.lane.b32.xlu0 %v6137, 64
  %v6164 = vpop.permute.xlu0 %6163
  %v6165 = vsel %vm1923, %v6148, %v6150
  %v6166 = vsel %vm1923, %v6150, %v6152
  %v6167 = vsel %vm1923, %v6152, %v6154
  %v6168 = vsel %vm1923, %v6154, %v6156
  %v6169 = vsel %vm1923, %v6156, %v6158
  %v6170 = vsel %vm1923, %v6158, %v6160
  %v6171 = vsel %vm1923, %v6160, %v6162
  %v6172 = vsel %vm1923, %v6162, %v6164
  %6181 = vst [vmem:[#allocation3 + $0x100] sm:$0xff] %v6165
  %6182 = vst [vmem:[#allocation3 + $0x108] sm:$0xff] %v6166
  %6183 = vst [vmem:[#allocation3 + $0x110] sm:$0xff] %v6167
  %6184 = vst [vmem:[#allocation3 + $0x118] sm:$0xff] %v6168
  %6185 = vst [vmem:[#allocation3 + $0x120] sm:$0xff] %v6169
  %6186 = vst [vmem:[#allocation3 + $0x128] sm:$0xff] %v6170
  %6187 = vst [vmem:[#allocation3 + $0x130] sm:$0xff] %v6171
  %6188 = vst [vmem:[#allocation3 + $0x138] sm:$0xff] %v6172
  %v6189 = vld [vmem:[#allocation2] sm:$0xff]
  %v6190 = vld [vmem:[#allocation2 + $0x8] sm:$0xff]
  %v6191 = vld [vmem:[#allocation2 + $0x10] sm:$0xff]
  %v6192 = vld [vmem:[#allocation2 + $0x18] sm:$0xff]
  %v6193 = vld [vmem:[#allocation2 + $0x20] sm:$0xff]
  %v6194 = vld [vmem:[#allocation2 + $0x28] sm:$0xff]
  %v6195 = vld [vmem:[#allocation2 + $0x30] sm:$0xff]
  %v6196 = vld [vmem:[#allocation2 + $0x38] sm:$0xff]
  %v6197 = vld [vmem:[#allocation2 + $0x40] sm:$0xff]
  %v6198 = vld [vmem:[%s2009] ss:$8 sm:$0xf]
  %v6199 = vld [vmem:[%s2009] ss:$8 sm:$0xf0]
  %v6200 = vor.u32 %v6198, %v6199
  %v6202 = vlaneseq
  %v6203 = vshrl.u32 %v6202, 7
  %v6204 = vsub.s32 0, %v6203
  %v6205 = vrot.slane %v6200, %v6204
  %v6206 = vlaneseq
  %v6207 = vshrl.u32 %v6206, 7
  %v6208 = vsub.s32 1, %v6207
  %v6209 = vrot.slane %v6200, %v6208
  %v6210 = vlaneseq
  %v6211 = vshrl.u32 %v6210, 7
  %v6212 = vsub.s32 2, %v6211
  %v6213 = vrot.slane %v6200, %v6212
  %v6214 = vlaneseq
  %v6215 = vshrl.u32 %v6214, 7
  %v6216 = vsub.s32 3, %v6215
  %v6217 = vrot.slane %v6200, %v6216
  %v6218 = vlaneseq
  %v6219 = vshrl.u32 %v6218, 7
  %v6220 = vsub.s32 4, %v6219
  %v6221 = vrot.slane %v6200, %v6220
  %v6222 = vlaneseq
  %v6223 = vshrl.u32 %v6222, 7
  %v6224 = vsub.s32 5, %v6223
  %v6225 = vrot.slane %v6200, %v6224
  %v6226 = vlaneseq
  %v6227 = vshrl.u32 %v6226, 7
  %v6228 = vsub.s32 6, %v6227
  %v6229 = vrot.slane %v6200, %v6228
  %v6230 = vlaneseq
  %v6231 = vshrl.u32 %v6230, 7
  %v6232 = vsub.s32 7, %v6231
  %v6233 = vrot.slane %v6200, %v6232
  %6234 = vrot.lane.b32.xlu0 %v6205, 65
  %v6235 = vpop.permute.xlu0 %6234
  %6236 = vrot.lane.b32.xlu0 %v6209, 65
  %v6237 = vpop.permute.xlu0 %6236
  %6238 = vrot.lane.b32.xlu0 %v6213, 65
  %v6239 = vpop.permute.xlu0 %6238
  %6240 = vrot.lane.b32.xlu0 %v6217, 65
  %v6241 = vpop.permute.xlu0 %6240
  %6242 = vrot.lane.b32.xlu0 %v6221, 65
  %v6243 = vpop.permute.xlu0 %6242
  %6244 = vrot.lane.b32.xlu0 %v6225, 65
  %v6245 = vpop.permute.xlu0 %6244
  %6246 = vrot.lane.b32.xlu0 %v6229, 65
  %v6247 = vpop.permute.xlu0 %6246
  %6248 = vrot.lane.b32.xlu0 %v6233, 65
  %v6249 = vpop.permute.xlu0 %6248
  %v6250 = vsel %vm1836, %v6235, %v6237
  %v6251 = vsel %vm1836, %v6237, %v6239
  %v6252 = vsel %vm1836, %v6239, %v6241
  %v6253 = vsel %vm1836, %v6241, %v6243
  %v6254 = vsel %vm1836, %v6243, %v6245
  %v6255 = vsel %vm1836, %v6245, %v6247
  %v6256 = vsel %vm1836, %v6247, %v6249
  %v6266 = vmul.f32 %v6189, %v6235
  %v6267 = vmul.f32 %v6190, %v6250
  %v6268 = vmul.f32 %v6191, %v6251
  %v6269 = vmul.f32 %v6192, %v6252
  %v6270 = vmul.f32 %v6193, %v6253
  %v6271 = vmul.f32 %v6194, %v6254
  %v6272 = vmul.f32 %v6195, %v6255
  %v6273 = vmul.f32 %v6196, %v6256
  %v6274 = vmul.f32 %v6197, %v6249
  %6284 = vrot.lane.b32.xlu0 %v6266, 63
  %v6285 = vpop.permute.xlu0 %6284
  %6286 = vrot.lane.b32.xlu0 %v6267, 63
  %v6287 = vpop.permute.xlu0 %6286
  %6288 = vrot.lane.b32.xlu0 %v6268, 63
  %v6289 = vpop.permute.xlu0 %6288
  %6290 = vrot.lane.b32.xlu0 %v6269, 63
  %v6291 = vpop.permute.xlu0 %6290
  %6292 = vrot.lane.b32.xlu0 %v6270, 63
  %v6293 = vpop.permute.xlu0 %6292
  %6294 = vrot.lane.b32.xlu0 %v6271, 63
  %v6295 = vpop.permute.xlu0 %6294
  %6296 = vrot.lane.b32.xlu0 %v6272, 63
  %v6297 = vpop.permute.xlu0 %6296
  %6298 = vrot.lane.b32.xlu0 %v6273, 63
  %v6299 = vpop.permute.xlu0 %6298
  %6300 = vrot.lane.b32.xlu0 %v6274, 63
  %v6301 = vpop.permute.xlu0 %6300
  %v6302 = vsel %vm1783, %v6285, %v6287
  %v6303 = vsel %vm1783, %v6287, %v6289
  %v6304 = vsel %vm1783, %v6289, %v6291
  %v6305 = vsel %vm1783, %v6291, %v6293
  %v6306 = vsel %vm1783, %v6293, %v6295
  %v6307 = vsel %vm1783, %v6295, %v6297
  %v6308 = vsel %vm1783, %v6297, %v6299
  %v6309 = vsel %vm1783, %v6299, %v6301
  %6318 = vst [vmem:[#allocation3 + $0x140] sm:$0xff] %v6302
  %6319 = vst [vmem:[#allocation3 + $0x148] sm:$0xff] %v6303
  %6320 = vst [vmem:[#allocation3 + $0x150] sm:$0xff] %v6304
  %6321 = vst [vmem:[#allocation3 + $0x158] sm:$0xff] %v6305
  %6322 = vst [vmem:[#allocation3 + $0x160] sm:$0xff] %v6306
  %6323 = vst [vmem:[#allocation3 + $0x168] sm:$0xff] %v6307
  %6324 = vst [vmem:[#allocation3 + $0x170] sm:$0xff] %v6308
  %6325 = vst [vmem:[#allocation3 + $0x178] sm:$0xff] %v6309
  %v6326 = vld [vmem:[#allocation2] sm:$0xff]
  %v6327 = vld [vmem:[#allocation2 + $0x8] sm:$0xff]
  %v6328 = vld [vmem:[#allocation2 + $0x10] sm:$0xff]
  %v6329 = vld [vmem:[#allocation2 + $0x18] sm:$0xff]
  %v6330 = vld [vmem:[#allocation2 + $0x20] sm:$0xff]
  %v6331 = vld [vmem:[#allocation2 + $0x28] sm:$0xff]
  %v6332 = vld [vmem:[#allocation2 + $0x30] sm:$0xff]
  %v6333 = vld [vmem:[#allocation2 + $0x38] sm:$0xff]
  %v6334 = vld [vmem:[#allocation2 + $0x40] sm:$0xff]
  %v6335 = vld [vmem:[%s2147] ss:$8 sm:$0xf]
  %v6336 = vld [vmem:[%s2147] ss:$8 sm:$0xf0]
  %v6337 = vor.u32 %v6335, %v6336
  %v6339 = vlaneseq
  %v6340 = vshrl.u32 %v6339, 7
  %v6341 = vsub.s32 0, %v6340
  %v6342 = vrot.slane %v6337, %v6341
  %v6343 = vlaneseq
  %v6344 = vshrl.u32 %v6343, 7
  %v6345 = vsub.s32 1, %v6344
  %v6346 = vrot.slane %v6337, %v6345
  %v6347 = vlaneseq
  %v6348 = vshrl.u32 %v6347, 7
  %v6349 = vsub.s32 2, %v6348
  %v6350 = vrot.slane %v6337, %v6349
  %v6351 = vlaneseq
  %v6352 = vshrl.u32 %v6351, 7
  %v6353 = vsub.s32 3, %v6352
  %v6354 = vrot.slane %v6337, %v6353
  %v6355 = vlaneseq
  %v6356 = vshrl.u32 %v6355, 7
  %v6357 = vsub.s32 4, %v6356
  %v6358 = vrot.slane %v6337, %v6357
  %v6359 = vlaneseq
  %v6360 = vshrl.u32 %v6359, 7
  %v6361 = vsub.s32 5, %v6360
  %v6362 = vrot.slane %v6337, %v6361
  %v6363 = vlaneseq
  %v6364 = vshrl.u32 %v6363, 7
  %v6365 = vsub.s32 6, %v6364
  %v6366 = vrot.slane %v6337, %v6365
  %v6367 = vlaneseq
  %v6368 = vshrl.u32 %v6367, 7
  %v6369 = vsub.s32 7, %v6368
  %v6370 = vrot.slane %v6337, %v6369
  %6371 = vrot.lane.b32.xlu0 %v6342, 71
  %v6372 = vpop.permute.xlu0 %6371
  %6373 = vrot.lane.b32.xlu0 %v6346, 71
  %v6374 = vpop.permute.xlu0 %6373
  %6375 = vrot.lane.b32.xlu0 %v6350, 71
  %v6376 = vpop.permute.xlu0 %6375
  %6377 = vrot.lane.b32.xlu0 %v6354, 71
  %v6378 = vpop.permute.xlu0 %6377
  %6379 = vrot.lane.b32.xlu0 %v6358, 71
  %v6380 = vpop.permute.xlu0 %6379
  %6381 = vrot.lane.b32.xlu0 %v6362, 71
  %v6382 = vpop.permute.xlu0 %6381
  %6383 = vrot.lane.b32.xlu0 %v6366, 71
  %v6384 = vpop.permute.xlu0 %6383
  %6385 = vrot.lane.b32.xlu0 %v6370, 71
  %v6386 = vpop.permute.xlu0 %6385
  %v6387 = vsel %vm1696, %v6372, %v6374
  %v6388 = vsel %vm1696, %v6374, %v6376
  %v6389 = vsel %vm1696, %v6376, %v6378
  %v6390 = vsel %vm1696, %v6378, %v6380
  %v6391 = vsel %vm1696, %v6380, %v6382
  %v6392 = vsel %vm1696, %v6382, %v6384
  %v6393 = vsel %vm1696, %v6384, %v6386
  %v6403 = vmul.f32 %v6326, %v6372
  %v6404 = vmul.f32 %v6327, %v6387
  %v6405 = vmul.f32 %v6328, %v6388
  %v6406 = vmul.f32 %v6329, %v6389
  %v6407 = vmul.f32 %v6330, %v6390
  %v6408 = vmul.f32 %v6331, %v6391
  %v6409 = vmul.f32 %v6332, %v6392
  %v6410 = vmul.f32 %v6333, %v6393
  %v6411 = vmul.f32 %v6334, %v6386
  %6421 = vrot.lane.b32.xlu0 %v6403, 57
  %v6422 = vpop.permute.xlu0 %6421
  %6423 = vrot.lane.b32.xlu0 %v6404, 57
  %v6424 = vpop.permute.xlu0 %6423
  %6425 = vrot.lane.b32.xlu0 %v6405, 57
  %v6426 = vpop.permute.xlu0 %6425
  %6427 = vrot.lane.b32.xlu0 %v6406, 57
  %v6428 = vpop.permute.xlu0 %6427
  %6429 = vrot.lane.b32.xlu0 %v6407, 57
  %v6430 = vpop.permute.xlu0 %6429
  %6431 = vrot.lane.b32.xlu0 %v6408, 57
  %v6432 = vpop.permute.xlu0 %6431
  %6433 = vrot.lane.b32.xlu0 %v6409, 57
  %v6434 = vpop.permute.xlu0 %6433
  %6435 = vrot.lane.b32.xlu0 %v6410, 57
  %v6436 = vpop.permute.xlu0 %6435
  %6437 = vrot.lane.b32.xlu0 %v6411, 57
  %v6438 = vpop.permute.xlu0 %6437
  %v6439 = vsel %vm1643, %v6422, %v6424
  %v6440 = vsel %vm1643, %v6424, %v6426
  %v6441 = vsel %vm1643, %v6426, %v6428
  %v6442 = vsel %vm1643, %v6428, %v6430
  %v6443 = vsel %vm1643, %v6430, %v6432
  %v6444 = vsel %vm1643, %v6432, %v6434
  %v6445 = vsel %vm1643, %v6434, %v6436
  %v6446 = vsel %vm1643, %v6436, %v6438
  %6455 = vst [vmem:[#allocation3 + $0x180] sm:$0xff] %v6439
  %6456 = vst [vmem:[#allocation3 + $0x188] sm:$0xff] %v6440
  %6457 = vst [vmem:[#allocation3 + $0x190] sm:$0xff] %v6441
  %6458 = vst [vmem:[#allocation3 + $0x198] sm:$0xff] %v6442
  %6459 = vst [vmem:[#allocation3 + $0x1a0] sm:$0xff] %v6443
  %6460 = vst [vmem:[#allocation3 + $0x1a8] sm:$0xff] %v6444
  %6461 = vst [vmem:[#allocation3 + $0x1b0] sm:$0xff] %v6445
  %6462 = vst [vmem:[#allocation3 + $0x1b8] sm:$0xff] %v6446
  %v6463 = vld [vmem:[#allocation2] sm:$0xff]
  %v6464 = vld [vmem:[#allocation2 + $0x8] sm:$0xff]
  %v6465 = vld [vmem:[#allocation2 + $0x10] sm:$0xff]
  %v6466 = vld [vmem:[#allocation2 + $0x18] sm:$0xff]
  %v6467 = vld [vmem:[#allocation2 + $0x20] sm:$0xff]
  %v6468 = vld [vmem:[#allocation2 + $0x28] sm:$0xff]
  %v6469 = vld [vmem:[#allocation2 + $0x30] sm:$0xff]
  %v6470 = vld [vmem:[#allocation2 + $0x38] sm:$0xff]
  %v6471 = vld [vmem:[#allocation2 + $0x40] sm:$0xff]
  %v6472 = vld [vmem:[%s2285] ss:$8 sm:$0xf]
  %v6473 = vld [vmem:[%s2285] ss:$8 sm:$0xf0]
  %v6474 = vor.u32 %v6472, %v6473
  %v6476 = vlaneseq
  %v6477 = vshrl.u32 %v6476, 7
  %v6478 = vsub.s32 0, %v6477
  %v6479 = vrot.slane %v6474, %v6478
  %v6480 = vlaneseq
  %v6481 = vshrl.u32 %v6480, 7
  %v6482 = vsub.s32 1, %v6481
  %v6483 = vrot.slane %v6474, %v6482
  %v6484 = vlaneseq
  %v6485 = vshrl.u32 %v6484, 7
  %v6486 = vsub.s32 2, %v6485
  %v6487 = vrot.slane %v6474, %v6486
  %v6488 = vlaneseq
  %v6489 = vshrl.u32 %v6488, 7
  %v6490 = vsub.s32 3, %v6489
  %v6491 = vrot.slane %v6474, %v6490
  %v6492 = vlaneseq
  %v6493 = vshrl.u32 %v6492, 7
  %v6494 = vsub.s32 4, %v6493
  %v6495 = vrot.slane %v6474, %v6494
  %v6496 = vlaneseq
  %v6497 = vshrl.u32 %v6496, 7
  %v6498 = vsub.s32 5, %v6497
  %v6499 = vrot.slane %v6474, %v6498
  %v6500 = vlaneseq
  %v6501 = vshrl.u32 %v6500, 7
  %v6502 = vsub.s32 6, %v6501
  %v6503 = vrot.slane %v6474, %v6502
  %v6504 = vlaneseq
  %v6505 = vshrl.u32 %v6504, 7
  %v6506 = vsub.s32 7, %v6505
  %v6507 = vrot.slane %v6474, %v6506
  %6508 = vrot.lane.b32.xlu0 %v6479, 72
  %v6509 = vpop.permute.xlu0 %6508
  %6510 = vrot.lane.b32.xlu0 %v6483, 72
  %v6511 = vpop.permute.xlu0 %6510
  %6512 = vrot.lane.b32.xlu0 %v6487, 72
  %v6513 = vpop.permute.xlu0 %6512
  %6514 = vrot.lane.b32.xlu0 %v6491, 72
  %v6515 = vpop.permute.xlu0 %6514
  %6516 = vrot.lane.b32.xlu0 %v6495, 72
  %v6517 = vpop.permute.xlu0 %6516
  %6518 = vrot.lane.b32.xlu0 %v6499, 72
  %v6519 = vpop.permute.xlu0 %6518
  %6520 = vrot.lane.b32.xlu0 %v6503, 72
  %v6521 = vpop.permute.xlu0 %6520
  %6522 = vrot.lane.b32.xlu0 %v6507, 72
  %v6523 = vpop.permute.xlu0 %6522
  %v6524 = vsel %vm1556, %v6509, %v6511
  %v6525 = vsel %vm1556, %v6511, %v6513
  %v6526 = vsel %vm1556, %v6513, %v6515
  %v6527 = vsel %vm1556, %v6515, %v6517
  %v6528 = vsel %vm1556, %v6517, %v6519
  %v6529 = vsel %vm1556, %v6519, %v6521
  %v6530 = vsel %vm1556, %v6521, %v6523
  %v6540 = vmul.f32 %v6463, %v6509
  %v6541 = vmul.f32 %v6464, %v6524
  %v6542 = vmul.f32 %v6465, %v6525
  %v6543 = vmul.f32 %v6466, %v6526
  %v6544 = vmul.f32 %v6467, %v6527
  %v6545 = vmul.f32 %v6468, %v6528
  %v6546 = vmul.f32 %v6469, %v6529
  %v6547 = vmul.f32 %v6470, %v6530
  %v6548 = vmul.f32 %v6471, %v6523
  %6558 = vrot.lane.b32.xlu0 %v6540, 56
  %v6559 = vpop.permute.xlu0 %6558
  %6560 = vrot.lane.b32.xlu0 %v6541, 56
  %v6561 = vpop.permute.xlu0 %6560
  %6562 = vrot.lane.b32.xlu0 %v6542, 56
  %v6563 = vpop.permute.xlu0 %6562
  %6564 = vrot.lane.b32.xlu0 %v6543, 56
  %v6565 = vpop.permute.xlu0 %6564
  %6566 = vrot.lane.b32.xlu0 %v6544, 56
  %v6567 = vpop.permute.xlu0 %6566
  %6568 = vrot.lane.b32.xlu0 %v6545, 56
  %v6569 = vpop.permute.xlu0 %6568
  %6570 = vrot.lane.b32.xlu0 %v6546, 56
  %v6571 = vpop.permute.xlu0 %6570
  %6572 = vrot.lane.b32.xlu0 %v6547, 56
  %v6573 = vpop.permute.xlu0 %6572
  %6574 = vrot.lane.b32.xlu0 %v6548, 56
  %v6575 = vpop.permute.xlu0 %6574
  %v6576 = vsel %vm1503, %v6559, %v6561
  %v6577 = vsel %vm1503, %v6561, %v6563
  %v6578 = vsel %vm1503, %v6563, %v6565
  %v6579 = vsel %vm1503, %v6565, %v6567
  %v6580 = vsel %vm1503, %v6567, %v6569
  %v6581 = vsel %vm1503, %v6569, %v6571
  %v6582 = vsel %vm1503, %v6571, %v6573
  %v6583 = vsel %vm1503, %v6573, %v6575
  %6592 = vst [vmem:[#allocation3 + $0x1c0] sm:$0xff] %v6576
  %6593 = vst [vmem:[#allocation3 + $0x1c8] sm:$0xff] %v6577
  %6594 = vst [vmem:[#allocation3 + $0x1d0] sm:$0xff] %v6578
  %6595 = vst [vmem:[#allocation3 + $0x1d8] sm:$0xff] %v6579
  %6596 = vst [vmem:[#allocation3 + $0x1e0] sm:$0xff] %v6580
  %6597 = vst [vmem:[#allocation3 + $0x1e8] sm:$0xff] %v6581
  %6598 = vst [vmem:[#allocation3 + $0x1f0] sm:$0xff] %v6582
  %6599 = vst [vmem:[#allocation3 + $0x1f8] sm:$0xff] %v6583
  %v6600 = vld [vmem:[#allocation2] sm:$0xff]
  %v6601 = vld [vmem:[#allocation2 + $0x8] sm:$0xff]
  %v6602 = vld [vmem:[#allocation2 + $0x10] sm:$0xff]
  %v6603 = vld [vmem:[#allocation2 + $0x18] sm:$0xff]
  %v6604 = vld [vmem:[#allocation2 + $0x20] sm:$0xff]
  %v6605 = vld [vmem:[#allocation2 + $0x28] sm:$0xff]
  %v6606 = vld [vmem:[#allocation2 + $0x30] sm:$0xff]
  %v6607 = vld [vmem:[#allocation2 + $0x38] sm:$0xff]
  %v6608 = vld [vmem:[#allocation2 + $0x40] sm:$0xff]
  %v6609 = vld [vmem:[%s2423] ss:$8 sm:$0xf]
  %v6610 = vld [vmem:[%s2423] ss:$8 sm:$0xf0]
  %v6611 = vor.u32 %v6609, %v6610
  %v6613 = vlaneseq
  %v6614 = vshrl.u32 %v6613, 7
  %v6615 = vsub.s32 0, %v6614
  %v6616 = vrot.slane %v6611, %v6615
  %v6617 = vlaneseq
  %v6618 = vshrl.u32 %v6617, 7
  %v6619 = vsub.s32 1, %v6618
  %v6620 = vrot.slane %v6611, %v6619
  %v6621 = vlaneseq
  %v6622 = vshrl.u32 %v6621, 7
  %v6623 = vsub.s32 2, %v6622
  %v6624 = vrot.slane %v6611, %v6623
  %v6625 = vlaneseq
  %v6626 = vshrl.u32 %v6625, 7
  %v6627 = vsub.s32 3, %v6626
  %v6628 = vrot.slane %v6611, %v6627
  %v6629 = vlaneseq
  %v6630 = vshrl.u32 %v6629, 7
  %v6631 = vsub.s32 4, %v6630
  %v6632 = vrot.slane %v6611, %v6631
  %v6633 = vlaneseq
  %v6634 = vshrl.u32 %v6633, 7
  %v6635 = vsub.s32 5, %v6634
  %v6636 = vrot.slane %v6611, %v6635
  %v6637 = vlaneseq
  %v6638 = vshrl.u32 %v6637, 7
  %v6639 = vsub.s32 6, %v6638
  %v6640 = vrot.slane %v6611, %v6639
  %v6641 = vlaneseq
  %v6642 = vshrl.u32 %v6641, 7
  %v6643 = vsub.s32 7, %v6642
  %v6644 = vrot.slane %v6611, %v6643
  %6645 = vrot.lane.b32.xlu0 %v6616, 73
  %v6646 = vpop.permute.xlu0 %6645
  %6647 = vrot.lane.b32.xlu0 %v6620, 73
  %v6648 = vpop.permute.xlu0 %6647
  %6649 = vrot.lane.b32.xlu0 %v6624, 73
  %v6650 = vpop.permute.xlu0 %6649
  %6651 = vrot.lane.b32.xlu0 %v6628, 73
  %v6652 = vpop.permute.xlu0 %6651
  %6653 = vrot.lane.b32.xlu0 %v6632, 73
  %v6654 = vpop.permute.xlu0 %6653
  %6655 = vrot.lane.b32.xlu0 %v6636, 73
  %v6656 = vpop.permute.xlu0 %6655
  %6657 = vrot.lane.b32.xlu0 %v6640, 73
  %v6658 = vpop.permute.xlu0 %6657
  %6659 = vrot.lane.b32.xlu0 %v6644, 73
  %v6660 = vpop.permute.xlu0 %6659
  %v6661 = vsel %vm1416, %v6646, %v6648
  %v6662 = vsel %vm1416, %v6648, %v6650
  %v6663 = vsel %vm1416, %v6650, %v6652
  %v6664 = vsel %vm1416, %v6652, %v6654
  %v6665 = vsel %vm1416, %v6654, %v6656
  %v6666 = vsel %vm1416, %v6656, %v6658
  %v6667 = vsel %vm1416, %v6658, %v6660
  %v6677 = vmul.f32 %v6600, %v6646
  %v6678 = vmul.f32 %v6601, %v6661
  %v6679 = vmul.f32 %v6602, %v6662
  %v6680 = vmul.f32 %v6603, %v6663
  %v6681 = vmul.f32 %v6604, %v6664
  %v6682 = vmul.f32 %v6605, %v6665
  %v6683 = vmul.f32 %v6606, %v6666
  %v6684 = vmul.f32 %v6607, %v6667
  %v6685 = vmul.f32 %v6608, %v6660
  %6695 = vrot.lane.b32.xlu0 %v6677, 55
  %v6696 = vpop.permute.xlu0 %6695
  %6697 = vrot.lane.b32.xlu0 %v6678, 55
  %v6698 = vpop.permute.xlu0 %6697
  %6699 = vrot.lane.b32.xlu0 %v6679, 55
  %v6700 = vpop.permute.xlu0 %6699
  %6701 = vrot.lane.b32.xlu0 %v6680, 55
  %v6702 = vpop.permute.xlu0 %6701
  %6703 = vrot.lane.b32.xlu0 %v6681, 55
  %v6704 = vpop.permute.xlu0 %6703
  %6705 = vrot.lane.b32.xlu0 %v6682, 55
  %v6706 = vpop.permute.xlu0 %6705
  %6707 = vrot.lane.b32.xlu0 %v6683, 55
  %v6708 = vpop.permute.xlu0 %6707
  %6709 = vrot.lane.b32.xlu0 %v6684, 55
  %v6710 = vpop.permute.xlu0 %6709
  %6711 = vrot.lane.b32.xlu0 %v6685, 55
  %v6712 = vpop.permute.xlu0 %6711
  %v6713 = vsel %vm1363, %v6696, %v6698
  %v6714 = vsel %vm1363, %v6698, %v6700
  %v6715 = vsel %vm1363, %v6700, %v6702
  %v6716 = vsel %vm1363, %v6702, %v6704
  %v6717 = vsel %vm1363, %v6704, %v6706
  %v6718 = vsel %vm1363, %v6706, %v6708
  %v6719 = vsel %vm1363, %v6708, %v6710
  %v6720 = vsel %vm1363, %v6710, %v6712
  %6729 = vst [vmem:[#allocation3 + $0x200] sm:$0xff] %v6713
  %6730 = vst [vmem:[#allocation3 + $0x208] sm:$0xff] %v6714
  %6731 = vst [vmem:[#allocation3 + $0x210] sm:$0xff] %v6715
  %6732 = vst [vmem:[#allocation3 + $0x218] sm:$0xff] %v6716
  %6733 = vst [vmem:[#allocation3 + $0x220] sm:$0xff] %v6717
  %6734 = vst [vmem:[#allocation3 + $0x228] sm:$0xff] %v6718
  %6735 = vst [vmem:[#allocation3 + $0x230] sm:$0xff] %v6719
  %6736 = vst [vmem:[#allocation3 + $0x238] sm:$0xff] %v6720
  %v6737 = vld [vmem:[#allocation2] sm:$0xff]
  %v6738 = vld [vmem:[#allocation2 + $0x8] sm:$0xff]
  %v6739 = vld [vmem:[#allocation2 + $0x10] sm:$0xff]
  %v6740 = vld [vmem:[#allocation2 + $0x18] sm:$0xff]
  %v6741 = vld [vmem:[#allocation2 + $0x20] sm:$0xff]
  %v6742 = vld [vmem:[#allocation2 + $0x28] sm:$0xff]
  %v6743 = vld [vmem:[#allocation2 + $0x30] sm:$0xff]
  %v6744 = vld [vmem:[#allocation2 + $0x38] sm:$0xff]
  %v6745 = vld [vmem:[#allocation2 + $0x40] sm:$0xff]
  %v6746 = vld [vmem:[%s2561] ss:$8 sm:$0xf]
  %v6747 = vld [vmem:[%s2561] ss:$8 sm:$0xf0]
  %v6748 = vor.u32 %v6746, %v6747
  %v6750 = vlaneseq
  %v6751 = vshrl.u32 %v6750, 7
  %v6752 = vsub.s32 0, %v6751
  %v6753 = vrot.slane %v6748, %v6752
  %v6754 = vlaneseq
  %v6755 = vshrl.u32 %v6754, 7
  %v6756 = vsub.s32 1, %v6755
  %v6757 = vrot.slane %v6748, %v6756
  %v6758 = vlaneseq
  %v6759 = vshrl.u32 %v6758, 7
  %v6760 = vsub.s32 2, %v6759
  %v6761 = vrot.slane %v6748, %v6760
  %v6762 = vlaneseq
  %v6763 = vshrl.u32 %v6762, 7
  %v6764 = vsub.s32 3, %v6763
  %v6765 = vrot.slane %v6748, %v6764
  %v6766 = vlaneseq
  %v6767 = vshrl.u32 %v6766, 7
  %v6768 = vsub.s32 4, %v6767
  %v6769 = vrot.slane %v6748, %v6768
  %v6770 = vlaneseq
  %v6771 = vshrl.u32 %v6770, 7
  %v6772 = vsub.s32 5, %v6771
  %v6773 = vrot.slane %v6748, %v6772
  %v6774 = vlaneseq
  %v6775 = vshrl.u32 %v6774, 7
  %v6776 = vsub.s32 6, %v6775
  %v6777 = vrot.slane %v6748, %v6776
  %v6778 = vlaneseq
  %v6779 = vshrl.u32 %v6778, 7
  %v6780 = vsub.s32 7, %v6779
  %v6781 = vrot.slane %v6748, %v6780
  %6782 = vrot.lane.b32.xlu0 %v6753, 119
  %v6783 = vpop.permute.xlu0 %6782
  %6784 = vrot.lane.b32.xlu0 %v6757, 119
  %v6785 = vpop.permute.xlu0 %6784
  %6786 = vrot.lane.b32.xlu0 %v6761, 119
  %v6787 = vpop.permute.xlu0 %6786
  %6788 = vrot.lane.b32.xlu0 %v6765, 119
  %v6789 = vpop.permute.xlu0 %6788
  %6790 = vrot.lane.b32.xlu0 %v6769, 119
  %v6791 = vpop.permute.xlu0 %6790
  %6792 = vrot.lane.b32.xlu0 %v6773, 119
  %v6793 = vpop.permute.xlu0 %6792
  %6794 = vrot.lane.b32.xlu0 %v6777, 119
  %v6795 = vpop.permute.xlu0 %6794
  %6796 = vrot.lane.b32.xlu0 %v6781, 119
  %v6797 = vpop.permute.xlu0 %6796
  %v6798 = vsel %vm2614, %v6783, %v6785
  %v6799 = vsel %vm2614, %v6785, %v6787
  %v6800 = vsel %vm2614, %v6787, %v6789
  %v6801 = vsel %vm2614, %v6789, %v6791
  %v6802 = vsel %vm2614, %v6791, %v6793
  %v6803 = vsel %vm2614, %v6793, %v6795
  %v6804 = vsel %vm2614, %v6795, %v6797
  %v6814 = vmul.f32 %v6737, %v6783
  %v6815 = vmul.f32 %v6738, %v6798
  %v6816 = vmul.f32 %v6739, %v6799
  %v6817 = vmul.f32 %v6740, %v6800
  %v6818 = vmul.f32 %v6741, %v6801
  %v6819 = vmul.f32 %v6742, %v6802
  %v6820 = vmul.f32 %v6743, %v6803
  %v6821 = vmul.f32 %v6744, %v6804
  %v6822 = vmul.f32 %v6745, %v6797
  %6832 = vrot.lane.b32.xlu0 %v6814, 9
  %v6833 = vpop.permute.xlu0 %6832
  %6834 = vrot.lane.b32.xlu0 %v6815, 9
  %v6835 = vpop.permute.xlu0 %6834
  %6836 = vrot.lane.b32.xlu0 %v6816, 9
  %v6837 = vpop.permute.xlu0 %6836
  %6838 = vrot.lane.b32.xlu0 %v6817, 9
  %v6839 = vpop.permute.xlu0 %6838
  %6840 = vrot.lane.b32.xlu0 %v6818, 9
  %v6841 = vpop.permute.xlu0 %6840
  %6842 = vrot.lane.b32.xlu0 %v6819, 9
  %v6843 = vpop.permute.xlu0 %6842
  %6844 = vrot.lane.b32.xlu0 %v6820, 9
  %v6845 = vpop.permute.xlu0 %6844
  %6846 = vrot.lane.b32.xlu0 %v6821, 9
  %v6847 = vpop.permute.xlu0 %6846
  %6848 = vrot.lane.b32.xlu0 %v6822, 9
  %v6849 = vpop.permute.xlu0 %6848
  %v6850 = vsel %vm2667, %v6833, %v6835
  %v6851 = vsel %vm2667, %v6835, %v6837
  %v6852 = vsel %vm2667, %v6837, %v6839
  %v6853 = vsel %vm2667, %v6839, %v6841
  %v6854 = vsel %vm2667, %v6841, %v6843
  %v6855 = vsel %vm2667, %v6843, %v6845
  %v6856 = vsel %vm2667, %v6845, %v6847
  %v6857 = vsel %vm2667, %v6847, %v6849
  %6866 = vst [vmem:[#allocation3 + $0x240] sm:$0xff] %v6850
  %6867 = vst [vmem:[#allocation3 + $0x248] sm:$0xff] %v6851
  %6868 = vst [vmem:[#allocation3 + $0x250] sm:$0xff] %v6852
  %6869 = vst [vmem:[#allocation3 + $0x258] sm:$0xff] %v6853
  %6870 = vst [vmem:[#allocation3 + $0x260] sm:$0xff] %v6854
  %6871 = vst [vmem:[#allocation3 + $0x268] sm:$0xff] %v6855
  %6872 = vst [vmem:[#allocation3 + $0x270] sm:$0xff] %v6856
  %6873 = vst [vmem:[#allocation3 + $0x278] sm:$0xff] %v6857
  %v6874 = vld [vmem:[#allocation2] sm:$0xff]
  %v6875 = vld [vmem:[#allocation2 + $0x8] sm:$0xff]
  %v6876 = vld [vmem:[#allocation2 + $0x10] sm:$0xff]
  %v6877 = vld [vmem:[#allocation2 + $0x18] sm:$0xff]
  %v6878 = vld [vmem:[#allocation2 + $0x20] sm:$0xff]
  %v6879 = vld [vmem:[#allocation2 + $0x28] sm:$0xff]
  %v6880 = vld [vmem:[#allocation2 + $0x30] sm:$0xff]
  %v6881 = vld [vmem:[#allocation2 + $0x38] sm:$0xff]
  %v6882 = vld [vmem:[#allocation2 + $0x40] sm:$0xff]
  %v6883 = vld [vmem:[%s2701] ss:$8 sm:$0xf]
  %v6884 = vld [vmem:[%s2701] ss:$8 sm:$0xf0]
  %v6885 = vor.u32 %v6883, %v6884
  %v6887 = vlaneseq
  %v6888 = vshrl.u32 %v6887, 7
  %v6889 = vsub.s32 0, %v6888
  %v6890 = vrot.slane %v6885, %v6889
  %v6891 = vlaneseq
  %v6892 = vshrl.u32 %v6891, 7
  %v6893 = vsub.s32 1, %v6892
  %v6894 = vrot.slane %v6885, %v6893
  %v6895 = vlaneseq
  %v6896 = vshrl.u32 %v6895, 7
  %v6897 = vsub.s32 2, %v6896
  %v6898 = vrot.slane %v6885, %v6897
  %v6899 = vlaneseq
  %v6900 = vshrl.u32 %v6899, 7
  %v6901 = vsub.s32 3, %v6900
  %v6902 = vrot.slane %v6885, %v6901
  %v6903 = vlaneseq
  %v6904 = vshrl.u32 %v6903, 7
  %v6905 = vsub.s32 4, %v6904
  %v6906 = vrot.slane %v6885, %v6905
  %v6907 = vlaneseq
  %v6908 = vshrl.u32 %v6907, 7
  %v6909 = vsub.s32 5, %v6908
  %v6910 = vrot.slane %v6885, %v6909
  %v6911 = vlaneseq
  %v6912 = vshrl.u32 %v6911, 7
  %v6913 = vsub.s32 6, %v6912
  %v6914 = vrot.slane %v6885, %v6913
  %v6915 = vlaneseq
  %v6916 = vshrl.u32 %v6915, 7
  %v6917 = vsub.s32 7, %v6916
  %v6918 = vrot.slane %v6885, %v6917
  %6919 = vrot.lane.b32.xlu0 %v6890, 120
  %v6920 = vpop.permute.xlu0 %6919
  %6921 = vrot.lane.b32.xlu0 %v6894, 120
  %v6922 = vpop.permute.xlu0 %6921
  %6923 = vrot.lane.b32.xlu0 %v6898, 120
  %v6924 = vpop.permute.xlu0 %6923
  %6925 = vrot.lane.b32.xlu0 %v6902, 120
  %v6926 = vpop.permute.xlu0 %6925
  %6927 = vrot.lane.b32.xlu0 %v6906, 120
  %v6928 = vpop.permute.xlu0 %6927
  %6929 = vrot.lane.b32.xlu0 %v6910, 120
  %v6930 = vpop.permute.xlu0 %6929
  %6931 = vrot.lane.b32.xlu0 %v6914, 120
  %v6932 = vpop.permute.xlu0 %6931
  %6933 = vrot.lane.b32.xlu0 %v6918, 120
  %v6934 = vpop.permute.xlu0 %6933
  %v6935 = vsel %vm2754, %v6920, %v6922
  %v6936 = vsel %vm2754, %v6922, %v6924
  %v6937 = vsel %vm2754, %v6924, %v6926
  %v6938 = vsel %vm2754, %v6926, %v6928
  %v6939 = vsel %vm2754, %v6928, %v6930
  %v6940 = vsel %vm2754, %v6930, %v6932
  %v6941 = vsel %vm2754, %v6932, %v6934
  %v6951 = vmul.f32 %v6874, %v6920
  %v6952 = vmul.f32 %v6875, %v6935
  %v6953 = vmul.f32 %v6876, %v6936
  %v6954 = vmul.f32 %v6877, %v6937
  %v6955 = vmul.f32 %v6878, %v6938
  %v6956 = vmul.f32 %v6879, %v6939
  %v6957 = vmul.f32 %v6880, %v6940
  %v6958 = vmul.f32 %v6881, %v6941
  %v6959 = vmul.f32 %v6882, %v6934
  %6969 = vrot.lane.b32.xlu0 %v6951, 8
  %v6970 = vpop.permute.xlu0 %6969
  %6971 = vrot.lane.b32.xlu0 %v6952, 8
  %v6972 = vpop.permute.xlu0 %6971
  %6973 = vrot.lane.b32.xlu0 %v6953, 8
  %v6974 = vpop.permute.xlu0 %6973
  %6975 = vrot.lane.b32.xlu0 %v6954, 8
  %v6976 = vpop.permute.xlu0 %6975
  %6977 = vrot.lane.b32.xlu0 %v6955, 8
  %v6978 = vpop.permute.xlu0 %6977
  %6979 = vrot.lane.b32.xlu0 %v6956, 8
  %v6980 = vpop.permute.xlu0 %6979
  %6981 = vrot.lane.b32.xlu0 %v6957, 8
  %v6982 = vpop.permute.xlu0 %6981
  %6983 = vrot.lane.b32.xlu0 %v6958, 8
  %v6984 = vpop.permute.xlu0 %6983
  %6985 = vrot.lane.b32.xlu0 %v6959, 8
  %v6986 = vpop.permute.xlu0 %6985
  %v6987 = vsel %vm65, %v6970, %v6972
  %v6988 = vsel %vm65, %v6972, %v6974
  %v6989 = vsel %vm65, %v6974, %v6976
  %v6990 = vsel %vm65, %v6976, %v6978
  %v6991 = vsel %vm65, %v6978, %v6980
  %v6992 = vsel %vm65, %v6980, %v6982
  %v6993 = vsel %vm65, %v6982, %v6984
  %v6994 = vsel %vm65, %v6984, %v6986
  %7003 = vst [vmem:[#allocation3 + $0x280] sm:$0xff] %v6987
  %7004 = vst [vmem:[#allocation3 + $0x288] sm:$0xff] %v6988
  %7005 = vst [vmem:[#allocation3 + $0x290] sm:$0xff] %v6989
  %7006 = vst [vmem:[#allocation3 + $0x298] sm:$0xff] %v6990
  %7007 = vst [vmem:[#allocation3 + $0x2a0] sm:$0xff] %v6991
  %7008 = vst [vmem:[#allocation3 + $0x2a8] sm:$0xff] %v6992
  %7009 = vst [vmem:[#allocation3 + $0x2b0] sm:$0xff] %v6993
  %7010 = vst [vmem:[#allocation3 + $0x2b8] sm:$0xff] %v6994
  %v7011 = vld [vmem:[#allocation2] sm:$0xff]
  %v7012 = vld [vmem:[#allocation2 + $0x8] sm:$0xff]
  %v7013 = vld [vmem:[#allocation2 + $0x10] sm:$0xff]
  %v7014 = vld [vmem:[#allocation2 + $0x18] sm:$0xff]
  %v7015 = vld [vmem:[#allocation2 + $0x20] sm:$0xff]
  %v7016 = vld [vmem:[#allocation2 + $0x28] sm:$0xff]
  %v7017 = vld [vmem:[#allocation2 + $0x30] sm:$0xff]
  %v7018 = vld [vmem:[#allocation2 + $0x38] sm:$0xff]
  %v7019 = vld [vmem:[#allocation2 + $0x40] sm:$0xff]
  %v7020 = vld [vmem:[%s2840] ss:$8 sm:$0xf]
  %v7021 = vld [vmem:[%s2840] ss:$8 sm:$0xf0]
  %v7022 = vor.u32 %v7020, %v7021
  %v7024 = vlaneseq
  %v7025 = vshrl.u32 %v7024, 7
  %v7026 = vsub.s32 0, %v7025
  %v7027 = vrot.slane %v7022, %v7026
  %v7028 = vlaneseq
  %v7029 = vshrl.u32 %v7028, 7
  %v7030 = vsub.s32 1, %v7029
  %v7031 = vrot.slane %v7022, %v7030
  %v7032 = vlaneseq
  %v7033 = vshrl.u32 %v7032, 7
  %v7034 = vsub.s32 2, %v7033
  %v7035 = vrot.slane %v7022, %v7034
  %v7036 = vlaneseq
  %v7037 = vshrl.u32 %v7036, 7
  %v7038 = vsub.s32 3, %v7037
  %v7039 = vrot.slane %v7022, %v7038
  %v7040 = vlaneseq
  %v7041 = vshrl.u32 %v7040, 7
  %v7042 = vsub.s32 4, %v7041
  %v7043 = vrot.slane %v7022, %v7042
  %v7044 = vlaneseq
  %v7045 = vshrl.u32 %v7044, 7
  %v7046 = vsub.s32 5, %v7045
  %v7047 = vrot.slane %v7022, %v7046
  %v7048 = vlaneseq
  %v7049 = vshrl.u32 %v7048, 7
  %v7050 = vsub.s32 6, %v7049
  %v7051 = vrot.slane %v7022, %v7050
  %v7052 = vlaneseq
  %v7053 = vshrl.u32 %v7052, 7
  %v7054 = vsub.s32 7, %v7053
  %v7055 = vrot.slane %v7022, %v7054
  %7056 = vrot.lane.b32.xlu0 %v7027, 121
  %v7057 = vpop.permute.xlu0 %7056
  %7058 = vrot.lane.b32.xlu0 %v7031, 121
  %v7059 = vpop.permute.xlu0 %7058
  %7060 = vrot.lane.b32.xlu0 %v7035, 121
  %v7061 = vpop.permute.xlu0 %7060
  %7062 = vrot.lane.b32.xlu0 %v7039, 121
  %v7063 = vpop.permute.xlu0 %7062
  %7064 = vrot.lane.b32.xlu0 %v7043, 121
  %v7065 = vpop.permute.xlu0 %7064
  %7066 = vrot.lane.b32.xlu0 %v7047, 121
  %v7067 = vpop.permute.xlu0 %7066
  %7068 = vrot.lane.b32.xlu0 %v7051, 121
  %v7069 = vpop.permute.xlu0 %7068
  %7070 = vrot.lane.b32.xlu0 %v7055, 121
  %v7071 = vpop.permute.xlu0 %7070
  %v7072 = vsel %vm2893, %v7057, %v7059
  %v7073 = vsel %vm2893, %v7059, %v7061
  %v7074 = vsel %vm2893, %v7061, %v7063
  %v7075 = vsel %vm2893, %v7063, %v7065
  %v7076 = vsel %vm2893, %v7065, %v7067
  %v7077 = vsel %vm2893, %v7067, %v7069
  %v7078 = vsel %vm2893, %v7069, %v7071
  %v7088 = vmul.f32 %v7011, %v7057
  %v7089 = vmul.f32 %v7012, %v7072
  %v7090 = vmul.f32 %v7013, %v7073
  %v7091 = vmul.f32 %v7014, %v7074
  %v7092 = vmul.f32 %v7015, %v7075
  %v7093 = vmul.f32 %v7016, %v7076
  %v7094 = vmul.f32 %v7017, %v7077
  %v7095 = vmul.f32 %v7018, %v7078
  %v7096 = vmul.f32 %v7019, %v7071
  %7106 = vrot.lane.b32.xlu0 %v7088, 7
  %v7107 = vpop.permute.xlu0 %7106
  %7108 = vrot.lane.b32.xlu0 %v7089, 7
  %v7109 = vpop.permute.xlu0 %7108
  %7110 = vrot.lane.b32.xlu0 %v7090, 7
  %v7111 = vpop.permute.xlu0 %7110
  %7112 = vrot.lane.b32.xlu0 %v7091, 7
  %v7113 = vpop.permute.xlu0 %7112
  %7114 = vrot.lane.b32.xlu0 %v7092, 7
  %v7115 = vpop.permute.xlu0 %7114
  %7116 = vrot.lane.b32.xlu0 %v7093, 7
  %v7117 = vpop.permute.xlu0 %7116
  %7118 = vrot.lane.b32.xlu0 %v7094, 7
  %v7119 = vpop.permute.xlu0 %7118
  %7120 = vrot.lane.b32.xlu0 %v7095, 7
  %v7121 = vpop.permute.xlu0 %7120
  %7122 = vrot.lane.b32.xlu0 %v7096, 7
  %v7123 = vpop.permute.xlu0 %7122
  %v7124 = vsel %vm2946, %v7107, %v7109
  %v7125 = vsel %vm2946, %v7109, %v7111
  %v7126 = vsel %vm2946, %v7111, %v7113
  %v7127 = vsel %vm2946, %v7113, %v7115
  %v7128 = vsel %vm2946, %v7115, %v7117
  %v7129 = vsel %vm2946, %v7117, %v7119
  %v7130 = vsel %vm2946, %v7119, %v7121
  %v7131 = vsel %vm2946, %v7121, %v7123
  %7140 = vst [vmem:[#allocation3 + $0x2c0] sm:$0xff] %v7124
  %7141 = vst [vmem:[#allocation3 + $0x2c8] sm:$0xff] %v7125
  %7142 = vst [vmem:[#allocation3 + $0x2d0] sm:$0xff] %v7126
  %7143 = vst [vmem:[#allocation3 + $0x2d8] sm:$0xff] %v7127
  %7144 = vst [vmem:[#allocation3 + $0x2e0] sm:$0xff] %v7128
  %7145 = vst [vmem:[#allocation3 + $0x2e8] sm:$0xff] %v7129
  %7146 = vst [vmem:[#allocation3 + $0x2f0] sm:$0xff] %v7130
  %7147 = vst [vmem:[#allocation3 + $0x2f8] sm:$0xff] %v7131
  %v7148 = vld [vmem:[#allocation2] sm:$0xff]
  %v7149 = vld [vmem:[#allocation2 + $0x8] sm:$0xff]
  %v7150 = vld [vmem:[#allocation2 + $0x10] sm:$0xff]
  %v7151 = vld [vmem:[#allocation2 + $0x18] sm:$0xff]
  %v7152 = vld [vmem:[#allocation2 + $0x20] sm:$0xff]
  %v7153 = vld [vmem:[#allocation2 + $0x28] sm:$0xff]
  %v7154 = vld [vmem:[#allocation2 + $0x30] sm:$0xff]
  %v7155 = vld [vmem:[#allocation2 + $0x38] sm:$0xff]
  %v7156 = vld [vmem:[#allocation2 + $0x40] sm:$0xff]
  %v7157 = vld [vmem:[%s2980] ss:$8 sm:$0xf]
  %v7158 = vld [vmem:[%s2980] ss:$8 sm:$0xf0]
  %v7159 = vor.u32 %v7157, %v7158
  %v7161 = vlaneseq
  %v7162 = vshrl.u32 %v7161, 7
  %v7163 = vsub.s32 0, %v7162
  %v7164 = vrot.slane %v7159, %v7163
  %v7165 = vlaneseq
  %v7166 = vshrl.u32 %v7165, 7
  %v7167 = vsub.s32 1, %v7166
  %v7168 = vrot.slane %v7159, %v7167
  %v7169 = vlaneseq
  %v7170 = vshrl.u32 %v7169, 7
  %v7171 = vsub.s32 2, %v7170
  %v7172 = vrot.slane %v7159, %v7171
  %v7173 = vlaneseq
  %v7174 = vshrl.u32 %v7173, 7
  %v7175 = vsub.s32 3, %v7174
  %v7176 = vrot.slane %v7159, %v7175
  %v7177 = vlaneseq
  %v7178 = vshrl.u32 %v7177, 7
  %v7179 = vsub.s32 4, %v7178
  %v7180 = vrot.slane %v7159, %v7179
  %v7181 = vlaneseq
  %v7182 = vshrl.u32 %v7181, 7
  %v7183 = vsub.s32 5, %v7182
  %v7184 = vrot.slane %v7159, %v7183
  %v7185 = vlaneseq
  %v7186 = vshrl.u32 %v7185, 7
  %v7187 = vsub.s32 6, %v7186
  %v7188 = vrot.slane %v7159, %v7187
  %v7189 = vlaneseq
  %v7190 = vshrl.u32 %v7189, 7
  %v7191 = vsub.s32 7, %v7190
  %v7192 = vrot.slane %v7159, %v7191
  %7193 = vrot.lane.b32.xlu0 %v7164, 127
  %v7194 = vpop.permute.xlu0 %7193
  %7195 = vrot.lane.b32.xlu0 %v7168, 127
  %v7196 = vpop.permute.xlu0 %7195
  %7197 = vrot.lane.b32.xlu0 %v7172, 127
  %v7198 = vpop.permute.xlu0 %7197
  %7199 = vrot.lane.b32.xlu0 %v7176, 127
  %v7200 = vpop.permute.xlu0 %7199
  %7201 = vrot.lane.b32.xlu0 %v7180, 127
  %v7202 = vpop.permute.xlu0 %7201
  %7203 = vrot.lane.b32.xlu0 %v7184, 127
  %v7204 = vpop.permute.xlu0 %7203
  %7205 = vrot.lane.b32.xlu0 %v7188, 127
  %v7206 = vpop.permute.xlu0 %7205
  %7207 = vrot.lane.b32.xlu0 %v7192, 127
  %v7208 = vpop.permute.xlu0 %7207
  %v7209 = vsel %vm3033, %v7194, %v7196
  %v7210 = vsel %vm3033, %v7196, %v7198
  %v7211 = vsel %vm3033, %v7198, %v7200
  %v7212 = vsel %vm3033, %v7200, %v7202
  %v7213 = vsel %vm3033, %v7202, %v7204
  %v7214 = vsel %vm3033, %v7204, %v7206
  %v7215 = vsel %vm3033, %v7206, %v7208
  %v7225 = vmul.f32 %v7148, %v7194
  %v7226 = vmul.f32 %v7149, %v7209
  %v7227 = vmul.f32 %v7150, %v7210
  %v7228 = vmul.f32 %v7151, %v7211
  %v7229 = vmul.f32 %v7152, %v7212
  %v7230 = vmul.f32 %v7153, %v7213
  %v7231 = vmul.f32 %v7154, %v7214
  %v7232 = vmul.f32 %v7155, %v7215
  %v7233 = vmul.f32 %v7156, %v7208
  %7243 = vrot.lane.b32.xlu0 %v7225, 1
  %v7244 = vpop.permute.xlu0 %7243
  %7245 = vrot.lane.b32.xlu0 %v7226, 1
  %v7246 = vpop.permute.xlu0 %7245
  %7247 = vrot.lane.b32.xlu0 %v7227, 1
  %v7248 = vpop.permute.xlu0 %7247
  %7249 = vrot.lane.b32.xlu0 %v7228, 1
  %v7250 = vpop.permute.xlu0 %7249
  %7251 = vrot.lane.b32.xlu0 %v7229, 1
  %v7252 = vpop.permute.xlu0 %7251
  %7253 = vrot.lane.b32.xlu0 %v7230, 1
  %v7254 = vpop.permute.xlu0 %7253
  %7255 = vrot.lane.b32.xlu0 %v7231, 1
  %v7256 = vpop.permute.xlu0 %7255
  %7257 = vrot.lane.b32.xlu0 %v7232, 1
  %v7258 = vpop.permute.xlu0 %7257
  %7259 = vrot.lane.b32.xlu0 %v7233, 1
  %v7260 = vpop.permute.xlu0 %7259
  %v7261 = vsel %vm3086, %v7244, %v7246
  %v7262 = vsel %vm3086, %v7246, %v7248
  %v7263 = vsel %vm3086, %v7248, %v7250
  %v7264 = vsel %vm3086, %v7250, %v7252
  %v7265 = vsel %vm3086, %v7252, %v7254
  %v7266 = vsel %vm3086, %v7254, %v7256
  %v7267 = vsel %vm3086, %v7256, %v7258
  %v7268 = vsel %vm3086, %v7258, %v7260
  %7277 = vst [vmem:[#allocation3 + $0x300] sm:$0xff] %v7261
  %7278 = vst [vmem:[#allocation3 + $0x308] sm:$0xff] %v7262
  %7279 = vst [vmem:[#allocation3 + $0x310] sm:$0xff] %v7263
  %7280 = vst [vmem:[#allocation3 + $0x318] sm:$0xff] %v7264
  %7281 = vst [vmem:[#allocation3 + $0x320] sm:$0xff] %v7265
  %7282 = vst [vmem:[#allocation3 + $0x328] sm:$0xff] %v7266
  %7283 = vst [vmem:[#allocation3 + $0x330] sm:$0xff] %v7267
  %7284 = vst [vmem:[#allocation3 + $0x338] sm:$0xff] %v7268
  %7285 = vst [vmem:[#allocation3 + $0x340] sm:$0xff] %v5487
  %7286 = vst [vmem:[#allocation3 + $0x348] sm:$0xff] %v5488
  %7287 = vst [vmem:[#allocation3 + $0x350] sm:$0xff] %v5489
  %7288 = vst [vmem:[#allocation3 + $0x358] sm:$0xff] %v5490
  %7289 = vst [vmem:[#allocation3 + $0x360] sm:$0xff] %v5491
  %7290 = vst [vmem:[#allocation3 + $0x368] sm:$0xff] %v5492
  %7291 = vst [vmem:[#allocation3 + $0x370] sm:$0xff] %v5493
  %7292 = vst [vmem:[#allocation3 + $0x378] sm:$0xff] %v5494
  %v7293 = vld [vmem:[#allocation2 + $0x8] sm:$0xff]
  %v7294 = vld [vmem:[#allocation2 + $0x10] sm:$0xff]
  %v7295 = vld [vmem:[#allocation2 + $0x18] sm:$0xff]
  %v7296 = vld [vmem:[#allocation2 + $0x20] sm:$0xff]
  %v7297 = vld [vmem:[#allocation2 + $0x28] sm:$0xff]
  %v7298 = vld [vmem:[#allocation2 + $0x30] sm:$0xff]
  %v7299 = vld [vmem:[#allocation2 + $0x38] sm:$0xff]
  %v7300 = vld [vmem:[#allocation2 + $0x40] sm:$0xff]
  %v7301 = vld [vmem:[#allocation2 + $0x48] sm:$0xff]
  %v7302 = vld [vmem:[%s3128] ss:$8 sm:$0xf]
  %v7303 = vld [vmem:[%s3128] ss:$8 sm:$0xf0]
  %v7304 = vor.u32 %v7302, %v7303
  %v7306 = vlaneseq
  %v7307 = vshrl.u32 %v7306, 7
  %v7308 = vsub.s32 0, %v7307
  %v7309 = vrot.slane %v7304, %v7308
  %v7310 = vlaneseq
  %v7311 = vshrl.u32 %v7310, 7
  %v7312 = vsub.s32 1, %v7311
  %v7313 = vrot.slane %v7304, %v7312
  %v7314 = vlaneseq
  %v7315 = vshrl.u32 %v7314, 7
  %v7316 = vsub.s32 2, %v7315
  %v7317 = vrot.slane %v7304, %v7316
  %v7318 = vlaneseq
  %v7319 = vshrl.u32 %v7318, 7
  %v7320 = vsub.s32 3, %v7319
  %v7321 = vrot.slane %v7304, %v7320
  %v7322 = vlaneseq
  %v7323 = vshrl.u32 %v7322, 7
  %v7324 = vsub.s32 4, %v7323
  %v7325 = vrot.slane %v7304, %v7324
  %v7326 = vlaneseq
  %v7327 = vshrl.u32 %v7326, 7
  %v7328 = vsub.s32 5, %v7327
  %v7329 = vrot.slane %v7304, %v7328
  %v7330 = vlaneseq
  %v7331 = vshrl.u32 %v7330, 7
  %v7332 = vsub.s32 6, %v7331
  %v7333 = vrot.slane %v7304, %v7332
  %v7334 = vlaneseq
  %v7335 = vshrl.u32 %v7334, 7
  %v7336 = vsub.s32 7, %v7335
  %v7337 = vrot.slane %v7304, %v7336
  %7338 = vrot.lane.b32.xlu0 %v7309, 1
  %v7339 = vpop.permute.xlu0 %7338
  %7340 = vrot.lane.b32.xlu0 %v7313, 1
  %v7341 = vpop.permute.xlu0 %7340
  %7342 = vrot.lane.b32.xlu0 %v7317, 1
  %v7343 = vpop.permute.xlu0 %7342
  %7344 = vrot.lane.b32.xlu0 %v7321, 1
  %v7345 = vpop.permute.xlu0 %7344
  %7346 = vrot.lane.b32.xlu0 %v7325, 1
  %v7347 = vpop.permute.xlu0 %7346
  %7348 = vrot.lane.b32.xlu0 %v7329, 1
  %v7349 = vpop.permute.xlu0 %7348
  %7350 = vrot.lane.b32.xlu0 %v7333, 1
  %v7351 = vpop.permute.xlu0 %7350
  %7352 = vrot.lane.b32.xlu0 %v7337, 1
  %v7353 = vpop.permute.xlu0 %7352
  %v7354 = vsel %vm3086, %v7339, %v7341
  %v7355 = vsel %vm3086, %v7341, %v7343
  %v7356 = vsel %vm3086, %v7343, %v7345
  %v7357 = vsel %vm3086, %v7345, %v7347
  %v7358 = vsel %vm3086, %v7347, %v7349
  %v7359 = vsel %vm3086, %v7349, %v7351
  %v7360 = vsel %vm3086, %v7351, %v7353
  %v7370 = vmul.f32 %v7293, %v7339
  %v7371 = vmul.f32 %v7294, %v7354
  %v7372 = vmul.f32 %v7295, %v7355
  %v7373 = vmul.f32 %v7296, %v7356
  %v7374 = vmul.f32 %v7297, %v7357
  %v7375 = vmul.f32 %v7298, %v7358
  %v7376 = vmul.f32 %v7299, %v7359
  %v7377 = vmul.f32 %v7300, %v7360
  %v7378 = vmul.f32 %v7301, %v7353
  %7388 = vrot.lane.b32.xlu0 %v7370, 127
  %v7389 = vpop.permute.xlu0 %7388
  %7390 = vrot.lane.b32.xlu0 %v7371, 127
  %v7391 = vpop.permute.xlu0 %7390
  %7392 = vrot.lane.b32.xlu0 %v7372, 127
  %v7393 = vpop.permute.xlu0 %7392
  %7394 = vrot.lane.b32.xlu0 %v7373, 127
  %v7395 = vpop.permute.xlu0 %7394
  %7396 = vrot.lane.b32.xlu0 %v7374, 127
  %v7397 = vpop.permute.xlu0 %7396
  %7398 = vrot.lane.b32.xlu0 %v7375, 127
  %v7399 = vpop.permute.xlu0 %7398
  %7400 = vrot.lane.b32.xlu0 %v7376, 127
  %v7401 = vpop.permute.xlu0 %7400
  %7402 = vrot.lane.b32.xlu0 %v7377, 127
  %v7403 = vpop.permute.xlu0 %7402
  %7404 = vrot.lane.b32.xlu0 %v7378, 127
  %v7405 = vpop.permute.xlu0 %7404
  %v7406 = vsel %vm3033, %v7389, %v7391
  %v7407 = vsel %vm3033, %v7391, %v7393
  %v7408 = vsel %vm3033, %v7393, %v7395
  %v7409 = vsel %vm3033, %v7395, %v7397
  %v7410 = vsel %vm3033, %v7397, %v7399
  %v7411 = vsel %vm3033, %v7399, %v7401
  %v7412 = vsel %vm3033, %v7401, %v7403
  %v7413 = vsel %vm3033, %v7403, %v7405
  %7422 = vst [vmem:[#allocation3 + $0x380] sm:$0xff] %v7406
  %7423 = vst [vmem:[#allocation3 + $0x388] sm:$0xff] %v7407
  %7424 = vst [vmem:[#allocation3 + $0x390] sm:$0xff] %v7408
  %7425 = vst [vmem:[#allocation3 + $0x398] sm:$0xff] %v7409
  %7426 = vst [vmem:[#allocation3 + $0x3a0] sm:$0xff] %v7410
  %7427 = vst [vmem:[#allocation3 + $0x3a8] sm:$0xff] %v7411
  %7428 = vst [vmem:[#allocation3 + $0x3b0] sm:$0xff] %v7412
  %7429 = vst [vmem:[#allocation3 + $0x3b8] sm:$0xff] %v7413
  %v7430 = vld [vmem:[#allocation2 + $0x8] sm:$0xff]
  %v7431 = vld [vmem:[#allocation2 + $0x10] sm:$0xff]
  %v7432 = vld [vmem:[#allocation2 + $0x18] sm:$0xff]
  %v7433 = vld [vmem:[#allocation2 + $0x20] sm:$0xff]
  %v7434 = vld [vmem:[#allocation2 + $0x28] sm:$0xff]
  %v7435 = vld [vmem:[#allocation2 + $0x30] sm:$0xff]
  %v7436 = vld [vmem:[#allocation2 + $0x38] sm:$0xff]
  %v7437 = vld [vmem:[#allocation2 + $0x40] sm:$0xff]
  %v7438 = vld [vmem:[#allocation2 + $0x48] sm:$0xff]
  %v7439 = vld [vmem:[%s3266] ss:$8 sm:$0xf]
  %v7440 = vld [vmem:[%s3266] ss:$8 sm:$0xf0]
  %v7441 = vor.u32 %v7439, %v7440
  %v7443 = vlaneseq
  %v7444 = vshrl.u32 %v7443, 7
  %v7445 = vsub.s32 0, %v7444
  %v7446 = vrot.slane %v7441, %v7445
  %v7447 = vlaneseq
  %v7448 = vshrl.u32 %v7447, 7
  %v7449 = vsub.s32 1, %v7448
  %v7450 = vrot.slane %v7441, %v7449
  %v7451 = vlaneseq
  %v7452 = vshrl.u32 %v7451, 7
  %v7453 = vsub.s32 2, %v7452
  %v7454 = vrot.slane %v7441, %v7453
  %v7455 = vlaneseq
  %v7456 = vshrl.u32 %v7455, 7
  %v7457 = vsub.s32 3, %v7456
  %v7458 = vrot.slane %v7441, %v7457
  %v7459 = vlaneseq
  %v7460 = vshrl.u32 %v7459, 7
  %v7461 = vsub.s32 4, %v7460
  %v7462 = vrot.slane %v7441, %v7461
  %v7463 = vlaneseq
  %v7464 = vshrl.u32 %v7463, 7
  %v7465 = vsub.s32 5, %v7464
  %v7466 = vrot.slane %v7441, %v7465
  %v7467 = vlaneseq
  %v7468 = vshrl.u32 %v7467, 7
  %v7469 = vsub.s32 6, %v7468
  %v7470 = vrot.slane %v7441, %v7469
  %v7471 = vlaneseq
  %v7472 = vshrl.u32 %v7471, 7
  %v7473 = vsub.s32 7, %v7472
  %v7474 = vrot.slane %v7441, %v7473
  %7475 = vrot.lane.b32.xlu0 %v7446, 7
  %v7476 = vpop.permute.xlu0 %7475
  %7477 = vrot.lane.b32.xlu0 %v7450, 7
  %v7478 = vpop.permute.xlu0 %7477
  %7479 = vrot.lane.b32.xlu0 %v7454, 7
  %v7480 = vpop.permute.xlu0 %7479
  %7481 = vrot.lane.b32.xlu0 %v7458, 7
  %v7482 = vpop.permute.xlu0 %7481
  %7483 = vrot.lane.b32.xlu0 %v7462, 7
  %v7484 = vpop.permute.xlu0 %7483
  %7485 = vrot.lane.b32.xlu0 %v7466, 7
  %v7486 = vpop.permute.xlu0 %7485
  %7487 = vrot.lane.b32.xlu0 %v7470, 7
  %v7488 = vpop.permute.xlu0 %7487
  %7489 = vrot.lane.b32.xlu0 %v7474, 7
  %v7490 = vpop.permute.xlu0 %7489
  %v7491 = vsel %vm2946, %v7476, %v7478
  %v7492 = vsel %vm2946, %v7478, %v7480
  %v7493 = vsel %vm2946, %v7480, %v7482
  %v7494 = vsel %vm2946, %v7482, %v7484
  %v7495 = vsel %vm2946, %v7484, %v7486
  %v7496 = vsel %vm2946, %v7486, %v7488
  %v7497 = vsel %vm2946, %v7488, %v7490
  %v7507 = vmul.f32 %v7430, %v7476
  %v7508 = vmul.f32 %v7431, %v7491
  %v7509 = vmul.f32 %v7432, %v7492
  %v7510 = vmul.f32 %v7433, %v7493
  %v7511 = vmul.f32 %v7434, %v7494
  %v7512 = vmul.f32 %v7435, %v7495
  %v7513 = vmul.f32 %v7436, %v7496
  %v7514 = vmul.f32 %v7437, %v7497
  %v7515 = vmul.f32 %v7438, %v7490
  %7525 = vrot.lane.b32.xlu0 %v7507, 121
  %v7526 = vpop.permute.xlu0 %7525
  %7527 = vrot.lane.b32.xlu0 %v7508, 121
  %v7528 = vpop.permute.xlu0 %7527
  %7529 = vrot.lane.b32.xlu0 %v7509, 121
  %v7530 = vpop.permute.xlu0 %7529
  %7531 = vrot.lane.b32.xlu0 %v7510, 121
  %v7532 = vpop.permute.xlu0 %7531
  %7533 = vrot.lane.b32.xlu0 %v7511, 121
  %v7534 = vpop.permute.xlu0 %7533
  %7535 = vrot.lane.b32.xlu0 %v7512, 121
  %v7536 = vpop.permute.xlu0 %7535
  %7537 = vrot.lane.b32.xlu0 %v7513, 121
  %v7538 = vpop.permute.xlu0 %7537
  %7539 = vrot.lane.b32.xlu0 %v7514, 121
  %v7540 = vpop.permute.xlu0 %7539
  %7541 = vrot.lane.b32.xlu0 %v7515, 121
  %v7542 = vpop.permute.xlu0 %7541
  %v7543 = vsel %vm2893, %v7526, %v7528
  %v7544 = vsel %vm2893, %v7528, %v7530
  %v7545 = vsel %vm2893, %v7530, %v7532
  %v7546 = vsel %vm2893, %v7532, %v7534
  %v7547 = vsel %vm2893, %v7534, %v7536
  %v7548 = vsel %vm2893, %v7536, %v7538
  %v7549 = vsel %vm2893, %v7538, %v7540
  %v7550 = vsel %vm2893, %v7540, %v7542
  %7559 = vst [vmem:[#allocation3 + $0x3c0] sm:$0xff] %v7543
  %7560 = vst [vmem:[#allocation3 + $0x3c8] sm:$0xff] %v7544
  %7561 = vst [vmem:[#allocation3 + $0x3d0] sm:$0xff] %v7545
  %7562 = vst [vmem:[#allocation3 + $0x3d8] sm:$0xff] %v7546
  %7563 = vst [vmem:[#allocation3 + $0x3e0] sm:$0xff] %v7547
  %7564 = vst [vmem:[#allocation3 + $0x3e8] sm:$0xff] %v7548
  %7565 = vst [vmem:[#allocation3 + $0x3f0] sm:$0xff] %v7549
  %7566 = vst [vmem:[#allocation3 + $0x3f8] sm:$0xff] %v7550
  %v7567 = vld [vmem:[#allocation2 + $0x8] sm:$0xff]
  %v7568 = vld [vmem:[#allocation2 + $0x10] sm:$0xff]
  %v7569 = vld [vmem:[#allocation2 + $0x18] sm:$0xff]
  %v7570 = vld [vmem:[#allocation2 + $0x20] sm:$0xff]
  %v7571 = vld [vmem:[#allocation2 + $0x28] sm:$0xff]
  %v7572 = vld [vmem:[#allocation2 + $0x30] sm:$0xff]
  %v7573 = vld [vmem:[#allocation2 + $0x38] sm:$0xff]
  %v7574 = vld [vmem:[#allocation2 + $0x40] sm:$0xff]
  %v7575 = vld [vmem:[#allocation2 + $0x48] sm:$0xff]
  %v7576 = vld [vmem:[%s3404] ss:$8 sm:$0xf]
  %v7577 = vld [vmem:[%s3404] ss:$8 sm:$0xf0]
  %v7578 = vor.u32 %v7576, %v7577
  %v7580 = vlaneseq
  %v7581 = vshrl.u32 %v7580, 7
  %v7582 = vsub.s32 0, %v7581
  %v7583 = vrot.slane %v7578, %v7582
  %v7584 = vlaneseq
  %v7585 = vshrl.u32 %v7584, 7
  %v7586 = vsub.s32 1, %v7585
  %v7587 = vrot.slane %v7578, %v7586
  %v7588 = vlaneseq
  %v7589 = vshrl.u32 %v7588, 7
  %v7590 = vsub.s32 2, %v7589
  %v7591 = vrot.slane %v7578, %v7590
  %v7592 = vlaneseq
  %v7593 = vshrl.u32 %v7592, 7
  %v7594 = vsub.s32 3, %v7593
  %v7595 = vrot.slane %v7578, %v7594
  %v7596 = vlaneseq
  %v7597 = vshrl.u32 %v7596, 7
  %v7598 = vsub.s32 4, %v7597
  %v7599 = vrot.slane %v7578, %v7598
  %v7600 = vlaneseq
  %v7601 = vshrl.u32 %v7600, 7
  %v7602 = vsub.s32 5, %v7601
  %v7603 = vrot.slane %v7578, %v7602
  %v7604 = vlaneseq
  %v7605 = vshrl.u32 %v7604, 7
  %v7606 = vsub.s32 6, %v7605
  %v7607 = vrot.slane %v7578, %v7606
  %v7608 = vlaneseq
  %v7609 = vshrl.u32 %v7608, 7
  %v7610 = vsub.s32 7, %v7609
  %v7611 = vrot.slane %v7578, %v7610
  %7612 = vrot.lane.b32.xlu0 %v7583, 8
  %v7613 = vpop.permute.xlu0 %7612
  %7614 = vrot.lane.b32.xlu0 %v7587, 8
  %v7615 = vpop.permute.xlu0 %7614
  %7616 = vrot.lane.b32.xlu0 %v7591, 8
  %v7617 = vpop.permute.xlu0 %7616
  %7618 = vrot.lane.b32.xlu0 %v7595, 8
  %v7619 = vpop.permute.xlu0 %7618
  %7620 = vrot.lane.b32.xlu0 %v7599, 8
  %v7621 = vpop.permute.xlu0 %7620
  %7622 = vrot.lane.b32.xlu0 %v7603, 8
  %v7623 = vpop.permute.xlu0 %7622
  %7624 = vrot.lane.b32.xlu0 %v7607, 8
  %v7625 = vpop.permute.xlu0 %7624
  %7626 = vrot.lane.b32.xlu0 %v7611, 8
  %v7627 = vpop.permute.xlu0 %7626
  %v7628 = vsel %vm65, %v7613, %v7615
  %v7629 = vsel %vm65, %v7615, %v7617
  %v7630 = vsel %vm65, %v7617, %v7619
  %v7631 = vsel %vm65, %v7619, %v7621
  %v7632 = vsel %vm65, %v7621, %v7623
  %v7633 = vsel %vm65, %v7623, %v7625
  %v7634 = vsel %vm65, %v7625, %v7627
  %v7644 = vmul.f32 %v7567, %v7613
  %v7645 = vmul.f32 %v7568, %v7628
  %v7646 = vmul.f32 %v7569, %v7629
  %v7647 = vmul.f32 %v7570, %v7630
  %v7648 = vmul.f32 %v7571, %v7631
  %v7649 = vmul.f32 %v7572, %v7632
  %v7650 = vmul.f32 %v7573, %v7633
  %v7651 = vmul.f32 %v7574, %v7634
  %v7652 = vmul.f32 %v7575, %v7627
  %7662 = vrot.lane.b32.xlu0 %v7644, 120
  %v7663 = vpop.permute.xlu0 %7662
  %7664 = vrot.lane.b32.xlu0 %v7645, 120
  %v7665 = vpop.permute.xlu0 %7664
  %7666 = vrot.lane.b32.xlu0 %v7646, 120
  %v7667 = vpop.permute.xlu0 %7666
  %7668 = vrot.lane.b32.xlu0 %v7647, 120
  %v7669 = vpop.permute.xlu0 %7668
  %7670 = vrot.lane.b32.xlu0 %v7648, 120
  %v7671 = vpop.permute.xlu0 %7670
  %7672 = vrot.lane.b32.xlu0 %v7649, 120
  %v7673 = vpop.permute.xlu0 %7672
  %7674 = vrot.lane.b32.xlu0 %v7650, 120
  %v7675 = vpop.permute.xlu0 %7674
  %7676 = vrot.lane.b32.xlu0 %v7651, 120
  %v7677 = vpop.permute.xlu0 %7676
  %7678 = vrot.lane.b32.xlu0 %v7652, 120
  %v7679 = vpop.permute.xlu0 %7678
  %v7680 = vsel %vm2754, %v7663, %v7665
  %v7681 = vsel %vm2754, %v7665, %v7667
  %v7682 = vsel %vm2754, %v7667, %v7669
  %v7683 = vsel %vm2754, %v7669, %v7671
  %v7684 = vsel %vm2754, %v7671, %v7673
  %v7685 = vsel %vm2754, %v7673, %v7675
  %v7686 = vsel %vm2754, %v7675, %v7677
  %v7687 = vsel %vm2754, %v7677, %v7679
  %7696 = vst [vmem:[#allocation3 + $0x400] sm:$0xff] %v7680
  %7697 = vst [vmem:[#allocation3 + $0x408] sm:$0xff] %v7681
  %7698 = vst [vmem:[#allocation3 + $0x410] sm:$0xff] %v7682
  %7699 = vst [vmem:[#allocation3 + $0x418] sm:$0xff] %v7683
  %7700 = vst [vmem:[#allocation3 + $0x420] sm:$0xff] %v7684
  %7701 = vst [vmem:[#allocation3 + $0x428] sm:$0xff] %v7685
  %7702 = vst [vmem:[#allocation3 + $0x430] sm:$0xff] %v7686
  %7703 = vst [vmem:[#allocation3 + $0x438] sm:$0xff] %v7687
  %v7704 = vld [vmem:[#allocation2 + $0x8] sm:$0xff]
  %v7705 = vld [vmem:[#allocation2 + $0x10] sm:$0xff]
  %v7706 = vld [vmem:[#allocation2 + $0x18] sm:$0xff]
  %v7707 = vld [vmem:[#allocation2 + $0x20] sm:$0xff]
  %v7708 = vld [vmem:[#allocation2 + $0x28] sm:$0xff]
  %v7709 = vld [vmem:[#allocation2 + $0x30] sm:$0xff]
  %v7710 = vld [vmem:[#allocation2 + $0x38] sm:$0xff]
  %v7711 = vld [vmem:[#allocation2 + $0x40] sm:$0xff]
  %v7712 = vld [vmem:[#allocation2 + $0x48] sm:$0xff]
  %v7713 = vld [vmem:[%s3542] ss:$8 sm:$0xf]
  %v7714 = vld [vmem:[%s3542] ss:$8 sm:$0xf0]
  %v7715 = vor.u32 %v7713, %v7714
  %v7717 = vlaneseq
  %v7718 = vshrl.u32 %v7717, 7
  %v7719 = vsub.s32 0, %v7718
  %v7720 = vrot.slane %v7715, %v7719
  %v7721 = vlaneseq
  %v7722 = vshrl.u32 %v7721, 7
  %v7723 = vsub.s32 1, %v7722
  %v7724 = vrot.slane %v7715, %v7723
  %v7725 = vlaneseq
  %v7726 = vshrl.u32 %v7725, 7
  %v7727 = vsub.s32 2, %v7726
  %v7728 = vrot.slane %v7715, %v7727
  %v7729 = vlaneseq
  %v7730 = vshrl.u32 %v7729, 7
  %v7731 = vsub.s32 3, %v7730
  %v7732 = vrot.slane %v7715, %v7731
  %v7733 = vlaneseq
  %v7734 = vshrl.u32 %v7733, 7
  %v7735 = vsub.s32 4, %v7734
  %v7736 = vrot.slane %v7715, %v7735
  %v7737 = vlaneseq
  %v7738 = vshrl.u32 %v7737, 7
  %v7739 = vsub.s32 5, %v7738
  %v7740 = vrot.slane %v7715, %v7739
  %v7741 = vlaneseq
  %v7742 = vshrl.u32 %v7741, 7
  %v7743 = vsub.s32 6, %v7742
  %v7744 = vrot.slane %v7715, %v7743
  %v7745 = vlaneseq
  %v7746 = vshrl.u32 %v7745, 7
  %v7747 = vsub.s32 7, %v7746
  %v7748 = vrot.slane %v7715, %v7747
  %7749 = vrot.lane.b32.xlu0 %v7720, 9
  %v7750 = vpop.permute.xlu0 %7749
  %7751 = vrot.lane.b32.xlu0 %v7724, 9
  %v7752 = vpop.permute.xlu0 %7751
  %7753 = vrot.lane.b32.xlu0 %v7728, 9
  %v7754 = vpop.permute.xlu0 %7753
  %7755 = vrot.lane.b32.xlu0 %v7732, 9
  %v7756 = vpop.permute.xlu0 %7755
  %7757 = vrot.lane.b32.xlu0 %v7736, 9
  %v7758 = vpop.permute.xlu0 %7757
  %7759 = vrot.lane.b32.xlu0 %v7740, 9
  %v7760 = vpop.permute.xlu0 %7759
  %7761 = vrot.lane.b32.xlu0 %v7744, 9
  %v7762 = vpop.permute.xlu0 %7761
  %7763 = vrot.lane.b32.xlu0 %v7748, 9
  %v7764 = vpop.permute.xlu0 %7763
  %v7765 = vsel %vm2667, %v7750, %v7752
  %v7766 = vsel %vm2667, %v7752, %v7754
  %v7767 = vsel %vm2667, %v7754, %v7756
  %v7768 = vsel %vm2667, %v7756, %v7758
  %v7769 = vsel %vm2667, %v7758, %v7760
  %v7770 = vsel %vm2667, %v7760, %v7762
  %v7771 = vsel %vm2667, %v7762, %v7764
  %v7781 = vmul.f32 %v7704, %v7750
  %v7782 = vmul.f32 %v7705, %v7765
  %v7783 = vmul.f32 %v7706, %v7766
  %v7784 = vmul.f32 %v7707, %v7767
  %v7785 = vmul.f32 %v7708, %v7768
  %v7786 = vmul.f32 %v7709, %v7769
  %v7787 = vmul.f32 %v7710, %v7770
  %v7788 = vmul.f32 %v7711, %v7771
  %v7789 = vmul.f32 %v7712, %v7764
  %7799 = vrot.lane.b32.xlu0 %v7781, 119
  %v7800 = vpop.permute.xlu0 %7799
  %7801 = vrot.lane.b32.xlu0 %v7782, 119
  %v7802 = vpop.permute.xlu0 %7801
  %7803 = vrot.lane.b32.xlu0 %v7783, 119
  %v7804 = vpop.permute.xlu0 %7803
  %7805 = vrot.lane.b32.xlu0 %v7784, 119
  %v7806 = vpop.permute.xlu0 %7805
  %7807 = vrot.lane.b32.xlu0 %v7785, 119
  %v7808 = vpop.permute.xlu0 %7807
  %7809 = vrot.lane.b32.xlu0 %v7786, 119
  %v7810 = vpop.permute.xlu0 %7809
  %7811 = vrot.lane.b32.xlu0 %v7787, 119
  %v7812 = vpop.permute.xlu0 %7811
  %7813 = vrot.lane.b32.xlu0 %v7788, 119
  %v7814 = vpop.permute.xlu0 %7813
  %7815 = vrot.lane.b32.xlu0 %v7789, 119
  %v7816 = vpop.permute.xlu0 %7815
  %v7817 = vsel %vm2614, %v7800, %v7802
  %v7818 = vsel %vm2614, %v7802, %v7804
  %v7819 = vsel %vm2614, %v7804, %v7806
  %v7820 = vsel %vm2614, %v7806, %v7808
  %v7821 = vsel %vm2614, %v7808, %v7810
  %v7822 = vsel %vm2614, %v7810, %v7812
  %v7823 = vsel %vm2614, %v7812, %v7814
  %v7824 = vsel %vm2614, %v7814, %v7816
  %7833 = vst [vmem:[#allocation3 + $0x440] sm:$0xff] %v7817
  %7834 = vst [vmem:[#allocation3 + $0x448] sm:$0xff] %v7818
  %7835 = vst [vmem:[#allocation3 + $0x450] sm:$0xff] %v7819
  %7836 = vst [vmem:[#allocation3 + $0x458] sm:$0xff] %v7820
  %7837 = vst [vmem:[#allocation3 + $0x460] sm:$0xff] %v7821
  %7838 = vst [vmem:[#allocation3 + $0x468] sm:$0xff] %v7822
  %7839 = vst [vmem:[#allocation3 + $0x470] sm:$0xff] %v7823
  %7840 = vst [vmem:[#allocation3 + $0x478] sm:$0xff] %v7824
  %v7841 = vld [vmem:[#allocation2 + $0x8] sm:$0xff]
  %v7842 = vld [vmem:[#allocation2 + $0x10] sm:$0xff]
  %v7843 = vld [vmem:[#allocation2 + $0x18] sm:$0xff]
  %v7844 = vld [vmem:[#allocation2 + $0x20] sm:$0xff]
  %v7845 = vld [vmem:[#allocation2 + $0x28] sm:$0xff]
  %v7846 = vld [vmem:[#allocation2 + $0x30] sm:$0xff]
  %v7847 = vld [vmem:[#allocation2 + $0x38] sm:$0xff]
  %v7848 = vld [vmem:[#allocation2 + $0x40] sm:$0xff]
  %v7849 = vld [vmem:[#allocation2 + $0x48] sm:$0xff]
  %v7850 = vld [vmem:[%s3680] ss:$8 sm:$0xf]
  %v7851 = vld [vmem:[%s3680] ss:$8 sm:$0xf0]
  %v7852 = vor.u32 %v7850, %v7851
  %v7854 = vlaneseq
  %v7855 = vshrl.u32 %v7854, 7
  %v7856 = vsub.s32 0, %v7855
  %v7857 = vrot.slane %v7852, %v7856
  %v7858 = vlaneseq
  %v7859 = vshrl.u32 %v7858, 7
  %v7860 = vsub.s32 1, %v7859
  %v7861 = vrot.slane %v7852, %v7860
  %v7862 = vlaneseq
  %v7863 = vshrl.u32 %v7862, 7
  %v7864 = vsub.s32 2, %v7863
  %v7865 = vrot.slane %v7852, %v7864
  %v7866 = vlaneseq
  %v7867 = vshrl.u32 %v7866, 7
  %v7868 = vsub.s32 3, %v7867
  %v7869 = vrot.slane %v7852, %v7868
  %v7870 = vlaneseq
  %v7871 = vshrl.u32 %v7870, 7
  %v7872 = vsub.s32 4, %v7871
  %v7873 = vrot.slane %v7852, %v7872
  %v7874 = vlaneseq
  %v7875 = vshrl.u32 %v7874, 7
  %v7876 = vsub.s32 5, %v7875
  %v7877 = vrot.slane %v7852, %v7876
  %v7878 = vlaneseq
  %v7879 = vshrl.u32 %v7878, 7
  %v7880 = vsub.s32 6, %v7879
  %v7881 = vrot.slane %v7852, %v7880
  %v7882 = vlaneseq
  %v7883 = vshrl.u32 %v7882, 7
  %v7884 = vsub.s32 7, %v7883
  %v7885 = vrot.slane %v7852, %v7884
  %7886 = vrot.lane.b32.xlu0 %v7857, 55
  %v7887 = vpop.permute.xlu0 %7886
  %7888 = vrot.lane.b32.xlu0 %v7861, 55
  %v7889 = vpop.permute.xlu0 %7888
  %7890 = vrot.lane.b32.xlu0 %v7865, 55
  %v7891 = vpop.permute.xlu0 %7890
  %7892 = vrot.lane.b32.xlu0 %v7869, 55
  %v7893 = vpop.permute.xlu0 %7892
  %7894 = vrot.lane.b32.xlu0 %v7873, 55
  %v7895 = vpop.permute.xlu0 %7894
  %7896 = vrot.lane.b32.xlu0 %v7877, 55
  %v7897 = vpop.permute.xlu0 %7896
  %7898 = vrot.lane.b32.xlu0 %v7881, 55
  %v7899 = vpop.permute.xlu0 %7898
  %7900 = vrot.lane.b32.xlu0 %v7885, 55
  %v7901 = vpop.permute.xlu0 %7900
  %v7902 = vsel %vm1363, %v7887, %v7889
  %v7903 = vsel %vm1363, %v7889, %v7891
  %v7904 = vsel %vm1363, %v7891, %v7893
  %v7905 = vsel %vm1363, %v7893, %v7895
  %v7906 = vsel %vm1363, %v7895, %v7897
  %v7907 = vsel %vm1363, %v7897, %v7899
  %v7908 = vsel %vm1363, %v7899, %v7901
  %v7918 = vmul.f32 %v7841, %v7887
  %v7919 = vmul.f32 %v7842, %v7902
  %v7920 = vmul.f32 %v7843, %v7903
  %v7921 = vmul.f32 %v7844, %v7904
  %v7922 = vmul.f32 %v7845, %v7905
  %v7923 = vmul.f32 %v7846, %v7906
  %v7924 = vmul.f32 %v7847, %v7907
  %v7925 = vmul.f32 %v7848, %v7908
  %v7926 = vmul.f32 %v7849, %v7901
  %7936 = vrot.lane.b32.xlu0 %v7918, 73
  %v7937 = vpop.permute.xlu0 %7936
  %7938 = vrot.lane.b32.xlu0 %v7919, 73
  %v7939 = vpop.permute.xlu0 %7938
  %7940 = vrot.lane.b32.xlu0 %v7920, 73
  %v7941 = vpop.permute.xlu0 %7940
  %7942 = vrot.lane.b32.xlu0 %v7921, 73
  %v7943 = vpop.permute.xlu0 %7942
  %7944 = vrot.lane.b32.xlu0 %v7922, 73
  %v7945 = vpop.permute.xlu0 %7944
  %7946 = vrot.lane.b32.xlu0 %v7923, 73
  %v7947 = vpop.permute.xlu0 %7946
  %7948 = vrot.lane.b32.xlu0 %v7924, 73
  %v7949 = vpop.permute.xlu0 %7948
  %7950 = vrot.lane.b32.xlu0 %v7925, 73
  %v7951 = vpop.permute.xlu0 %7950
  %7952 = vrot.lane.b32.xlu0 %v7926, 73
  %v7953 = vpop.permute.xlu0 %7952
  %v7954 = vsel %vm1416, %v7937, %v7939
  %v7955 = vsel %vm1416, %v7939, %v7941
  %v7956 = vsel %vm1416, %v7941, %v7943
  %v7957 = vsel %vm1416, %v7943, %v7945
  %v7958 = vsel %vm1416, %v7945, %v7947
  %v7959 = vsel %vm1416, %v7947, %v7949
  %v7960 = vsel %vm1416, %v7949, %v7951
  %v7961 = vsel %vm1416, %v7951, %v7953
  %7970 = vst [vmem:[#allocation3 + $0x480] sm:$0xff] %v7954
  %7971 = vst [vmem:[#allocation3 + $0x488] sm:$0xff] %v7955
  %7972 = vst [vmem:[#allocation3 + $0x490] sm:$0xff] %v7956
  %7973 = vst [vmem:[#allocation3 + $0x498] sm:$0xff] %v7957
  %7974 = vst [vmem:[#allocation3 + $0x4a0] sm:$0xff] %v7958
  %7975 = vst [vmem:[#allocation3 + $0x4a8] sm:$0xff] %v7959
  %7976 = vst [vmem:[#allocation3 + $0x4b0] sm:$0xff] %v7960
  %7977 = vst [vmem:[#allocation3 + $0x4b8] sm:$0xff] %v7961
  %v7978 = vld [vmem:[#allocation2 + $0x8] sm:$0xff]
  %v7979 = vld [vmem:[#allocation2 + $0x10] sm:$0xff]
  %v7980 = vld [vmem:[#allocation2 + $0x18] sm:$0xff]
  %v7981 = vld [vmem:[#allocation2 + $0x20] sm:$0xff]
  %v7982 = vld [vmem:[#allocation2 + $0x28] sm:$0xff]
  %v7983 = vld [vmem:[#allocation2 + $0x30] sm:$0xff]
  %v7984 = vld [vmem:[#allocation2 + $0x38] sm:$0xff]
  %v7985 = vld [vmem:[#allocation2 + $0x40] sm:$0xff]
  %v7986 = vld [vmem:[#allocation2 + $0x48] sm:$0xff]
  %v7987 = vld [vmem:[%s3818] ss:$8 sm:$0xf]
  %v7988 = vld [vmem:[%s3818] ss:$8 sm:$0xf0]
  %v7989 = vor.u32 %v7987, %v7988
  %v7991 = vlaneseq
  %v7992 = vshrl.u32 %v7991, 7
  %v7993 = vsub.s32 0, %v7992
  %v7994 = vrot.slane %v7989, %v7993
  %v7995 = vlaneseq
  %v7996 = vshrl.u32 %v7995, 7
  %v7997 = vsub.s32 1, %v7996
  %v7998 = vrot.slane %v7989, %v7997
  %v7999 = vlaneseq
  %v8000 = vshrl.u32 %v7999, 7
  %v8001 = vsub.s32 2, %v8000
  %v8002 = vrot.slane %v7989, %v8001
  %v8003 = vlaneseq
  %v8004 = vshrl.u32 %v8003, 7
  %v8005 = vsub.s32 3, %v8004
  %v8006 = vrot.slane %v7989, %v8005
  %v8007 = vlaneseq
  %v8008 = vshrl.u32 %v8007, 7
  %v8009 = vsub.s32 4, %v8008
  %v8010 = vrot.slane %v7989, %v8009
  %v8011 = vlaneseq
  %v8012 = vshrl.u32 %v8011, 7
  %v8013 = vsub.s32 5, %v8012
  %v8014 = vrot.slane %v7989, %v8013
  %v8015 = vlaneseq
  %v8016 = vshrl.u32 %v8015, 7
  %v8017 = vsub.s32 6, %v8016
  %v8018 = vrot.slane %v7989, %v8017
  %v8019 = vlaneseq
  %v8020 = vshrl.u32 %v8019, 7
  %v8021 = vsub.s32 7, %v8020
  %v8022 = vrot.slane %v7989, %v8021
  %8023 = vrot.lane.b32.xlu0 %v7994, 56
  %v8024 = vpop.permute.xlu0 %8023
  %8025 = vrot.lane.b32.xlu0 %v7998, 56
  %v8026 = vpop.permute.xlu0 %8025
  %8027 = vrot.lane.b32.xlu0 %v8002, 56
  %v8028 = vpop.permute.xlu0 %8027
  %8029 = vrot.lane.b32.xlu0 %v8006, 56
  %v8030 = vpop.permute.xlu0 %8029
  %8031 = vrot.lane.b32.xlu0 %v8010, 56
  %v8032 = vpop.permute.xlu0 %8031
  %8033 = vrot.lane.b32.xlu0 %v8014, 56
  %v8034 = vpop.permute.xlu0 %8033
  %8035 = vrot.lane.b32.xlu0 %v8018, 56
  %v8036 = vpop.permute.xlu0 %8035
  %8037 = vrot.lane.b32.xlu0 %v8022, 56
  %v8038 = vpop.permute.xlu0 %8037
  %v8039 = vsel %vm1503, %v8024, %v8026
  %v8040 = vsel %vm1503, %v8026, %v8028
  %v8041 = vsel %vm1503, %v8028, %v8030
  %v8042 = vsel %vm1503, %v8030, %v8032
  %v8043 = vsel %vm1503, %v8032, %v8034
  %v8044 = vsel %vm1503, %v8034, %v8036
  %v8045 = vsel %vm1503, %v8036, %v8038
  %v8055 = vmul.f32 %v7978, %v8024
  %v8056 = vmul.f32 %v7979, %v8039
  %v8057 = vmul.f32 %v7980, %v8040
  %v8058 = vmul.f32 %v7981, %v8041
  %v8059 = vmul.f32 %v7982, %v8042
  %v8060 = vmul.f32 %v7983, %v8043
  %v8061 = vmul.f32 %v7984, %v8044
  %v8062 = vmul.f32 %v7985, %v8045
  %v8063 = vmul.f32 %v7986, %v8038
  %8073 = vrot.lane.b32.xlu0 %v8055, 72
  %v8074 = vpop.permute.xlu0 %8073
  %8075 = vrot.lane.b32.xlu0 %v8056, 72
  %v8076 = vpop.permute.xlu0 %8075
  %8077 = vrot.lane.b32.xlu0 %v8057, 72
  %v8078 = vpop.permute.xlu0 %8077
  %8079 = vrot.lane.b32.xlu0 %v8058, 72
  %v8080 = vpop.permute.xlu0 %8079
  %8081 = vrot.lane.b32.xlu0 %v8059, 72
  %v8082 = vpop.permute.xlu0 %8081
  %8083 = vrot.lane.b32.xlu0 %v8060, 72
  %v8084 = vpop.permute.xlu0 %8083
  %8085 = vrot.lane.b32.xlu0 %v8061, 72
  %v8086 = vpop.permute.xlu0 %8085
  %8087 = vrot.lane.b32.xlu0 %v8062, 72
  %v8088 = vpop.permute.xlu0 %8087
  %8089 = vrot.lane.b32.xlu0 %v8063, 72
  %v8090 = vpop.permute.xlu0 %8089
  %v8091 = vsel %vm1556, %v8074, %v8076
  %v8092 = vsel %vm1556, %v8076, %v8078
  %v8093 = vsel %vm1556, %v8078, %v8080
  %v8094 = vsel %vm1556, %v8080, %v8082
  %v8095 = vsel %vm1556, %v8082, %v8084
  %v8096 = vsel %vm1556, %v8084, %v8086
  %v8097 = vsel %vm1556, %v8086, %v8088
  %v8098 = vsel %vm1556, %v8088, %v8090
  %8107 = vst [vmem:[#allocation3 + $0x4c0] sm:$0xff] %v8091
  %8108 = vst [vmem:[#allocation3 + $0x4c8] sm:$0xff] %v8092
  %8109 = vst [vmem:[#allocation3 + $0x4d0] sm:$0xff] %v8093
  %8110 = vst [vmem:[#allocation3 + $0x4d8] sm:$0xff] %v8094
  %8111 = vst [vmem:[#allocation3 + $0x4e0] sm:$0xff] %v8095
  %8112 = vst [vmem:[#allocation3 + $0x4e8] sm:$0xff] %v8096
  %8113 = vst [vmem:[#allocation3 + $0x4f0] sm:$0xff] %v8097
  %8114 = vst [vmem:[#allocation3 + $0x4f8] sm:$0xff] %v8098
  %v8115 = vld [vmem:[#allocation2 + $0x8] sm:$0xff]
  %v8116 = vld [vmem:[#allocation2 + $0x10] sm:$0xff]
  %v8117 = vld [vmem:[#allocation2 + $0x18] sm:$0xff]
  %v8118 = vld [vmem:[#allocation2 + $0x20] sm:$0xff]
  %v8119 = vld [vmem:[#allocation2 + $0x28] sm:$0xff]
  %v8120 = vld [vmem:[#allocation2 + $0x30] sm:$0xff]
  %v8121 = vld [vmem:[#allocation2 + $0x38] sm:$0xff]
  %v8122 = vld [vmem:[#allocation2 + $0x40] sm:$0xff]
  %v8123 = vld [vmem:[#allocation2 + $0x48] sm:$0xff]
  %v8124 = vld [vmem:[%s3956] ss:$8 sm:$0xf]
  %v8125 = vld [vmem:[%s3956] ss:$8 sm:$0xf0]
  %v8126 = vor.u32 %v8124, %v8125
  %v8128 = vlaneseq
  %v8129 = vshrl.u32 %v8128, 7
  %v8130 = vsub.s32 0, %v8129
  %v8131 = vrot.slane %v8126, %v8130
  %v8132 = vlaneseq
  %v8133 = vshrl.u32 %v8132, 7
  %v8134 = vsub.s32 1, %v8133
  %v8135 = vrot.slane %v8126, %v8134
  %v8136 = vlaneseq
  %v8137 = vshrl.u32 %v8136, 7
  %v8138 = vsub.s32 2, %v8137
  %v8139 = vrot.slane %v8126, %v8138
  %v8140 = vlaneseq
  %v8141 = vshrl.u32 %v8140, 7
  %v8142 = vsub.s32 3, %v8141
  %v8143 = vrot.slane %v8126, %v8142
  %v8144 = vlaneseq
  %v8145 = vshrl.u32 %v8144, 7
  %v8146 = vsub.s32 4, %v8145
  %v8147 = vrot.slane %v8126, %v8146
  %v8148 = vlaneseq
  %v8149 = vshrl.u32 %v8148, 7
  %v8150 = vsub.s32 5, %v8149
  %v8151 = vrot.slane %v8126, %v8150
  %v8152 = vlaneseq
  %v8153 = vshrl.u32 %v8152, 7
  %v8154 = vsub.s32 6, %v8153
  %v8155 = vrot.slane %v8126, %v8154
  %v8156 = vlaneseq
  %v8157 = vshrl.u32 %v8156, 7
  %v8158 = vsub.s32 7, %v8157
  %v8159 = vrot.slane %v8126, %v8158
  %8160 = vrot.lane.b32.xlu0 %v8131, 57
  %v8161 = vpop.permute.xlu0 %8160
  %8162 = vrot.lane.b32.xlu0 %v8135, 57
  %v8163 = vpop.permute.xlu0 %8162
  %8164 = vrot.lane.b32.xlu0 %v8139, 57
  %v8165 = vpop.permute.xlu0 %8164
  %8166 = vrot.lane.b32.xlu0 %v8143, 57
  %v8167 = vpop.permute.xlu0 %8166
  %8168 = vrot.lane.b32.xlu0 %v8147, 57
  %v8169 = vpop.permute.xlu0 %8168
  %8170 = vrot.lane.b32.xlu0 %v8151, 57
  %v8171 = vpop.permute.xlu0 %8170
  %8172 = vrot.lane.b32.xlu0 %v8155, 57
  %v8173 = vpop.permute.xlu0 %8172
  %8174 = vrot.lane.b32.xlu0 %v8159, 57
  %v8175 = vpop.permute.xlu0 %8174
  %v8176 = vsel %vm1643, %v8161, %v8163
  %v8177 = vsel %vm1643, %v8163, %v8165
  %v8178 = vsel %vm1643, %v8165, %v8167
  %v8179 = vsel %vm1643, %v8167, %v8169
  %v8180 = vsel %vm1643, %v8169, %v8171
  %v8181 = vsel %vm1643, %v8171, %v8173
  %v8182 = vsel %vm1643, %v8173, %v8175
  %v8192 = vmul.f32 %v8115, %v8161
  %v8193 = vmul.f32 %v8116, %v8176
  %v8194 = vmul.f32 %v8117, %v8177
  %v8195 = vmul.f32 %v8118, %v8178
  %v8196 = vmul.f32 %v8119, %v8179
  %v8197 = vmul.f32 %v8120, %v8180
  %v8198 = vmul.f32 %v8121, %v8181
  %v8199 = vmul.f32 %v8122, %v8182
  %v8200 = vmul.f32 %v8123, %v8175
  %8210 = vrot.lane.b32.xlu0 %v8192, 71
  %v8211 = vpop.permute.xlu0 %8210
  %8212 = vrot.lane.b32.xlu0 %v8193, 71
  %v8213 = vpop.permute.xlu0 %8212
  %8214 = vrot.lane.b32.xlu0 %v8194, 71
  %v8215 = vpop.permute.xlu0 %8214
  %8216 = vrot.lane.b32.xlu0 %v8195, 71
  %v8217 = vpop.permute.xlu0 %8216
  %8218 = vrot.lane.b32.xlu0 %v8196, 71
  %v8219 = vpop.permute.xlu0 %8218
  %8220 = vrot.lane.b32.xlu0 %v8197, 71
  %v8221 = vpop.permute.xlu0 %8220
  %8222 = vrot.lane.b32.xlu0 %v8198, 71
  %v8223 = vpop.permute.xlu0 %8222
  %8224 = vrot.lane.b32.xlu0 %v8199, 71
  %v8225 = vpop.permute.xlu0 %8224
  %8226 = vrot.lane.b32.xlu0 %v8200, 71
  %v8227 = vpop.permute.xlu0 %8226
  %v8228 = vsel %vm1696, %v8211, %v8213
  %v8229 = vsel %vm1696, %v8213, %v8215
  %v8230 = vsel %vm1696, %v8215, %v8217
  %v8231 = vsel %vm1696, %v8217, %v8219
  %v8232 = vsel %vm1696, %v8219, %v8221
  %v8233 = vsel %vm1696, %v8221, %v8223
  %v8234 = vsel %vm1696, %v8223, %v8225
  %v8235 = vsel %vm1696, %v8225, %v8227
  %8244 = vst [vmem:[#allocation3 + $0x500] sm:$0xff] %v8228
  %8245 = vst [vmem:[#allocation3 + $0x508] sm:$0xff] %v8229
  %8246 = vst [vmem:[#allocation3 + $0x510] sm:$0xff] %v8230
  %8247 = vst [vmem:[#allocation3 + $0x518] sm:$0xff] %v8231
  %8248 = vst [vmem:[#allocation3 + $0x520] sm:$0xff] %v8232
  %8249 = vst [vmem:[#allocation3 + $0x528] sm:$0xff] %v8233
  %8250 = vst [vmem:[#allocation3 + $0x530] sm:$0xff] %v8234
  %8251 = vst [vmem:[#allocation3 + $0x538] sm:$0xff] %v8235
  %v8252 = vld [vmem:[#allocation2 + $0x8] sm:$0xff]
  %v8253 = vld [vmem:[#allocation2 + $0x10] sm:$0xff]
  %v8254 = vld [vmem:[#allocation2 + $0x18] sm:$0xff]
  %v8255 = vld [vmem:[#allocation2 + $0x20] sm:$0xff]
  %v8256 = vld [vmem:[#allocation2 + $0x28] sm:$0xff]
  %v8257 = vld [vmem:[#allocation2 + $0x30] sm:$0xff]
  %v8258 = vld [vmem:[#allocation2 + $0x38] sm:$0xff]
  %v8259 = vld [vmem:[#allocation2 + $0x40] sm:$0xff]
  %v8260 = vld [vmem:[#allocation2 + $0x48] sm:$0xff]
  %v8261 = vld [vmem:[%s4094] ss:$8 sm:$0xf]
  %v8262 = vld [vmem:[%s4094] ss:$8 sm:$0xf0]
  %v8263 = vor.u32 %v8261, %v8262
  %v8265 = vlaneseq
  %v8266 = vshrl.u32 %v8265, 7
  %v8267 = vsub.s32 0, %v8266
  %v8268 = vrot.slane %v8263, %v8267
  %v8269 = vlaneseq
  %v8270 = vshrl.u32 %v8269, 7
  %v8271 = vsub.s32 1, %v8270
  %v8272 = vrot.slane %v8263, %v8271
  %v8273 = vlaneseq
  %v8274 = vshrl.u32 %v8273, 7
  %v8275 = vsub.s32 2, %v8274
  %v8276 = vrot.slane %v8263, %v8275
  %v8277 = vlaneseq
  %v8278 = vshrl.u32 %v8277, 7
  %v8279 = vsub.s32 3, %v8278
  %v8280 = vrot.slane %v8263, %v8279
  %v8281 = vlaneseq
  %v8282 = vshrl.u32 %v8281, 7
  %v8283 = vsub.s32 4, %v8282
  %v8284 = vrot.slane %v8263, %v8283
  %v8285 = vlaneseq
  %v8286 = vshrl.u32 %v8285, 7
  %v8287 = vsub.s32 5, %v8286
  %v8288 = vrot.slane %v8263, %v8287
  %v8289 = vlaneseq
  %v8290 = vshrl.u32 %v8289, 7
  %v8291 = vsub.s32 6, %v8290
  %v8292 = vrot.slane %v8263, %v8291
  %v8293 = vlaneseq
  %v8294 = vshrl.u32 %v8293, 7
  %v8295 = vsub.s32 7, %v8294
  %v8296 = vrot.slane %v8263, %v8295
  %8297 = vrot.lane.b32.xlu0 %v8268, 63
  %v8298 = vpop.permute.xlu0 %8297
  %8299 = vrot.lane.b32.xlu0 %v8272, 63
  %v8300 = vpop.permute.xlu0 %8299
  %8301 = vrot.lane.b32.xlu0 %v8276, 63
  %v8302 = vpop.permute.xlu0 %8301
  %8303 = vrot.lane.b32.xlu0 %v8280, 63
  %v8304 = vpop.permute.xlu0 %8303
  %8305 = vrot.lane.b32.xlu0 %v8284, 63
  %v8306 = vpop.permute.xlu0 %8305
  %8307 = vrot.lane.b32.xlu0 %v8288, 63
  %v8308 = vpop.permute.xlu0 %8307
  %8309 = vrot.lane.b32.xlu0 %v8292, 63
  %v8310 = vpop.permute.xlu0 %8309
  %8311 = vrot.lane.b32.xlu0 %v8296, 63
  %v8312 = vpop.permute.xlu0 %8311
  %v8313 = vsel %vm1783, %v8298, %v8300
  %v8314 = vsel %vm1783, %v8300, %v8302
  %v8315 = vsel %vm1783, %v8302, %v8304
  %v8316 = vsel %vm1783, %v8304, %v8306
  %v8317 = vsel %vm1783, %v8306, %v8308
  %v8318 = vsel %vm1783, %v8308, %v8310
  %v8319 = vsel %vm1783, %v8310, %v8312
  %v8329 = vmul.f32 %v8252, %v8298
  %v8330 = vmul.f32 %v8253, %v8313
  %v8331 = vmul.f32 %v8254, %v8314
  %v8332 = vmul.f32 %v8255, %v8315
  %v8333 = vmul.f32 %v8256, %v8316
  %v8334 = vmul.f32 %v8257, %v8317
  %v8335 = vmul.f32 %v8258, %v8318
  %v8336 = vmul.f32 %v8259, %v8319
  %v8337 = vmul.f32 %v8260, %v8312
  %8347 = vrot.lane.b32.xlu0 %v8329, 65
  %v8348 = vpop.permute.xlu0 %8347
  %8349 = vrot.lane.b32.xlu0 %v8330, 65
  %v8350 = vpop.permute.xlu0 %8349
  %8351 = vrot.lane.b32.xlu0 %v8331, 65
  %v8352 = vpop.permute.xlu0 %8351
  %8353 = vrot.lane.b32.xlu0 %v8332, 65
  %v8354 = vpop.permute.xlu0 %8353
  %8355 = vrot.lane.b32.xlu0 %v8333, 65
  %v8356 = vpop.permute.xlu0 %8355
  %8357 = vrot.lane.b32.xlu0 %v8334, 65
  %v8358 = vpop.permute.xlu0 %8357
  %8359 = vrot.lane.b32.xlu0 %v8335, 65
  %v8360 = vpop.permute.xlu0 %8359
  %8361 = vrot.lane.b32.xlu0 %v8336, 65
  %v8362 = vpop.permute.xlu0 %8361
  %8363 = vrot.lane.b32.xlu0 %v8337, 65
  %v8364 = vpop.permute.xlu0 %8363
  %v8365 = vsel %vm1836, %v8348, %v8350
  %v8366 = vsel %vm1836, %v8350, %v8352
  %v8367 = vsel %vm1836, %v8352, %v8354
  %v8368 = vsel %vm1836, %v8354, %v8356
  %v8369 = vsel %vm1836, %v8356, %v8358
  %v8370 = vsel %vm1836, %v8358, %v8360
  %v8371 = vsel %vm1836, %v8360, %v8362
  %v8372 = vsel %vm1836, %v8362, %v8364
  %8381 = vst [vmem:[#allocation3 + $0x540] sm:$0xff] %v8365
  %8382 = vst [vmem:[#allocation3 + $0x548] sm:$0xff] %v8366
  %8383 = vst [vmem:[#allocation3 + $0x550] sm:$0xff] %v8367
  %8384 = vst [vmem:[#allocation3 + $0x558] sm:$0xff] %v8368
  %8385 = vst [vmem:[#allocation3 + $0x560] sm:$0xff] %v8369
  %8386 = vst [vmem:[#allocation3 + $0x568] sm:$0xff] %v8370
  %8387 = vst [vmem:[#allocation3 + $0x570] sm:$0xff] %v8371
  %8388 = vst [vmem:[#allocation3 + $0x578] sm:$0xff] %v8372
  %v8389 = vld [vmem:[#allocation2 + $0x8] sm:$0xff]
  %v8390 = vld [vmem:[#allocation2 + $0x10] sm:$0xff]
  %v8391 = vld [vmem:[#allocation2 + $0x18] sm:$0xff]
  %v8392 = vld [vmem:[#allocation2 + $0x20] sm:$0xff]
  %v8393 = vld [vmem:[#allocation2 + $0x28] sm:$0xff]
  %v8394 = vld [vmem:[#allocation2 + $0x30] sm:$0xff]
  %v8395 = vld [vmem:[#allocation2 + $0x38] sm:$0xff]
  %v8396 = vld [vmem:[#allocation2 + $0x40] sm:$0xff]
  %v8397 = vld [vmem:[#allocation2 + $0x48] sm:$0xff]
  %v8398 = vld [vmem:[%s4232] ss:$8 sm:$0xf]
  %v8399 = vld [vmem:[%s4232] ss:$8 sm:$0xf0]
  %v8400 = vor.u32 %v8398, %v8399
  %v8402 = vlaneseq
  %v8403 = vshrl.u32 %v8402, 7
  %v8404 = vsub.s32 0, %v8403
  %v8405 = vrot.slane %v8400, %v8404
  %v8406 = vlaneseq
  %v8407 = vshrl.u32 %v8406, 7
  %v8408 = vsub.s32 1, %v8407
  %v8409 = vrot.slane %v8400, %v8408
  %v8410 = vlaneseq
  %v8411 = vshrl.u32 %v8410, 7
  %v8412 = vsub.s32 2, %v8411
  %v8413 = vrot.slane %v8400, %v8412
  %v8414 = vlaneseq
  %v8415 = vshrl.u32 %v8414, 7
  %v8416 = vsub.s32 3, %v8415
  %v8417 = vrot.slane %v8400, %v8416
  %v8418 = vlaneseq
  %v8419 = vshrl.u32 %v8418, 7
  %v8420 = vsub.s32 4, %v8419
  %v8421 = vrot.slane %v8400, %v8420
  %v8422 = vlaneseq
  %v8423 = vshrl.u32 %v8422, 7
  %v8424 = vsub.s32 5, %v8423
  %v8425 = vrot.slane %v8400, %v8424
  %v8426 = vlaneseq
  %v8427 = vshrl.u32 %v8426, 7
  %v8428 = vsub.s32 6, %v8427
  %v8429 = vrot.slane %v8400, %v8428
  %v8430 = vlaneseq
  %v8431 = vshrl.u32 %v8430, 7
  %v8432 = vsub.s32 7, %v8431
  %v8433 = vrot.slane %v8400, %v8432
  %8434 = vrot.lane.b32.xlu0 %v8405, 64
  %v8435 = vpop.permute.xlu0 %8434
  %8436 = vrot.lane.b32.xlu0 %v8409, 64
  %v8437 = vpop.permute.xlu0 %8436
  %8438 = vrot.lane.b32.xlu0 %v8413, 64
  %v8439 = vpop.permute.xlu0 %8438
  %8440 = vrot.lane.b32.xlu0 %v8417, 64
  %v8441 = vpop.permute.xlu0 %8440
  %8442 = vrot.lane.b32.xlu0 %v8421, 64
  %v8443 = vpop.permute.xlu0 %8442
  %8444 = vrot.lane.b32.xlu0 %v8425, 64
  %v8445 = vpop.permute.xlu0 %8444
  %8446 = vrot.lane.b32.xlu0 %v8429, 64
  %v8447 = vpop.permute.xlu0 %8446
  %8448 = vrot.lane.b32.xlu0 %v8433, 64
  %v8449 = vpop.permute.xlu0 %8448
  %v8450 = vsel %vm1923, %v8435, %v8437
  %v8451 = vsel %vm1923, %v8437, %v8439
  %v8452 = vsel %vm1923, %v8439, %v8441
  %v8453 = vsel %vm1923, %v8441, %v8443
  %v8454 = vsel %vm1923, %v8443, %v8445
  %v8455 = vsel %vm1923, %v8445, %v8447
  %v8456 = vsel %vm1923, %v8447, %v8449
  %v8466 = vmul.f32 %v8389, %v8435
  %v8467 = vmul.f32 %v8390, %v8450
  %v8468 = vmul.f32 %v8391, %v8451
  %v8469 = vmul.f32 %v8392, %v8452
  %v8470 = vmul.f32 %v8393, %v8453
  %v8471 = vmul.f32 %v8394, %v8454
  %v8472 = vmul.f32 %v8395, %v8455
  %v8473 = vmul.f32 %v8396, %v8456
  %v8474 = vmul.f32 %v8397, %v8449
  %8484 = vrot.lane.b32.xlu0 %v8466, 64
  %v8485 = vpop.permute.xlu0 %8484
  %8486 = vrot.lane.b32.xlu0 %v8467, 64
  %v8487 = vpop.permute.xlu0 %8486
  %8488 = vrot.lane.b32.xlu0 %v8468, 64
  %v8489 = vpop.permute.xlu0 %8488
  %8490 = vrot.lane.b32.xlu0 %v8469, 64
  %v8491 = vpop.permute.xlu0 %8490
  %8492 = vrot.lane.b32.xlu0 %v8470, 64
  %v8493 = vpop.permute.xlu0 %8492
  %8494 = vrot.lane.b32.xlu0 %v8471, 64
  %v8495 = vpop.permute.xlu0 %8494
  %8496 = vrot.lane.b32.xlu0 %v8472, 64
  %v8497 = vpop.permute.xlu0 %8496
  %8498 = vrot.lane.b32.xlu0 %v8473, 64
  %v8499 = vpop.permute.xlu0 %8498
  %8500 = vrot.lane.b32.xlu0 %v8474, 64
  %v8501 = vpop.permute.xlu0 %8500
  %v8502 = vsel %vm1923, %v8485, %v8487
  %v8503 = vsel %vm1923, %v8487, %v8489
  %v8504 = vsel %vm1923, %v8489, %v8491
  %v8505 = vsel %vm1923, %v8491, %v8493
  %v8506 = vsel %vm1923, %v8493, %v8495
  %v8507 = vsel %vm1923, %v8495, %v8497
  %v8508 = vsel %vm1923, %v8497, %v8499
  %v8509 = vsel %vm1923, %v8499, %v8501
  %8518 = vst [vmem:[#allocation3 + $0x580] sm:$0xff] %v8502
  %8519 = vst [vmem:[#allocation3 + $0x588] sm:$0xff] %v8503
  %8520 = vst [vmem:[#allocation3 + $0x590] sm:$0xff] %v8504
  %8521 = vst [vmem:[#allocation3 + $0x598] sm:$0xff] %v8505
  %8522 = vst [vmem:[#allocation3 + $0x5a0] sm:$0xff] %v8506
  %8523 = vst [vmem:[#allocation3 + $0x5a8] sm:$0xff] %v8507
  %8524 = vst [vmem:[#allocation3 + $0x5b0] sm:$0xff] %v8508
  %8525 = vst [vmem:[#allocation3 + $0x5b8] sm:$0xff] %v8509
  %v8526 = vld [vmem:[#allocation2 + $0x8] sm:$0xff]
  %v8527 = vld [vmem:[#allocation2 + $0x10] sm:$0xff]
  %v8528 = vld [vmem:[#allocation2 + $0x18] sm:$0xff]
  %v8529 = vld [vmem:[#allocation2 + $0x20] sm:$0xff]
  %v8530 = vld [vmem:[#allocation2 + $0x28] sm:$0xff]
  %v8531 = vld [vmem:[#allocation2 + $0x30] sm:$0xff]
  %v8532 = vld [vmem:[#allocation2 + $0x38] sm:$0xff]
  %v8533 = vld [vmem:[#allocation2 + $0x40] sm:$0xff]
  %v8534 = vld [vmem:[#allocation2 + $0x48] sm:$0xff]
  %v8535 = vld [vmem:[%s4370] ss:$8 sm:$0xf]
  %v8536 = vld [vmem:[%s4370] ss:$8 sm:$0xf0]
  %v8537 = vor.u32 %v8535, %v8536
  %v8539 = vlaneseq
  %v8540 = vshrl.u32 %v8539, 7
  %v8541 = vsub.s32 0, %v8540
  %v8542 = vrot.slane %v8537, %v8541
  %v8543 = vlaneseq
  %v8544 = vshrl.u32 %v8543, 7
  %v8545 = vsub.s32 1, %v8544
  %v8546 = vrot.slane %v8537, %v8545
  %v8547 = vlaneseq
  %v8548 = vshrl.u32 %v8547, 7
  %v8549 = vsub.s32 2, %v8548
  %v8550 = vrot.slane %v8537, %v8549
  %v8551 = vlaneseq
  %v8552 = vshrl.u32 %v8551, 7
  %v8553 = vsub.s32 3, %v8552
  %v8554 = vrot.slane %v8537, %v8553
  %v8555 = vlaneseq
  %v8556 = vshrl.u32 %v8555, 7
  %v8557 = vsub.s32 4, %v8556
  %v8558 = vrot.slane %v8537, %v8557
  %v8559 = vlaneseq
  %v8560 = vshrl.u32 %v8559, 7
  %v8561 = vsub.s32 5, %v8560
  %v8562 = vrot.slane %v8537, %v8561
  %v8563 = vlaneseq
  %v8564 = vshrl.u32 %v8563, 7
  %v8565 = vsub.s32 6, %v8564
  %v8566 = vrot.slane %v8537, %v8565
  %v8567 = vlaneseq
  %v8568 = vshrl.u32 %v8567, 7
  %v8569 = vsub.s32 7, %v8568
  %v8570 = vrot.slane %v8537, %v8569
  %8571 = vrot.lane.b32.xlu0 %v8542, 65
  %v8572 = vpop.permute.xlu0 %8571
  %8573 = vrot.lane.b32.xlu0 %v8546, 65
  %v8574 = vpop.permute.xlu0 %8573
  %8575 = vrot.lane.b32.xlu0 %v8550, 65
  %v8576 = vpop.permute.xlu0 %8575
  %8577 = vrot.lane.b32.xlu0 %v8554, 65
  %v8578 = vpop.permute.xlu0 %8577
  %8579 = vrot.lane.b32.xlu0 %v8558, 65
  %v8580 = vpop.permute.xlu0 %8579
  %8581 = vrot.lane.b32.xlu0 %v8562, 65
  %v8582 = vpop.permute.xlu0 %8581
  %8583 = vrot.lane.b32.xlu0 %v8566, 65
  %v8584 = vpop.permute.xlu0 %8583
  %8585 = vrot.lane.b32.xlu0 %v8570, 65
  %v8586 = vpop.permute.xlu0 %8585
  %v8587 = vsel %vm1836, %v8572, %v8574
  %v8588 = vsel %vm1836, %v8574, %v8576
  %v8589 = vsel %vm1836, %v8576, %v8578
  %v8590 = vsel %vm1836, %v8578, %v8580
  %v8591 = vsel %vm1836, %v8580, %v8582
  %v8592 = vsel %vm1836, %v8582, %v8584
  %v8593 = vsel %vm1836, %v8584, %v8586
  %v8603 = vmul.f32 %v8526, %v8572
  %v8604 = vmul.f32 %v8527, %v8587
  %v8605 = vmul.f32 %v8528, %v8588
  %v8606 = vmul.f32 %v8529, %v8589
  %v8607 = vmul.f32 %v8530, %v8590
  %v8608 = vmul.f32 %v8531, %v8591
  %v8609 = vmul.f32 %v8532, %v8592
  %v8610 = vmul.f32 %v8533, %v8593
  %v8611 = vmul.f32 %v8534, %v8586
  %8621 = vrot.lane.b32.xlu0 %v8603, 63
  %v8622 = vpop.permute.xlu0 %8621
  %8623 = vrot.lane.b32.xlu0 %v8604, 63
  %v8624 = vpop.permute.xlu0 %8623
  %8625 = vrot.lane.b32.xlu0 %v8605, 63
  %v8626 = vpop.permute.xlu0 %8625
  %8627 = vrot.lane.b32.xlu0 %v8606, 63
  %v8628 = vpop.permute.xlu0 %8627
  %8629 = vrot.lane.b32.xlu0 %v8607, 63
  %v8630 = vpop.permute.xlu0 %8629
  %8631 = vrot.lane.b32.xlu0 %v8608, 63
  %v8632 = vpop.permute.xlu0 %8631
  %8633 = vrot.lane.b32.xlu0 %v8609, 63
  %v8634 = vpop.permute.xlu0 %8633
  %8635 = vrot.lane.b32.xlu0 %v8610, 63
  %v8636 = vpop.permute.xlu0 %8635
  %8637 = vrot.lane.b32.xlu0 %v8611, 63
  %v8638 = vpop.permute.xlu0 %8637
  %v8639 = vsel %vm1783, %v8622, %v8624
  %v8640 = vsel %vm1783, %v8624, %v8626
  %v8641 = vsel %vm1783, %v8626, %v8628
  %v8642 = vsel %vm1783, %v8628, %v8630
  %v8643 = vsel %vm1783, %v8630, %v8632
  %v8644 = vsel %vm1783, %v8632, %v8634
  %v8645 = vsel %vm1783, %v8634, %v8636
  %v8646 = vsel %vm1783, %v8636, %v8638
  %8655 = vst [vmem:[#allocation3 + $0x5c0] sm:$0xff] %v8639
  %8656 = vst [vmem:[#allocation3 + $0x5c8] sm:$0xff] %v8640
  %8657 = vst [vmem:[#allocation3 + $0x5d0] sm:$0xff] %v8641
  %8658 = vst [vmem:[#allocation3 + $0x5d8] sm:$0xff] %v8642
  %8659 = vst [vmem:[#allocation3 + $0x5e0] sm:$0xff] %v8643
  %8660 = vst [vmem:[#allocation3 + $0x5e8] sm:$0xff] %v8644
  %8661 = vst [vmem:[#allocation3 + $0x5f0] sm:$0xff] %v8645
  %8662 = vst [vmem:[#allocation3 + $0x5f8] sm:$0xff] %v8646
  %v8663 = vld [vmem:[#allocation2 + $0x8] sm:$0xff]
  %v8664 = vld [vmem:[#allocation2 + $0x10] sm:$0xff]
  %v8665 = vld [vmem:[#allocation2 + $0x18] sm:$0xff]
  %v8666 = vld [vmem:[#allocation2 + $0x20] sm:$0xff]
  %v8667 = vld [vmem:[#allocation2 + $0x28] sm:$0xff]
  %v8668 = vld [vmem:[#allocation2 + $0x30] sm:$0xff]
  %v8669 = vld [vmem:[#allocation2 + $0x38] sm:$0xff]
  %v8670 = vld [vmem:[#allocation2 + $0x40] sm:$0xff]
  %v8671 = vld [vmem:[#allocation2 + $0x48] sm:$0xff]
  %v8672 = vld [vmem:[%s4508] ss:$8 sm:$0xf]
  %v8673 = vld [vmem:[%s4508] ss:$8 sm:$0xf0]
  %v8674 = vor.u32 %v8672, %v8673
  %v8676 = vlaneseq
  %v8677 = vshrl.u32 %v8676, 7
  %v8678 = vsub.s32 0, %v8677
  %v8679 = vrot.slane %v8674, %v8678
  %v8680 = vlaneseq
  %v8681 = vshrl.u32 %v8680, 7
  %v8682 = vsub.s32 1, %v8681
  %v8683 = vrot.slane %v8674, %v8682
  %v8684 = vlaneseq
  %v8685 = vshrl.u32 %v8684, 7
  %v8686 = vsub.s32 2, %v8685
  %v8687 = vrot.slane %v8674, %v8686
  %v8688 = vlaneseq
  %v8689 = vshrl.u32 %v8688, 7
  %v8690 = vsub.s32 3, %v8689
  %v8691 = vrot.slane %v8674, %v8690
  %v8692 = vlaneseq
  %v8693 = vshrl.u32 %v8692, 7
  %v8694 = vsub.s32 4, %v8693
  %v8695 = vrot.slane %v8674, %v8694
  %v8696 = vlaneseq
  %v8697 = vshrl.u32 %v8696, 7
  %v8698 = vsub.s32 5, %v8697
  %v8699 = vrot.slane %v8674, %v8698
  %v8700 = vlaneseq
  %v8701 = vshrl.u32 %v8700, 7
  %v8702 = vsub.s32 6, %v8701
  %v8703 = vrot.slane %v8674, %v8702
  %v8704 = vlaneseq
  %v8705 = vshrl.u32 %v8704, 7
  %v8706 = vsub.s32 7, %v8705
  %v8707 = vrot.slane %v8674, %v8706
  %8708 = vrot.lane.b32.xlu0 %v8679, 71
  %v8709 = vpop.permute.xlu0 %8708
  %8710 = vrot.lane.b32.xlu0 %v8683, 71
  %v8711 = vpop.permute.xlu0 %8710
  %8712 = vrot.lane.b32.xlu0 %v8687, 71
  %v8713 = vpop.permute.xlu0 %8712
  %8714 = vrot.lane.b32.xlu0 %v8691, 71
  %v8715 = vpop.permute.xlu0 %8714
  %8716 = vrot.lane.b32.xlu0 %v8695, 71
  %v8717 = vpop.permute.xlu0 %8716
  %8718 = vrot.lane.b32.xlu0 %v8699, 71
  %v8719 = vpop.permute.xlu0 %8718
  %8720 = vrot.lane.b32.xlu0 %v8703, 71
  %v8721 = vpop.permute.xlu0 %8720
  %8722 = vrot.lane.b32.xlu0 %v8707, 71
  %v8723 = vpop.permute.xlu0 %8722
  %v8724 = vsel %vm1696, %v8709, %v8711
  %v8725 = vsel %vm1696, %v8711, %v8713
  %v8726 = vsel %vm1696, %v8713, %v8715
  %v8727 = vsel %vm1696, %v8715, %v8717
  %v8728 = vsel %vm1696, %v8717, %v8719
  %v8729 = vsel %vm1696, %v8719, %v8721
  %v8730 = vsel %vm1696, %v8721, %v8723
  %v8740 = vmul.f32 %v8663, %v8709
  %v8741 = vmul.f32 %v8664, %v8724
  %v8742 = vmul.f32 %v8665, %v8725
  %v8743 = vmul.f32 %v8666, %v8726
  %v8744 = vmul.f32 %v8667, %v8727
  %v8745 = vmul.f32 %v8668, %v8728
  %v8746 = vmul.f32 %v8669, %v8729
  %v8747 = vmul.f32 %v8670, %v8730
  %v8748 = vmul.f32 %v8671, %v8723
  %8758 = vrot.lane.b32.xlu0 %v8740, 57
  %v8759 = vpop.permute.xlu0 %8758
  %8760 = vrot.lane.b32.xlu0 %v8741, 57
  %v8761 = vpop.permute.xlu0 %8760
  %8762 = vrot.lane.b32.xlu0 %v8742, 57
  %v8763 = vpop.permute.xlu0 %8762
  %8764 = vrot.lane.b32.xlu0 %v8743, 57
  %v8765 = vpop.permute.xlu0 %8764
  %8766 = vrot.lane.b32.xlu0 %v8744, 57
  %v8767 = vpop.permute.xlu0 %8766
  %8768 = vrot.lane.b32.xlu0 %v8745, 57
  %v8769 = vpop.permute.xlu0 %8768
  %8770 = vrot.lane.b32.xlu0 %v8746, 57
  %v8771 = vpop.permute.xlu0 %8770
  %8772 = vrot.lane.b32.xlu0 %v8747, 57
  %v8773 = vpop.permute.xlu0 %8772
  %8774 = vrot.lane.b32.xlu0 %v8748, 57
  %v8775 = vpop.permute.xlu0 %8774
  %v8776 = vsel %vm1643, %v8759, %v8761
  %v8777 = vsel %vm1643, %v8761, %v8763
  %v8778 = vsel %vm1643, %v8763, %v8765
  %v8779 = vsel %vm1643, %v8765, %v8767
  %v8780 = vsel %vm1643, %v8767, %v8769
  %v8781 = vsel %vm1643, %v8769, %v8771
  %v8782 = vsel %vm1643, %v8771, %v8773
  %v8783 = vsel %vm1643, %v8773, %v8775
  %8792 = vst [vmem:[#allocation3 + $0x600] sm:$0xff] %v8776
  %8793 = vst [vmem:[#allocation3 + $0x608] sm:$0xff] %v8777
  %8794 = vst [vmem:[#allocation3 + $0x610] sm:$0xff] %v8778
  %8795 = vst [vmem:[#allocation3 + $0x618] sm:$0xff] %v8779
  %8796 = vst [vmem:[#allocation3 + $0x620] sm:$0xff] %v8780
  %8797 = vst [vmem:[#allocation3 + $0x628] sm:$0xff] %v8781
  %8798 = vst [vmem:[#allocation3 + $0x630] sm:$0xff] %v8782
  %8799 = vst [vmem:[#allocation3 + $0x638] sm:$0xff] %v8783
  %v8800 = vld [vmem:[#allocation2 + $0x8] sm:$0xff]
  %v8801 = vld [vmem:[#allocation2 + $0x10] sm:$0xff]
  %v8802 = vld [vmem:[#allocation2 + $0x18] sm:$0xff]
  %v8803 = vld [vmem:[#allocation2 + $0x20] sm:$0xff]
  %v8804 = vld [vmem:[#allocation2 + $0x28] sm:$0xff]
  %v8805 = vld [vmem:[#allocation2 + $0x30] sm:$0xff]
  %v8806 = vld [vmem:[#allocation2 + $0x38] sm:$0xff]
  %v8807 = vld [vmem:[#allocation2 + $0x40] sm:$0xff]
  %v8808 = vld [vmem:[#allocation2 + $0x48] sm:$0xff]
  %v8809 = vld [vmem:[%s4646] ss:$8 sm:$0xf]
  %v8810 = vld [vmem:[%s4646] ss:$8 sm:$0xf0]
  %v8811 = vor.u32 %v8809, %v8810
  %v8813 = vlaneseq
  %v8814 = vshrl.u32 %v8813, 7
  %v8815 = vsub.s32 0, %v8814
  %v8816 = vrot.slane %v8811, %v8815
  %v8817 = vlaneseq
  %v8818 = vshrl.u32 %v8817, 7
  %v8819 = vsub.s32 1, %v8818
  %v8820 = vrot.slane %v8811, %v8819
  %v8821 = vlaneseq
  %v8822 = vshrl.u32 %v8821, 7
  %v8823 = vsub.s32 2, %v8822
  %v8824 = vrot.slane %v8811, %v8823
  %v8825 = vlaneseq
  %v8826 = vshrl.u32 %v8825, 7
  %v8827 = vsub.s32 3, %v8826
  %v8828 = vrot.slane %v8811, %v8827
  %v8829 = vlaneseq
  %v8830 = vshrl.u32 %v8829, 7
  %v8831 = vsub.s32 4, %v8830
  %v8832 = vrot.slane %v8811, %v8831
  %v8833 = vlaneseq
  %v8834 = vshrl.u32 %v8833, 7
  %v8835 = vsub.s32 5, %v8834
  %v8836 = vrot.slane %v8811, %v8835
  %v8837 = vlaneseq
  %v8838 = vshrl.u32 %v8837, 7
  %v8839 = vsub.s32 6, %v8838
  %v8840 = vrot.slane %v8811, %v8839
  %v8841 = vlaneseq
  %v8842 = vshrl.u32 %v8841, 7
  %v8843 = vsub.s32 7, %v8842
  %v8844 = vrot.slane %v8811, %v8843
  %8845 = vrot.lane.b32.xlu0 %v8816, 72
  %v8846 = vpop.permute.xlu0 %8845
  %8847 = vrot.lane.b32.xlu0 %v8820, 72
  %v8848 = vpop.permute.xlu0 %8847
  %8849 = vrot.lane.b32.xlu0 %v8824, 72
  %v8850 = vpop.permute.xlu0 %8849
  %8851 = vrot.lane.b32.xlu0 %v8828, 72
  %v8852 = vpop.permute.xlu0 %8851
  %8853 = vrot.lane.b32.xlu0 %v8832, 72
  %v8854 = vpop.permute.xlu0 %8853
  %8855 = vrot.lane.b32.xlu0 %v8836, 72
  %v8856 = vpop.permute.xlu0 %8855
  %8857 = vrot.lane.b32.xlu0 %v8840, 72
  %v8858 = vpop.permute.xlu0 %8857
  %8859 = vrot.lane.b32.xlu0 %v8844, 72
  %v8860 = vpop.permute.xlu0 %8859
  %v8861 = vsel %vm1556, %v8846, %v8848
  %v8862 = vsel %vm1556, %v8848, %v8850
  %v8863 = vsel %vm1556, %v8850, %v8852
  %v8864 = vsel %vm1556, %v8852, %v8854
  %v8865 = vsel %vm1556, %v8854, %v8856
  %v8866 = vsel %vm1556, %v8856, %v8858
  %v8867 = vsel %vm1556, %v8858, %v8860
  %v8877 = vmul.f32 %v8800, %v8846
  %v8878 = vmul.f32 %v8801, %v8861
  %v8879 = vmul.f32 %v8802, %v8862
  %v8880 = vmul.f32 %v8803, %v8863
  %v8881 = vmul.f32 %v8804, %v8864
  %v8882 = vmul.f32 %v8805, %v8865
  %v8883 = vmul.f32 %v8806, %v8866
  %v8884 = vmul.f32 %v8807, %v8867
  %v8885 = vmul.f32 %v8808, %v8860
  %8895 = vrot.lane.b32.xlu0 %v8877, 56
  %v8896 = vpop.permute.xlu0 %8895
  %8897 = vrot.lane.b32.xlu0 %v8878, 56
  %v8898 = vpop.permute.xlu0 %8897
  %8899 = vrot.lane.b32.xlu0 %v8879, 56
  %v8900 = vpop.permute.xlu0 %8899
  %8901 = vrot.lane.b32.xlu0 %v8880, 56
  %v8902 = vpop.permute.xlu0 %8901
  %8903 = vrot.lane.b32.xlu0 %v8881, 56
  %v8904 = vpop.permute.xlu0 %8903
  %8905 = vrot.lane.b32.xlu0 %v8882, 56
  %v8906 = vpop.permute.xlu0 %8905
  %8907 = vrot.lane.b32.xlu0 %v8883, 56
  %v8908 = vpop.permute.xlu0 %8907
  %8909 = vrot.lane.b32.xlu0 %v8884, 56
  %v8910 = vpop.permute.xlu0 %8909
  %8911 = vrot.lane.b32.xlu0 %v8885, 56
  %v8912 = vpop.permute.xlu0 %8911
  %v8913 = vsel %vm1503, %v8896, %v8898
  %v8914 = vsel %vm1503, %v8898, %v8900
  %v8915 = vsel %vm1503, %v8900, %v8902
  %v8916 = vsel %vm1503, %v8902, %v8904
  %v8917 = vsel %vm1503, %v8904, %v8906
  %v8918 = vsel %vm1503, %v8906, %v8908
  %v8919 = vsel %vm1503, %v8908, %v8910
  %v8920 = vsel %vm1503, %v8910, %v8912
  %8929 = vst [vmem:[#allocation3 + $0x640] sm:$0xff] %v8913
  %8930 = vst [vmem:[#allocation3 + $0x648] sm:$0xff] %v8914
  %8931 = vst [vmem:[#allocation3 + $0x650] sm:$0xff] %v8915
  %8932 = vst [vmem:[#allocation3 + $0x658] sm:$0xff] %v8916
  %8933 = vst [vmem:[#allocation3 + $0x660] sm:$0xff] %v8917
  %8934 = vst [vmem:[#allocation3 + $0x668] sm:$0xff] %v8918
  %8935 = vst [vmem:[#allocation3 + $0x670] sm:$0xff] %v8919
  %8936 = vst [vmem:[#allocation3 + $0x678] sm:$0xff] %v8920
  %v8937 = vld [vmem:[#allocation2 + $0x8] sm:$0xff]
  %v8938 = vld [vmem:[#allocation2 + $0x10] sm:$0xff]
  %v8939 = vld [vmem:[#allocation2 + $0x18] sm:$0xff]
  %v8940 = vld [vmem:[#allocation2 + $0x20] sm:$0xff]
  %v8941 = vld [vmem:[#allocation2 + $0x28] sm:$0xff]
  %v8942 = vld [vmem:[#allocation2 + $0x30] sm:$0xff]
  %v8943 = vld [vmem:[#allocation2 + $0x38] sm:$0xff]
  %v8944 = vld [vmem:[#allocation2 + $0x40] sm:$0xff]
  %v8945 = vld [vmem:[#allocation2 + $0x48] sm:$0xff]
  %v8946 = vld [vmem:[%s4784] ss:$8 sm:$0xf]
  %v8947 = vld [vmem:[%s4784] ss:$8 sm:$0xf0]
  %v8948 = vor.u32 %v8946, %v8947
  %v8950 = vlaneseq
  %v8951 = vshrl.u32 %v8950, 7
  %v8952 = vsub.s32 0, %v8951
  %v8953 = vrot.slane %v8948, %v8952
  %v8954 = vlaneseq
  %v8955 = vshrl.u32 %v8954, 7
  %v8956 = vsub.s32 1, %v8955
  %v8957 = vrot.slane %v8948, %v8956
  %v8958 = vlaneseq
  %v8959 = vshrl.u32 %v8958, 7
  %v8960 = vsub.s32 2, %v8959
  %v8961 = vrot.slane %v8948, %v8960
  %v8962 = vlaneseq
  %v8963 = vshrl.u32 %v8962, 7
  %v8964 = vsub.s32 3, %v8963
  %v8965 = vrot.slane %v8948, %v8964
  %v8966 = vlaneseq
  %v8967 = vshrl.u32 %v8966, 7
  %v8968 = vsub.s32 4, %v8967
  %v8969 = vrot.slane %v8948, %v8968
  %v8970 = vlaneseq
  %v8971 = vshrl.u32 %v8970, 7
  %v8972 = vsub.s32 5, %v8971
  %v8973 = vrot.slane %v8948, %v8972
  %v8974 = vlaneseq
  %v8975 = vshrl.u32 %v8974, 7
  %v8976 = vsub.s32 6, %v8975
  %v8977 = vrot.slane %v8948, %v8976
  %v8978 = vlaneseq
  %v8979 = vshrl.u32 %v8978, 7
  %v8980 = vsub.s32 7, %v8979
  %v8981 = vrot.slane %v8948, %v8980
  %8982 = vrot.lane.b32.xlu0 %v8953, 73
  %v8983 = vpop.permute.xlu0 %8982
  %8984 = vrot.lane.b32.xlu0 %v8957, 73
  %v8985 = vpop.permute.xlu0 %8984
  %8986 = vrot.lane.b32.xlu0 %v8961, 73
  %v8987 = vpop.permute.xlu0 %8986
  %8988 = vrot.lane.b32.xlu0 %v8965, 73
  %v8989 = vpop.permute.xlu0 %8988
  %8990 = vrot.lane.b32.xlu0 %v8969, 73
  %v8991 = vpop.permute.xlu0 %8990
  %8992 = vrot.lane.b32.xlu0 %v8973, 73
  %v8993 = vpop.permute.xlu0 %8992
  %8994 = vrot.lane.b32.xlu0 %v8977, 73
  %v8995 = vpop.permute.xlu0 %8994
  %8996 = vrot.lane.b32.xlu0 %v8981, 73
  %v8997 = vpop.permute.xlu0 %8996
  %v8998 = vsel %vm1416, %v8983, %v8985
  %v8999 = vsel %vm1416, %v8985, %v8987
  %v9000 = vsel %vm1416, %v8987, %v8989
  %v9001 = vsel %vm1416, %v8989, %v8991
  %v9002 = vsel %vm1416, %v8991, %v8993
  %v9003 = vsel %vm1416, %v8993, %v8995
  %v9004 = vsel %vm1416, %v8995, %v8997
  %v9014 = vmul.f32 %v8937, %v8983
  %v9015 = vmul.f32 %v8938, %v8998
  %v9016 = vmul.f32 %v8939, %v8999
  %v9017 = vmul.f32 %v8940, %v9000
  %v9018 = vmul.f32 %v8941, %v9001
  %v9019 = vmul.f32 %v8942, %v9002
  %v9020 = vmul.f32 %v8943, %v9003
  %v9021 = vmul.f32 %v8944, %v9004
  %v9022 = vmul.f32 %v8945, %v8997
  %9032 = vrot.lane.b32.xlu0 %v9014, 55
  %v9033 = vpop.permute.xlu0 %9032
  %9034 = vrot.lane.b32.xlu0 %v9015, 55
  %v9035 = vpop.permute.xlu0 %9034
  %9036 = vrot.lane.b32.xlu0 %v9016, 55
  %v9037 = vpop.permute.xlu0 %9036
  %9038 = vrot.lane.b32.xlu0 %v9017, 55
  %v9039 = vpop.permute.xlu0 %9038
  %9040 = vrot.lane.b32.xlu0 %v9018, 55
  %v9041 = vpop.permute.xlu0 %9040
  %9042 = vrot.lane.b32.xlu0 %v9019, 55
  %v9043 = vpop.permute.xlu0 %9042
  %9044 = vrot.lane.b32.xlu0 %v9020, 55
  %v9045 = vpop.permute.xlu0 %9044
  %9046 = vrot.lane.b32.xlu0 %v9021, 55
  %v9047 = vpop.permute.xlu0 %9046
  %9048 = vrot.lane.b32.xlu0 %v9022, 55
  %v9049 = vpop.permute.xlu0 %9048
  %v9050 = vsel %vm1363, %v9033, %v9035
  %v9051 = vsel %vm1363, %v9035, %v9037
  %v9052 = vsel %vm1363, %v9037, %v9039
  %v9053 = vsel %vm1363, %v9039, %v9041
  %v9054 = vsel %vm1363, %v9041, %v9043
  %v9055 = vsel %vm1363, %v9043, %v9045
  %v9056 = vsel %vm1363, %v9045, %v9047
  %v9057 = vsel %vm1363, %v9047, %v9049
  %9066 = vst [vmem:[#allocation3 + $0x680] sm:$0xff] %v9050
  %9067 = vst [vmem:[#allocation3 + $0x688] sm:$0xff] %v9051
  %9068 = vst [vmem:[#allocation3 + $0x690] sm:$0xff] %v9052
  %9069 = vst [vmem:[#allocation3 + $0x698] sm:$0xff] %v9053
  %9070 = vst [vmem:[#allocation3 + $0x6a0] sm:$0xff] %v9054
  %9071 = vst [vmem:[#allocation3 + $0x6a8] sm:$0xff] %v9055
  %9072 = vst [vmem:[#allocation3 + $0x6b0] sm:$0xff] %v9056
  %9073 = vst [vmem:[#allocation3 + $0x6b8] sm:$0xff] %v9057
  %v9074 = vld [vmem:[%s4] sm:$0xff]
  %v9075 = vld [vmem:[%s4 + $0x8] sm:$0xff]
  %v9076 = vld [vmem:[#allocation3] sm:$0xff]
  %v9077 = vld [vmem:[#allocation3 + $0x8] sm:$0xff]
  %v9078 = vld [vmem:[#allocation3 + $0x10] sm:$0xff]
  %v9079 = vld [vmem:[#allocation3 + $0x18] sm:$0xff]
  %v9080 = vld [vmem:[#allocation3 + $0x20] sm:$0xff]
  %v9081 = vld [vmem:[#allocation3 + $0x28] sm:$0xff]
  %v9082 = vld [vmem:[#allocation3 + $0x30] sm:$0xff]
  %v9083 = vld [vmem:[#allocation3 + $0x38] sm:$0xff]
  %v9084 = vld [vmem:[#allocation3 + $0x40] sm:$0xff]
  %v9085 = vld [vmem:[#allocation3 + $0x48] sm:$0xff]
  %v9086 = vld [vmem:[#allocation3 + $0x50] sm:$0xff]
  %v9087 = vld [vmem:[#allocation3 + $0x58] sm:$0xff]
  %v9088 = vld [vmem:[#allocation3 + $0x60] sm:$0xff]
  %v9089 = vld [vmem:[#allocation3 + $0x68] sm:$0xff]
  %v9090 = vld [vmem:[#allocation3 + $0x70] sm:$0xff]
  %v9091 = vld [vmem:[#allocation3 + $0x78] sm:$0xff]
  %v9092 = vld [vmem:[#allocation3 + $0x80] sm:$0xff]
  %v9093 = vld [vmem:[#allocation3 + $0x88] sm:$0xff]
  %v9094 = vld [vmem:[#allocation3 + $0x90] sm:$0xff]
  %v9095 = vld [vmem:[#allocation3 + $0x98] sm:$0xff]
  %v9096 = vld [vmem:[#allocation3 + $0xa0] sm:$0xff]
  %v9097 = vld [vmem:[#allocation3 + $0xa8] sm:$0xff]
  %v9098 = vld [vmem:[#allocation3 + $0xb0] sm:$0xff]
  %v9099 = vld [vmem:[#allocation3 + $0xb8] sm:$0xff]
  %v9100 = vld [vmem:[#allocation3 + $0xc0] sm:$0xff]
  %v9101 = vld [vmem:[#allocation3 + $0xc8] sm:$0xff]
  %v9102 = vld [vmem:[#allocation3 + $0xd0] sm:$0xff]
  %v9103 = vld [vmem:[#allocation3 + $0xd8] sm:$0xff]
  %v9104 = vld [vmem:[#allocation3 + $0xe0] sm:$0xff]
  %v9105 = vld [vmem:[#allocation3 + $0xe8] sm:$0xff]
  %v9106 = vld [vmem:[#allocation3 + $0xf0] sm:$0xff]
  %v9107 = vld [vmem:[#allocation3 + $0xf8] sm:$0xff]
  %v9108 = vld [vmem:[#allocation3 + $0x100] sm:$0xff]
  %v9109 = vld [vmem:[#allocation3 + $0x108] sm:$0xff]
  %v9110 = vld [vmem:[#allocation3 + $0x110] sm:$0xff]
  %v9111 = vld [vmem:[#allocation3 + $0x118] sm:$0xff]
  %v9112 = vld [vmem:[#allocation3 + $0x120] sm:$0xff]
  %v9113 = vld [vmem:[#allocation3 + $0x128] sm:$0xff]
  %v9114 = vld [vmem:[#allocation3 + $0x130] sm:$0xff]
  %v9115 = vld [vmem:[#allocation3 + $0x138] sm:$0xff]
  %v9116 = vld [vmem:[#allocation3 + $0x140] sm:$0xff]
  %v9117 = vld [vmem:[#allocation3 + $0x148] sm:$0xff]
  %v9118 = vld [vmem:[#allocation3 + $0x150] sm:$0xff]
  %v9119 = vld [vmem:[#allocation3 + $0x158] sm:$0xff]
  %v9120 = vld [vmem:[#allocation3 + $0x160] sm:$0xff]
  %v9121 = vld [vmem:[#allocation3 + $0x168] sm:$0xff]
  %v9122 = vld [vmem:[#allocation3 + $0x170] sm:$0xff]
  %v9123 = vld [vmem:[#allocation3 + $0x178] sm:$0xff]
  %v9124 = vld [vmem:[#allocation3 + $0x180] sm:$0xff]
  %v9125 = vld [vmem:[#allocation3 + $0x188] sm:$0xff]
  %v9126 = vld [vmem:[#allocation3 + $0x190] sm:$0xff]
  %v9127 = vld [vmem:[#allocation3 + $0x198] sm:$0xff]
  %v9128 = vld [vmem:[#allocation3 + $0x1a0] sm:$0xff]
  %v9129 = vld [vmem:[#allocation3 + $0x1a8] sm:$0xff]
  %v9130 = vld [vmem:[#allocation3 + $0x1b0] sm:$0xff]
  %v9131 = vld [vmem:[#allocation3 + $0x1b8] sm:$0xff]
  %v9132 = vld [vmem:[#allocation3 + $0x1c0] sm:$0xff]
  %v9133 = vld [vmem:[#allocation3 + $0x1c8] sm:$0xff]
  %v9134 = vld [vmem:[#allocation3 + $0x1d0] sm:$0xff]
  %v9135 = vld [vmem:[#allocation3 + $0x1d8] sm:$0xff]
  %v9136 = vld [vmem:[#allocation3 + $0x1e0] sm:$0xff]
  %v9137 = vld [vmem:[#allocation3 + $0x1e8] sm:$0xff]
  %v9138 = vld [vmem:[#allocation3 + $0x1f0] sm:$0xff]
  %v9139 = vld [vmem:[#allocation3 + $0x1f8] sm:$0xff]
  %v9140 = vld [vmem:[#allocation3 + $0x200] sm:$0xff]
  %v9141 = vld [vmem:[#allocation3 + $0x208] sm:$0xff]
  %v9142 = vld [vmem:[#allocation3 + $0x210] sm:$0xff]
  %v9143 = vld [vmem:[#allocation3 + $0x218] sm:$0xff]
  %v9144 = vld [vmem:[#allocation3 + $0x220] sm:$0xff]
  %v9145 = vld [vmem:[#allocation3 + $0x228] sm:$0xff]
  %v9146 = vld [vmem:[#allocation3 + $0x230] sm:$0xff]
  %v9147 = vld [vmem:[#allocation3 + $0x238] sm:$0xff]
  %v9148 = vld [vmem:[#allocation3 + $0x240] sm:$0xff]
  %v9149 = vld [vmem:[#allocation3 + $0x248] sm:$0xff]
  %v9150 = vld [vmem:[#allocation3 + $0x250] sm:$0xff]
  %v9151 = vld [vmem:[#allocation3 + $0x258] sm:$0xff]
  %v9152 = vld [vmem:[#allocation3 + $0x260] sm:$0xff]
  %v9153 = vld [vmem:[#allocation3 + $0x268] sm:$0xff]
  %v9154 = vld [vmem:[#allocation3 + $0x270] sm:$0xff]
  %v9155 = vld [vmem:[#allocation3 + $0x278] sm:$0xff]
  %v9156 = vld [vmem:[#allocation3 + $0x280] sm:$0xff]
  %v9157 = vld [vmem:[#allocation3 + $0x288] sm:$0xff]
  %v9158 = vld [vmem:[#allocation3 + $0x290] sm:$0xff]
  %v9159 = vld [vmem:[#allocation3 + $0x298] sm:$0xff]
  %v9160 = vld [vmem:[#allocation3 + $0x2a0] sm:$0xff]
  %v9161 = vld [vmem:[#allocation3 + $0x2a8] sm:$0xff]
  %v9162 = vld [vmem:[#allocation3 + $0x2b0] sm:$0xff]
  %v9163 = vld [vmem:[#allocation3 + $0x2b8] sm:$0xff]
  %v9164 = vld [vmem:[#allocation3 + $0x2c0] sm:$0xff]
  %v9165 = vld [vmem:[#allocation3 + $0x2c8] sm:$0xff]
  %v9166 = vld [vmem:[#allocation3 + $0x2d0] sm:$0xff]
  %v9167 = vld [vmem:[#allocation3 + $0x2d8] sm:$0xff]
  %v9168 = vld [vmem:[#allocation3 + $0x2e0] sm:$0xff]
  %v9169 = vld [vmem:[#allocation3 + $0x2e8] sm:$0xff]
  %v9170 = vld [vmem:[#allocation3 + $0x2f0] sm:$0xff]
  %v9171 = vld [vmem:[#allocation3 + $0x2f8] sm:$0xff]
  %v9172 = vld [vmem:[#allocation3 + $0x300] sm:$0xff]
  %v9173 = vld [vmem:[#allocation3 + $0x308] sm:$0xff]
  %v9174 = vld [vmem:[#allocation3 + $0x310] sm:$0xff]
  %v9175 = vld [vmem:[#allocation3 + $0x318] sm:$0xff]
  %v9176 = vld [vmem:[#allocation3 + $0x320] sm:$0xff]
  %v9177 = vld [vmem:[#allocation3 + $0x328] sm:$0xff]
  %v9178 = vld [vmem:[#allocation3 + $0x330] sm:$0xff]
  %v9179 = vld [vmem:[#allocation3 + $0x338] sm:$0xff]
  %v9180 = vld [vmem:[#allocation3 + $0x340] sm:$0xff]
  %v9181 = vld [vmem:[#allocation3 + $0x348] sm:$0xff]
  %v9182 = vld [vmem:[#allocation3 + $0x350] sm:$0xff]
  %v9183 = vld [vmem:[#allocation3 + $0x358] sm:$0xff]
  %v9184 = vld [vmem:[#allocation3 + $0x360] sm:$0xff]
  %v9185 = vld [vmem:[#allocation3 + $0x368] sm:$0xff]
  %v9186 = vld [vmem:[#allocation3 + $0x370] sm:$0xff]
  %v9187 = vld [vmem:[#allocation3 + $0x378] sm:$0xff]
  %v9188 = vld [vmem:[#allocation3 + $0x380] sm:$0xff]
  %v9189 = vld [vmem:[#allocation3 + $0x388] sm:$0xff]
  %v9190 = vld [vmem:[#allocation3 + $0x390] sm:$0xff]
  %v9191 = vld [vmem:[#allocation3 + $0x398] sm:$0xff]
  %v9192 = vld [vmem:[#allocation3 + $0x3a0] sm:$0xff]
  %v9193 = vld [vmem:[#allocation3 + $0x3a8] sm:$0xff]
  %v9194 = vld [vmem:[#allocation3 + $0x3b0] sm:$0xff]
  %v9195 = vld [vmem:[#allocation3 + $0x3b8] sm:$0xff]
  %v9196 = vld [vmem:[#allocation3 + $0x3c0] sm:$0xff]
  %v9197 = vld [vmem:[#allocation3 + $0x3c8] sm:$0xff]
  %v9198 = vld [vmem:[#allocation3 + $0x3d0] sm:$0xff]
  %v9199 = vld [vmem:[#allocation3 + $0x3d8] sm:$0xff]
  %v9200 = vld [vmem:[#allocation3 + $0x3e0] sm:$0xff]
  %v9201 = vld [vmem:[#allocation3 + $0x3e8] sm:$0xff]
  %v9202 = vld [vmem:[#allocation3 + $0x3f0] sm:$0xff]
  %v9203 = vld [vmem:[#allocation3 + $0x3f8] sm:$0xff]
  %v9204 = vld [vmem:[#allocation3 + $0x400] sm:$0xff]
  %v9205 = vld [vmem:[#allocation3 + $0x408] sm:$0xff]
  %v9206 = vld [vmem:[#allocation3 + $0x410] sm:$0xff]
  %v9207 = vld [vmem:[#allocation3 + $0x418] sm:$0xff]
  %v9208 = vld [vmem:[#allocation3 + $0x420] sm:$0xff]
  %v9209 = vld [vmem:[#allocation3 + $0x428] sm:$0xff]
  %v9210 = vld [vmem:[#allocation3 + $0x430] sm:$0xff]
  %v9211 = vld [vmem:[#allocation3 + $0x438] sm:$0xff]
  %v9212 = vld [vmem:[#allocation3 + $0x440] sm:$0xff]
  %v9213 = vld [vmem:[#allocation3 + $0x448] sm:$0xff]
  %v9214 = vld [vmem:[#allocation3 + $0x450] sm:$0xff]
  %v9215 = vld [vmem:[#allocation3 + $0x458] sm:$0xff]
  %v9216 = vld [vmem:[#allocation3 + $0x460] sm:$0xff]
  %v9217 = vld [vmem:[#allocation3 + $0x468] sm:$0xff]
  %v9218 = vld [vmem:[#allocation3 + $0x470] sm:$0xff]
  %v9219 = vld [vmem:[#allocation3 + $0x478] sm:$0xff]
  %v9220 = vld [vmem:[#allocation3 + $0x480] sm:$0xff]
  %v9221 = vld [vmem:[#allocation3 + $0x488] sm:$0xff]
  %v9222 = vld [vmem:[#allocation3 + $0x490] sm:$0xff]
  %v9223 = vld [vmem:[#allocation3 + $0x498] sm:$0xff]
  %v9224 = vld [vmem:[#allocation3 + $0x4a0] sm:$0xff]
  %v9225 = vld [vmem:[#allocation3 + $0x4a8] sm:$0xff]
  %v9226 = vld [vmem:[#allocation3 + $0x4b0] sm:$0xff]
  %v9227 = vld [vmem:[#allocation3 + $0x4b8] sm:$0xff]
  %v9228 = vld [vmem:[#allocation3 + $0x4c0] sm:$0xff]
  %v9229 = vld [vmem:[#allocation3 + $0x4c8] sm:$0xff]
  %v9230 = vld [vmem:[#allocation3 + $0x4d0] sm:$0xff]
  %v9231 = vld [vmem:[#allocation3 + $0x4d8] sm:$0xff]
  %v9232 = vld [vmem:[#allocation3 + $0x4e0] sm:$0xff]
  %v9233 = vld [vmem:[#allocation3 + $0x4e8] sm:$0xff]
  %v9234 = vld [vmem:[#allocation3 + $0x4f0] sm:$0xff]
  %v9235 = vld [vmem:[#allocation3 + $0x4f8] sm:$0xff]
  %v9236 = vld [vmem:[#allocation3 + $0x500] sm:$0xff]
  %v9237 = vld [vmem:[#allocation3 + $0x508] sm:$0xff]
  %v9238 = vld [vmem:[#allocation3 + $0x510] sm:$0xff]
  %v9239 = vld [vmem:[#allocation3 + $0x518] sm:$0xff]
  %v9240 = vld [vmem:[#allocation3 + $0x520] sm:$0xff]
  %v9241 = vld [vmem:[#allocation3 + $0x528] sm:$0xff]
  %v9242 = vld [vmem:[#allocation3 + $0x530] sm:$0xff]
  %v9243 = vld [vmem:[#allocation3 + $0x538] sm:$0xff]
  %v9244 = vld [vmem:[#allocation3 + $0x540] sm:$0xff]
  %v9245 = vld [vmem:[#allocation3 + $0x548] sm:$0xff]
  %v9246 = vld [vmem:[#allocation3 + $0x550] sm:$0xff]
  %v9247 = vld [vmem:[#allocation3 + $0x558] sm:$0xff]
  %v9248 = vld [vmem:[#allocation3 + $0x560] sm:$0xff]
  %v9249 = vld [vmem:[#allocation3 + $0x568] sm:$0xff]
  %v9250 = vld [vmem:[#allocation3 + $0x570] sm:$0xff]
  %v9251 = vld [vmem:[#allocation3 + $0x578] sm:$0xff]
  %v9252 = vld [vmem:[#allocation3 + $0x580] sm:$0xff]
  %v9253 = vld [vmem:[#allocation3 + $0x588] sm:$0xff]
  %v9254 = vld [vmem:[#allocation3 + $0x590] sm:$0xff]
  %v9255 = vld [vmem:[#allocation3 + $0x598] sm:$0xff]
  %v9256 = vld [vmem:[#allocation3 + $0x5a0] sm:$0xff]
  %v9257 = vld [vmem:[#allocation3 + $0x5a8] sm:$0xff]
  %v9258 = vld [vmem:[#allocation3 + $0x5b0] sm:$0xff]
  %v9259 = vld [vmem:[#allocation3 + $0x5b8] sm:$0xff]
  %v9260 = vld [vmem:[#allocation3 + $0x5c0] sm:$0xff]
  %v9261 = vld [vmem:[#allocation3 + $0x5c8] sm:$0xff]
  %v9262 = vld [vmem:[#allocation3 + $0x5d0] sm:$0xff]
  %v9263 = vld [vmem:[#allocation3 + $0x5d8] sm:$0xff]
  %v9264 = vld [vmem:[#allocation3 + $0x5e0] sm:$0xff]
  %v9265 = vld [vmem:[#allocation3 + $0x5e8] sm:$0xff]
  %v9266 = vld [vmem:[#allocation3 + $0x5f0] sm:$0xff]
  %v9267 = vld [vmem:[#allocation3 + $0x5f8] sm:$0xff]
  %v9268 = vld [vmem:[#allocation3 + $0x600] sm:$0xff]
  %v9269 = vld [vmem:[#allocation3 + $0x608] sm:$0xff]
  %v9270 = vld [vmem:[#allocation3 + $0x610] sm:$0xff]
  %v9271 = vld [vmem:[#allocation3 + $0x618] sm:$0xff]
  %v9272 = vld [vmem:[#allocation3 + $0x620] sm:$0xff]
  %v9273 = vld [vmem:[#allocation3 + $0x628] sm:$0xff]
  %v9274 = vld [vmem:[#allocation3 + $0x630] sm:$0xff]
  %v9275 = vld [vmem:[#allocation3 + $0x638] sm:$0xff]
  %v9276 = vld [vmem:[#allocation3 + $0x640] sm:$0xff]
  %v9277 = vld [vmem:[#allocation3 + $0x648] sm:$0xff]
  %v9278 = vld [vmem:[#allocation3 + $0x650] sm:$0xff]
  %v9279 = vld [vmem:[#allocation3 + $0x658] sm:$0xff]
  %v9280 = vld [vmem:[#allocation3 + $0x660] sm:$0xff]
  %v9281 = vld [vmem:[#allocation3 + $0x668] sm:$0xff]
  %v9282 = vld [vmem:[#allocation3 + $0x670] sm:$0xff]
  %v9283 = vld [vmem:[#allocation3 + $0x678] sm:$0xff]
  %v9284 = vld [vmem:[#allocation3 + $0x680] sm:$0xff]
  %v9285 = vld [vmem:[#allocation3 + $0x688] sm:$0xff]
  %v9286 = vld [vmem:[#allocation3 + $0x690] sm:$0xff]
  %v9287 = vld [vmem:[#allocation3 + $0x698] sm:$0xff]
  %v9288 = vld [vmem:[#allocation3 + $0x6a0] sm:$0xff]
  %v9289 = vld [vmem:[#allocation3 + $0x6a8] sm:$0xff]
  %v9290 = vld [vmem:[#allocation3 + $0x6b0] sm:$0xff]
  %v9291 = vld [vmem:[#allocation3 + $0x6b8] sm:$0xff]
  %9293 = vset.pattern.permute.xlu0 4
  %9294 = vperm.xlu0 %9293, %v5495
  %v9295 = vpop.permute.xlu0 %9294
  %v9298 = vsel %vm5135, %v9075, 0
  %9300 = vmatprep.subr.mxu0 %v9077
  %9301 = vmatpush1.msra.mxu0 %v9076
  %9302 = vmatprep.subr.mxu0 %v9085
  %9303 = vmatpush1.msra.mxu0 %v9084
  %9304 = vmatprep.subr.mxu0 %v9093
  %9305 = vmatpush1.msra.mxu0 %v9092
  %9306 = vmatprep.subr.mxu0 %v9101
  %9307 = vmatpush1.msra.mxu0 %v9100
  %9308 = vmatprep.subr.mxu0 %v9109
  %9309 = vmatpush1.msra.mxu0 %v9108
  %9310 = vmatprep.subr.mxu0 %v9117
  %9311 = vmatpush1.msra.mxu0 %v9116
  %9312 = vmatprep.subr.mxu0 %v9125
  %9313 = vmatpush1.msra.mxu0 %v9124
  %9314 = vmatprep.subr.mxu0 %v9133
  %9315 = vmatpush1.msra.mxu0 %v9132
  %9316 = vmatprep.subr.mxu0 %v9141
  %9317 = vmatpush1.msra.mxu0 %v9140
  %9318 = vmatprep.subr.mxu0 %v9149
  %9319 = vmatpush1.msra.mxu0 %v9148
  %9320 = vmatprep.subr.mxu0 %v9157
  %9321 = vmatpush1.msra.mxu0 %v9156
  %9322 = vmatprep.subr.mxu0 %v9165
  %9323 = vmatpush1.msra.mxu0 %v9164
  %9324 = vmatprep.subr.mxu0 %v9173
  %9325 = vmatpush1.msra.mxu0 %v9172
  %9326 = vmatprep.subr.mxu0 %v9181
  %9327 = vmatpush1.msra.mxu0 %v9180
  %9328 = vmatprep.subr.mxu0 %v9189
  %9329 = vmatpush1.msra.mxu0 %v9188
  %9330 = vmatprep.subr.mxu0 %v9197
  %9331 = vmatpush1.msra.mxu0 %v9196
  %9332 = vmatprep.subr.mxu0 %v9205
  %9333 = vmatpush1.msra.mxu0 %v9204
  %9334 = vmatprep.subr.mxu0 %v9213
  %9335 = vmatpush1.msra.mxu0 %v9212
  %9336 = vmatprep.subr.mxu0 %v9221
  %9337 = vmatpush1.msra.mxu0 %v9220
  %9338 = vmatprep.subr.mxu0 %v9229
  %9339 = vmatpush1.msra.mxu0 %v9228
  %9340 = vmatprep.subr.mxu0 %v9237
  %9341 = vmatpush1.msra.mxu0 %v9236
  %9342 = vmatprep.subr.mxu0 %v9245
  %9343 = vmatpush1.msra.mxu0 %v9244
  %9344 = vmatprep.subr.mxu0 %v9253
  %9345 = vmatpush1.msra.mxu0 %v9252
  %9346 = vmatprep.subr.mxu0 %v9261
  %9347 = vmatpush1.msra.mxu0 %v9260
  %9348 = vmatprep.subr.mxu0 %v9269
  %9349 = vmatpush1.msra.mxu0 %v9268
  %9350 = vmatprep.subr.mxu0 %v9277
  %9351 = vmatpush1.msra.mxu0 %v9276
  %9352 = vmatprep.subr.mxu0 %v9285
  %9353 = vmatpush1.msra.mxu0 %v9284
  %9354 = vmatprep.subr.mxu0 0.0
  %9355 = vmatpush1.msra.mxu0 0.0
  %9356 = vmatprep.subr.mxu0 0.0
  %9357 = vmatpush1.msra.mxu0 0.0
  %9358 = vmatprep.subr.mxu0 0.0
  %9359 = vmatpush1.msra.mxu0 0.0
  %9360 = vmatprep.subr.mxu0 0.0
  %9361 = vmatpush1.msra.mxu0 0.0
  %9362 = vmatprep.subr.mxu0 0.0
  %9363 = vmatpush1.msra.mxu0 0.0
  %9364 = vmatprep.mubr.f32.mxu0 %v9298
  %9365 = vmatmul.mubr.f32.gmra.mrb[0].mxu0 %v9074
  %v9366 = vpop.f32.mrb[0].mxu0
  %v9367 = vadd.f32 %v9295, %v9366
  %v9368 = vpop.f32.mrb[0].mxu0
  %v9369 = vadd.f32 %v9295, %v9368
  %9370 = vdwg.mxu0
  %9371 = vmatprep.subr.mxu0 %v9079
  %9372 = vmatpush1.msra.mxu0 %v9078
  %9373 = vmatprep.subr.mxu0 %v9087
  %9374 = vmatpush1.msra.mxu0 %v9086
  %9375 = vmatprep.subr.mxu0 %v9095
  %9376 = vmatpush1.msra.mxu0 %v9094
  %9377 = vmatprep.subr.mxu0 %v9103
  %9378 = vmatpush1.msra.mxu0 %v9102
  %9379 = vmatprep.subr.mxu0 %v9111
  %9380 = vmatpush1.msra.mxu0 %v9110
  %9381 = vmatprep.subr.mxu0 %v9119
  %9382 = vmatpush1.msra.mxu0 %v9118
  %9383 = vmatprep.subr.mxu0 %v9127
  %9384 = vmatpush1.msra.mxu0 %v9126
  %9385 = vmatprep.subr.mxu0 %v9135
  %9386 = vmatpush1.msra.mxu0 %v9134
  %9387 = vmatprep.subr.mxu0 %v9143
  %9388 = vmatpush1.msra.mxu0 %v9142
  %9389 = vmatprep.subr.mxu0 %v9151
  %9390 = vmatpush1.msra.mxu0 %v9150
  %9391 = vmatprep.subr.mxu0 %v9159
  %9392 = vmatpush1.msra.mxu0 %v9158
  %9393 = vmatprep.subr.mxu0 %v9167
  %9394 = vmatpush1.msra.mxu0 %v9166
  %9395 = vmatprep.subr.mxu0 %v9175
  %9396 = vmatpush1.msra.mxu0 %v9174
  %9397 = vmatprep.subr.mxu0 %v9183
  %9398 = vmatpush1.msra.mxu0 %v9182
  %9399 = vmatprep.subr.mxu0 %v9191
  %9400 = vmatpush1.msra.mxu0 %v9190
  %9401 = vmatprep.subr.mxu0 %v9199
  %9402 = vmatpush1.msra.mxu0 %v9198
  %9403 = vmatprep.subr.mxu0 %v9207
  %9404 = vmatpush1.msra.mxu0 %v9206
  %9405 = vmatprep.subr.mxu0 %v9215
  %9406 = vmatpush1.msra.mxu0 %v9214
  %9407 = vmatprep.subr.mxu0 %v9223
  %9408 = vmatpush1.msra.mxu0 %v9222
  %9409 = vmatprep.subr.mxu0 %v9231
  %9410 = vmatpush1.msra.mxu0 %v9230
  %9411 = vmatprep.subr.mxu0 %v9239
  %9412 = vmatpush1.msra.mxu0 %v9238
  %9413 = vmatprep.subr.mxu0 %v9247
  %9414 = vmatpush1.msra.mxu0 %v9246
  %9415 = vmatprep.subr.mxu0 %v9255
  %9416 = vmatpush1.msra.mxu0 %v9254
  %9417 = vmatprep.subr.mxu0 %v9263
  %9418 = vmatpush1.msra.mxu0 %v9262
  %9419 = vmatprep.subr.mxu0 %v9271
  %9420 = vmatpush1.msra.mxu0 %v9270
  %9421 = vmatprep.subr.mxu0 %v9279
  %9422 = vmatpush1.msra.mxu0 %v9278
  %9423 = vmatprep.subr.mxu0 %v9287
  %9424 = vmatpush1.msra.mxu0 %v9286
  %9425 = vmatprep.subr.mxu0 0.0
  %9426 = vmatpush1.msra.mxu0 0.0
  %9427 = vmatprep.subr.mxu0 0.0
  %9428 = vmatpush1.msra.mxu0 0.0
  %9429 = vmatprep.subr.mxu0 0.0
  %9430 = vmatpush1.msra.mxu0 0.0
  %9431 = vmatprep.subr.mxu0 0.0
  %9432 = vmatpush1.msra.mxu0 0.0
  %9433 = vmatprep.subr.mxu0 0.0
  %9434 = vmatpush1.msra.mxu0 0.0
  %9435 = vmatprep.mubr.f32.mxu0 %v9298
  %9436 = vmatmul.mubr.f32.gmra.mrb[0].mxu0 %v9074
  %v9437 = vpop.f32.mrb[0].mxu0
  %v9438 = vadd.f32 %v9295, %v9437
  %v9439 = vpop.f32.mrb[0].mxu0
  %v9440 = vadd.f32 %v9295, %v9439
  %9441 = vdwg.mxu0
  %9442 = vmatprep.subr.mxu0 %v9081
  %9443 = vmatpush1.msra.mxu0 %v9080
  %9444 = vmatprep.subr.mxu0 %v9089
  %9445 = vmatpush1.msra.mxu0 %v9088
  %9446 = vmatprep.subr.mxu0 %v9097
  %9447 = vmatpush1.msra.mxu0 %v9096
  %9448 = vmatprep.subr.mxu0 %v9105
  %9449 = vmatpush1.msra.mxu0 %v9104
  %9450 = vmatprep.subr.mxu0 %v9113
  %9451 = vmatpush1.msra.mxu0 %v9112
  %9452 = vmatprep.subr.mxu0 %v9121
  %9453 = vmatpush1.msra.mxu0 %v9120
  %9454 = vmatprep.subr.mxu0 %v9129
  %9455 = vmatpush1.msra.mxu0 %v9128
  %9456 = vmatprep.subr.mxu0 %v9137
  %9457 = vmatpush1.msra.mxu0 %v9136
  %9458 = vmatprep.subr.mxu0 %v9145
  %9459 = vmatpush1.msra.mxu0 %v9144
  %9460 = vmatprep.subr.mxu0 %v9153
  %9461 = vmatpush1.msra.mxu0 %v9152
  %9462 = vmatprep.subr.mxu0 %v9161
  %9463 = vmatpush1.msra.mxu0 %v9160
  %9464 = vmatprep.subr.mxu0 %v9169
  %9465 = vmatpush1.msra.mxu0 %v9168
  %9466 = vmatprep.subr.mxu0 %v9177
  %9467 = vmatpush1.msra.mxu0 %v9176
  %9468 = vmatprep.subr.mxu0 %v9185
  %9469 = vmatpush1.msra.mxu0 %v9184
  %9470 = vmatprep.subr.mxu0 %v9193
  %9471 = vmatpush1.msra.mxu0 %v9192
  %9472 = vmatprep.subr.mxu0 %v9201
  %9473 = vmatpush1.msra.mxu0 %v9200
  %9474 = vmatprep.subr.mxu0 %v9209
  %9475 = vmatpush1.msra.mxu0 %v9208
  %9476 = vmatprep.subr.mxu0 %v9217
  %9477 = vmatpush1.msra.mxu0 %v9216
  %9478 = vmatprep.subr.mxu0 %v9225
  %9479 = vmatpush1.msra.mxu0 %v9224
  %9480 = vmatprep.subr.mxu0 %v9233
  %9481 = vmatpush1.msra.mxu0 %v9232
  %9482 = vmatprep.subr.mxu0 %v9241
  %9483 = vmatpush1.msra.mxu0 %v9240
  %9484 = vmatprep.subr.mxu0 %v9249
  %9485 = vmatpush1.msra.mxu0 %v9248
  %9486 = vmatprep.subr.mxu0 %v9257
  %9487 = vmatpush1.msra.mxu0 %v9256
  %9488 = vmatprep.subr.mxu0 %v9265
  %9489 = vmatpush1.msra.mxu0 %v9264
  %9490 = vmatprep.subr.mxu0 %v9273
  %9491 = vmatpush1.msra.mxu0 %v9272
  %9492 = vmatprep.subr.mxu0 %v9281
  %9493 = vmatpush1.msra.mxu0 %v9280
  %9494 = vmatprep.subr.mxu0 %v9289
  %9495 = vmatpush1.msra.mxu0 %v9288
  %9496 = vmatprep.subr.mxu0 0.0
  %9497 = vmatpush1.msra.mxu0 0.0
  %9498 = vmatprep.subr.mxu0 0.0
  %9499 = vmatpush1.msra.mxu0 0.0
  %9500 = vmatprep.subr.mxu0 0.0
  %9501 = vmatpush1.msra.mxu0 0.0
  %9502 = vmatprep.subr.mxu0 0.0
  %9503 = vmatpush1.msra.mxu0 0.0
  %9504 = vmatprep.subr.mxu0 0.0
  %9505 = vmatpush1.msra.mxu0 0.0
  %9506 = vmatprep.mubr.f32.mxu0 %v9298
  %9507 = vmatmul.mubr.f32.gmra.mrb[0].mxu0 %v9074
  %v9508 = vpop.f32.mrb[0].mxu0
  %v9509 = vadd.f32 %v9295, %v9508
  %v9510 = vpop.f32.mrb[0].mxu0
  %v9511 = vadd.f32 %v9295, %v9510
  %9512 = vdwg.mxu0
  %9513 = vmatprep.subr.mxu0 %v9083
  %9514 = vmatpush1.msra.mxu0 %v9082
  %9515 = vmatprep.subr.mxu0 %v9091
  %9516 = vmatpush1.msra.mxu0 %v9090
  %9517 = vmatprep.subr.mxu0 %v9099
  %9518 = vmatpush1.msra.mxu0 %v9098
  %9519 = vmatprep.subr.mxu0 %v9107
  %9520 = vmatpush1.msra.mxu0 %v9106
  %9521 = vmatprep.subr.mxu0 %v9115
  %9522 = vmatpush1.msra.mxu0 %v9114
  %9523 = vmatprep.subr.mxu0 %v9123
  %9524 = vmatpush1.msra.mxu0 %v9122
  %9525 = vmatprep.subr.mxu0 %v9131
  %9526 = vmatpush1.msra.mxu0 %v9130
  %9527 = vmatprep.subr.mxu0 %v9139
  %9528 = vmatpush1.msra.mxu0 %v9138
  %9529 = vmatprep.subr.mxu0 %v9147
  %9530 = vmatpush1.msra.mxu0 %v9146
  %9531 = vmatprep.subr.mxu0 %v9155
  %9532 = vmatpush1.msra.mxu0 %v9154
  %9533 = vmatprep.subr.mxu0 %v9163
  %9534 = vmatpush1.msra.mxu0 %v9162
  %9535 = vmatprep.subr.mxu0 %v9171
  %9536 = vmatpush1.msra.mxu0 %v9170
  %9537 = vmatprep.subr.mxu0 %v9179
  %9538 = vmatpush1.msra.mxu0 %v9178
  %9539 = vmatprep.subr.mxu0 %v9187
  %9540 = vmatpush1.msra.mxu0 %v9186
  %9541 = vmatprep.subr.mxu0 %v9195
  %9542 = vmatpush1.msra.mxu0 %v9194
  %9543 = vmatprep.subr.mxu0 %v9203
  %9544 = vmatpush1.msra.mxu0 %v9202
  %9545 = vmatprep.subr.mxu0 %v9211
  %9546 = vmatpush1.msra.mxu0 %v9210
  %9547 = vmatprep.subr.mxu0 %v9219
  %9548 = vmatpush1.msra.mxu0 %v9218
  %9549 = vmatprep.subr.mxu0 %v9227
  %9550 = vmatpush1.msra.mxu0 %v9226
  %9551 = vmatprep.subr.mxu0 %v9235
  %9552 = vmatpush1.msra.mxu0 %v9234
  %9553 = vmatprep.subr.mxu0 %v9243
  %9554 = vmatpush1.msra.mxu0 %v9242
  %9555 = vmatprep.subr.mxu0 %v9251
  %9556 = vmatpush1.msra.mxu0 %v9250
  %9557 = vmatprep.subr.mxu0 %v9259
  %9558 = vmatpush1.msra.mxu0 %v9258
  %9559 = vmatprep.subr.mxu0 %v9267
  %9560 = vmatpush1.msra.mxu0 %v9266
  %9561 = vmatprep.subr.mxu0 %v9275
  %9562 = vmatpush1.msra.mxu0 %v9274
  %9563 = vmatprep.subr.mxu0 %v9283
  %9564 = vmatpush1.msra.mxu0 %v9282
  %9565 = vmatprep.subr.mxu0 %v9291
  %9566 = vmatpush1.msra.mxu0 %v9290
  %9567 = vmatprep.subr.mxu0 0.0
  %9568 = vmatpush1.msra.mxu0 0.0
  %9569 = vmatprep.subr.mxu0 0.0
  %9570 = vmatpush1.msra.mxu0 0.0
  %9571 = vmatprep.subr.mxu0 0.0
  %9572 = vmatpush1.msra.mxu0 0.0
  %9573 = vmatprep.subr.mxu0 0.0
  %9574 = vmatpush1.msra.mxu0 0.0
  %9575 = vmatprep.subr.mxu0 0.0
  %9576 = vmatpush1.msra.mxu0 0.0
  %9577 = vmatprep.mubr.f32.mxu0 %v9298
  %9578 = vmatmul.mubr.f32.gmra.mrb[0].mxu0 %v9074
  %v9579 = vpop.f32.mrb[0].mxu0
  %v9580 = vadd.f32 %v9295, %v9579
  %v9581 = vpop.f32.mrb[0].mxu0
  %v9582 = vadd.f32 %v9295, %v9581
  %9583 = vdwg.mxu0
  %v9584 = vadd.f32 %v9367, %v9369
  %v9585 = vadd.f32 %v9584, %v9438
  %v9586 = vadd.f32 %v9585, %v9440
  %v9587 = vadd.f32 %v9586, %v9509
  %v9588 = vadd.f32 %v9587, %v9511
  %v9589 = vadd.f32 %v9588, %v9580
  %v9590 = vadd.f32 %v9589, %v9582
  %9591 = vadd.xlane.f32.xlu0 %v9590
  %v9592 = vpop.xlane.xlu0 %9591
  %v9593 = vmul.f32 %v9592, 0.0009765625
  %v9594 = vsub.f32 %v9367, %v9593
  %v9595 = vsub.f32 %v9369, %v9593
  %v9596 = vsub.f32 %v9438, %v9593
  %v9597 = vsub.f32 %v9440, %v9593
  %v9598 = vsub.f32 %v9509, %v9593
  %v9599 = vsub.f32 %v9511, %v9593
  %v9600 = vsub.f32 %v9580, %v9593
  %v9601 = vsub.f32 %v9582, %v9593
  %v9602 = vmul.f32 %v9594, %v9594
  %v9603 = vmul.f32 %v9595, %v9595
  %v9604 = vmul.f32 %v9596, %v9596
  %v9605 = vmul.f32 %v9597, %v9597
  %v9606 = vmul.f32 %v9598, %v9598
  %v9607 = vmul.f32 %v9599, %v9599
  %v9608 = vmul.f32 %v9600, %v9600
  %v9609 = vmul.f32 %v9601, %v9601
  %v9610 = vadd.f32 %v9602, %v9603
  %v9611 = vadd.f32 %v9610, %v9604
  %v9612 = vadd.f32 %v9611, %v9605
  %v9613 = vadd.f32 %v9612, %v9606
  %v9614 = vadd.f32 %v9613, %v9607
  %v9615 = vadd.f32 %v9614, %v9608
  %v9616 = vadd.f32 %v9615, %v9609
  %9617 = vadd.xlane.f32.xlu0 %v9616
  %v9618 = vpop.xlane.xlu0 %9617
  %v9619 = vmul.f32 %v9618, 0.0009765625
  %v9620 = vadd.f32 %v9619, 1e-05
  %v9621 = vrsqrt.pop %v9620
  %v9622 = vmul.f32 %v5495, %v9621
  %9624 = vset.pattern.permute.xlu0 5
  %9625 = vperm.xlu0 %9624, %v9622
  %v9626 = vpop.permute.xlu0 %9625
  %v9628 = vmul.f32 %v9594, %v9626
  %v9629 = vmul.f32 %v9595, %v9626
  %v9630 = vmul.f32 %v9596, %v9626
  %v9631 = vmul.f32 %v9597, %v9626
  %v9632 = vmul.f32 %v9598, %v9626
  %v9633 = vmul.f32 %v9599, %v9626
  %v9634 = vmul.f32 %v9600, %v9626
  %v9635 = vmul.f32 %v9601, %v9626
  %9636 = vset.pattern.permute.xlu0 6
  %9637 = vperm.xlu0 %9636, %v5495
  %v9638 = vpop.permute.xlu0 %9637
  %v9640 = vadd.f32 %v9628, %v9638
  %v9641 = vadd.f32 %v9629, %v9638
  %v9642 = vadd.f32 %v9630, %v9638
  %v9643 = vadd.f32 %v9631, %v9638
  %v9644 = vadd.f32 %v9632, %v9638
  %v9645 = vadd.f32 %v9633, %v9638
  %v9646 = vadd.f32 %v9634, %v9638
  %v9647 = vadd.f32 %v9635, %v9638
  %v9648 = vmax.f32 %v9640, 0.0
  %v9649 = vmax.f32 %v9641, 0.0
  %v9650 = vmax.f32 %v9642, 0.0
  %v9651 = vmax.f32 %v9643, 0.0
  %v9652 = vmax.f32 %v9644, 0.0
  %v9653 = vmax.f32 %v9645, 0.0
  %v9654 = vmax.f32 %v9646, 0.0
  %v9655 = vmax.f32 %v9647, 0.0
  %9656 = vst [vmem:[%s8] sm:$0xff] %v9648
  %9657 = vst [vmem:[%s8 + $0x8] sm:$0xff] %v9649
  %9658 = vst [vmem:[%s8 + $0x10] sm:$0xff] %v9650
  %9659 = vst [vmem:[%s8 + $0x18] sm:$0xff] %v9651
  %9660 = vst [vmem:[%s8 + $0x20] sm:$0xff] %v9652
  %9661 = vst [vmem:[%s8 + $0x28] sm:$0xff] %v9653
  %9662 = vst [vmem:[%s8 + $0x30] sm:$0xff] %v9654
  %9663 = vst [vmem:[%s8 + $0x38] sm:$0xff] %v9655
  // Predicated region
  $region34: #{up_forward.1} parent=0 // pred_check
    _
  $region35: #{up_forward.1} parent=0 // pred_check_branch
    %9665 = sbr.rel (0) target = $region37
  $region36: #{up_forward.1} parent=0 // pred_region
    _
  $region37: #{up_forward.1} parent=0 // pred_fallthru
    _
  // Predicated region
  $region38: #{up_forward.1} parent=0 // pred_check
    _
  $region39: #{up_forward.1} parent=0 // pred_check_branch
    %9667 = sbr.rel (0) target = $region41
  $region40: #{up_forward.1} parent=0 // pred_region
    _
  $region41: #{up_forward.1} parent=0 // pred_fallthru
    _

</llo_original>
